<compile_context>
chip_gen: v7x
topology: tpu7x:2x2x1
jax: 0.10.0
libtpu: 0.0.40
codegen_flags: <defaults>
</compile_context>

<pallas_src>
import numpy as np
import jax
import jax.numpy as jnp
from jax.experimental import pallas as pl
from jax.experimental.pallas import tpu as pltpu


# --------------------- host-side, one-time preparation --------------------- #

def _conv_tap_gathers(batch, h, w, k, stride, pad):
    """0/1 matrices G[t] such that (G[t] @ X) gathers, for kernel tap t=(kh,kw),
    the spatially shifted input rows (zero rows where the tap falls in padding).
    X rows are ordered (b, h, w); output rows are ordered (b, oh, ow)."""
    oh = (h + 2 * pad - k) // stride + 1
    ow = (w + 2 * pad - k) // stride + 1
    g = np.zeros((k * k, batch * oh * ow, batch * h * w), np.float32)
    for kh in range(k):
        for kw in range(k):
            t = kh * k + kw
            for b in range(batch):
                for i in range(oh):
                    for j in range(ow):
                        hi = i * stride + kh - pad
                        wj = j * stride + kw - pad
                        if 0 <= hi < h and 0 <= wj < w:
                            g[t, (b * oh + i) * ow + j, (b * h + hi) * w + wj] = 1.0
    return g


def prepare_params(params, batch):
    """Pre-transpose / pre-flatten / pre-cast all weights once (outside the jitted
    per-call path).  PyTorch layouts in: conv [OC, IC, kh, kw], linear [out, in]."""
    bf16, f32 = jnp.bfloat16, jnp.float32
    w2, w3 = params['w2'], params['w3']
    return {
        # conv1: [256, 32] with rows ordered (c, kh, kw) -- matches im2col columns.
        'w1': jnp.asarray(params['w1'].reshape(32, 4 * 8 * 8).T, bf16),
        'b1': jnp.asarray(params['b1'].reshape(1, 32), f32),
        # conv2 (k=4, s=2, p=1) on the pooled 10x10 map.
        'g2': jnp.asarray(_conv_tap_gathers(batch, 10, 10, 4, 2, 1), bf16),     # [16, B*25, B*100]
        'w2': jnp.asarray(jnp.transpose(w2, (2, 3, 1, 0)).reshape(16, 32, 64), bf16),
        'b2': jnp.asarray(params['b2'].reshape(1, 64), f32),
        # conv3 (k=3, s=1, p=1) on the 5x5 map.
        'g3': jnp.asarray(_conv_tap_gathers(batch, 5, 5, 3, 1, 1), bf16),       # [9, B*25, B*25]
        'w3': jnp.asarray(jnp.transpose(w3, (2, 3, 1, 0)).reshape(9, 64, 64), bf16),
        'b3': jnp.asarray(params['b3'].reshape(1, 64), f32),
        # fc head.
        'w_fc1': jnp.asarray(params['w_fc1'].T, bf16),                          # [1600, 256]
        'b_fc1': jnp.asarray(params['b_fc1'].reshape(1, -1), f32),
        'w_out': jnp.asarray(params['w_out'].T, bf16),                          # [256, A]
        'b_out': jnp.asarray(params['b_out'].reshape(1, -1), f32),
    }


# ------------------------------ Pallas kernels ------------------------------ #

def _conv_stack_kernel(col1_ref, w1_ref, b1_ref, g2_ref, w2_ref, b2_ref,
                       g3_ref, w3_ref, b3_ref, a3_ref):
    """conv1 + ReLU + 2x2 maxpool + conv2 + ReLU + conv3 + ReLU, fully in VMEM."""
    f32, bf16 = jnp.float32, jnp.bfloat16
    n_pool = col1_ref.shape[0] // 4          # B*100 pooled spatial positions

    # --- conv1 + ReLU, maxpool fused as max over the 4 contiguous row blocks ---
    w1 = w1_ref[...]
    pooled = None
    for p in range(4):
        blk = col1_ref[p * n_pool:(p + 1) * n_pool, :]               # [B*100, 256] bf16
        y = jnp.dot(blk, w1, preferred_element_type=f32) + b1_ref[...]
        y = jnp.maximum(y, 0.0)
        pooled = y if pooled is None else jnp.maximum(pooled, y)
    pooled = pooled.astype(bf16)                                     # [B*100, 32]

    # --- conv2 (k=4, s=2, p=1): sum over 16 taps of (gather @ x) @ w_tap ---
    acc2 = jnp.zeros((g2_ref.shape[1], w2_ref.shape[2]), f32)        # [B*25, 64]
    for t in range(g2_ref.shape[0]):
        xt = jnp.dot(g2_ref[t], pooled, preferred_element_type=f32).astype(bf16)
        acc2 = acc2 + jnp.dot(xt, w2_ref[t], preferred_element_type=f32)
    a2 = jnp.maximum(acc2 + b2_ref[...], 0.0).astype(bf16)           # [B*25, 64]

    # --- conv3 (k=3, s=1, p=1): same tap-sum scheme ---
    acc3 = jnp.zeros((g3_ref.shape[1], w3_ref.shape[2]), f32)        # [B*25, 64]
    for t in range(g3_ref.shape[0]):
        xt = jnp.dot(g3_ref[t], a2, preferred_element_type=f32).astype(bf16)
        acc3 = acc3 + jnp.dot(xt, w3_ref[t], preferred_element_type=f32)
    a3_ref[...] = jnp.maximum(acc3 + b3_ref[...], 0.0).astype(a3_ref.dtype)


def _fc_head_kernel(x_ref, w1_ref, b1_ref, w2_ref, b2_ref, o_ref):
    """fc1 + ReLU + out + softmax (dim=1), fully fused."""
    h = jnp.dot(x_ref[...], w1_ref[...], preferred_element_type=jnp.float32)
    h = jnp.maximum(h + b1_ref[...], 0.0).astype(jnp.bfloat16)
    logits = jnp.dot(h, w2_ref[...], preferred_element_type=jnp.float32) + b2_ref[...]
    m = jnp.max(logits, axis=1, keepdims=True)
    e = jnp.exp(logits - m)
    o_ref[...] = e * pl.reciprocal(jnp.sum(e, axis=1, keepdims=True), approx=True)


# ----------------------------- Pallas wrappers ------------------------------ #

_ARB = pltpu.CompilerParams(dimension_semantics=("arbitrary",))


def _full(shape):
    rank = len(shape)
    return pl.BlockSpec(shape, lambda i, _r=rank: (0,) * _r)


def conv_stack(col1, kp):
    s_out = kp['g2'].shape[1]                        # B*25
    return pl.pallas_call(
        _conv_stack_kernel,
        out_shape=jax.ShapeDtypeStruct((s_out, 64), jnp.bfloat16),
        grid=(1,),
        in_specs=[_full(col1.shape),
                  _full(kp['w1'].shape), _full(kp['b1'].shape),
                  _full(kp['g2'].shape), _full(kp['w2'].shape), _full(kp['b2'].shape),
                  _full(kp['g3'].shape), _full(kp['w3'].shape), _full(kp['b3'].shape)],
        out_specs=_full((s_out, 64)),
        compiler_params=_ARB,
    )(col1, kp['w1'], kp['b1'], kp['g2'], kp['w2'], kp['b2'],
      kp['g3'], kp['w3'], kp['b3'])


def fc_head(flat, kp):
    B, K = flat.shape
    H = kp['w_fc1'].shape[1]
    A = kp['w_out'].shape[1]
    return pl.pallas_call(
        _fc_head_kernel,
        out_shape=jax.ShapeDtypeStruct((B, A), jnp.float32),
        grid=(1,),
        in_specs=[_full((B, K)), _full((K, H)), _full((1, H)),
                  _full((H, A)), _full((1, A))],
        out_specs=_full((B, A)),
        compiler_params=_ARB,
    )(flat, kp['w_fc1'], kp['b_fc1'], kp['w_out'], kp['b_out'])


def _im2col_conv1_pooled_order(x):
    """im2col for conv1 (k=8, s=4, p=2), rows ordered (dh, dw, b, oh2, ow2) so that
    the in-kernel 2x2 maxpool is a max over 4 contiguous row blocks.
    Columns ordered (c, kh, kw) to match W1.reshape(32, 256)."""
    # TODO(synk): the stride-4 patch extraction stays as XLA glue; expressing it
    # inside the kernel would need strided lane gathers with no clean Pallas form.
    B, C, H, W = x.shape
    xp = jnp.pad(x, ((0, 0), (0, 0), (2, 2), (2, 2)))
    OH = OW = (H + 4 - 8) // 4 + 1                       # 20
    patches = []
    for kh in range(8):
        for kw in range(8):
            patches.append(jax.lax.slice(
                xp, (0, 0, kh, kw),
                (B, C, kh + (OH - 1) * 4 + 1, kw + (OW - 1) * 4 + 1),
                (1, 1, 4, 4)))                           # [B, C, 20, 20]
    col = jnp.stack(patches, axis=0).reshape(8, 8, B, C, OH, OW)
    col = col.transpose(2, 4, 5, 3, 0, 1)                # [B, 20, 20, C, 8, 8]
    col = col.reshape(B, 10, 2, 10, 2, C * 64)           # oh->(oh2,dh), ow->(ow2,dw)
    col = col.transpose(2, 4, 0, 1, 3, 5)                # [dh, dw, B, 10, 10, 256]
    return col.reshape(4 * B * 100, C * 64)              # [4*B*100, 256]


def net_policy_gradient_forward(x, kp):
    """Forward pass of NetPolicyGradient. x: [B, 4, 80, 80] f32 -> [B, N_ACTIONS]."""
    B = x.shape[0]
    col1 = _im2col_conv1_pooled_order(x).astype(jnp.bfloat16)   # [4*B*100, 256]
    a3 = conv_stack(col1, kp)                                   # [B*25, 64] bf16
    # torch.flatten(x, 1) flattens in (C, H, W) order: (b, hw, c) -> (b, c*25 + hw).
    flat = a3.reshape(B, 25, 64).transpose(0, 2, 1).reshape(B, 1600)
    return fc_head(flat, kp)                                    # [B, A] f32


# ---------------------------------- main ----------------------------------- #

if __name__ == "__main__":
    N_ACTIONS = 2   # Flappy Bird: {no-op, flap}
    B = 2
    key = jax.random.PRNGKey(0)
    ks = jax.random.split(key, 11)

    # Deterministic synthetic parameters (PyTorch layouts: conv [OC, IC, kh, kw],
    # linear [out_features, in_features]).
    params = {
        'w1':    jax.random.normal(ks[0], (32, 4, 8, 8),      jnp.float32) * 0.05,
        'b1':    jax.random.normal(ks[1], (32,),              jnp.float32) * 0.05,
        'w2':    jax.random.normal(ks[2], (64, 32, 4, 4),     jnp.float32) * 0.05,
        'b2':    jax.random.normal(ks[3], (64,),              jnp.float32) * 0.05,
        'w3':    jax.random.normal(ks[4], (64, 64, 3, 3),     jnp.float32) * 0.05,
        'b3':    jax.random.normal(ks[5], (64,),              jnp.float32) * 0.05,
        'w_fc1': jax.random.normal(ks[6], (256, 1600),        jnp.float32) * 0.02,
        'b_fc1': jax.random.normal(ks[7], (256,),             jnp.float32) * 0.02,
        'w_out': jax.random.normal(ks[8], (N_ACTIONS, 256),   jnp.float32) * 0.05,
        'b_out': jax.random.normal(ks[9], (N_ACTIONS,),       jnp.float32) * 0.05,
    }

    # Input: batch=2, 4 stacked frames, 80x80 (spatial size forced by fc1 = 1600).
    x = jax.random.normal(ks[10], (B, 4, 80, 80), jnp.float32)

    kp = prepare_params(params, B)            # one-time weight prep (hoisted)
    fwd = jax.jit(net_policy_gradient_forward)
    probs = jax.block_until_ready(fwd(x, kp))

    assert probs.shape == (B, N_ACTIONS)
    assert bool(jnp.all(jnp.isfinite(probs)))
    # approx reciprocal in the softmax -> allow a small tolerance on the row sums
    assert bool(jnp.allclose(jnp.sum(probs, axis=1), 1.0, atol=1e-2))
    print("KERNEL_OK")
</pallas_src>

<mosaic_0001>
module attributes {stable_mosaic.version = 11 : i64} {
  func.func @_conv_stack_kernel(%arg0: i32, %arg1: memref<800x256xbf16, #tpu.memory_space<vmem>>, %arg2: memref<256x32xbf16, #tpu.memory_space<vmem>>, %arg3: memref<1x32xf32, #tpu.memory_space<vmem>>, %arg4: memref<16x50x200xbf16, #tpu.memory_space<vmem>>, %arg5: memref<16x32x64xbf16, #tpu.memory_space<vmem>>, %arg6: memref<1x64xf32, #tpu.memory_space<vmem>>, %arg7: memref<9x50x50xbf16, #tpu.memory_space<vmem>>, %arg8: memref<9x64x64xbf16, #tpu.memory_space<vmem>>, %arg9: memref<1x64xf32, #tpu.memory_space<vmem>>, %arg10: memref<50x64xbf16, #tpu.memory_space<vmem>>) attributes {dimension_semantics = [#tpu.dimension_semantics<arbitrary>], iteration_bounds = array<i64: 1>, scalar_prefetch = 0 : i64, scratch_operands = 0 : i64, tpu.core_type = #tpu.core_type<tc>, window_params = [{pipeline_mode = #tpu.pipeline_mode<synchronous>, transform_indices = @transform_0, window_bounds = array<i64: 800, 256>}, {pipeline_mode = #tpu.pipeline_mode<synchronous>, transform_indices = @transform_1, window_bounds = array<i64: 256, 32>}, {pipeline_mode = #tpu.pipeline_mode<synchronous>, transform_indices = @transform_2, window_bounds = array<i64: 1, 32>}, {pipeline_mode = #tpu.pipeline_mode<synchronous>, transform_indices = @transform_3, window_bounds = array<i64: 16, 50, 200>}, {pipeline_mode = #tpu.pipeline_mode<synchronous>, transform_indices = @transform_4, window_bounds = array<i64: 16, 32, 64>}, {pipeline_mode = #tpu.pipeline_mode<synchronous>, transform_indices = @transform_5, window_bounds = array<i64: 1, 64>}, {pipeline_mode = #tpu.pipeline_mode<synchronous>, transform_indices = @transform_6, window_bounds = array<i64: 9, 50, 50>}, {pipeline_mode = #tpu.pipeline_mode<synchronous>, transform_indices = @transform_7, window_bounds = array<i64: 9, 64, 64>}, {pipeline_mode = #tpu.pipeline_mode<synchronous>, transform_indices = @transform_8, window_bounds = array<i64: 1, 64>}, {pipeline_mode = #tpu.pipeline_mode<synchronous>, transform_indices = @transform_9, window_bounds = array<i64: 50, 64>}]} {
    %c0 = arith.constant 0 : index
    %c0_0 = arith.constant 0 : index
    %0 = vector.load %arg2[%c0, %c0_0] : memref<256x32xbf16, #tpu.memory_space<vmem>>, vector<256x32xbf16>
    %c0_1 = arith.constant 0 : index
    %c0_2 = arith.constant 0 : index
    %1 = vector.load %arg1[%c0_1, %c0_2] : memref<800x256xbf16, #tpu.memory_space<vmem>>, vector<200x256xbf16>
    %cst = arith.constant dense<0.000000e+00> : vector<200x32xf32>
    %2 = tpu.matmul %1, %0, %cst {dimension_numbers = #tpu.dot_dimension_numbers<[1], [0], [0], [1], [0, 0, 1, 1], [], []>} : vector<200x256xbf16>, vector<256x32xbf16>, vector<200x32xf32> -> vector<200x32xf32>
    %c0_3 = arith.constant 0 : index
    %c0_4 = arith.constant 0 : index
    %3 = vector.load %arg3[%c0_3, %c0_4] : memref<1x32xf32, #tpu.memory_space<vmem>>, vector<1x32xf32>
    %4 = vector.broadcast %3 : vector<1x32xf32> to vector<200x32xf32>
    %5 = arith.addf %2, %4 : vector<200x32xf32>
    %cst_5 = arith.constant 0.000000e+00 : f32
    %6 = vector.broadcast %cst_5 : f32 to vector<200x32xf32>
    %7 = arith.maximumf %5, %6 : vector<200x32xf32>
    %c200 = arith.constant 200 : index
    %c0_6 = arith.constant 0 : index
    %8 = vector.load %arg1[%c200, %c0_6] : memref<800x256xbf16, #tpu.memory_space<vmem>>, vector<200x256xbf16>
    %cst_7 = arith.constant dense<0.000000e+00> : vector<200x32xf32>
    %9 = tpu.matmul %8, %0, %cst_7 {dimension_numbers = #tpu.dot_dimension_numbers<[1], [0], [0], [1], [0, 0, 1, 1], [], []>} : vector<200x256xbf16>, vector<256x32xbf16>, vector<200x32xf32> -> vector<200x32xf32>
    %c0_8 = arith.constant 0 : index
    %c0_9 = arith.constant 0 : index
    %10 = vector.load %arg3[%c0_8, %c0_9] : memref<1x32xf32, #tpu.memory_space<vmem>>, vector<1x32xf32>
    %11 = vector.broadcast %10 : vector<1x32xf32> to vector<200x32xf32>
    %12 = arith.addf %9, %11 : vector<200x32xf32>
    %cst_10 = arith.constant 0.000000e+00 : f32
    %13 = vector.broadcast %cst_10 : f32 to vector<200x32xf32>
    %14 = arith.maximumf %12, %13 : vector<200x32xf32>
    %15 = arith.maximumf %7, %14 : vector<200x32xf32>
    %c400 = arith.constant 400 : index
    %c0_11 = arith.constant 0 : index
    %16 = vector.load %arg1[%c400, %c0_11] : memref<800x256xbf16, #tpu.memory_space<vmem>>, vector<200x256xbf16>
    %cst_12 = arith.constant dense<0.000000e+00> : vector<200x32xf32>
    %17 = tpu.matmul %16, %0, %cst_12 {dimension_numbers = #tpu.dot_dimension_numbers<[1], [0], [0], [1], [0, 0, 1, 1], [], []>} : vector<200x256xbf16>, vector<256x32xbf16>, vector<200x32xf32> -> vector<200x32xf32>
    %c0_13 = arith.constant 0 : index
    %c0_14 = arith.constant 0 : index
    %18 = vector.load %arg3[%c0_13, %c0_14] : memref<1x32xf32, #tpu.memory_space<vmem>>, vector<1x32xf32>
    %19 = vector.broadcast %18 : vector<1x32xf32> to vector<200x32xf32>
    %20 = arith.addf %17, %19 : vector<200x32xf32>
    %cst_15 = arith.constant 0.000000e+00 : f32
    %21 = vector.broadcast %cst_15 : f32 to vector<200x32xf32>
    %22 = arith.maximumf %20, %21 : vector<200x32xf32>
    %23 = arith.maximumf %15, %22 : vector<200x32xf32>
    %c600 = arith.constant 600 : index
    %c0_16 = arith.constant 0 : index
    %24 = vector.load %arg1[%c600, %c0_16] : memref<800x256xbf16, #tpu.memory_space<vmem>>, vector<200x256xbf16>
    %cst_17 = arith.constant dense<0.000000e+00> : vector<200x32xf32>
    %25 = tpu.matmul %24, %0, %cst_17 {dimension_numbers = #tpu.dot_dimension_numbers<[1], [0], [0], [1], [0, 0, 1, 1], [], []>} : vector<200x256xbf16>, vector<256x32xbf16>, vector<200x32xf32> -> vector<200x32xf32>
    %c0_18 = arith.constant 0 : index
    %c0_19 = arith.constant 0 : index
    %26 = vector.load %arg3[%c0_18, %c0_19] : memref<1x32xf32, #tpu.memory_space<vmem>>, vector<1x32xf32>
    %27 = vector.broadcast %26 : vector<1x32xf32> to vector<200x32xf32>
    %28 = arith.addf %25, %27 : vector<200x32xf32>
    %cst_20 = arith.constant 0.000000e+00 : f32
    %29 = vector.broadcast %cst_20 : f32 to vector<200x32xf32>
    %30 = arith.maximumf %28, %29 : vector<200x32xf32>
    %31 = arith.maximumf %23, %30 : vector<200x32xf32>
    %32 = arith.truncf %31 : vector<200x32xf32> to vector<200x32xbf16>
    %cst_21 = arith.constant 0.000000e+00 : f32
    %33 = vector.broadcast %cst_21 : f32 to vector<50x64xf32>
    %c0_22 = arith.constant 0 : index
    %c0_23 = arith.constant 0 : index
    %c0_24 = arith.constant 0 : index
    %34 = vector.load %arg4[%c0_22, %c0_23, %c0_24] : memref<16x50x200xbf16, #tpu.memory_space<vmem>>, vector<1x50x200xbf16>
    %35 = vector.shape_cast %34 : vector<1x50x200xbf16> to vector<50x200xbf16>
    %cst_25 = arith.constant dense<0.000000e+00> : vector<50x32xf32>
    %36 = tpu.matmul %35, %32, %cst_25 {dimension_numbers = #tpu.dot_dimension_numbers<[1], [0], [0], [1], [0, 0, 1, 1], [], []>} : vector<50x200xbf16>, vector<200x32xbf16>, vector<50x32xf32> -> vector<50x32xf32>
    %37 = arith.truncf %36 : vector<50x32xf32> to vector<50x32xbf16>
    %c0_26 = arith.constant 0 : index
    %c0_27 = arith.constant 0 : index
    %c0_28 = arith.constant 0 : index
    %38 = vector.load %arg5[%c0_26, %c0_27, %c0_28] : memref<16x32x64xbf16, #tpu.memory_space<vmem>>, vector<1x32x64xbf16>
    %39 = vector.shape_cast %38 : vector<1x32x64xbf16> to vector<32x64xbf16>
    %cst_29 = arith.constant dense<0.000000e+00> : vector<50x64xf32>
    %40 = tpu.matmul %37, %39, %cst_29 {dimension_numbers = #tpu.dot_dimension_numbers<[1], [0], [0], [1], [0, 0, 1, 1], [], []>} : vector<50x32xbf16>, vector<32x64xbf16>, vector<50x64xf32> -> vector<50x64xf32>
    %41 = arith.addf %33, %40 : vector<50x64xf32>
    %c1 = arith.constant 1 : index
    %c0_30 = arith.constant 0 : index
    %c0_31 = arith.constant 0 : index
    %42 = vector.load %arg4[%c1, %c0_30, %c0_31] : memref<16x50x200xbf16, #tpu.memory_space<vmem>>, vector<1x50x200xbf16>
    %43 = vector.shape_cast %42 : vector<1x50x200xbf16> to vector<50x200xbf16>
    %cst_32 = arith.constant dense<0.000000e+00> : vector<50x32xf32>
    %44 = tpu.matmul %43, %32, %cst_32 {dimension_numbers = #tpu.dot_dimension_numbers<[1], [0], [0], [1], [0, 0, 1, 1], [], []>} : vector<50x200xbf16>, vector<200x32xbf16>, vector<50x32xf32> -> vector<50x32xf32>
    %45 = arith.truncf %44 : vector<50x32xf32> to vector<50x32xbf16>
    %c1_33 = arith.constant 1 : index
    %c0_34 = arith.constant 0 : index
    %c0_35 = arith.constant 0 : index
    %46 = vector.load %arg5[%c1_33, %c0_34, %c0_35] : memref<16x32x64xbf16, #tpu.memory_space<vmem>>, vector<1x32x64xbf16>
    %47 = vector.shape_cast %46 : vector<1x32x64xbf16> to vector<32x64xbf16>
    %cst_36 = arith.constant dense<0.000000e+00> : vector<50x64xf32>
    %48 = tpu.matmul %45, %47, %cst_36 {dimension_numbers = #tpu.dot_dimension_numbers<[1], [0], [0], [1], [0, 0, 1, 1], [], []>} : vector<50x32xbf16>, vector<32x64xbf16>, vector<50x64xf32> -> vector<50x64xf32>
    %49 = arith.addf %41, %48 : vector<50x64xf32>
    %c2 = arith.constant 2 : index
    %c0_37 = arith.constant 0 : index
    %c0_38 = arith.constant 0 : index
    %50 = vector.load %arg4[%c2, %c0_37, %c0_38] : memref<16x50x200xbf16, #tpu.memory_space<vmem>>, vector<1x50x200xbf16>
    %51 = vector.shape_cast %50 : vector<1x50x200xbf16> to vector<50x200xbf16>
    %cst_39 = arith.constant dense<0.000000e+00> : vector<50x32xf32>
    %52 = tpu.matmul %51, %32, %cst_39 {dimension_numbers = #tpu.dot_dimension_numbers<[1], [0], [0], [1], [0, 0, 1, 1], [], []>} : vector<50x200xbf16>, vector<200x32xbf16>, vector<50x32xf32> -> vector<50x32xf32>
    %53 = arith.truncf %52 : vector<50x32xf32> to vector<50x32xbf16>
    %c2_40 = arith.constant 2 : index
    %c0_41 = arith.constant 0 : index
    %c0_42 = arith.constant 0 : index
    %54 = vector.load %arg5[%c2_40, %c0_41, %c0_42] : memref<16x32x64xbf16, #tpu.memory_space<vmem>>, vector<1x32x64xbf16>
    %55 = vector.shape_cast %54 : vector<1x32x64xbf16> to vector<32x64xbf16>
    %cst_43 = arith.constant dense<0.000000e+00> : vector<50x64xf32>
    %56 = tpu.matmul %53, %55, %cst_43 {dimension_numbers = #tpu.dot_dimension_numbers<[1], [0], [0], [1], [0, 0, 1, 1], [], []>} : vector<50x32xbf16>, vector<32x64xbf16>, vector<50x64xf32> -> vector<50x64xf32>
    %57 = arith.addf %49, %56 : vector<50x64xf32>
    %c3 = arith.constant 3 : index
    %c0_44 = arith.constant 0 : index
    %c0_45 = arith.constant 0 : index
    %58 = vector.load %arg4[%c3, %c0_44, %c0_45] : memref<16x50x200xbf16, #tpu.memory_space<vmem>>, vector<1x50x200xbf16>
    %59 = vector.shape_cast %58 : vector<1x50x200xbf16> to vector<50x200xbf16>
    %cst_46 = arith.constant dense<0.000000e+00> : vector<50x32xf32>
    %60 = tpu.matmul %59, %32, %cst_46 {dimension_numbers = #tpu.dot_dimension_numbers<[1], [0], [0], [1], [0, 0, 1, 1], [], []>} : vector<50x200xbf16>, vector<200x32xbf16>, vector<50x32xf32> -> vector<50x32xf32>
    %61 = arith.truncf %60 : vector<50x32xf32> to vector<50x32xbf16>
    %c3_47 = arith.constant 3 : index
    %c0_48 = arith.constant 0 : index
    %c0_49 = arith.constant 0 : index
    %62 = vector.load %arg5[%c3_47, %c0_48, %c0_49] : memref<16x32x64xbf16, #tpu.memory_space<vmem>>, vector<1x32x64xbf16>
    %63 = vector.shape_cast %62 : vector<1x32x64xbf16> to vector<32x64xbf16>
    %cst_50 = arith.constant dense<0.000000e+00> : vector<50x64xf32>
    %64 = tpu.matmul %61, %63, %cst_50 {dimension_numbers = #tpu.dot_dimension_numbers<[1], [0], [0], [1], [0, 0, 1, 1], [], []>} : vector<50x32xbf16>, vector<32x64xbf16>, vector<50x64xf32> -> vector<50x64xf32>
    %65 = arith.addf %57, %64 : vector<50x64xf32>
    %c4 = arith.constant 4 : index
    %c0_51 = arith.constant 0 : index
    %c0_52 = arith.constant 0 : index
    %66 = vector.load %arg4[%c4, %c0_51, %c0_52] : memref<16x50x200xbf16, #tpu.memory_space<vmem>>, vector<1x50x200xbf16>
    %67 = vector.shape_cast %66 : vector<1x50x200xbf16> to vector<50x200xbf16>
    %cst_53 = arith.constant dense<0.000000e+00> : vector<50x32xf32>
    %68 = tpu.matmul %67, %32, %cst_53 {dimension_numbers = #tpu.dot_dimension_numbers<[1], [0], [0], [1], [0, 0, 1, 1], [], []>} : vector<50x200xbf16>, vector<200x32xbf16>, vector<50x32xf32> -> vector<50x32xf32>
    %69 = arith.truncf %68 : vector<50x32xf32> to vector<50x32xbf16>
    %c4_54 = arith.constant 4 : index
    %c0_55 = arith.constant 0 : index
    %c0_56 = arith.constant 0 : index
    %70 = vector.load %arg5[%c4_54, %c0_55, %c0_56] : memref<16x32x64xbf16, #tpu.memory_space<vmem>>, vector<1x32x64xbf16>
    %71 = vector.shape_cast %70 : vector<1x32x64xbf16> to vector<32x64xbf16>
    %cst_57 = arith.constant dense<0.000000e+00> : vector<50x64xf32>
    %72 = tpu.matmul %69, %71, %cst_57 {dimension_numbers = #tpu.dot_dimension_numbers<[1], [0], [0], [1], [0, 0, 1, 1], [], []>} : vector<50x32xbf16>, vector<32x64xbf16>, vector<50x64xf32> -> vector<50x64xf32>
    %73 = arith.addf %65, %72 : vector<50x64xf32>
    %c5 = arith.constant 5 : index
    %c0_58 = arith.constant 0 : index
    %c0_59 = arith.constant 0 : index
    %74 = vector.load %arg4[%c5, %c0_58, %c0_59] : memref<16x50x200xbf16, #tpu.memory_space<vmem>>, vector<1x50x200xbf16>
    %75 = vector.shape_cast %74 : vector<1x50x200xbf16> to vector<50x200xbf16>
    %cst_60 = arith.constant dense<0.000000e+00> : vector<50x32xf32>
    %76 = tpu.matmul %75, %32, %cst_60 {dimension_numbers = #tpu.dot_dimension_numbers<[1], [0], [0], [1], [0, 0, 1, 1], [], []>} : vector<50x200xbf16>, vector<200x32xbf16>, vector<50x32xf32> -> vector<50x32xf32>
    %77 = arith.truncf %76 : vector<50x32xf32> to vector<50x32xbf16>
    %c5_61 = arith.constant 5 : index
    %c0_62 = arith.constant 0 : index
    %c0_63 = arith.constant 0 : index
    %78 = vector.load %arg5[%c5_61, %c0_62, %c0_63] : memref<16x32x64xbf16, #tpu.memory_space<vmem>>, vector<1x32x64xbf16>
    %79 = vector.shape_cast %78 : vector<1x32x64xbf16> to vector<32x64xbf16>
    %cst_64 = arith.constant dense<0.000000e+00> : vector<50x64xf32>
    %80 = tpu.matmul %77, %79, %cst_64 {dimension_numbers = #tpu.dot_dimension_numbers<[1], [0], [0], [1], [0, 0, 1, 1], [], []>} : vector<50x32xbf16>, vector<32x64xbf16>, vector<50x64xf32> -> vector<50x64xf32>
    %81 = arith.addf %73, %80 : vector<50x64xf32>
    %c6 = arith.constant 6 : index
    %c0_65 = arith.constant 0 : index
    %c0_66 = arith.constant 0 : index
    %82 = vector.load %arg4[%c6, %c0_65, %c0_66] : memref<16x50x200xbf16, #tpu.memory_space<vmem>>, vector<1x50x200xbf16>
    %83 = vector.shape_cast %82 : vector<1x50x200xbf16> to vector<50x200xbf16>
    %cst_67 = arith.constant dense<0.000000e+00> : vector<50x32xf32>
    %84 = tpu.matmul %83, %32, %cst_67 {dimension_numbers = #tpu.dot_dimension_numbers<[1], [0], [0], [1], [0, 0, 1, 1], [], []>} : vector<50x200xbf16>, vector<200x32xbf16>, vector<50x32xf32> -> vector<50x32xf32>
    %85 = arith.truncf %84 : vector<50x32xf32> to vector<50x32xbf16>
    %c6_68 = arith.constant 6 : index
    %c0_69 = arith.constant 0 : index
    %c0_70 = arith.constant 0 : index
    %86 = vector.load %arg5[%c6_68, %c0_69, %c0_70] : memref<16x32x64xbf16, #tpu.memory_space<vmem>>, vector<1x32x64xbf16>
    %87 = vector.shape_cast %86 : vector<1x32x64xbf16> to vector<32x64xbf16>
    %cst_71 = arith.constant dense<0.000000e+00> : vector<50x64xf32>
    %88 = tpu.matmul %85, %87, %cst_71 {dimension_numbers = #tpu.dot_dimension_numbers<[1], [0], [0], [1], [0, 0, 1, 1], [], []>} : vector<50x32xbf16>, vector<32x64xbf16>, vector<50x64xf32> -> vector<50x64xf32>
    %89 = arith.addf %81, %88 : vector<50x64xf32>
    %c7 = arith.constant 7 : index
    %c0_72 = arith.constant 0 : index
    %c0_73 = arith.constant 0 : index
    %90 = vector.load %arg4[%c7, %c0_72, %c0_73] : memref<16x50x200xbf16, #tpu.memory_space<vmem>>, vector<1x50x200xbf16>
    %91 = vector.shape_cast %90 : vector<1x50x200xbf16> to vector<50x200xbf16>
    %cst_74 = arith.constant dense<0.000000e+00> : vector<50x32xf32>
    %92 = tpu.matmul %91, %32, %cst_74 {dimension_numbers = #tpu.dot_dimension_numbers<[1], [0], [0], [1], [0, 0, 1, 1], [], []>} : vector<50x200xbf16>, vector<200x32xbf16>, vector<50x32xf32> -> vector<50x32xf32>
    %93 = arith.truncf %92 : vector<50x32xf32> to vector<50x32xbf16>
    %c7_75 = arith.constant 7 : index
    %c0_76 = arith.constant 0 : index
    %c0_77 = arith.constant 0 : index
    %94 = vector.load %arg5[%c7_75, %c0_76, %c0_77] : memref<16x32x64xbf16, #tpu.memory_space<vmem>>, vector<1x32x64xbf16>
    %95 = vector.shape_cast %94 : vector<1x32x64xbf16> to vector<32x64xbf16>
    %cst_78 = arith.constant dense<0.000000e+00> : vector<50x64xf32>
    %96 = tpu.matmul %93, %95, %cst_78 {dimension_numbers = #tpu.dot_dimension_numbers<[1], [0], [0], [1], [0, 0, 1, 1], [], []>} : vector<50x32xbf16>, vector<32x64xbf16>, vector<50x64xf32> -> vector<50x64xf32>
    %97 = arith.addf %89, %96 : vector<50x64xf32>
    %c8 = arith.constant 8 : index
    %c0_79 = arith.constant 0 : index
    %c0_80 = arith.constant 0 : index
    %98 = vector.load %arg4[%c8, %c0_79, %c0_80] : memref<16x50x200xbf16, #tpu.memory_space<vmem>>, vector<1x50x200xbf16>
    %99 = vector.shape_cast %98 : vector<1x50x200xbf16> to vector<50x200xbf16>
    %cst_81 = arith.constant dense<0.000000e+00> : vector<50x32xf32>
    %100 = tpu.matmul %99, %32, %cst_81 {dimension_numbers = #tpu.dot_dimension_numbers<[1], [0], [0], [1], [0, 0, 1, 1], [], []>} : vector<50x200xbf16>, vector<200x32xbf16>, vector<50x32xf32> -> vector<50x32xf32>
    %101 = arith.truncf %100 : vector<50x32xf32> to vector<50x32xbf16>
    %c8_82 = arith.constant 8 : index
    %c0_83 = arith.constant 0 : index
    %c0_84 = arith.constant 0 : index
    %102 = vector.load %arg5[%c8_82, %c0_83, %c0_84] : memref<16x32x64xbf16, #tpu.memory_space<vmem>>, vector<1x32x64xbf16>
    %103 = vector.shape_cast %102 : vector<1x32x64xbf16> to vector<32x64xbf16>
    %cst_85 = arith.constant dense<0.000000e+00> : vector<50x64xf32>
    %104 = tpu.matmul %101, %103, %cst_85 {dimension_numbers = #tpu.dot_dimension_numbers<[1], [0], [0], [1], [0, 0, 1, 1], [], []>} : vector<50x32xbf16>, vector<32x64xbf16>, vector<50x64xf32> -> vector<50x64xf32>
    %105 = arith.addf %97, %104 : vector<50x64xf32>
    %c9 = arith.constant 9 : index
    %c0_86 = arith.constant 0 : index
    %c0_87 = arith.constant 0 : index
    %106 = vector.load %arg4[%c9, %c0_86, %c0_87] : memref<16x50x200xbf16, #tpu.memory_space<vmem>>, vector<1x50x200xbf16>
    %107 = vector.shape_cast %106 : vector<1x50x200xbf16> to vector<50x200xbf16>
    %cst_88 = arith.constant dense<0.000000e+00> : vector<50x32xf32>
    %108 = tpu.matmul %107, %32, %cst_88 {dimension_numbers = #tpu.dot_dimension_numbers<[1], [0], [0], [1], [0, 0, 1, 1], [], []>} : vector<50x200xbf16>, vector<200x32xbf16>, vector<50x32xf32> -> vector<50x32xf32>
    %109 = arith.truncf %108 : vector<50x32xf32> to vector<50x32xbf16>
    %c9_89 = arith.constant 9 : index
    %c0_90 = arith.constant 0 : index
    %c0_91 = arith.constant 0 : index
    %110 = vector.load %arg5[%c9_89, %c0_90, %c0_91] : memref<16x32x64xbf16, #tpu.memory_space<vmem>>, vector<1x32x64xbf16>
    %111 = vector.shape_cast %110 : vector<1x32x64xbf16> to vector<32x64xbf16>
    %cst_92 = arith.constant dense<0.000000e+00> : vector<50x64xf32>
    %112 = tpu.matmul %109, %111, %cst_92 {dimension_numbers = #tpu.dot_dimension_numbers<[1], [0], [0], [1], [0, 0, 1, 1], [], []>} : vector<50x32xbf16>, vector<32x64xbf16>, vector<50x64xf32> -> vector<50x64xf32>
    %113 = arith.addf %105, %112 : vector<50x64xf32>
    %c10 = arith.constant 10 : index
    %c0_93 = arith.constant 0 : index
    %c0_94 = arith.constant 0 : index
    %114 = vector.load %arg4[%c10, %c0_93, %c0_94] : memref<16x50x200xbf16, #tpu.memory_space<vmem>>, vector<1x50x200xbf16>
    %115 = vector.shape_cast %114 : vector<1x50x200xbf16> to vector<50x200xbf16>
    %cst_95 = arith.constant dense<0.000000e+00> : vector<50x32xf32>
    %116 = tpu.matmul %115, %32, %cst_95 {dimension_numbers = #tpu.dot_dimension_numbers<[1], [0], [0], [1], [0, 0, 1, 1], [], []>} : vector<50x200xbf16>, vector<200x32xbf16>, vector<50x32xf32> -> vector<50x32xf32>
    %117 = arith.truncf %116 : vector<50x32xf32> to vector<50x32xbf16>
    %c10_96 = arith.constant 10 : index
    %c0_97 = arith.constant 0 : index
    %c0_98 = arith.constant 0 : index
    %118 = vector.load %arg5[%c10_96, %c0_97, %c0_98] : memref<16x32x64xbf16, #tpu.memory_space<vmem>>, vector<1x32x64xbf16>
    %119 = vector.shape_cast %118 : vector<1x32x64xbf16> to vector<32x64xbf16>
    %cst_99 = arith.constant dense<0.000000e+00> : vector<50x64xf32>
    %120 = tpu.matmul %117, %119, %cst_99 {dimension_numbers = #tpu.dot_dimension_numbers<[1], [0], [0], [1], [0, 0, 1, 1], [], []>} : vector<50x32xbf16>, vector<32x64xbf16>, vector<50x64xf32> -> vector<50x64xf32>
    %121 = arith.addf %113, %120 : vector<50x64xf32>
    %c11 = arith.constant 11 : index
    %c0_100 = arith.constant 0 : index
    %c0_101 = arith.constant 0 : index
    %122 = vector.load %arg4[%c11, %c0_100, %c0_101] : memref<16x50x200xbf16, #tpu.memory_space<vmem>>, vector<1x50x200xbf16>
    %123 = vector.shape_cast %122 : vector<1x50x200xbf16> to vector<50x200xbf16>
    %cst_102 = arith.constant dense<0.000000e+00> : vector<50x32xf32>
    %124 = tpu.matmul %123, %32, %cst_102 {dimension_numbers = #tpu.dot_dimension_numbers<[1], [0], [0], [1], [0, 0, 1, 1], [], []>} : vector<50x200xbf16>, vector<200x32xbf16>, vector<50x32xf32> -> vector<50x32xf32>
    %125 = arith.truncf %124 : vector<50x32xf32> to vector<50x32xbf16>
    %c11_103 = arith.constant 11 : index
    %c0_104 = arith.constant 0 : index
    %c0_105 = arith.constant 0 : index
    %126 = vector.load %arg5[%c11_103, %c0_104, %c0_105] : memref<16x32x64xbf16, #tpu.memory_space<vmem>>, vector<1x32x64xbf16>
    %127 = vector.shape_cast %126 : vector<1x32x64xbf16> to vector<32x64xbf16>
    %cst_106 = arith.constant dense<0.000000e+00> : vector<50x64xf32>
    %128 = tpu.matmul %125, %127, %cst_106 {dimension_numbers = #tpu.dot_dimension_numbers<[1], [0], [0], [1], [0, 0, 1, 1], [], []>} : vector<50x32xbf16>, vector<32x64xbf16>, vector<50x64xf32> -> vector<50x64xf32>
    %129 = arith.addf %121, %128 : vector<50x64xf32>
    %c12 = arith.constant 12 : index
    %c0_107 = arith.constant 0 : index
    %c0_108 = arith.constant 0 : index
    %130 = vector.load %arg4[%c12, %c0_107, %c0_108] : memref<16x50x200xbf16, #tpu.memory_space<vmem>>, vector<1x50x200xbf16>
    %131 = vector.shape_cast %130 : vector<1x50x200xbf16> to vector<50x200xbf16>
    %cst_109 = arith.constant dense<0.000000e+00> : vector<50x32xf32>
    %132 = tpu.matmul %131, %32, %cst_109 {dimension_numbers = #tpu.dot_dimension_numbers<[1], [0], [0], [1], [0, 0, 1, 1], [], []>} : vector<50x200xbf16>, vector<200x32xbf16>, vector<50x32xf32> -> vector<50x32xf32>
    %133 = arith.truncf %132 : vector<50x32xf32> to vector<50x32xbf16>
    %c12_110 = arith.constant 12 : index
    %c0_111 = arith.constant 0 : index
    %c0_112 = arith.constant 0 : index
    %134 = vector.load %arg5[%c12_110, %c0_111, %c0_112] : memref<16x32x64xbf16, #tpu.memory_space<vmem>>, vector<1x32x64xbf16>
    %135 = vector.shape_cast %134 : vector<1x32x64xbf16> to vector<32x64xbf16>
    %cst_113 = arith.constant dense<0.000000e+00> : vector<50x64xf32>
    %136 = tpu.matmul %133, %135, %cst_113 {dimension_numbers = #tpu.dot_dimension_numbers<[1], [0], [0], [1], [0, 0, 1, 1], [], []>} : vector<50x32xbf16>, vector<32x64xbf16>, vector<50x64xf32> -> vector<50x64xf32>
    %137 = arith.addf %129, %136 : vector<50x64xf32>
    %c13 = arith.constant 13 : index
    %c0_114 = arith.constant 0 : index
    %c0_115 = arith.constant 0 : index
    %138 = vector.load %arg4[%c13, %c0_114, %c0_115] : memref<16x50x200xbf16, #tpu.memory_space<vmem>>, vector<1x50x200xbf16>
    %139 = vector.shape_cast %138 : vector<1x50x200xbf16> to vector<50x200xbf16>
    %cst_116 = arith.constant dense<0.000000e+00> : vector<50x32xf32>
    %140 = tpu.matmul %139, %32, %cst_116 {dimension_numbers = #tpu.dot_dimension_numbers<[1], [0], [0], [1], [0, 0, 1, 1], [], []>} : vector<50x200xbf16>, vector<200x32xbf16>, vector<50x32xf32> -> vector<50x32xf32>
    %141 = arith.truncf %140 : vector<50x32xf32> to vector<50x32xbf16>
    %c13_117 = arith.constant 13 : index
    %c0_118 = arith.constant 0 : index
    %c0_119 = arith.constant 0 : index
    %142 = vector.load %arg5[%c13_117, %c0_118, %c0_119] : memref<16x32x64xbf16, #tpu.memory_space<vmem>>, vector<1x32x64xbf16>
    %143 = vector.shape_cast %142 : vector<1x32x64xbf16> to vector<32x64xbf16>
    %cst_120 = arith.constant dense<0.000000e+00> : vector<50x64xf32>
    %144 = tpu.matmul %141, %143, %cst_120 {dimension_numbers = #tpu.dot_dimension_numbers<[1], [0], [0], [1], [0, 0, 1, 1], [], []>} : vector<50x32xbf16>, vector<32x64xbf16>, vector<50x64xf32> -> vector<50x64xf32>
    %145 = arith.addf %137, %144 : vector<50x64xf32>
    %c14 = arith.constant 14 : index
    %c0_121 = arith.constant 0 : index
    %c0_122 = arith.constant 0 : index
    %146 = vector.load %arg4[%c14, %c0_121, %c0_122] : memref<16x50x200xbf16, #tpu.memory_space<vmem>>, vector<1x50x200xbf16>
    %147 = vector.shape_cast %146 : vector<1x50x200xbf16> to vector<50x200xbf16>
    %cst_123 = arith.constant dense<0.000000e+00> : vector<50x32xf32>
    %148 = tpu.matmul %147, %32, %cst_123 {dimension_numbers = #tpu.dot_dimension_numbers<[1], [0], [0], [1], [0, 0, 1, 1], [], []>} : vector<50x200xbf16>, vector<200x32xbf16>, vector<50x32xf32> -> vector<50x32xf32>
    %149 = arith.truncf %148 : vector<50x32xf32> to vector<50x32xbf16>
    %c14_124 = arith.constant 14 : index
    %c0_125 = arith.constant 0 : index
    %c0_126 = arith.constant 0 : index
    %150 = vector.load %arg5[%c14_124, %c0_125, %c0_126] : memref<16x32x64xbf16, #tpu.memory_space<vmem>>, vector<1x32x64xbf16>
    %151 = vector.shape_cast %150 : vector<1x32x64xbf16> to vector<32x64xbf16>
    %cst_127 = arith.constant dense<0.000000e+00> : vector<50x64xf32>
    %152 = tpu.matmul %149, %151, %cst_127 {dimension_numbers = #tpu.dot_dimension_numbers<[1], [0], [0], [1], [0, 0, 1, 1], [], []>} : vector<50x32xbf16>, vector<32x64xbf16>, vector<50x64xf32> -> vector<50x64xf32>
    %153 = arith.addf %145, %152 : vector<50x64xf32>
    %c15 = arith.constant 15 : index
    %c0_128 = arith.constant 0 : index
    %c0_129 = arith.constant 0 : index
    %154 = vector.load %arg4[%c15, %c0_128, %c0_129] : memref<16x50x200xbf16, #tpu.memory_space<vmem>>, vector<1x50x200xbf16>
    %155 = vector.shape_cast %154 : vector<1x50x200xbf16> to vector<50x200xbf16>
    %cst_130 = arith.constant dense<0.000000e+00> : vector<50x32xf32>
    %156 = tpu.matmul %155, %32, %cst_130 {dimension_numbers = #tpu.dot_dimension_numbers<[1], [0], [0], [1], [0, 0, 1, 1], [], []>} : vector<50x200xbf16>, vector<200x32xbf16>, vector<50x32xf32> -> vector<50x32xf32>
    %157 = arith.truncf %156 : vector<50x32xf32> to vector<50x32xbf16>
    %c15_131 = arith.constant 15 : index
    %c0_132 = arith.constant 0 : index
    %c0_133 = arith.constant 0 : index
    %158 = vector.load %arg5[%c15_131, %c0_132, %c0_133] : memref<16x32x64xbf16, #tpu.memory_space<vmem>>, vector<1x32x64xbf16>
    %159 = vector.shape_cast %158 : vector<1x32x64xbf16> to vector<32x64xbf16>
    %cst_134 = arith.constant dense<0.000000e+00> : vector<50x64xf32>
    %160 = tpu.matmul %157, %159, %cst_134 {dimension_numbers = #tpu.dot_dimension_numbers<[1], [0], [0], [1], [0, 0, 1, 1], [], []>} : vector<50x32xbf16>, vector<32x64xbf16>, vector<50x64xf32> -> vector<50x64xf32>
    %161 = arith.addf %153, %160 : vector<50x64xf32>
    %c0_135 = arith.constant 0 : index
    %c0_136 = arith.constant 0 : index
    %162 = vector.load %arg6[%c0_135, %c0_136] : memref<1x64xf32, #tpu.memory_space<vmem>>, vector<1x64xf32>
    %163 = vector.broadcast %162 : vector<1x64xf32> to vector<50x64xf32>
    %164 = arith.addf %161, %163 : vector<50x64xf32>
    %cst_137 = arith.constant 0.000000e+00 : f32
    %165 = vector.broadcast %cst_137 : f32 to vector<50x64xf32>
    %166 = arith.maximumf %164, %165 : vector<50x64xf32>
    %167 = arith.truncf %166 : vector<50x64xf32> to vector<50x64xbf16>
    %cst_138 = arith.constant 0.000000e+00 : f32
    %168 = vector.broadcast %cst_138 : f32 to vector<50x64xf32>
    %c0_139 = arith.constant 0 : index
    %c0_140 = arith.constant 0 : index
    %c0_141 = arith.constant 0 : index
    %169 = vector.load %arg7[%c0_139, %c0_140, %c0_141] : memref<9x50x50xbf16, #tpu.memory_space<vmem>>, vector<1x50x50xbf16>
    %170 = vector.shape_cast %169 : vector<1x50x50xbf16> to vector<50x50xbf16>
    %cst_142 = arith.constant dense<0.000000e+00> : vector<50x64xf32>
    %171 = tpu.matmul %170, %167, %cst_142 {dimension_numbers = #tpu.dot_dimension_numbers<[1], [0], [0], [1], [0, 0, 1, 1], [], []>} : vector<50x50xbf16>, vector<50x64xbf16>, vector<50x64xf32> -> vector<50x64xf32>
    %172 = arith.truncf %171 : vector<50x64xf32> to vector<50x64xbf16>
    %c0_143 = arith.constant 0 : index
    %c0_144 = arith.constant 0 : index
    %c0_145 = arith.constant 0 : index
    %173 = vector.load %arg8[%c0_143, %c0_144, %c0_145] : memref<9x64x64xbf16, #tpu.memory_space<vmem>>, vector<1x64x64xbf16>
    %174 = vector.shape_cast %173 : vector<1x64x64xbf16> to vector<64x64xbf16>
    %cst_146 = arith.constant dense<0.000000e+00> : vector<50x64xf32>
    %175 = tpu.matmul %172, %174, %cst_146 {dimension_numbers = #tpu.dot_dimension_numbers<[1], [0], [0], [1], [0, 0, 1, 1], [], []>} : vector<50x64xbf16>, vector<64x64xbf16>, vector<50x64xf32> -> vector<50x64xf32>
    %176 = arith.addf %168, %175 : vector<50x64xf32>
    %c1_147 = arith.constant 1 : index
    %c0_148 = arith.constant 0 : index
    %c0_149 = arith.constant 0 : index
    %177 = vector.load %arg7[%c1_147, %c0_148, %c0_149] : memref<9x50x50xbf16, #tpu.memory_space<vmem>>, vector<1x50x50xbf16>
    %178 = vector.shape_cast %177 : vector<1x50x50xbf16> to vector<50x50xbf16>
    %cst_150 = arith.constant dense<0.000000e+00> : vector<50x64xf32>
    %179 = tpu.matmul %178, %167, %cst_150 {dimension_numbers = #tpu.dot_dimension_numbers<[1], [0], [0], [1], [0, 0, 1, 1], [], []>} : vector<50x50xbf16>, vector<50x64xbf16>, vector<50x64xf32> -> vector<50x64xf32>
    %180 = arith.truncf %179 : vector<50x64xf32> to vector<50x64xbf16>
    %c1_151 = arith.constant 1 : index
    %c0_152 = arith.constant 0 : index
    %c0_153 = arith.constant 0 : index
    %181 = vector.load %arg8[%c1_151, %c0_152, %c0_153] : memref<9x64x64xbf16, #tpu.memory_space<vmem>>, vector<1x64x64xbf16>
    %182 = vector.shape_cast %181 : vector<1x64x64xbf16> to vector<64x64xbf16>
    %cst_154 = arith.constant dense<0.000000e+00> : vector<50x64xf32>
    %183 = tpu.matmul %180, %182, %cst_154 {dimension_numbers = #tpu.dot_dimension_numbers<[1], [0], [0], [1], [0, 0, 1, 1], [], []>} : vector<50x64xbf16>, vector<64x64xbf16>, vector<50x64xf32> -> vector<50x64xf32>
    %184 = arith.addf %176, %183 : vector<50x64xf32>
    %c2_155 = arith.constant 2 : index
    %c0_156 = arith.constant 0 : index
    %c0_157 = arith.constant 0 : index
    %185 = vector.load %arg7[%c2_155, %c0_156, %c0_157] : memref<9x50x50xbf16, #tpu.memory_space<vmem>>, vector<1x50x50xbf16>
    %186 = vector.shape_cast %185 : vector<1x50x50xbf16> to vector<50x50xbf16>
    %cst_158 = arith.constant dense<0.000000e+00> : vector<50x64xf32>
    %187 = tpu.matmul %186, %167, %cst_158 {dimension_numbers = #tpu.dot_dimension_numbers<[1], [0], [0], [1], [0, 0, 1, 1], [], []>} : vector<50x50xbf16>, vector<50x64xbf16>, vector<50x64xf32> -> vector<50x64xf32>
    %188 = arith.truncf %187 : vector<50x64xf32> to vector<50x64xbf16>
    %c2_159 = arith.constant 2 : index
    %c0_160 = arith.constant 0 : index
    %c0_161 = arith.constant 0 : index
    %189 = vector.load %arg8[%c2_159, %c0_160, %c0_161] : memref<9x64x64xbf16, #tpu.memory_space<vmem>>, vector<1x64x64xbf16>
    %190 = vector.shape_cast %189 : vector<1x64x64xbf16> to vector<64x64xbf16>
    %cst_162 = arith.constant dense<0.000000e+00> : vector<50x64xf32>
    %191 = tpu.matmul %188, %190, %cst_162 {dimension_numbers = #tpu.dot_dimension_numbers<[1], [0], [0], [1], [0, 0, 1, 1], [], []>} : vector<50x64xbf16>, vector<64x64xbf16>, vector<50x64xf32> -> vector<50x64xf32>
    %192 = arith.addf %184, %191 : vector<50x64xf32>
    %c3_163 = arith.constant 3 : index
    %c0_164 = arith.constant 0 : index
    %c0_165 = arith.constant 0 : index
    %193 = vector.load %arg7[%c3_163, %c0_164, %c0_165] : memref<9x50x50xbf16, #tpu.memory_space<vmem>>, vector<1x50x50xbf16>
    %194 = vector.shape_cast %193 : vector<1x50x50xbf16> to vector<50x50xbf16>
    %cst_166 = arith.constant dense<0.000000e+00> : vector<50x64xf32>
    %195 = tpu.matmul %194, %167, %cst_166 {dimension_numbers = #tpu.dot_dimension_numbers<[1], [0], [0], [1], [0, 0, 1, 1], [], []>} : vector<50x50xbf16>, vector<50x64xbf16>, vector<50x64xf32> -> vector<50x64xf32>
    %196 = arith.truncf %195 : vector<50x64xf32> to vector<50x64xbf16>
    %c3_167 = arith.constant 3 : index
    %c0_168 = arith.constant 0 : index
    %c0_169 = arith.constant 0 : index
    %197 = vector.load %arg8[%c3_167, %c0_168, %c0_169] : memref<9x64x64xbf16, #tpu.memory_space<vmem>>, vector<1x64x64xbf16>
    %198 = vector.shape_cast %197 : vector<1x64x64xbf16> to vector<64x64xbf16>
    %cst_170 = arith.constant dense<0.000000e+00> : vector<50x64xf32>
    %199 = tpu.matmul %196, %198, %cst_170 {dimension_numbers = #tpu.dot_dimension_numbers<[1], [0], [0], [1], [0, 0, 1, 1], [], []>} : vector<50x64xbf16>, vector<64x64xbf16>, vector<50x64xf32> -> vector<50x64xf32>
    %200 = arith.addf %192, %199 : vector<50x64xf32>
    %c4_171 = arith.constant 4 : index
    %c0_172 = arith.constant 0 : index
    %c0_173 = arith.constant 0 : index
    %201 = vector.load %arg7[%c4_171, %c0_172, %c0_173] : memref<9x50x50xbf16, #tpu.memory_space<vmem>>, vector<1x50x50xbf16>
    %202 = vector.shape_cast %201 : vector<1x50x50xbf16> to vector<50x50xbf16>
    %cst_174 = arith.constant dense<0.000000e+00> : vector<50x64xf32>
    %203 = tpu.matmul %202, %167, %cst_174 {dimension_numbers = #tpu.dot_dimension_numbers<[1], [0], [0], [1], [0, 0, 1, 1], [], []>} : vector<50x50xbf16>, vector<50x64xbf16>, vector<50x64xf32> -> vector<50x64xf32>
    %204 = arith.truncf %203 : vector<50x64xf32> to vector<50x64xbf16>
    %c4_175 = arith.constant 4 : index
    %c0_176 = arith.constant 0 : index
    %c0_177 = arith.constant 0 : index
    %205 = vector.load %arg8[%c4_175, %c0_176, %c0_177] : memref<9x64x64xbf16, #tpu.memory_space<vmem>>, vector<1x64x64xbf16>
    %206 = vector.shape_cast %205 : vector<1x64x64xbf16> to vector<64x64xbf16>
    %cst_178 = arith.constant dense<0.000000e+00> : vector<50x64xf32>
    %207 = tpu.matmul %204, %206, %cst_178 {dimension_numbers = #tpu.dot_dimension_numbers<[1], [0], [0], [1], [0, 0, 1, 1], [], []>} : vector<50x64xbf16>, vector<64x64xbf16>, vector<50x64xf32> -> vector<50x64xf32>
    %208 = arith.addf %200, %207 : vector<50x64xf32>
    %c5_179 = arith.constant 5 : index
    %c0_180 = arith.constant 0 : index
    %c0_181 = arith.constant 0 : index
    %209 = vector.load %arg7[%c5_179, %c0_180, %c0_181] : memref<9x50x50xbf16, #tpu.memory_space<vmem>>, vector<1x50x50xbf16>
    %210 = vector.shape_cast %209 : vector<1x50x50xbf16> to vector<50x50xbf16>
    %cst_182 = arith.constant dense<0.000000e+00> : vector<50x64xf32>
    %211 = tpu.matmul %210, %167, %cst_182 {dimension_numbers = #tpu.dot_dimension_numbers<[1], [0], [0], [1], [0, 0, 1, 1], [], []>} : vector<50x50xbf16>, vector<50x64xbf16>, vector<50x64xf32> -> vector<50x64xf32>
    %212 = arith.truncf %211 : vector<50x64xf32> to vector<50x64xbf16>
    %c5_183 = arith.constant 5 : index
    %c0_184 = arith.constant 0 : index
    %c0_185 = arith.constant 0 : index
    %213 = vector.load %arg8[%c5_183, %c0_184, %c0_185] : memref<9x64x64xbf16, #tpu.memory_space<vmem>>, vector<1x64x64xbf16>
    %214 = vector.shape_cast %213 : vector<1x64x64xbf16> to vector<64x64xbf16>
    %cst_186 = arith.constant dense<0.000000e+00> : vector<50x64xf32>
    %215 = tpu.matmul %212, %214, %cst_186 {dimension_numbers = #tpu.dot_dimension_numbers<[1], [0], [0], [1], [0, 0, 1, 1], [], []>} : vector<50x64xbf16>, vector<64x64xbf16>, vector<50x64xf32> -> vector<50x64xf32>
    %216 = arith.addf %208, %215 : vector<50x64xf32>
    %c6_187 = arith.constant 6 : index
    %c0_188 = arith.constant 0 : index
    %c0_189 = arith.constant 0 : index
    %217 = vector.load %arg7[%c6_187, %c0_188, %c0_189] : memref<9x50x50xbf16, #tpu.memory_space<vmem>>, vector<1x50x50xbf16>
    %218 = vector.shape_cast %217 : vector<1x50x50xbf16> to vector<50x50xbf16>
    %cst_190 = arith.constant dense<0.000000e+00> : vector<50x64xf32>
    %219 = tpu.matmul %218, %167, %cst_190 {dimension_numbers = #tpu.dot_dimension_numbers<[1], [0], [0], [1], [0, 0, 1, 1], [], []>} : vector<50x50xbf16>, vector<50x64xbf16>, vector<50x64xf32> -> vector<50x64xf32>
    %220 = arith.truncf %219 : vector<50x64xf32> to vector<50x64xbf16>
    %c6_191 = arith.constant 6 : index
    %c0_192 = arith.constant 0 : index
    %c0_193 = arith.constant 0 : index
    %221 = vector.load %arg8[%c6_191, %c0_192, %c0_193] : memref<9x64x64xbf16, #tpu.memory_space<vmem>>, vector<1x64x64xbf16>
    %222 = vector.shape_cast %221 : vector<1x64x64xbf16> to vector<64x64xbf16>
    %cst_194 = arith.constant dense<0.000000e+00> : vector<50x64xf32>
    %223 = tpu.matmul %220, %222, %cst_194 {dimension_numbers = #tpu.dot_dimension_numbers<[1], [0], [0], [1], [0, 0, 1, 1], [], []>} : vector<50x64xbf16>, vector<64x64xbf16>, vector<50x64xf32> -> vector<50x64xf32>
    %224 = arith.addf %216, %223 : vector<50x64xf32>
    %c7_195 = arith.constant 7 : index
    %c0_196 = arith.constant 0 : index
    %c0_197 = arith.constant 0 : index
    %225 = vector.load %arg7[%c7_195, %c0_196, %c0_197] : memref<9x50x50xbf16, #tpu.memory_space<vmem>>, vector<1x50x50xbf16>
    %226 = vector.shape_cast %225 : vector<1x50x50xbf16> to vector<50x50xbf16>
    %cst_198 = arith.constant dense<0.000000e+00> : vector<50x64xf32>
    %227 = tpu.matmul %226, %167, %cst_198 {dimension_numbers = #tpu.dot_dimension_numbers<[1], [0], [0], [1], [0, 0, 1, 1], [], []>} : vector<50x50xbf16>, vector<50x64xbf16>, vector<50x64xf32> -> vector<50x64xf32>
    %228 = arith.truncf %227 : vector<50x64xf32> to vector<50x64xbf16>
    %c7_199 = arith.constant 7 : index
    %c0_200 = arith.constant 0 : index
    %c0_201 = arith.constant 0 : index
    %229 = vector.load %arg8[%c7_199, %c0_200, %c0_201] : memref<9x64x64xbf16, #tpu.memory_space<vmem>>, vector<1x64x64xbf16>
    %230 = vector.shape_cast %229 : vector<1x64x64xbf16> to vector<64x64xbf16>
    %cst_202 = arith.constant dense<0.000000e+00> : vector<50x64xf32>
    %231 = tpu.matmul %228, %230, %cst_202 {dimension_numbers = #tpu.dot_dimension_numbers<[1], [0], [0], [1], [0, 0, 1, 1], [], []>} : vector<50x64xbf16>, vector<64x64xbf16>, vector<50x64xf32> -> vector<50x64xf32>
    %232 = arith.addf %224, %231 : vector<50x64xf32>
    %c8_203 = arith.constant 8 : index
    %c0_204 = arith.constant 0 : index
    %c0_205 = arith.constant 0 : index
    %233 = vector.load %arg7[%c8_203, %c0_204, %c0_205] : memref<9x50x50xbf16, #tpu.memory_space<vmem>>, vector<1x50x50xbf16>
    %234 = vector.shape_cast %233 : vector<1x50x50xbf16> to vector<50x50xbf16>
    %cst_206 = arith.constant dense<0.000000e+00> : vector<50x64xf32>
    %235 = tpu.matmul %234, %167, %cst_206 {dimension_numbers = #tpu.dot_dimension_numbers<[1], [0], [0], [1], [0, 0, 1, 1], [], []>} : vector<50x50xbf16>, vector<50x64xbf16>, vector<50x64xf32> -> vector<50x64xf32>
    %236 = arith.truncf %235 : vector<50x64xf32> to vector<50x64xbf16>
    %c8_207 = arith.constant 8 : index
    %c0_208 = arith.constant 0 : index
    %c0_209 = arith.constant 0 : index
    %237 = vector.load %arg8[%c8_207, %c0_208, %c0_209] : memref<9x64x64xbf16, #tpu.memory_space<vmem>>, vector<1x64x64xbf16>
    %238 = vector.shape_cast %237 : vector<1x64x64xbf16> to vector<64x64xbf16>
    %cst_210 = arith.constant dense<0.000000e+00> : vector<50x64xf32>
    %239 = tpu.matmul %236, %238, %cst_210 {dimension_numbers = #tpu.dot_dimension_numbers<[1], [0], [0], [1], [0, 0, 1, 1], [], []>} : vector<50x64xbf16>, vector<64x64xbf16>, vector<50x64xf32> -> vector<50x64xf32>
    %240 = arith.addf %232, %239 : vector<50x64xf32>
    %c0_211 = arith.constant 0 : index
    %c0_212 = arith.constant 0 : index
    %241 = vector.load %arg9[%c0_211, %c0_212] : memref<1x64xf32, #tpu.memory_space<vmem>>, vector<1x64xf32>
    %242 = vector.broadcast %241 : vector<1x64xf32> to vector<50x64xf32>
    %243 = arith.addf %240, %242 : vector<50x64xf32>
    %cst_213 = arith.constant 0.000000e+00 : f32
    %244 = vector.broadcast %cst_213 : f32 to vector<50x64xf32>
    %245 = arith.maximumf %243, %244 : vector<50x64xf32>
    %246 = arith.truncf %245 : vector<50x64xf32> to vector<50x64xbf16>
    %c0_214 = arith.constant 0 : index
    %c0_215 = arith.constant 0 : index
    %247 = vector.load %arg10[%c0_214, %c0_215] : memref<50x64xbf16, #tpu.memory_space<vmem>>, vector<50x64xbf16>
    tpu.vector_store %arg10[%c0_214, %c0_215], %246 {strides = array<i32>} : memref<50x64xbf16, #tpu.memory_space<vmem>>, vector<50x64xbf16>,
    return
  }
  func.func @transform_0(%arg0: i32) -> (i32, i32) {
    %c0_i32 = arith.constant 0 : i32
    %c0_i32_0 = arith.constant 0 : i32
    %c0_i32_1 = arith.constant 0 : i32
    return %c0_i32, %c0_i32_0 : i32, i32
  }
  func.func @transform_1(%arg0: i32) -> (i32, i32) {
    %c0_i32 = arith.constant 0 : i32
    %c0_i32_0 = arith.constant 0 : i32
    %c0_i32_1 = arith.constant 0 : i32
    return %c0_i32, %c0_i32_0 : i32, i32
  }
  func.func @transform_2(%arg0: i32) -> (i32, i32) {
    %c0_i32 = arith.constant 0 : i32
    %c0_i32_0 = arith.constant 0 : i32
    %c0_i32_1 = arith.constant 0 : i32
    return %c0_i32, %c0_i32_0 : i32, i32
  }
  func.func @transform_3(%arg0: i32) -> (i32, i32, i32) {
    %c0_i32 = arith.constant 0 : i32
    %c0_i32_0 = arith.constant 0 : i32
    %c0_i32_1 = arith.constant 0 : i32
    %c0_i32_2 = arith.constant 0 : i32
    return %c0_i32, %c0_i32_0, %c0_i32_1 : i32, i32, i32
  }
  func.func @transform_4(%arg0: i32) -> (i32, i32, i32) {
    %c0_i32 = arith.constant 0 : i32
    %c0_i32_0 = arith.constant 0 : i32
    %c0_i32_1 = arith.constant 0 : i32
    %c0_i32_2 = arith.constant 0 : i32
    return %c0_i32, %c0_i32_0, %c0_i32_1 : i32, i32, i32
  }
  func.func @transform_5(%arg0: i32) -> (i32, i32) {
    %c0_i32 = arith.constant 0 : i32
    %c0_i32_0 = arith.constant 0 : i32
    %c0_i32_1 = arith.constant 0 : i32
    return %c0_i32, %c0_i32_0 : i32, i32
  }
  func.func @transform_6(%arg0: i32) -> (i32, i32, i32) {
    %c0_i32 = arith.constant 0 : i32
    %c0_i32_0 = arith.constant 0 : i32
    %c0_i32_1 = arith.constant 0 : i32
    %c0_i32_2 = arith.constant 0 : i32
    return %c0_i32, %c0_i32_0, %c0_i32_1 : i32, i32, i32
  }
  func.func @transform_7(%arg0: i32) -> (i32, i32, i32) {
    %c0_i32 = arith.constant 0 : i32
    %c0_i32_0 = arith.constant 0 : i32
    %c0_i32_1 = arith.constant 0 : i32
    %c0_i32_2 = arith.constant 0 : i32
    return %c0_i32, %c0_i32_0, %c0_i32_1 : i32, i32, i32
  }
  func.func @transform_8(%arg0: i32) -> (i32, i32) {
    %c0_i32 = arith.constant 0 : i32
    %c0_i32_0 = arith.constant 0 : i32
    %c0_i32_1 = arith.constant 0 : i32
    return %c0_i32, %c0_i32_0 : i32, i32
  }
  func.func @transform_9(%arg0: i32) -> (i32, i32) {
    %c0_i32 = arith.constant 0 : i32
    %c0_i32_0 = arith.constant 0 : i32
    %c0_i32_1 = arith.constant 0 : i32
    return %c0_i32, %c0_i32_0 : i32, i32
  }
}

module attributes {stable_mosaic.version = 11 : i64} {
  func.func @_fc_head_kernel(%arg0: i32, %arg1: memref<2x1600xbf16, #tpu.memory_space<vmem>>, %arg2: memref<1600x256xbf16, #tpu.memory_space<vmem>>, %arg3: memref<1x256xf32, #tpu.memory_space<vmem>>, %arg4: memref<256x2xbf16, #tpu.memory_space<vmem>>, %arg5: memref<1x2xf32, #tpu.memory_space<vmem>>, %arg6: memref<2x2xf32, #tpu.memory_space<vmem>>) attributes {dimension_semantics = [#tpu.dimension_semantics<arbitrary>], iteration_bounds = array<i64: 1>, scalar_prefetch = 0 : i64, scratch_operands = 0 : i64, tpu.core_type = #tpu.core_type<tc>, window_params = [{pipeline_mode = #tpu.pipeline_mode<synchronous>, transform_indices = @transform_0, window_bounds = array<i64: 2, 1600>}, {pipeline_mode = #tpu.pipeline_mode<synchronous>, transform_indices = @transform_1, window_bounds = array<i64: 1600, 256>}, {pipeline_mode = #tpu.pipeline_mode<synchronous>, transform_indices = @transform_2, window_bounds = array<i64: 1, 256>}, {pipeline_mode = #tpu.pipeline_mode<synchronous>, transform_indices = @transform_3, window_bounds = array<i64: 256, 2>}, {pipeline_mode = #tpu.pipeline_mode<synchronous>, transform_indices = @transform_4, window_bounds = array<i64: 1, 2>}, {pipeline_mode = #tpu.pipeline_mode<synchronous>, transform_indices = @transform_5, window_bounds = array<i64: 2, 2>}]} {
    %c0 = arith.constant 0 : index
    %c0_0 = arith.constant 0 : index
    %0 = vector.load %arg1[%c0, %c0_0] : memref<2x1600xbf16, #tpu.memory_space<vmem>>, vector<2x1600xbf16>
    %c0_1 = arith.constant 0 : index
    %c0_2 = arith.constant 0 : index
    %1 = vector.load %arg2[%c0_1, %c0_2] : memref<1600x256xbf16, #tpu.memory_space<vmem>>, vector<1600x256xbf16>
    %cst = arith.constant dense<0.000000e+00> : vector<2x256xf32>
    %2 = tpu.matmul %0, %1, %cst {dimension_numbers = #tpu.dot_dimension_numbers<[1], [0], [0], [1], [0, 0, 1, 1], [], []>} : vector<2x1600xbf16>, vector<1600x256xbf16>, vector<2x256xf32> -> vector<2x256xf32>
    %c0_3 = arith.constant 0 : index
    %c0_4 = arith.constant 0 : index
    %3 = vector.load %arg3[%c0_3, %c0_4] : memref<1x256xf32, #tpu.memory_space<vmem>>, vector<1x256xf32>
    %4 = vector.broadcast %3 : vector<1x256xf32> to vector<2x256xf32>
    %5 = arith.addf %2, %4 : vector<2x256xf32>
    %cst_5 = arith.constant 0.000000e+00 : f32
    %6 = vector.broadcast %cst_5 : f32 to vector<2x256xf32>
    %7 = arith.maximumf %5, %6 : vector<2x256xf32>
    %8 = arith.truncf %7 : vector<2x256xf32> to vector<2x256xbf16>
    %c0_6 = arith.constant 0 : index
    %c0_7 = arith.constant 0 : index
    %9 = vector.load %arg4[%c0_6, %c0_7] : memref<256x2xbf16, #tpu.memory_space<vmem>>, vector<256x2xbf16>
    %cst_8 = arith.constant dense<0.000000e+00> : vector<2x2xf32>
    %10 = tpu.matmul %8, %9, %cst_8 {dimension_numbers = #tpu.dot_dimension_numbers<[1], [0], [0], [1], [0, 0, 1, 1], [], []>} : vector<2x256xbf16>, vector<256x2xbf16>, vector<2x2xf32> -> vector<2x2xf32>
    %c0_9 = arith.constant 0 : index
    %c0_10 = arith.constant 0 : index
    %11 = vector.load %arg5[%c0_9, %c0_10] : memref<1x2xf32, #tpu.memory_space<vmem>>, vector<1x2xf32>
    %12 = vector.broadcast %11 : vector<1x2xf32> to vector<2x2xf32>
    %13 = arith.addf %10, %12 : vector<2x2xf32>
    %cst_11 = arith.constant dense<0xFF800000> : vector<2xf32>
    %14 = vector.multi_reduction <maximumf>, %13, %cst_11 [1] : vector<2x2xf32> to vector<2xf32>
    %15 = vector.shape_cast %14 : vector<2xf32> to vector<2x1xf32>
    %16 = vector.broadcast %15 : vector<2x1xf32> to vector<2x2xf32>
    %17 = arith.subf %13, %16 : vector<2x2xf32>
    %18 = math.exp %17 : vector<2x2xf32>
    %cst_12 = arith.constant dense<0.000000e+00> : vector<2xf32>
    %19 = vector.multi_reduction <add>, %18, %cst_12 [1] : vector<2x2xf32> to vector<2xf32>
    %20 = vector.shape_cast %19 : vector<2xf32> to vector<2x1xf32>
    %21 = tpu.reciprocal %20 {approx = true} : vector<2x1xf32> -> vector<2x1xf32>
    %22 = vector.broadcast %21 : vector<2x1xf32> to vector<2x2xf32>
    %23 = arith.mulf %18, %22 : vector<2x2xf32>
    %c0_13 = arith.constant 0 : index
    %c0_14 = arith.constant 0 : index
    %24 = vector.load %arg6[%c0_13, %c0_14] : memref<2x2xf32, #tpu.memory_space<vmem>>, vector<2x2xf32>
    tpu.vector_store %arg6[%c0_13, %c0_14], %23 {strides = array<i32>} : memref<2x2xf32, #tpu.memory_space<vmem>>, vector<2x2xf32>,
    return
  }
  func.func @transform_0(%arg0: i32) -> (i32, i32) {
    %c0_i32 = arith.constant 0 : i32
    %c0_i32_0 = arith.constant 0 : i32
    %c0_i32_1 = arith.constant 0 : i32
    return %c0_i32, %c0_i32_0 : i32, i32
  }
  func.func @transform_1(%arg0: i32) -> (i32, i32) {
    %c0_i32 = arith.constant 0 : i32
    %c0_i32_0 = arith.constant 0 : i32
    %c0_i32_1 = arith.constant 0 : i32
    return %c0_i32, %c0_i32_0 : i32, i32
  }
  func.func @transform_2(%arg0: i32) -> (i32, i32) {
    %c0_i32 = arith.constant 0 : i32
    %c0_i32_0 = arith.constant 0 : i32
    %c0_i32_1 = arith.constant 0 : i32
    return %c0_i32, %c0_i32_0 : i32, i32
  }
  func.func @transform_3(%arg0: i32) -> (i32, i32) {
    %c0_i32 = arith.constant 0 : i32
    %c0_i32_0 = arith.constant 0 : i32
    %c0_i32_1 = arith.constant 0 : i32
    return %c0_i32, %c0_i32_0 : i32, i32
  }
  func.func @transform_4(%arg0: i32) -> (i32, i32) {
    %c0_i32 = arith.constant 0 : i32
    %c0_i32_0 = arith.constant 0 : i32
    %c0_i32_1 = arith.constant 0 : i32
    return %c0_i32, %c0_i32_0 : i32, i32
  }
  func.func @transform_5(%arg0: i32) -> (i32, i32) {
    %c0_i32 = arith.constant 0 : i32
    %c0_i32_0 = arith.constant 0 : i32
    %c0_i32_1 = arith.constant 0 : i32
    return %c0_i32, %c0_i32_0 : i32, i32
  }
}

</mosaic_0001>

<llo_original>
// kernel: net_policy_gradient_forward.2
$region0: #{net_policy_gradient_forward.2}
  #allocation0 [shape = 'u32[]', space=smem, size = 0x4, offset = 0x4, fixed_abs, tag = 'smem constant byte address 0x4 - core index']
  #allocation1 [shape = 'u32[144,128]{1,0:T(1,128)}', space=vmem, size = 0x12000, scoped, tag = 'internal scratch']
  %s0 = inlined_call_operand.vmem [shape: bf16[800,256], index: 0, kind: input, shape index: {}]
  %s1 = inlined_call_operand.vmem [shape: bf16[256,32], index: 1, kind: input, shape index: {}]
  %s2 = inlined_call_operand.vmem [shape: f32[1,32], index: 2, kind: input, shape index: {}]
  %s3 = inlined_call_operand.vmem [shape: bf16[16,50,200], index: 3, kind: input, shape index: {}]
  %s4 = inlined_call_operand.vmem [shape: bf16[16,32,64], index: 4, kind: input, shape index: {}]
  %s5 = inlined_call_operand.vmem [shape: f32[1,64], index: 5, kind: input, shape index: {}]
  %s6 = inlined_call_operand.vmem [shape: bf16[9,50,50], index: 6, kind: input, shape index: {}]
  %s7 = inlined_call_operand.vmem [shape: bf16[9,64,64], index: 7, kind: input, shape index: {}]
  %s8 = inlined_call_operand.vmem [shape: f32[1,64], index: 8, kind: input, shape index: {}]
  %s9 = inlined_call_operand.vmem [shape: bf16[50,64], index: 9, kind: output, shape index: {}]
  %s10 = sld [smem:[#allocation0]]
  $region46: #{net_policy_gradient_forward.2} parent=0
    _
  %s12 = ssub.s32 1, %s10
  %s13 = scalar_select 0, %s12, %s10
  // Predicated region
  $region2: #{net_policy_gradient_forward.2} parent=0 // pred_check
    _
  $region3: #{net_policy_gradient_forward.2} parent=0 // pred_check_branch
    %15 = sbr.rel (0) target = $region5
  $region4: #{net_policy_gradient_forward.2} parent=0 // pred_region
    _
  $region5: #{net_policy_gradient_forward.2} parent=0 // pred_fallthru
    _
  // Predicated region
  $region6: #{net_policy_gradient_forward.2} parent=0 // pred_check
    _
  $region7: #{net_policy_gradient_forward.2} parent=0 // pred_check_branch
    %17 = sbr.rel (0) target = $region9
  $region8: #{net_policy_gradient_forward.2} parent=0 // pred_region
    _
  $region9: #{net_policy_gradient_forward.2} parent=0 // pred_fallthru
    _
  // Predicated region
  $region10: #{net_policy_gradient_forward.2} parent=0 // pred_check
    _
  $region11: #{net_policy_gradient_forward.2} parent=0 // pred_check_branch
    %19 = sbr.rel (0) target = $region13
  $region12: #{net_policy_gradient_forward.2} parent=0 // pred_region
    _
  $region13: #{net_policy_gradient_forward.2} parent=0 // pred_fallthru
    _
  // Predicated region
  $region14: #{net_policy_gradient_forward.2} parent=0 // pred_check
    _
  $region15: #{net_policy_gradient_forward.2} parent=0 // pred_check_branch
    %21 = sbr.rel (0) target = $region17
  $region16: #{net_policy_gradient_forward.2} parent=0 // pred_region
    _
  $region17: #{net_policy_gradient_forward.2} parent=0 // pred_fallthru
    _
  // Predicated region
  $region18: #{net_policy_gradient_forward.2} parent=0 // pred_check
    _
  $region19: #{net_policy_gradient_forward.2} parent=0 // pred_check_branch
    %23 = sbr.rel (0) target = $region21
  $region20: #{net_policy_gradient_forward.2} parent=0 // pred_region
    _
  $region21: #{net_policy_gradient_forward.2} parent=0 // pred_fallthru
    _
  // Predicated region
  $region22: #{net_policy_gradient_forward.2} parent=0 // pred_check
    _
  $region23: #{net_policy_gradient_forward.2} parent=0 // pred_check_branch
    %25 = sbr.rel (0) target = $region25
  $region24: #{net_policy_gradient_forward.2} parent=0 // pred_region
    _
  $region25: #{net_policy_gradient_forward.2} parent=0 // pred_fallthru
    _
  // Predicated region
  $region26: #{net_policy_gradient_forward.2} parent=0 // pred_check
    _
  $region27: #{net_policy_gradient_forward.2} parent=0 // pred_check_branch
    %27 = sbr.rel (0) target = $region29
  $region28: #{net_policy_gradient_forward.2} parent=0 // pred_region
    _
  $region29: #{net_policy_gradient_forward.2} parent=0 // pred_fallthru
    _
  // Predicated region
  $region30: #{net_policy_gradient_forward.2} parent=0 // pred_check
    _
  $region31: #{net_policy_gradient_forward.2} parent=0 // pred_check_branch
    %29 = sbr.rel (0) target = $region33
  $region32: #{net_policy_gradient_forward.2} parent=0 // pred_region
    _
  $region33: #{net_policy_gradient_forward.2} parent=0 // pred_fallthru
    _
  // Predicated region
  $region34: #{net_policy_gradient_forward.2} parent=0 // pred_check
    _
  $region35: #{net_policy_gradient_forward.2} parent=0 // pred_check_branch
    %31 = sbr.rel (0) target = $region37
  $region36: #{net_policy_gradient_forward.2} parent=0 // pred_region
    _
  $region37: #{net_policy_gradient_forward.2} parent=0 // pred_fallthru
    _
  %v33 = vld [vmem:[%s1] sm:$0xf]
  %v34 = vld [vmem:[%s1 + $0x4] sm:$0xf]
  %v35 = vld [vmem:[%s1 + $0x8] sm:$0xf]
  %v36 = vld [vmem:[%s1 + $0xc] sm:$0xf]
  %v37 = vld [vmem:[%s1 + $0x10] sm:$0xf]
  %v38 = vld [vmem:[%s1 + $0x14] sm:$0xf]
  %v39 = vld [vmem:[%s1 + $0x18] sm:$0xf]
  %v40 = vld [vmem:[%s1 + $0x1c] sm:$0xf]
  %v41 = vld [vmem:[%s1 + $0x20] sm:$0xf]
  %v42 = vld [vmem:[%s1 + $0x24] sm:$0xf]
  %v43 = vld [vmem:[%s1 + $0x28] sm:$0xf]
  %v44 = vld [vmem:[%s1 + $0x2c] sm:$0xf]
  %v45 = vld [vmem:[%s1 + $0x30] sm:$0xf]
  %v46 = vld [vmem:[%s1 + $0x34] sm:$0xf]
  %v47 = vld [vmem:[%s1 + $0x38] sm:$0xf]
  %v48 = vld [vmem:[%s1 + $0x3c] sm:$0xf]
  %v49 = vld [vmem:[%s1 + $0x40] sm:$0xf]
  %v50 = vld [vmem:[%s1 + $0x44] sm:$0xf]
  %v51 = vld [vmem:[%s1 + $0x48] sm:$0xf]
  %v52 = vld [vmem:[%s1 + $0x4c] sm:$0xf]
  %v53 = vld [vmem:[%s1 + $0x50] sm:$0xf]
  %v54 = vld [vmem:[%s1 + $0x54] sm:$0xf]
  %v55 = vld [vmem:[%s1 + $0x58] sm:$0xf]
  %v56 = vld [vmem:[%s1 + $0x5c] sm:$0xf]
  %v57 = vld [vmem:[%s1 + $0x60] sm:$0xf]
  %v58 = vld [vmem:[%s1 + $0x64] sm:$0xf]
  %v59 = vld [vmem:[%s1 + $0x68] sm:$0xf]
  %v60 = vld [vmem:[%s1 + $0x6c] sm:$0xf]
  %v61 = vld [vmem:[%s1 + $0x70] sm:$0xf]
  %v62 = vld [vmem:[%s1 + $0x74] sm:$0xf]
  %v63 = vld [vmem:[%s1 + $0x78] sm:$0xf]
  %v64 = vld [vmem:[%s1 + $0x7c] sm:$0xf]
  %v65 = vld [vmem:[%s0] sm:$0xff]
  %v66 = vld [vmem:[%s0 + $0x8] sm:$0xff]
  %v67 = vld [vmem:[%s0 + $0x10] sm:$0xff]
  %v68 = vld [vmem:[%s0 + $0x18] sm:$0xff]
  %v69 = vld [vmem:[%s0 + $0x20] sm:$0xff]
  %v70 = vld [vmem:[%s0 + $0x28] sm:$0xff]
  %v71 = vld [vmem:[%s0 + $0x30] sm:$0xff]
  %v72 = vld [vmem:[%s0 + $0x38] sm:$0xff]
  %v73 = vld [vmem:[%s0 + $0x40] sm:$0xff]
  %v74 = vld [vmem:[%s0 + $0x48] sm:$0xff]
  %v75 = vld [vmem:[%s0 + $0x50] sm:$0xff]
  %v76 = vld [vmem:[%s0 + $0x58] sm:$0xff]
  %v77 = vld [vmem:[%s0 + $0x60] sm:$0xff]
  %v78 = vld [vmem:[%s0 + $0x68] sm:$0xff]
  %v79 = vld [vmem:[%s0 + $0x70] sm:$0xff]
  %v80 = vld [vmem:[%s0 + $0x78] sm:$0xff]
  %v81 = vld [vmem:[%s0 + $0x80] sm:$0xff]
  %v82 = vld [vmem:[%s0 + $0x88] sm:$0xff]
  %v83 = vld [vmem:[%s0 + $0x90] sm:$0xff]
  %v84 = vld [vmem:[%s0 + $0x98] sm:$0xff]
  %v85 = vld [vmem:[%s0 + $0xa0] sm:$0xff]
  %v86 = vld [vmem:[%s0 + $0xa8] sm:$0xff]
  %v87 = vld [vmem:[%s0 + $0xb0] sm:$0xff]
  %v88 = vld [vmem:[%s0 + $0xb8] sm:$0xff]
  %v89 = vld [vmem:[%s0 + $0xc0] sm:$0xff]
  %v90 = vld [vmem:[%s2] sm:$0x1]
  %v92 = vlaneseq
  %v93 = vshrl.u32 %v92, 7
  %v94 = vsub.s32 0, %v93
  %v95 = vrot.slane %v90, %v94
  %v122 = vunpack.c.l.b16 %v65
  %v123 = vunpack.c.h.b16 %v65
  %v124 = vunpack.c.l.b16 %v66
  %v125 = vunpack.c.h.b16 %v66
  %v126 = vunpack.c.l.b16 %v67
  %v127 = vunpack.c.h.b16 %v67
  %v128 = vunpack.c.l.b16 %v68
  %v129 = vunpack.c.h.b16 %v68
  %v130 = vunpack.c.l.b16 %v69
  %v131 = vunpack.c.h.b16 %v69
  %v132 = vunpack.c.l.b16 %v70
  %v133 = vunpack.c.h.b16 %v70
  %v134 = vunpack.c.l.b16 %v71
  %v135 = vunpack.c.h.b16 %v71
  %v136 = vunpack.c.l.b16 %v72
  %v137 = vunpack.c.h.b16 %v72
  %v138 = vunpack.c.l.b16 %v73
  %v139 = vunpack.c.h.b16 %v73
  %v140 = vunpack.c.l.b16 %v74
  %v141 = vunpack.c.h.b16 %v74
  %v142 = vunpack.c.l.b16 %v75
  %v143 = vunpack.c.h.b16 %v75
  %v144 = vunpack.c.l.b16 %v76
  %v145 = vunpack.c.h.b16 %v76
  %v146 = vunpack.c.l.b16 %v77
  %v147 = vunpack.c.h.b16 %v77
  %v148 = vunpack.c.l.b16 %v78
  %v149 = vunpack.c.h.b16 %v78
  %v150 = vunpack.c.l.b16 %v79
  %v151 = vunpack.c.h.b16 %v79
  %v152 = vunpack.c.l.b16 %v80
  %v153 = vunpack.c.h.b16 %v80
  %v154 = vunpack.c.l.b16 %v81
  %v155 = vunpack.c.h.b16 %v81
  %v156 = vunpack.c.l.b16 %v82
  %v157 = vunpack.c.h.b16 %v82
  %v158 = vunpack.c.l.b16 %v83
  %v159 = vunpack.c.h.b16 %v83
  %v160 = vunpack.c.l.b16 %v84
  %v161 = vunpack.c.h.b16 %v84
  %v162 = vunpack.c.l.b16 %v85
  %v163 = vunpack.c.h.b16 %v85
  %v164 = vunpack.c.l.b16 %v86
  %v165 = vunpack.c.h.b16 %v86
  %v166 = vunpack.c.l.b16 %v87
  %v167 = vunpack.c.h.b16 %v87
  %v168 = vunpack.c.l.b16 %v88
  %v169 = vunpack.c.h.b16 %v88
  %v170 = vunpack.c.l.b16 %v89
  %v171 = vunpack.c.h.b16 %v89
  %v172 = vpack.c.b16 %v124, %v122
  %v173 = vpack.c.b16 %v125, %v123
  %v174 = vpack.c.b16 %v128, %v126
  %v175 = vpack.c.b16 %v129, %v127
  %v176 = vpack.c.b16 %v132, %v130
  %v177 = vpack.c.b16 %v133, %v131
  %v178 = vpack.c.b16 %v136, %v134
  %v179 = vpack.c.b16 %v137, %v135
  %v180 = vpack.c.b16 %v140, %v138
  %v181 = vpack.c.b16 %v141, %v139
  %v182 = vpack.c.b16 %v144, %v142
  %v183 = vpack.c.b16 %v145, %v143
  %v184 = vpack.c.b16 %v148, %v146
  %v185 = vpack.c.b16 %v149, %v147
  %v186 = vpack.c.b16 %v152, %v150
  %v187 = vpack.c.b16 %v153, %v151
  %v188 = vpack.c.b16 %v156, %v154
  %v189 = vpack.c.b16 %v157, %v155
  %v190 = vpack.c.b16 %v160, %v158
  %v191 = vpack.c.b16 %v161, %v159
  %v192 = vpack.c.b16 %v164, %v162
  %v193 = vpack.c.b16 %v165, %v163
  %v194 = vpack.c.b16 %v168, %v166
  %v195 = vpack.c.b16 %v169, %v167
  %v196 = vpack.c.b16 %v170, %v170
  %v197 = vpack.c.b16 %v171, %v171
  %v256 = vunpack.c.l.b16 %v33
  %v257 = vunpack.c.l.b16 %v34
  %v258 = vunpack.c.l.b16 %v35
  %v259 = vunpack.c.l.b16 %v36
  %v260 = vunpack.c.l.b16 %v37
  %v261 = vunpack.c.l.b16 %v38
  %v262 = vunpack.c.l.b16 %v39
  %v263 = vunpack.c.l.b16 %v40
  %v264 = vunpack.c.l.b16 %v41
  %v265 = vunpack.c.l.b16 %v42
  %v266 = vunpack.c.l.b16 %v43
  %v267 = vunpack.c.l.b16 %v44
  %v268 = vunpack.c.l.b16 %v45
  %v269 = vunpack.c.l.b16 %v46
  %v270 = vunpack.c.l.b16 %v47
  %v271 = vunpack.c.l.b16 %v48
  %v272 = vunpack.c.l.b16 %v49
  %v273 = vunpack.c.l.b16 %v50
  %v274 = vunpack.c.l.b16 %v51
  %v275 = vunpack.c.l.b16 %v52
  %v276 = vunpack.c.l.b16 %v53
  %v277 = vunpack.c.l.b16 %v54
  %v278 = vunpack.c.l.b16 %v55
  %v279 = vunpack.c.l.b16 %v56
  %v280 = vunpack.c.l.b16 %v57
  %v281 = vunpack.c.l.b16 %v58
  %v282 = vunpack.c.l.b16 %v59
  %v283 = vunpack.c.l.b16 %v60
  %v284 = vunpack.c.l.b16 %v61
  %v285 = vunpack.c.l.b16 %v62
  %v286 = vunpack.c.l.b16 %v63
  %v287 = vunpack.c.l.b16 %v64
  %v288 = vpack.c.b16 %v257, %v256
  %v289 = vpack.c.b16 %v259, %v258
  %v290 = vpack.c.b16 %v261, %v260
  %v291 = vpack.c.b16 %v263, %v262
  %v292 = vpack.c.b16 %v265, %v264
  %v293 = vpack.c.b16 %v267, %v266
  %v294 = vpack.c.b16 %v269, %v268
  %v295 = vpack.c.b16 %v271, %v270
  %v296 = vpack.c.b16 %v273, %v272
  %v297 = vpack.c.b16 %v275, %v274
  %v298 = vpack.c.b16 %v277, %v276
  %v299 = vpack.c.b16 %v279, %v278
  %v300 = vpack.c.b16 %v281, %v280
  %v301 = vpack.c.b16 %v283, %v282
  %v302 = vpack.c.b16 %v285, %v284
  %v303 = vpack.c.b16 %v287, %v286
  %320 = vmatprep.subr.bf16.mxu0 0
  %321 = vmatpush1.bf16.msra.mxu0 %v288
  %322 = vmatprep.subr.bf16.mxu0 0
  %323 = vmatpush1.bf16.msra.mxu0 %v289
  %324 = vmatprep.subr.bf16.mxu0 0
  %325 = vmatpush1.bf16.msra.mxu0 %v290
  %326 = vmatprep.subr.bf16.mxu0 0
  %327 = vmatpush1.bf16.msra.mxu0 %v291
  %328 = vmatprep.subr.bf16.mxu0 0
  %329 = vmatpush1.bf16.msra.mxu0 %v292
  %330 = vmatprep.subr.bf16.mxu0 0
  %331 = vmatpush1.bf16.msra.mxu0 %v293
  %332 = vmatprep.subr.bf16.mxu0 0
  %333 = vmatpush1.bf16.msra.mxu0 %v294
  %334 = vmatprep.subr.bf16.mxu0 0
  %335 = vmatpush1.bf16.msra.mxu0 %v295
  %336 = vmatprep.subr.bf16.mxu0 0
  %337 = vmatpush1.bf16.msra.mxu0 %v296
  %338 = vmatprep.subr.bf16.mxu0 0
  %339 = vmatpush1.bf16.msra.mxu0 %v297
  %340 = vmatprep.subr.bf16.mxu0 0
  %341 = vmatpush1.bf16.msra.mxu0 %v298
  %342 = vmatprep.subr.bf16.mxu0 0
  %343 = vmatpush1.bf16.msra.mxu0 %v299
  %344 = vmatprep.subr.bf16.mxu0 0
  %345 = vmatpush1.bf16.msra.mxu0 %v300
  %346 = vmatprep.subr.bf16.mxu0 0
  %347 = vmatpush1.bf16.msra.mxu0 %v301
  %348 = vmatprep.subr.bf16.mxu0 0
  %349 = vmatpush1.bf16.msra.mxu0 %v302
  %350 = vmatprep.subr.bf16.mxu0 0
  %351 = vmatpush1.bf16.msra.mxu0 %v303
  %352 = vmatprep.mubr.bf16.mxu0 %v173
  %353 = vmatmul.mubr.bf16.gmra.mrb[0].mxu0 %v172
  %v354 = vpop.f32.mrb[0].mxu0
  %v355 = vadd.f32 %v95, %v354
  %v356 = vpop.f32.mrb[0].mxu0
  %v357 = vpop.f32.mrb[0].mxu0
  %v358 = vadd.f32 %v95, %v357
  %v359 = vpop.f32.mrb[0].mxu0
  %360 = vmatprep.mubr.bf16.mxu0 %v175
  %361 = vmatmul.mubr.bf16.gmra.mrb[0].mxu0 %v174
  %v362 = vpop.f32.mrb[0].mxu0
  %v363 = vadd.f32 %v95, %v362
  %v364 = vpop.f32.mrb[0].mxu0
  %v365 = vpop.f32.mrb[0].mxu0
  %v366 = vadd.f32 %v95, %v365
  %v367 = vpop.f32.mrb[0].mxu0
  %368 = vmatprep.mubr.bf16.mxu0 %v177
  %369 = vmatmul.mubr.bf16.gmra.mrb[0].mxu0 %v176
  %v370 = vpop.f32.mrb[0].mxu0
  %v371 = vadd.f32 %v95, %v370
  %v372 = vpop.f32.mrb[0].mxu0
  %v373 = vpop.f32.mrb[0].mxu0
  %v374 = vadd.f32 %v95, %v373
  %v375 = vpop.f32.mrb[0].mxu0
  %376 = vmatprep.mubr.bf16.mxu0 %v179
  %377 = vmatmul.mubr.bf16.gmra.mrb[0].mxu0 %v178
  %v378 = vpop.f32.mrb[0].mxu0
  %v379 = vadd.f32 %v95, %v378
  %v380 = vpop.f32.mrb[0].mxu0
  %v381 = vpop.f32.mrb[0].mxu0
  %v382 = vadd.f32 %v95, %v381
  %v383 = vpop.f32.mrb[0].mxu0
  %384 = vmatprep.mubr.bf16.mxu0 %v181
  %385 = vmatmul.mubr.bf16.gmra.mrb[0].mxu0 %v180
  %v386 = vpop.f32.mrb[0].mxu0
  %v387 = vadd.f32 %v95, %v386
  %v388 = vpop.f32.mrb[0].mxu0
  %v389 = vpop.f32.mrb[0].mxu0
  %v390 = vadd.f32 %v95, %v389
  %v391 = vpop.f32.mrb[0].mxu0
  %392 = vmatprep.mubr.bf16.mxu0 %v183
  %393 = vmatmul.mubr.bf16.gmra.mrb[0].mxu0 %v182
  %v394 = vpop.f32.mrb[0].mxu0
  %v395 = vadd.f32 %v95, %v394
  %v396 = vpop.f32.mrb[0].mxu0
  %v397 = vpop.f32.mrb[0].mxu0
  %v398 = vadd.f32 %v95, %v397
  %v399 = vpop.f32.mrb[0].mxu0
  %400 = vmatprep.mubr.bf16.mxu0 %v185
  %401 = vmatmul.mubr.bf16.gmra.mrb[0].mxu0 %v184
  %v402 = vpop.f32.mrb[0].mxu0
  %v403 = vadd.f32 %v95, %v402
  %v404 = vpop.f32.mrb[0].mxu0
  %v405 = vpop.f32.mrb[0].mxu0
  %v406 = vadd.f32 %v95, %v405
  %v407 = vpop.f32.mrb[0].mxu0
  %408 = vmatprep.mubr.bf16.mxu0 %v187
  %409 = vmatmul.mubr.bf16.gmra.mrb[0].mxu0 %v186
  %v410 = vpop.f32.mrb[0].mxu0
  %v411 = vadd.f32 %v95, %v410
  %v412 = vpop.f32.mrb[0].mxu0
  %v413 = vpop.f32.mrb[0].mxu0
  %v414 = vadd.f32 %v95, %v413
  %v415 = vpop.f32.mrb[0].mxu0
  %416 = vmatprep.mubr.bf16.mxu0 %v189
  %417 = vmatmul.mubr.bf16.gmra.mrb[0].mxu0 %v188
  %v418 = vpop.f32.mrb[0].mxu0
  %v419 = vadd.f32 %v95, %v418
  %v420 = vpop.f32.mrb[0].mxu0
  %v421 = vpop.f32.mrb[0].mxu0
  %v422 = vadd.f32 %v95, %v421
  %v423 = vpop.f32.mrb[0].mxu0
  %424 = vmatprep.mubr.bf16.mxu0 %v191
  %425 = vmatmul.mubr.bf16.gmra.mrb[0].mxu0 %v190
  %v426 = vpop.f32.mrb[0].mxu0
  %v427 = vadd.f32 %v95, %v426
  %v428 = vpop.f32.mrb[0].mxu0
  %v429 = vpop.f32.mrb[0].mxu0
  %v430 = vadd.f32 %v95, %v429
  %v431 = vpop.f32.mrb[0].mxu0
  %432 = vmatprep.mubr.bf16.mxu0 %v193
  %433 = vmatmul.mubr.bf16.gmra.mrb[0].mxu0 %v192
  %v434 = vpop.f32.mrb[0].mxu0
  %v435 = vadd.f32 %v95, %v434
  %v436 = vpop.f32.mrb[0].mxu0
  %v437 = vpop.f32.mrb[0].mxu0
  %v438 = vadd.f32 %v95, %v437
  %v439 = vpop.f32.mrb[0].mxu0
  %440 = vmatprep.mubr.bf16.mxu0 %v195
  %441 = vmatmul.mubr.bf16.gmra.mrb[0].mxu0 %v194
  %v442 = vpop.f32.mrb[0].mxu0
  %v443 = vadd.f32 %v95, %v442
  %v444 = vpop.f32.mrb[0].mxu0
  %v445 = vpop.f32.mrb[0].mxu0
  %v446 = vadd.f32 %v95, %v445
  %v447 = vpop.f32.mrb[0].mxu0
  %448 = vmatprep.mubr.bf16.mxu0 %v197
  %449 = vmatmul.mubr.bf16.gmra.mrb[0].mxu0 %v196
  %v450 = vpop.f32.mrb[0].mxu0
  %v451 = vadd.f32 %v95, %v450
  %v452 = vpop.f32.mrb[0].mxu0
  %v453 = vpop.f32.mrb[0].mxu0
  %v454 = vpop.f32.mrb[0].mxu0
  %455 = vdwg.mxu0
  %v456 = vmax.f32 %v355, 0.0
  %v457 = vmax.f32 %v358, 0.0
  %v458 = vmax.f32 %v363, 0.0
  %v459 = vmax.f32 %v366, 0.0
  %v460 = vmax.f32 %v371, 0.0
  %v461 = vmax.f32 %v374, 0.0
  %v462 = vmax.f32 %v379, 0.0
  %v463 = vmax.f32 %v382, 0.0
  %v464 = vmax.f32 %v387, 0.0
  %v465 = vmax.f32 %v390, 0.0
  %v466 = vmax.f32 %v395, 0.0
  %v467 = vmax.f32 %v398, 0.0
  %v468 = vmax.f32 %v403, 0.0
  %v469 = vmax.f32 %v406, 0.0
  %v470 = vmax.f32 %v411, 0.0
  %v471 = vmax.f32 %v414, 0.0
  %v472 = vmax.f32 %v419, 0.0
  %v473 = vmax.f32 %v422, 0.0
  %v474 = vmax.f32 %v427, 0.0
  %v475 = vmax.f32 %v430, 0.0
  %v476 = vmax.f32 %v435, 0.0
  %v477 = vmax.f32 %v438, 0.0
  %v478 = vmax.f32 %v443, 0.0
  %v479 = vmax.f32 %v446, 0.0
  %v480 = vmax.f32 %v451, 0.0
  %v481 = vld [vmem:[%s0 + $0xc8] sm:$0xff]
  %v482 = vld [vmem:[%s0 + $0xd0] sm:$0xff]
  %v483 = vld [vmem:[%s0 + $0xd8] sm:$0xff]
  %v484 = vld [vmem:[%s0 + $0xe0] sm:$0xff]
  %v485 = vld [vmem:[%s0 + $0xe8] sm:$0xff]
  %v486 = vld [vmem:[%s0 + $0xf0] sm:$0xff]
  %v487 = vld [vmem:[%s0 + $0xf8] sm:$0xff]
  %v488 = vld [vmem:[%s0 + $0x100] sm:$0xff]
  %v489 = vld [vmem:[%s0 + $0x108] sm:$0xff]
  %v490 = vld [vmem:[%s0 + $0x110] sm:$0xff]
  %v491 = vld [vmem:[%s0 + $0x118] sm:$0xff]
  %v492 = vld [vmem:[%s0 + $0x120] sm:$0xff]
  %v493 = vld [vmem:[%s0 + $0x128] sm:$0xff]
  %v494 = vld [vmem:[%s0 + $0x130] sm:$0xff]
  %v495 = vld [vmem:[%s0 + $0x138] sm:$0xff]
  %v496 = vld [vmem:[%s0 + $0x140] sm:$0xff]
  %v497 = vld [vmem:[%s0 + $0x148] sm:$0xff]
  %v498 = vld [vmem:[%s0 + $0x150] sm:$0xff]
  %v499 = vld [vmem:[%s0 + $0x158] sm:$0xff]
  %v500 = vld [vmem:[%s0 + $0x160] sm:$0xff]
  %v501 = vld [vmem:[%s0 + $0x168] sm:$0xff]
  %v502 = vld [vmem:[%s0 + $0x170] sm:$0xff]
  %v503 = vld [vmem:[%s0 + $0x178] sm:$0xff]
  %v504 = vld [vmem:[%s0 + $0x180] sm:$0xff]
  %v505 = vld [vmem:[%s0 + $0x188] sm:$0xff]
  %v531 = vunpack.c.l.b16 %v481
  %v532 = vunpack.c.h.b16 %v481
  %v533 = vunpack.c.l.b16 %v482
  %v534 = vunpack.c.h.b16 %v482
  %v535 = vunpack.c.l.b16 %v483
  %v536 = vunpack.c.h.b16 %v483
  %v537 = vunpack.c.l.b16 %v484
  %v538 = vunpack.c.h.b16 %v484
  %v539 = vunpack.c.l.b16 %v485
  %v540 = vunpack.c.h.b16 %v485
  %v541 = vunpack.c.l.b16 %v486
  %v542 = vunpack.c.h.b16 %v486
  %v543 = vunpack.c.l.b16 %v487
  %v544 = vunpack.c.h.b16 %v487
  %v545 = vunpack.c.l.b16 %v488
  %v546 = vunpack.c.h.b16 %v488
  %v547 = vunpack.c.l.b16 %v489
  %v548 = vunpack.c.h.b16 %v489
  %v549 = vunpack.c.l.b16 %v490
  %v550 = vunpack.c.h.b16 %v490
  %v551 = vunpack.c.l.b16 %v491
  %v552 = vunpack.c.h.b16 %v491
  %v553 = vunpack.c.l.b16 %v492
  %v554 = vunpack.c.h.b16 %v492
  %v555 = vunpack.c.l.b16 %v493
  %v556 = vunpack.c.h.b16 %v493
  %v557 = vunpack.c.l.b16 %v494
  %v558 = vunpack.c.h.b16 %v494
  %v559 = vunpack.c.l.b16 %v495
  %v560 = vunpack.c.h.b16 %v495
  %v561 = vunpack.c.l.b16 %v496
  %v562 = vunpack.c.h.b16 %v496
  %v563 = vunpack.c.l.b16 %v497
  %v564 = vunpack.c.h.b16 %v497
  %v565 = vunpack.c.l.b16 %v498
  %v566 = vunpack.c.h.b16 %v498
  %v567 = vunpack.c.l.b16 %v499
  %v568 = vunpack.c.h.b16 %v499
  %v569 = vunpack.c.l.b16 %v500
  %v570 = vunpack.c.h.b16 %v500
  %v571 = vunpack.c.l.b16 %v501
  %v572 = vunpack.c.h.b16 %v501
  %v573 = vunpack.c.l.b16 %v502
  %v574 = vunpack.c.h.b16 %v502
  %v575 = vunpack.c.l.b16 %v503
  %v576 = vunpack.c.h.b16 %v503
  %v577 = vunpack.c.l.b16 %v504
  %v578 = vunpack.c.h.b16 %v504
  %v579 = vunpack.c.l.b16 %v505
  %v580 = vunpack.c.h.b16 %v505
  %v581 = vpack.c.b16 %v533, %v531
  %v582 = vpack.c.b16 %v534, %v532
  %v583 = vpack.c.b16 %v537, %v535
  %v584 = vpack.c.b16 %v538, %v536
  %v585 = vpack.c.b16 %v541, %v539
  %v586 = vpack.c.b16 %v542, %v540
  %v587 = vpack.c.b16 %v545, %v543
  %v588 = vpack.c.b16 %v546, %v544
  %v589 = vpack.c.b16 %v549, %v547
  %v590 = vpack.c.b16 %v550, %v548
  %v591 = vpack.c.b16 %v553, %v551
  %v592 = vpack.c.b16 %v554, %v552
  %v593 = vpack.c.b16 %v557, %v555
  %v594 = vpack.c.b16 %v558, %v556
  %v595 = vpack.c.b16 %v561, %v559
  %v596 = vpack.c.b16 %v562, %v560
  %v597 = vpack.c.b16 %v565, %v563
  %v598 = vpack.c.b16 %v566, %v564
  %v599 = vpack.c.b16 %v569, %v567
  %v600 = vpack.c.b16 %v570, %v568
  %v601 = vpack.c.b16 %v573, %v571
  %v602 = vpack.c.b16 %v574, %v572
  %v603 = vpack.c.b16 %v577, %v575
  %v604 = vpack.c.b16 %v578, %v576
  %v605 = vpack.c.b16 %v579, %v579
  %v606 = vpack.c.b16 %v580, %v580
  %633 = vmatprep.subr.bf16.mxu0 0
  %634 = vmatpush1.bf16.msra.mxu0 %v288
  %635 = vmatprep.subr.bf16.mxu0 0
  %636 = vmatpush1.bf16.msra.mxu0 %v289
  %637 = vmatprep.subr.bf16.mxu0 0
  %638 = vmatpush1.bf16.msra.mxu0 %v290
  %639 = vmatprep.subr.bf16.mxu0 0
  %640 = vmatpush1.bf16.msra.mxu0 %v291
  %641 = vmatprep.subr.bf16.mxu0 0
  %642 = vmatpush1.bf16.msra.mxu0 %v292
  %643 = vmatprep.subr.bf16.mxu0 0
  %644 = vmatpush1.bf16.msra.mxu0 %v293
  %645 = vmatprep.subr.bf16.mxu0 0
  %646 = vmatpush1.bf16.msra.mxu0 %v294
  %647 = vmatprep.subr.bf16.mxu0 0
  %648 = vmatpush1.bf16.msra.mxu0 %v295
  %649 = vmatprep.subr.bf16.mxu0 0
  %650 = vmatpush1.bf16.msra.mxu0 %v296
  %651 = vmatprep.subr.bf16.mxu0 0
  %652 = vmatpush1.bf16.msra.mxu0 %v297
  %653 = vmatprep.subr.bf16.mxu0 0
  %654 = vmatpush1.bf16.msra.mxu0 %v298
  %655 = vmatprep.subr.bf16.mxu0 0
  %656 = vmatpush1.bf16.msra.mxu0 %v299
  %657 = vmatprep.subr.bf16.mxu0 0
  %658 = vmatpush1.bf16.msra.mxu0 %v300
  %659 = vmatprep.subr.bf16.mxu0 0
  %660 = vmatpush1.bf16.msra.mxu0 %v301
  %661 = vmatprep.subr.bf16.mxu0 0
  %662 = vmatpush1.bf16.msra.mxu0 %v302
  %663 = vmatprep.subr.bf16.mxu0 0
  %664 = vmatpush1.bf16.msra.mxu0 %v303
  %665 = vmatprep.mubr.bf16.mxu0 %v582
  %666 = vmatmul.mubr.bf16.gmra.mrb[0].mxu0 %v581
  %v667 = vpop.f32.mrb[0].mxu0
  %v668 = vadd.f32 %v95, %v667
  %v669 = vpop.f32.mrb[0].mxu0
  %v670 = vpop.f32.mrb[0].mxu0
  %v671 = vadd.f32 %v95, %v670
  %v672 = vpop.f32.mrb[0].mxu0
  %673 = vmatprep.mubr.bf16.mxu0 %v584
  %674 = vmatmul.mubr.bf16.gmra.mrb[0].mxu0 %v583
  %v675 = vpop.f32.mrb[0].mxu0
  %v676 = vadd.f32 %v95, %v675
  %v677 = vpop.f32.mrb[0].mxu0
  %v678 = vpop.f32.mrb[0].mxu0
  %v679 = vadd.f32 %v95, %v678
  %v680 = vpop.f32.mrb[0].mxu0
  %681 = vmatprep.mubr.bf16.mxu0 %v586
  %682 = vmatmul.mubr.bf16.gmra.mrb[0].mxu0 %v585
  %v683 = vpop.f32.mrb[0].mxu0
  %v684 = vadd.f32 %v95, %v683
  %v685 = vpop.f32.mrb[0].mxu0
  %v686 = vpop.f32.mrb[0].mxu0
  %v687 = vadd.f32 %v95, %v686
  %v688 = vpop.f32.mrb[0].mxu0
  %689 = vmatprep.mubr.bf16.mxu0 %v588
  %690 = vmatmul.mubr.bf16.gmra.mrb[0].mxu0 %v587
  %v691 = vpop.f32.mrb[0].mxu0
  %v692 = vadd.f32 %v95, %v691
  %v693 = vpop.f32.mrb[0].mxu0
  %v694 = vpop.f32.mrb[0].mxu0
  %v695 = vadd.f32 %v95, %v694
  %v696 = vpop.f32.mrb[0].mxu0
  %697 = vmatprep.mubr.bf16.mxu0 %v590
  %698 = vmatmul.mubr.bf16.gmra.mrb[0].mxu0 %v589
  %v699 = vpop.f32.mrb[0].mxu0
  %v700 = vadd.f32 %v95, %v699
  %v701 = vpop.f32.mrb[0].mxu0
  %v702 = vpop.f32.mrb[0].mxu0
  %v703 = vadd.f32 %v95, %v702
  %v704 = vpop.f32.mrb[0].mxu0
  %705 = vmatprep.mubr.bf16.mxu0 %v592
  %706 = vmatmul.mubr.bf16.gmra.mrb[0].mxu0 %v591
  %v707 = vpop.f32.mrb[0].mxu0
  %v708 = vadd.f32 %v95, %v707
  %v709 = vpop.f32.mrb[0].mxu0
  %v710 = vpop.f32.mrb[0].mxu0
  %v711 = vadd.f32 %v95, %v710
  %v712 = vpop.f32.mrb[0].mxu0
  %713 = vmatprep.mubr.bf16.mxu0 %v594
  %714 = vmatmul.mubr.bf16.gmra.mrb[0].mxu0 %v593
  %v715 = vpop.f32.mrb[0].mxu0
  %v716 = vadd.f32 %v95, %v715
  %v717 = vpop.f32.mrb[0].mxu0
  %v718 = vpop.f32.mrb[0].mxu0
  %v719 = vadd.f32 %v95, %v718
  %v720 = vpop.f32.mrb[0].mxu0
  %721 = vmatprep.mubr.bf16.mxu0 %v596
  %722 = vmatmul.mubr.bf16.gmra.mrb[0].mxu0 %v595
  %v723 = vpop.f32.mrb[0].mxu0
  %v724 = vadd.f32 %v95, %v723
  %v725 = vpop.f32.mrb[0].mxu0
  %v726 = vpop.f32.mrb[0].mxu0
  %v727 = vadd.f32 %v95, %v726
  %v728 = vpop.f32.mrb[0].mxu0
  %729 = vmatprep.mubr.bf16.mxu0 %v598
  %730 = vmatmul.mubr.bf16.gmra.mrb[0].mxu0 %v597
  %v731 = vpop.f32.mrb[0].mxu0
  %v732 = vadd.f32 %v95, %v731
  %v733 = vpop.f32.mrb[0].mxu0
  %v734 = vpop.f32.mrb[0].mxu0
  %v735 = vadd.f32 %v95, %v734
  %v736 = vpop.f32.mrb[0].mxu0
  %737 = vmatprep.mubr.bf16.mxu0 %v600
  %738 = vmatmul.mubr.bf16.gmra.mrb[0].mxu0 %v599
  %v739 = vpop.f32.mrb[0].mxu0
  %v740 = vadd.f32 %v95, %v739
  %v741 = vpop.f32.mrb[0].mxu0
  %v742 = vpop.f32.mrb[0].mxu0
  %v743 = vadd.f32 %v95, %v742
  %v744 = vpop.f32.mrb[0].mxu0
  %745 = vmatprep.mubr.bf16.mxu0 %v602
  %746 = vmatmul.mubr.bf16.gmra.mrb[0].mxu0 %v601
  %v747 = vpop.f32.mrb[0].mxu0
  %v748 = vadd.f32 %v95, %v747
  %v749 = vpop.f32.mrb[0].mxu0
  %v750 = vpop.f32.mrb[0].mxu0
  %v751 = vadd.f32 %v95, %v750
  %v752 = vpop.f32.mrb[0].mxu0
  %753 = vmatprep.mubr.bf16.mxu0 %v604
  %754 = vmatmul.mubr.bf16.gmra.mrb[0].mxu0 %v603
  %v755 = vpop.f32.mrb[0].mxu0
  %v756 = vadd.f32 %v95, %v755
  %v757 = vpop.f32.mrb[0].mxu0
  %v758 = vpop.f32.mrb[0].mxu0
  %v759 = vadd.f32 %v95, %v758
  %v760 = vpop.f32.mrb[0].mxu0
  %761 = vmatprep.mubr.bf16.mxu0 %v606
  %762 = vmatmul.mubr.bf16.gmra.mrb[0].mxu0 %v605
  %v763 = vpop.f32.mrb[0].mxu0
  %v764 = vadd.f32 %v95, %v763
  %v765 = vpop.f32.mrb[0].mxu0
  %v766 = vpop.f32.mrb[0].mxu0
  %v767 = vpop.f32.mrb[0].mxu0
  %768 = vdwg.mxu0
  %v769 = vmax.f32 %v668, 0.0
  %v770 = vmax.f32 %v671, 0.0
  %v771 = vmax.f32 %v676, 0.0
  %v772 = vmax.f32 %v679, 0.0
  %v773 = vmax.f32 %v684, 0.0
  %v774 = vmax.f32 %v687, 0.0
  %v775 = vmax.f32 %v692, 0.0
  %v776 = vmax.f32 %v695, 0.0
  %v777 = vmax.f32 %v700, 0.0
  %v778 = vmax.f32 %v703, 0.0
  %v779 = vmax.f32 %v708, 0.0
  %v780 = vmax.f32 %v711, 0.0
  %v781 = vmax.f32 %v716, 0.0
  %v782 = vmax.f32 %v719, 0.0
  %v783 = vmax.f32 %v724, 0.0
  %v784 = vmax.f32 %v727, 0.0
  %v785 = vmax.f32 %v732, 0.0
  %v786 = vmax.f32 %v735, 0.0
  %v787 = vmax.f32 %v740, 0.0
  %v788 = vmax.f32 %v743, 0.0
  %v789 = vmax.f32 %v748, 0.0
  %v790 = vmax.f32 %v751, 0.0
  %v791 = vmax.f32 %v756, 0.0
  %v792 = vmax.f32 %v759, 0.0
  %v793 = vmax.f32 %v764, 0.0
  %v794 = vmax.f32 %v456, %v769
  %v795 = vmax.f32 %v457, %v770
  %v796 = vmax.f32 %v458, %v771
  %v797 = vmax.f32 %v459, %v772
  %v798 = vmax.f32 %v460, %v773
  %v799 = vmax.f32 %v461, %v774
  %v800 = vmax.f32 %v462, %v775
  %v801 = vmax.f32 %v463, %v776
  %v802 = vmax.f32 %v464, %v777
  %v803 = vmax.f32 %v465, %v778
  %v804 = vmax.f32 %v466, %v779
  %v805 = vmax.f32 %v467, %v780
  %v806 = vmax.f32 %v468, %v781
  %v807 = vmax.f32 %v469, %v782
  %v808 = vmax.f32 %v470, %v783
  %v809 = vmax.f32 %v471, %v784
  %v810 = vmax.f32 %v472, %v785
  %v811 = vmax.f32 %v473, %v786
  %v812 = vmax.f32 %v474, %v787
  %v813 = vmax.f32 %v475, %v788
  %v814 = vmax.f32 %v476, %v789
  %v815 = vmax.f32 %v477, %v790
  %v816 = vmax.f32 %v478, %v791
  %v817 = vmax.f32 %v479, %v792
  %v818 = vmax.f32 %v480, %v793
  %v819 = vld [vmem:[%s0 + $0x190] sm:$0xff]
  %v820 = vld [vmem:[%s0 + $0x198] sm:$0xff]
  %v821 = vld [vmem:[%s0 + $0x1a0] sm:$0xff]
  %v822 = vld [vmem:[%s0 + $0x1a8] sm:$0xff]
  %v823 = vld [vmem:[%s0 + $0x1b0] sm:$0xff]
  %v824 = vld [vmem:[%s0 + $0x1b8] sm:$0xff]
  %v825 = vld [vmem:[%s0 + $0x1c0] sm:$0xff]
  %v826 = vld [vmem:[%s0 + $0x1c8] sm:$0xff]
  %v827 = vld [vmem:[%s0 + $0x1d0] sm:$0xff]
  %v828 = vld [vmem:[%s0 + $0x1d8] sm:$0xff]
  %v829 = vld [vmem:[%s0 + $0x1e0] sm:$0xff]
  %v830 = vld [vmem:[%s0 + $0x1e8] sm:$0xff]
  %v831 = vld [vmem:[%s0 + $0x1f0] sm:$0xff]
  %v832 = vld [vmem:[%s0 + $0x1f8] sm:$0xff]
  %v833 = vld [vmem:[%s0 + $0x200] sm:$0xff]
  %v834 = vld [vmem:[%s0 + $0x208] sm:$0xff]
  %v835 = vld [vmem:[%s0 + $0x210] sm:$0xff]
  %v836 = vld [vmem:[%s0 + $0x218] sm:$0xff]
  %v837 = vld [vmem:[%s0 + $0x220] sm:$0xff]
  %v838 = vld [vmem:[%s0 + $0x228] sm:$0xff]
  %v839 = vld [vmem:[%s0 + $0x230] sm:$0xff]
  %v840 = vld [vmem:[%s0 + $0x238] sm:$0xff]
  %v841 = vld [vmem:[%s0 + $0x240] sm:$0xff]
  %v842 = vld [vmem:[%s0 + $0x248] sm:$0xff]
  %v843 = vld [vmem:[%s0 + $0x250] sm:$0xff]
  %v869 = vunpack.c.l.b16 %v819
  %v870 = vunpack.c.h.b16 %v819
  %v871 = vunpack.c.l.b16 %v820
  %v872 = vunpack.c.h.b16 %v820
  %v873 = vunpack.c.l.b16 %v821
  %v874 = vunpack.c.h.b16 %v821
  %v875 = vunpack.c.l.b16 %v822
  %v876 = vunpack.c.h.b16 %v822
  %v877 = vunpack.c.l.b16 %v823
  %v878 = vunpack.c.h.b16 %v823
  %v879 = vunpack.c.l.b16 %v824
  %v880 = vunpack.c.h.b16 %v824
  %v881 = vunpack.c.l.b16 %v825
  %v882 = vunpack.c.h.b16 %v825
  %v883 = vunpack.c.l.b16 %v826
  %v884 = vunpack.c.h.b16 %v826
  %v885 = vunpack.c.l.b16 %v827
  %v886 = vunpack.c.h.b16 %v827
  %v887 = vunpack.c.l.b16 %v828
  %v888 = vunpack.c.h.b16 %v828
  %v889 = vunpack.c.l.b16 %v829
  %v890 = vunpack.c.h.b16 %v829
  %v891 = vunpack.c.l.b16 %v830
  %v892 = vunpack.c.h.b16 %v830
  %v893 = vunpack.c.l.b16 %v831
  %v894 = vunpack.c.h.b16 %v831
  %v895 = vunpack.c.l.b16 %v832
  %v896 = vunpack.c.h.b16 %v832
  %v897 = vunpack.c.l.b16 %v833
  %v898 = vunpack.c.h.b16 %v833
  %v899 = vunpack.c.l.b16 %v834
  %v900 = vunpack.c.h.b16 %v834
  %v901 = vunpack.c.l.b16 %v835
  %v902 = vunpack.c.h.b16 %v835
  %v903 = vunpack.c.l.b16 %v836
  %v904 = vunpack.c.h.b16 %v836
  %v905 = vunpack.c.l.b16 %v837
  %v906 = vunpack.c.h.b16 %v837
  %v907 = vunpack.c.l.b16 %v838
  %v908 = vunpack.c.h.b16 %v838
  %v909 = vunpack.c.l.b16 %v839
  %v910 = vunpack.c.h.b16 %v839
  %v911 = vunpack.c.l.b16 %v840
  %v912 = vunpack.c.h.b16 %v840
  %v913 = vunpack.c.l.b16 %v841
  %v914 = vunpack.c.h.b16 %v841
  %v915 = vunpack.c.l.b16 %v842
  %v916 = vunpack.c.h.b16 %v842
  %v917 = vunpack.c.l.b16 %v843
  %v918 = vunpack.c.h.b16 %v843
  %v919 = vpack.c.b16 %v871, %v869
  %v920 = vpack.c.b16 %v872, %v870
  %v921 = vpack.c.b16 %v875, %v873
  %v922 = vpack.c.b16 %v876, %v874
  %v923 = vpack.c.b16 %v879, %v877
  %v924 = vpack.c.b16 %v880, %v878
  %v925 = vpack.c.b16 %v883, %v881
  %v926 = vpack.c.b16 %v884, %v882
  %v927 = vpack.c.b16 %v887, %v885
  %v928 = vpack.c.b16 %v888, %v886
  %v929 = vpack.c.b16 %v891, %v889
  %v930 = vpack.c.b16 %v892, %v890
  %v931 = vpack.c.b16 %v895, %v893
  %v932 = vpack.c.b16 %v896, %v894
  %v933 = vpack.c.b16 %v899, %v897
  %v934 = vpack.c.b16 %v900, %v898
  %v935 = vpack.c.b16 %v903, %v901
  %v936 = vpack.c.b16 %v904, %v902
  %v937 = vpack.c.b16 %v907, %v905
  %v938 = vpack.c.b16 %v908, %v906
  %v939 = vpack.c.b16 %v911, %v909
  %v940 = vpack.c.b16 %v912, %v910
  %v941 = vpack.c.b16 %v915, %v913
  %v942 = vpack.c.b16 %v916, %v914
  %v943 = vpack.c.b16 %v917, %v917
  %v944 = vpack.c.b16 %v918, %v918
  %971 = vmatprep.subr.bf16.mxu0 0
  %972 = vmatpush1.bf16.msra.mxu0 %v288
  %973 = vmatprep.subr.bf16.mxu0 0
  %974 = vmatpush1.bf16.msra.mxu0 %v289
  %975 = vmatprep.subr.bf16.mxu0 0
  %976 = vmatpush1.bf16.msra.mxu0 %v290
  %977 = vmatprep.subr.bf16.mxu0 0
  %978 = vmatpush1.bf16.msra.mxu0 %v291
  %979 = vmatprep.subr.bf16.mxu0 0
  %980 = vmatpush1.bf16.msra.mxu0 %v292
  %981 = vmatprep.subr.bf16.mxu0 0
  %982 = vmatpush1.bf16.msra.mxu0 %v293
  %983 = vmatprep.subr.bf16.mxu0 0
  %984 = vmatpush1.bf16.msra.mxu0 %v294
  %985 = vmatprep.subr.bf16.mxu0 0
  %986 = vmatpush1.bf16.msra.mxu0 %v295
  %987 = vmatprep.subr.bf16.mxu0 0
  %988 = vmatpush1.bf16.msra.mxu0 %v296
  %989 = vmatprep.subr.bf16.mxu0 0
  %990 = vmatpush1.bf16.msra.mxu0 %v297
  %991 = vmatprep.subr.bf16.mxu0 0
  %992 = vmatpush1.bf16.msra.mxu0 %v298
  %993 = vmatprep.subr.bf16.mxu0 0
  %994 = vmatpush1.bf16.msra.mxu0 %v299
  %995 = vmatprep.subr.bf16.mxu0 0
  %996 = vmatpush1.bf16.msra.mxu0 %v300
  %997 = vmatprep.subr.bf16.mxu0 0
  %998 = vmatpush1.bf16.msra.mxu0 %v301
  %999 = vmatprep.subr.bf16.mxu0 0
  %1000 = vmatpush1.bf16.msra.mxu0 %v302
  %1001 = vmatprep.subr.bf16.mxu0 0
  %1002 = vmatpush1.bf16.msra.mxu0 %v303
  %1003 = vmatprep.mubr.bf16.mxu0 %v920
  %1004 = vmatmul.mubr.bf16.gmra.mrb[0].mxu0 %v919
  %v1005 = vpop.f32.mrb[0].mxu0
  %v1006 = vadd.f32 %v95, %v1005
  %v1007 = vpop.f32.mrb[0].mxu0
  %v1008 = vpop.f32.mrb[0].mxu0
  %v1009 = vadd.f32 %v95, %v1008
  %v1010 = vpop.f32.mrb[0].mxu0
  %1011 = vmatprep.mubr.bf16.mxu0 %v922
  %1012 = vmatmul.mubr.bf16.gmra.mrb[0].mxu0 %v921
  %v1013 = vpop.f32.mrb[0].mxu0
  %v1014 = vadd.f32 %v95, %v1013
  %v1015 = vpop.f32.mrb[0].mxu0
  %v1016 = vpop.f32.mrb[0].mxu0
  %v1017 = vadd.f32 %v95, %v1016
  %v1018 = vpop.f32.mrb[0].mxu0
  %1019 = vmatprep.mubr.bf16.mxu0 %v924
  %1020 = vmatmul.mubr.bf16.gmra.mrb[0].mxu0 %v923
  %v1021 = vpop.f32.mrb[0].mxu0
  %v1022 = vadd.f32 %v95, %v1021
  %v1023 = vpop.f32.mrb[0].mxu0
  %v1024 = vpop.f32.mrb[0].mxu0
  %v1025 = vadd.f32 %v95, %v1024
  %v1026 = vpop.f32.mrb[0].mxu0
  %1027 = vmatprep.mubr.bf16.mxu0 %v926
  %1028 = vmatmul.mubr.bf16.gmra.mrb[0].mxu0 %v925
  %v1029 = vpop.f32.mrb[0].mxu0
  %v1030 = vadd.f32 %v95, %v1029
  %v1031 = vpop.f32.mrb[0].mxu0
  %v1032 = vpop.f32.mrb[0].mxu0
  %v1033 = vadd.f32 %v95, %v1032
  %v1034 = vpop.f32.mrb[0].mxu0
  %1035 = vmatprep.mubr.bf16.mxu0 %v928
  %1036 = vmatmul.mubr.bf16.gmra.mrb[0].mxu0 %v927
  %v1037 = vpop.f32.mrb[0].mxu0
  %v1038 = vadd.f32 %v95, %v1037
  %v1039 = vpop.f32.mrb[0].mxu0
  %v1040 = vpop.f32.mrb[0].mxu0
  %v1041 = vadd.f32 %v95, %v1040
  %v1042 = vpop.f32.mrb[0].mxu0
  %1043 = vmatprep.mubr.bf16.mxu0 %v930
  %1044 = vmatmul.mubr.bf16.gmra.mrb[0].mxu0 %v929
  %v1045 = vpop.f32.mrb[0].mxu0
  %v1046 = vadd.f32 %v95, %v1045
  %v1047 = vpop.f32.mrb[0].mxu0
  %v1048 = vpop.f32.mrb[0].mxu0
  %v1049 = vadd.f32 %v95, %v1048
  %v1050 = vpop.f32.mrb[0].mxu0
  %1051 = vmatprep.mubr.bf16.mxu0 %v932
  %1052 = vmatmul.mubr.bf16.gmra.mrb[0].mxu0 %v931
  %v1053 = vpop.f32.mrb[0].mxu0
  %v1054 = vadd.f32 %v95, %v1053
  %v1055 = vpop.f32.mrb[0].mxu0
  %v1056 = vpop.f32.mrb[0].mxu0
  %v1057 = vadd.f32 %v95, %v1056
  %v1058 = vpop.f32.mrb[0].mxu0
  %1059 = vmatprep.mubr.bf16.mxu0 %v934
  %1060 = vmatmul.mubr.bf16.gmra.mrb[0].mxu0 %v933
  %v1061 = vpop.f32.mrb[0].mxu0
  %v1062 = vadd.f32 %v95, %v1061
  %v1063 = vpop.f32.mrb[0].mxu0
  %v1064 = vpop.f32.mrb[0].mxu0
  %v1065 = vadd.f32 %v95, %v1064
  %v1066 = vpop.f32.mrb[0].mxu0
  %1067 = vmatprep.mubr.bf16.mxu0 %v936
  %1068 = vmatmul.mubr.bf16.gmra.mrb[0].mxu0 %v935
  %v1069 = vpop.f32.mrb[0].mxu0
  %v1070 = vadd.f32 %v95, %v1069
  %v1071 = vpop.f32.mrb[0].mxu0
  %v1072 = vpop.f32.mrb[0].mxu0
  %v1073 = vadd.f32 %v95, %v1072
  %v1074 = vpop.f32.mrb[0].mxu0
  %1075 = vmatprep.mubr.bf16.mxu0 %v938
  %1076 = vmatmul.mubr.bf16.gmra.mrb[0].mxu0 %v937
  %v1077 = vpop.f32.mrb[0].mxu0
  %v1078 = vadd.f32 %v95, %v1077
  %v1079 = vpop.f32.mrb[0].mxu0
  %v1080 = vpop.f32.mrb[0].mxu0
  %v1081 = vadd.f32 %v95, %v1080
  %v1082 = vpop.f32.mrb[0].mxu0
  %1083 = vmatprep.mubr.bf16.mxu0 %v940
  %1084 = vmatmul.mubr.bf16.gmra.mrb[0].mxu0 %v939
  %v1085 = vpop.f32.mrb[0].mxu0
  %v1086 = vadd.f32 %v95, %v1085
  %v1087 = vpop.f32.mrb[0].mxu0
  %v1088 = vpop.f32.mrb[0].mxu0
  %v1089 = vadd.f32 %v95, %v1088
  %v1090 = vpop.f32.mrb[0].mxu0
  %1091 = vmatprep.mubr.bf16.mxu0 %v942
  %1092 = vmatmul.mubr.bf16.gmra.mrb[0].mxu0 %v941
  %v1093 = vpop.f32.mrb[0].mxu0
  %v1094 = vadd.f32 %v95, %v1093
  %v1095 = vpop.f32.mrb[0].mxu0
  %v1096 = vpop.f32.mrb[0].mxu0
  %v1097 = vadd.f32 %v95, %v1096
  %v1098 = vpop.f32.mrb[0].mxu0
  %1099 = vmatprep.mubr.bf16.mxu0 %v944
  %1100 = vmatmul.mubr.bf16.gmra.mrb[0].mxu0 %v943
  %v1101 = vpop.f32.mrb[0].mxu0
  %v1102 = vadd.f32 %v95, %v1101
  %v1103 = vpop.f32.mrb[0].mxu0
  %v1104 = vpop.f32.mrb[0].mxu0
  %v1105 = vpop.f32.mrb[0].mxu0
  %1106 = vdwg.mxu0
  %v1107 = vmax.f32 %v1006, 0.0
  %v1108 = vmax.f32 %v1009, 0.0
  %v1109 = vmax.f32 %v1014, 0.0
  %v1110 = vmax.f32 %v1017, 0.0
  %v1111 = vmax.f32 %v1022, 0.0
  %v1112 = vmax.f32 %v1025, 0.0
  %v1113 = vmax.f32 %v1030, 0.0
  %v1114 = vmax.f32 %v1033, 0.0
  %v1115 = vmax.f32 %v1038, 0.0
  %v1116 = vmax.f32 %v1041, 0.0
  %v1117 = vmax.f32 %v1046, 0.0
  %v1118 = vmax.f32 %v1049, 0.0
  %v1119 = vmax.f32 %v1054, 0.0
  %v1120 = vmax.f32 %v1057, 0.0
  %v1121 = vmax.f32 %v1062, 0.0
  %v1122 = vmax.f32 %v1065, 0.0
  %v1123 = vmax.f32 %v1070, 0.0
  %v1124 = vmax.f32 %v1073, 0.0
  %v1125 = vmax.f32 %v1078, 0.0
  %v1126 = vmax.f32 %v1081, 0.0
  %v1127 = vmax.f32 %v1086, 0.0
  %v1128 = vmax.f32 %v1089, 0.0
  %v1129 = vmax.f32 %v1094, 0.0
  %v1130 = vmax.f32 %v1097, 0.0
  %v1131 = vmax.f32 %v1102, 0.0
  %v1132 = vmax.f32 %v794, %v1107
  %v1133 = vmax.f32 %v795, %v1108
  %v1134 = vmax.f32 %v796, %v1109
  %v1135 = vmax.f32 %v797, %v1110
  %v1136 = vmax.f32 %v798, %v1111
  %v1137 = vmax.f32 %v799, %v1112
  %v1138 = vmax.f32 %v800, %v1113
  %v1139 = vmax.f32 %v801, %v1114
  %v1140 = vmax.f32 %v802, %v1115
  %v1141 = vmax.f32 %v803, %v1116
  %v1142 = vmax.f32 %v804, %v1117
  %v1143 = vmax.f32 %v805, %v1118
  %v1144 = vmax.f32 %v806, %v1119
  %v1145 = vmax.f32 %v807, %v1120
  %v1146 = vmax.f32 %v808, %v1121
  %v1147 = vmax.f32 %v809, %v1122
  %v1148 = vmax.f32 %v810, %v1123
  %v1149 = vmax.f32 %v811, %v1124
  %v1150 = vmax.f32 %v812, %v1125
  %v1151 = vmax.f32 %v813, %v1126
  %v1152 = vmax.f32 %v814, %v1127
  %v1153 = vmax.f32 %v815, %v1128
  %v1154 = vmax.f32 %v816, %v1129
  %v1155 = vmax.f32 %v817, %v1130
  %v1156 = vmax.f32 %v818, %v1131
  %v1157 = vld [vmem:[%s0 + $0x258] sm:$0xff]
  %v1158 = vld [vmem:[%s0 + $0x260] sm:$0xff]
  %v1159 = vld [vmem:[%s0 + $0x268] sm:$0xff]
  %v1160 = vld [vmem:[%s0 + $0x270] sm:$0xff]
  %v1161 = vld [vmem:[%s0 + $0x278] sm:$0xff]
  %v1162 = vld [vmem:[%s0 + $0x280] sm:$0xff]
  %v1163 = vld [vmem:[%s0 + $0x288] sm:$0xff]
  %v1164 = vld [vmem:[%s0 + $0x290] sm:$0xff]
  %v1165 = vld [vmem:[%s0 + $0x298] sm:$0xff]
  %v1166 = vld [vmem:[%s0 + $0x2a0] sm:$0xff]
  %v1167 = vld [vmem:[%s0 + $0x2a8] sm:$0xff]
  %v1168 = vld [vmem:[%s0 + $0x2b0] sm:$0xff]
  %v1169 = vld [vmem:[%s0 + $0x2b8] sm:$0xff]
  %v1170 = vld [vmem:[%s0 + $0x2c0] sm:$0xff]
  %v1171 = vld [vmem:[%s0 + $0x2c8] sm:$0xff]
  %v1172 = vld [vmem:[%s0 + $0x2d0] sm:$0xff]
  %v1173 = vld [vmem:[%s0 + $0x2d8] sm:$0xff]
  %v1174 = vld [vmem:[%s0 + $0x2e0] sm:$0xff]
  %v1175 = vld [vmem:[%s0 + $0x2e8] sm:$0xff]
  %v1176 = vld [vmem:[%s0 + $0x2f0] sm:$0xff]
  %v1177 = vld [vmem:[%s0 + $0x2f8] sm:$0xff]
  %v1178 = vld [vmem:[%s0 + $0x300] sm:$0xff]
  %v1179 = vld [vmem:[%s0 + $0x308] sm:$0xff]
  %v1180 = vld [vmem:[%s0 + $0x310] sm:$0xff]
  %v1181 = vld [vmem:[%s0 + $0x318] sm:$0xff]
  %v1207 = vunpack.c.l.b16 %v1157
  %v1208 = vunpack.c.h.b16 %v1157
  %v1209 = vunpack.c.l.b16 %v1158
  %v1210 = vunpack.c.h.b16 %v1158
  %v1211 = vunpack.c.l.b16 %v1159
  %v1212 = vunpack.c.h.b16 %v1159
  %v1213 = vunpack.c.l.b16 %v1160
  %v1214 = vunpack.c.h.b16 %v1160
  %v1215 = vunpack.c.l.b16 %v1161
  %v1216 = vunpack.c.h.b16 %v1161
  %v1217 = vunpack.c.l.b16 %v1162
  %v1218 = vunpack.c.h.b16 %v1162
  %v1219 = vunpack.c.l.b16 %v1163
  %v1220 = vunpack.c.h.b16 %v1163
  %v1221 = vunpack.c.l.b16 %v1164
  %v1222 = vunpack.c.h.b16 %v1164
  %v1223 = vunpack.c.l.b16 %v1165
  %v1224 = vunpack.c.h.b16 %v1165
  %v1225 = vunpack.c.l.b16 %v1166
  %v1226 = vunpack.c.h.b16 %v1166
  %v1227 = vunpack.c.l.b16 %v1167
  %v1228 = vunpack.c.h.b16 %v1167
  %v1229 = vunpack.c.l.b16 %v1168
  %v1230 = vunpack.c.h.b16 %v1168
  %v1231 = vunpack.c.l.b16 %v1169
  %v1232 = vunpack.c.h.b16 %v1169
  %v1233 = vunpack.c.l.b16 %v1170
  %v1234 = vunpack.c.h.b16 %v1170
  %v1235 = vunpack.c.l.b16 %v1171
  %v1236 = vunpack.c.h.b16 %v1171
  %v1237 = vunpack.c.l.b16 %v1172
  %v1238 = vunpack.c.h.b16 %v1172
  %v1239 = vunpack.c.l.b16 %v1173
  %v1240 = vunpack.c.h.b16 %v1173
  %v1241 = vunpack.c.l.b16 %v1174
  %v1242 = vunpack.c.h.b16 %v1174
  %v1243 = vunpack.c.l.b16 %v1175
  %v1244 = vunpack.c.h.b16 %v1175
  %v1245 = vunpack.c.l.b16 %v1176
  %v1246 = vunpack.c.h.b16 %v1176
  %v1247 = vunpack.c.l.b16 %v1177
  %v1248 = vunpack.c.h.b16 %v1177
  %v1249 = vunpack.c.l.b16 %v1178
  %v1250 = vunpack.c.h.b16 %v1178
  %v1251 = vunpack.c.l.b16 %v1179
  %v1252 = vunpack.c.h.b16 %v1179
  %v1253 = vunpack.c.l.b16 %v1180
  %v1254 = vunpack.c.h.b16 %v1180
  %v1255 = vunpack.c.l.b16 %v1181
  %v1256 = vunpack.c.h.b16 %v1181
  %v1257 = vpack.c.b16 %v1209, %v1207
  %v1258 = vpack.c.b16 %v1210, %v1208
  %v1259 = vpack.c.b16 %v1213, %v1211
  %v1260 = vpack.c.b16 %v1214, %v1212
  %v1261 = vpack.c.b16 %v1217, %v1215
  %v1262 = vpack.c.b16 %v1218, %v1216
  %v1263 = vpack.c.b16 %v1221, %v1219
  %v1264 = vpack.c.b16 %v1222, %v1220
  %v1265 = vpack.c.b16 %v1225, %v1223
  %v1266 = vpack.c.b16 %v1226, %v1224
  %v1267 = vpack.c.b16 %v1229, %v1227
  %v1268 = vpack.c.b16 %v1230, %v1228
  %v1269 = vpack.c.b16 %v1233, %v1231
  %v1270 = vpack.c.b16 %v1234, %v1232
  %v1271 = vpack.c.b16 %v1237, %v1235
  %v1272 = vpack.c.b16 %v1238, %v1236
  %v1273 = vpack.c.b16 %v1241, %v1239
  %v1274 = vpack.c.b16 %v1242, %v1240
  %v1275 = vpack.c.b16 %v1245, %v1243
  %v1276 = vpack.c.b16 %v1246, %v1244
  %v1277 = vpack.c.b16 %v1249, %v1247
  %v1278 = vpack.c.b16 %v1250, %v1248
  %v1279 = vpack.c.b16 %v1253, %v1251
  %v1280 = vpack.c.b16 %v1254, %v1252
  %v1281 = vpack.c.b16 %v1255, %v1255
  %v1282 = vpack.c.b16 %v1256, %v1256
  %1309 = vmatprep.subr.bf16.mxu0 0
  %1310 = vmatpush1.bf16.msra.mxu0 %v288
  %1311 = vmatprep.subr.bf16.mxu0 0
  %1312 = vmatpush1.bf16.msra.mxu0 %v289
  %1313 = vmatprep.subr.bf16.mxu0 0
  %1314 = vmatpush1.bf16.msra.mxu0 %v290
  %1315 = vmatprep.subr.bf16.mxu0 0
  %1316 = vmatpush1.bf16.msra.mxu0 %v291
  %1317 = vmatprep.subr.bf16.mxu0 0
  %1318 = vmatpush1.bf16.msra.mxu0 %v292
  %1319 = vmatprep.subr.bf16.mxu0 0
  %1320 = vmatpush1.bf16.msra.mxu0 %v293
  %1321 = vmatprep.subr.bf16.mxu0 0
  %1322 = vmatpush1.bf16.msra.mxu0 %v294
  %1323 = vmatprep.subr.bf16.mxu0 0
  %1324 = vmatpush1.bf16.msra.mxu0 %v295
  %1325 = vmatprep.subr.bf16.mxu0 0
  %1326 = vmatpush1.bf16.msra.mxu0 %v296
  %1327 = vmatprep.subr.bf16.mxu0 0
  %1328 = vmatpush1.bf16.msra.mxu0 %v297
  %1329 = vmatprep.subr.bf16.mxu0 0
  %1330 = vmatpush1.bf16.msra.mxu0 %v298
  %1331 = vmatprep.subr.bf16.mxu0 0
  %1332 = vmatpush1.bf16.msra.mxu0 %v299
  %1333 = vmatprep.subr.bf16.mxu0 0
  %1334 = vmatpush1.bf16.msra.mxu0 %v300
  %1335 = vmatprep.subr.bf16.mxu0 0
  %1336 = vmatpush1.bf16.msra.mxu0 %v301
  %1337 = vmatprep.subr.bf16.mxu0 0
  %1338 = vmatpush1.bf16.msra.mxu0 %v302
  %1339 = vmatprep.subr.bf16.mxu0 0
  %1340 = vmatpush1.bf16.msra.mxu0 %v303
  %1341 = vmatprep.mubr.bf16.mxu0 %v1258
  %1342 = vmatmul.mubr.bf16.gmra.mrb[0].mxu0 %v1257
  %v1343 = vpop.f32.mrb[0].mxu0
  %v1344 = vadd.f32 %v95, %v1343
  %v1345 = vpop.f32.mrb[0].mxu0
  %v1346 = vpop.f32.mrb[0].mxu0
  %v1347 = vadd.f32 %v95, %v1346
  %v1348 = vpop.f32.mrb[0].mxu0
  %1349 = vmatprep.mubr.bf16.mxu0 %v1260
  %1350 = vmatmul.mubr.bf16.gmra.mrb[0].mxu0 %v1259
  %v1351 = vpop.f32.mrb[0].mxu0
  %v1352 = vadd.f32 %v95, %v1351
  %v1353 = vpop.f32.mrb[0].mxu0
  %v1354 = vpop.f32.mrb[0].mxu0
  %v1355 = vadd.f32 %v95, %v1354
  %v1356 = vpop.f32.mrb[0].mxu0
  %1357 = vmatprep.mubr.bf16.mxu0 %v1262
  %1358 = vmatmul.mubr.bf16.gmra.mrb[0].mxu0 %v1261
  %v1359 = vpop.f32.mrb[0].mxu0
  %v1360 = vadd.f32 %v95, %v1359
  %v1361 = vpop.f32.mrb[0].mxu0
  %v1362 = vpop.f32.mrb[0].mxu0
  %v1363 = vadd.f32 %v95, %v1362
  %v1364 = vpop.f32.mrb[0].mxu0
  %1365 = vmatprep.mubr.bf16.mxu0 %v1264
  %1366 = vmatmul.mubr.bf16.gmra.mrb[0].mxu0 %v1263
  %v1367 = vpop.f32.mrb[0].mxu0
  %v1368 = vadd.f32 %v95, %v1367
  %v1369 = vpop.f32.mrb[0].mxu0
  %v1370 = vpop.f32.mrb[0].mxu0
  %v1371 = vadd.f32 %v95, %v1370
  %v1372 = vpop.f32.mrb[0].mxu0
  %1373 = vmatprep.mubr.bf16.mxu0 %v1266
  %1374 = vmatmul.mubr.bf16.gmra.mrb[0].mxu0 %v1265
  %v1375 = vpop.f32.mrb[0].mxu0
  %v1376 = vadd.f32 %v95, %v1375
  %v1377 = vpop.f32.mrb[0].mxu0
  %v1378 = vpop.f32.mrb[0].mxu0
  %v1379 = vadd.f32 %v95, %v1378
  %v1380 = vpop.f32.mrb[0].mxu0
  %1381 = vmatprep.mubr.bf16.mxu0 %v1268
  %1382 = vmatmul.mubr.bf16.gmra.mrb[0].mxu0 %v1267
  %v1383 = vpop.f32.mrb[0].mxu0
  %v1384 = vadd.f32 %v95, %v1383
  %v1385 = vpop.f32.mrb[0].mxu0
  %v1386 = vpop.f32.mrb[0].mxu0
  %v1387 = vadd.f32 %v95, %v1386
  %v1388 = vpop.f32.mrb[0].mxu0
  %1389 = vmatprep.mubr.bf16.mxu0 %v1270
  %1390 = vmatmul.mubr.bf16.gmra.mrb[0].mxu0 %v1269
  %v1391 = vpop.f32.mrb[0].mxu0
  %v1392 = vadd.f32 %v95, %v1391
  %v1393 = vpop.f32.mrb[0].mxu0
  %v1394 = vpop.f32.mrb[0].mxu0
  %v1395 = vadd.f32 %v95, %v1394
  %v1396 = vpop.f32.mrb[0].mxu0
  %1397 = vmatprep.mubr.bf16.mxu0 %v1272
  %1398 = vmatmul.mubr.bf16.gmra.mrb[0].mxu0 %v1271
  %v1399 = vpop.f32.mrb[0].mxu0
  %v1400 = vadd.f32 %v95, %v1399
  %v1401 = vpop.f32.mrb[0].mxu0
  %v1402 = vpop.f32.mrb[0].mxu0
  %v1403 = vadd.f32 %v95, %v1402
  %v1404 = vpop.f32.mrb[0].mxu0
  %1405 = vmatprep.mubr.bf16.mxu0 %v1274
  %1406 = vmatmul.mubr.bf16.gmra.mrb[0].mxu0 %v1273
  %v1407 = vpop.f32.mrb[0].mxu0
  %v1408 = vadd.f32 %v95, %v1407
  %v1409 = vpop.f32.mrb[0].mxu0
  %v1410 = vpop.f32.mrb[0].mxu0
  %v1411 = vadd.f32 %v95, %v1410
  %v1412 = vpop.f32.mrb[0].mxu0
  %1413 = vmatprep.mubr.bf16.mxu0 %v1276
  %1414 = vmatmul.mubr.bf16.gmra.mrb[0].mxu0 %v1275
  %v1415 = vpop.f32.mrb[0].mxu0
  %v1416 = vadd.f32 %v95, %v1415
  %v1417 = vpop.f32.mrb[0].mxu0
  %v1418 = vpop.f32.mrb[0].mxu0
  %v1419 = vadd.f32 %v95, %v1418
  %v1420 = vpop.f32.mrb[0].mxu0
  %1421 = vmatprep.mubr.bf16.mxu0 %v1278
  %1422 = vmatmul.mubr.bf16.gmra.mrb[0].mxu0 %v1277
  %v1423 = vpop.f32.mrb[0].mxu0
  %v1424 = vadd.f32 %v95, %v1423
  %v1425 = vpop.f32.mrb[0].mxu0
  %v1426 = vpop.f32.mrb[0].mxu0
  %v1427 = vadd.f32 %v95, %v1426
  %v1428 = vpop.f32.mrb[0].mxu0
  %1429 = vmatprep.mubr.bf16.mxu0 %v1280
  %1430 = vmatmul.mubr.bf16.gmra.mrb[0].mxu0 %v1279
  %v1431 = vpop.f32.mrb[0].mxu0
  %v1432 = vadd.f32 %v95, %v1431
  %v1433 = vpop.f32.mrb[0].mxu0
  %v1434 = vpop.f32.mrb[0].mxu0
  %v1435 = vadd.f32 %v95, %v1434
  %v1436 = vpop.f32.mrb[0].mxu0
  %1437 = vmatprep.mubr.bf16.mxu0 %v1282
  %1438 = vmatmul.mubr.bf16.gmra.mrb[0].mxu0 %v1281
  %v1439 = vpop.f32.mrb[0].mxu0
  %v1440 = vadd.f32 %v95, %v1439
  %v1441 = vpop.f32.mrb[0].mxu0
  %v1442 = vpop.f32.mrb[0].mxu0
  %v1443 = vpop.f32.mrb[0].mxu0
  %1444 = vdwg.mxu0
  %v1445 = vmax.f32 %v1344, 0.0
  %v1446 = vmax.f32 %v1347, 0.0
  %v1447 = vmax.f32 %v1352, 0.0
  %v1448 = vmax.f32 %v1355, 0.0
  %v1449 = vmax.f32 %v1360, 0.0
  %v1450 = vmax.f32 %v1363, 0.0
  %v1451 = vmax.f32 %v1368, 0.0
  %v1452 = vmax.f32 %v1371, 0.0
  %v1453 = vmax.f32 %v1376, 0.0
  %v1454 = vmax.f32 %v1379, 0.0
  %v1455 = vmax.f32 %v1384, 0.0
  %v1456 = vmax.f32 %v1387, 0.0
  %v1457 = vmax.f32 %v1392, 0.0
  %v1458 = vmax.f32 %v1395, 0.0
  %v1459 = vmax.f32 %v1400, 0.0
  %v1460 = vmax.f32 %v1403, 0.0
  %v1461 = vmax.f32 %v1408, 0.0
  %v1462 = vmax.f32 %v1411, 0.0
  %v1463 = vmax.f32 %v1416, 0.0
  %v1464 = vmax.f32 %v1419, 0.0
  %v1465 = vmax.f32 %v1424, 0.0
  %v1466 = vmax.f32 %v1427, 0.0
  %v1467 = vmax.f32 %v1432, 0.0
  %v1468 = vmax.f32 %v1435, 0.0
  %v1469 = vmax.f32 %v1440, 0.0
  %v1470 = vmax.f32 %v1132, %v1445
  %v1471 = vmax.f32 %v1133, %v1446
  %v1472 = vmax.f32 %v1134, %v1447
  %v1473 = vmax.f32 %v1135, %v1448
  %v1474 = vmax.f32 %v1136, %v1449
  %v1475 = vmax.f32 %v1137, %v1450
  %v1476 = vmax.f32 %v1138, %v1451
  %v1477 = vmax.f32 %v1139, %v1452
  %v1478 = vmax.f32 %v1140, %v1453
  %v1479 = vmax.f32 %v1141, %v1454
  %v1480 = vmax.f32 %v1142, %v1455
  %v1481 = vmax.f32 %v1143, %v1456
  %v1482 = vmax.f32 %v1144, %v1457
  %v1483 = vmax.f32 %v1145, %v1458
  %v1484 = vmax.f32 %v1146, %v1459
  %v1485 = vmax.f32 %v1147, %v1460
  %v1486 = vmax.f32 %v1148, %v1461
  %v1487 = vmax.f32 %v1149, %v1462
  %v1488 = vmax.f32 %v1150, %v1463
  %v1489 = vmax.f32 %v1151, %v1464
  %v1490 = vmax.f32 %v1152, %v1465
  %v1491 = vmax.f32 %v1153, %v1466
  %v1492 = vmax.f32 %v1154, %v1467
  %v1493 = vmax.f32 %v1155, %v1468
  %v1494 = vmax.f32 %v1156, %v1469
  %v1495 = vpack.c.bf16 %v1471, %v1470
  %v1496 = vpack.c.bf16 %v1473, %v1472
  %v1497 = vpack.c.bf16 %v1475, %v1474
  %v1498 = vpack.c.bf16 %v1477, %v1476
  %v1499 = vpack.c.bf16 %v1479, %v1478
  %v1500 = vpack.c.bf16 %v1481, %v1480
  %v1501 = vpack.c.bf16 %v1483, %v1482
  %v1502 = vpack.c.bf16 %v1485, %v1484
  %v1503 = vpack.c.bf16 %v1487, %v1486
  %v1504 = vpack.c.bf16 %v1489, %v1488
  %v1505 = vpack.c.bf16 %v1491, %v1490
  %v1506 = vpack.c.bf16 %v1493, %v1492
  %v1507 = vpack.c.bf16 %v1494, %v1494
  %v1508 = vld [vmem:[%s3] sm:$0xff]
  %v1509 = vld [vmem:[%s3 + $0x8] sm:$0xff]
  %v1510 = vld [vmem:[%s3 + $0x10] sm:$0xff]
  %v1511 = vld [vmem:[%s3 + $0x18] sm:$0xff]
  %v1512 = vld [vmem:[%s3 + $0x20] sm:$0xff]
  %v1513 = vld [vmem:[%s3 + $0x28] sm:$0xff]
  %v1514 = vld [vmem:[%s3 + $0x30] sm:$0x11]
  %v1522 = vunpack.c.l.b16 %v1508
  %v1523 = vunpack.c.h.b16 %v1508
  %v1524 = vunpack.c.l.b16 %v1509
  %v1525 = vunpack.c.h.b16 %v1509
  %v1526 = vunpack.c.l.b16 %v1510
  %v1527 = vunpack.c.h.b16 %v1510
  %v1528 = vunpack.c.l.b16 %v1511
  %v1529 = vunpack.c.h.b16 %v1511
  %v1530 = vunpack.c.l.b16 %v1512
  %v1531 = vunpack.c.h.b16 %v1512
  %v1532 = vunpack.c.l.b16 %v1513
  %v1533 = vunpack.c.h.b16 %v1513
  %v1534 = vunpack.c.l.b16 %v1514
  %v1535 = vunpack.c.h.b16 %v1514
  %v1536 = vpack.c.b16 %v1524, %v1522
  %v1537 = vpack.c.b16 %v1525, %v1523
  %v1538 = vpack.c.b16 %v1528, %v1526
  %v1539 = vpack.c.b16 %v1529, %v1527
  %v1540 = vpack.c.b16 %v1532, %v1530
  %v1541 = vpack.c.b16 %v1533, %v1531
  %v1542 = vpack.c.b16 %v1534, %v1534
  %v1543 = vpack.c.b16 %v1535, %v1535
  %vm1548 = vcmask 588800
  %v1550 = vsel %vm1548, %v1537, 0
  %v1553 = vsel %vm1548, %v1539, 0
  %v1556 = vsel %vm1548, %v1541, 0
  %v1559 = vsel %vm1548, %v1543, 0
  %vm1561 = vcmask 1043456
  %v1563 = vsel %vm1561, %v1507, 0
  %1565 = vmatprep.subr.bf16.mxu0 0
  %1566 = vmatpush1.bf16.msra.mxu0 %v1495
  %1567 = vmatprep.subr.bf16.mxu0 0
  %1568 = vmatpush1.bf16.msra.mxu0 %v1496
  %1569 = vmatprep.subr.bf16.mxu0 0
  %1570 = vmatpush1.bf16.msra.mxu0 %v1497
  %1571 = vmatprep.subr.bf16.mxu0 0
  %1572 = vmatpush1.bf16.msra.mxu0 %v1498
  %1573 = vmatprep.subr.bf16.mxu0 0
  %1574 = vmatpush1.bf16.msra.mxu0 %v1499
  %1575 = vmatprep.subr.bf16.mxu0 0
  %1576 = vmatpush1.bf16.msra.mxu0 %v1500
  %1577 = vmatprep.subr.bf16.mxu0 0
  %1578 = vmatpush1.bf16.msra.mxu0 %v1501
  %1579 = vmatprep.subr.bf16.mxu0 0
  %1580 = vmatpush1.bf16.msra.mxu0 %v1502
  %1581 = vmatprep.subr.bf16.mxu0 0
  %1582 = vmatpush1.bf16.msra.mxu0 %v1503
  %1583 = vmatprep.subr.bf16.mxu0 0
  %1584 = vmatpush1.bf16.msra.mxu0 %v1504
  %1585 = vmatprep.subr.bf16.mxu0 0
  %1586 = vmatpush1.bf16.msra.mxu0 %v1505
  %1587 = vmatprep.subr.bf16.mxu0 0
  %1588 = vmatpush1.bf16.msra.mxu0 %v1506
  %1589 = vmatprep.subr.bf16.mxu0 0
  %1590 = vmatpush1.bf16.msra.mxu0 %v1563
  %1591 = vmatprep.subr.bf16.mxu0 0
  %1592 = vmatpush1.bf16.msra.mxu0 0
  %1593 = vmatprep.subr.bf16.mxu0 0
  %1594 = vmatpush1.bf16.msra.mxu0 0
  %1595 = vmatprep.subr.bf16.mxu0 0
  %1596 = vmatpush1.bf16.msra.mxu0 0
  %1597 = vmatprep.mubr.bf16.mxu0 %v1550
  %1598 = vmatmul.mubr.bf16.gmra.mrb[0].mxu0 %v1536
  %v1599 = vpop.f32.mrb[0].mxu0
  %v1600 = vadd.f32 0.0, %v1599
  %v1601 = vpop.f32.mrb[0].mxu0
  %v1602 = vpop.f32.mrb[0].mxu0
  %v1603 = vadd.f32 0.0, %v1602
  %v1604 = vpop.f32.mrb[0].mxu0
  %1605 = vmatprep.mubr.bf16.mxu0 %v1553
  %1606 = vmatmul.mubr.bf16.gmra.mrb[0].mxu0 %v1538
  %v1607 = vpop.f32.mrb[0].mxu0
  %v1608 = vadd.f32 0.0, %v1607
  %v1609 = vpop.f32.mrb[0].mxu0
  %v1610 = vpop.f32.mrb[0].mxu0
  %v1611 = vadd.f32 0.0, %v1610
  %v1612 = vpop.f32.mrb[0].mxu0
  %1613 = vmatprep.mubr.bf16.mxu0 %v1556
  %1614 = vmatmul.mubr.bf16.gmra.mrb[0].mxu0 %v1540
  %v1615 = vpop.f32.mrb[0].mxu0
  %v1616 = vadd.f32 0.0, %v1615
  %v1617 = vpop.f32.mrb[0].mxu0
  %v1618 = vpop.f32.mrb[0].mxu0
  %v1619 = vadd.f32 0.0, %v1618
  %v1620 = vpop.f32.mrb[0].mxu0
  %1621 = vmatprep.mubr.bf16.mxu0 %v1559
  %1622 = vmatmul.mubr.bf16.gmra.mrb[0].mxu0 %v1542
  %v1623 = vpop.f32.mrb[0].mxu0
  %v1624 = vadd.f32 0.0, %v1623
  %v1625 = vpop.f32.mrb[0].mxu0
  %v1626 = vpop.f32.mrb[0].mxu0
  %v1627 = vpop.f32.mrb[0].mxu0
  %1628 = vdwg.mxu0
  %v1629 = vpack.c.bf16 %v1603, %v1600
  %v1630 = vpack.c.bf16 %v1611, %v1608
  %v1631 = vpack.c.bf16 %v1619, %v1616
  %v1632 = vpack.c.bf16 %v1624, %v1624
  %v1633 = vld [vmem:[%s4] sm:$0xf]
  %v1634 = vld [vmem:[%s4 + $0x4] sm:$0xf]
  %v1635 = vld [vmem:[%s4 + $0x8] sm:$0xf]
  %v1636 = vld [vmem:[%s4 + $0xc] sm:$0xf]
  %s1637 = scalar_lea.vmem %s3, 56
  %v1638 = vld [vmem:[%s1637] sm:$0xff]
  %v1639 = vld [vmem:[%s1637 + $0x8] sm:$0xff]
  %v1640 = vld [vmem:[%s1637 + $0x10] sm:$0xff]
  %v1641 = vld [vmem:[%s1637 + $0x18] sm:$0xff]
  %v1642 = vld [vmem:[%s1637 + $0x20] sm:$0xff]
  %v1643 = vld [vmem:[%s1637 + $0x28] sm:$0xff]
  %v1644 = vld [vmem:[%s1637 + $0x30] sm:$0x11]
  %v1652 = vunpack.c.l.b16 %v1638
  %v1653 = vunpack.c.h.b16 %v1638
  %v1654 = vunpack.c.l.b16 %v1639
  %v1655 = vunpack.c.h.b16 %v1639
  %v1656 = vunpack.c.l.b16 %v1640
  %v1657 = vunpack.c.h.b16 %v1640
  %v1658 = vunpack.c.l.b16 %v1641
  %v1659 = vunpack.c.h.b16 %v1641
  %v1660 = vunpack.c.l.b16 %v1642
  %v1661 = vunpack.c.h.b16 %v1642
  %v1662 = vunpack.c.l.b16 %v1643
  %v1663 = vunpack.c.h.b16 %v1643
  %v1664 = vunpack.c.l.b16 %v1644
  %v1665 = vunpack.c.h.b16 %v1644
  %v1666 = vpack.c.b16 %v1654, %v1652
  %v1667 = vpack.c.b16 %v1655, %v1653
  %v1668 = vpack.c.b16 %v1658, %v1656
  %v1669 = vpack.c.b16 %v1659, %v1657
  %v1670 = vpack.c.b16 %v1662, %v1660
  %v1671 = vpack.c.b16 %v1663, %v1661
  %v1672 = vpack.c.b16 %v1664, %v1664
  %v1673 = vpack.c.b16 %v1665, %v1665
  %v1679 = vsel %vm1548, %v1667, 0
  %v1682 = vsel %vm1548, %v1669, 0
  %v1685 = vsel %vm1548, %v1671, 0
  %v1688 = vsel %vm1548, %v1673, 0
  %1690 = vmatprep.subr.bf16.mxu0 0
  %1691 = vmatpush1.bf16.msra.mxu0 %v1495
  %1692 = vmatprep.subr.bf16.mxu0 0
  %1693 = vmatpush1.bf16.msra.mxu0 %v1496
  %1694 = vmatprep.subr.bf16.mxu0 0
  %1695 = vmatpush1.bf16.msra.mxu0 %v1497
  %1696 = vmatprep.subr.bf16.mxu0 0
  %1697 = vmatpush1.bf16.msra.mxu0 %v1498
  %1698 = vmatprep.subr.bf16.mxu0 0
  %1699 = vmatpush1.bf16.msra.mxu0 %v1499
  %1700 = vmatprep.subr.bf16.mxu0 0
  %1701 = vmatpush1.bf16.msra.mxu0 %v1500
  %1702 = vmatprep.subr.bf16.mxu0 0
  %1703 = vmatpush1.bf16.msra.mxu0 %v1501
  %1704 = vmatprep.subr.bf16.mxu0 0
  %1705 = vmatpush1.bf16.msra.mxu0 %v1502
  %1706 = vmatprep.subr.bf16.mxu0 0
  %1707 = vmatpush1.bf16.msra.mxu0 %v1503
  %1708 = vmatprep.subr.bf16.mxu0 0
  %1709 = vmatpush1.bf16.msra.mxu0 %v1504
  %1710 = vmatprep.subr.bf16.mxu0 0
  %1711 = vmatpush1.bf16.msra.mxu0 %v1505
  %1712 = vmatprep.subr.bf16.mxu0 0
  %1713 = vmatpush1.bf16.msra.mxu0 %v1506
  %1714 = vmatprep.subr.bf16.mxu0 0
  %1715 = vmatpush1.bf16.msra.mxu0 %v1563
  %1716 = vmatprep.subr.bf16.mxu0 0
  %1717 = vmatpush1.bf16.msra.mxu0 0
  %1718 = vmatprep.subr.bf16.mxu0 0
  %1719 = vmatpush1.bf16.msra.mxu0 0
  %1720 = vmatprep.subr.bf16.mxu0 0
  %1721 = vmatpush1.bf16.msra.mxu0 0
  %1722 = vmatprep.mubr.bf16.mxu0 %v1679
  %1723 = vmatmul.mubr.bf16.gmra.mrb[0].mxu0 %v1666
  %v1724 = vpop.f32.mrb[0].mxu0
  %v1725 = vadd.f32 0.0, %v1724
  %v1726 = vpop.f32.mrb[0].mxu0
  %v1727 = vpop.f32.mrb[0].mxu0
  %v1728 = vadd.f32 0.0, %v1727
  %v1729 = vpop.f32.mrb[0].mxu0
  %1730 = vmatprep.mubr.bf16.mxu0 %v1682
  %1731 = vmatmul.mubr.bf16.gmra.mrb[0].mxu0 %v1668
  %v1732 = vpop.f32.mrb[0].mxu0
  %v1733 = vadd.f32 0.0, %v1732
  %v1734 = vpop.f32.mrb[0].mxu0
  %v1735 = vpop.f32.mrb[0].mxu0
  %v1736 = vadd.f32 0.0, %v1735
  %v1737 = vpop.f32.mrb[0].mxu0
  %1738 = vmatprep.mubr.bf16.mxu0 %v1685
  %1739 = vmatmul.mubr.bf16.gmra.mrb[0].mxu0 %v1670
  %v1740 = vpop.f32.mrb[0].mxu0
  %v1741 = vadd.f32 0.0, %v1740
  %v1742 = vpop.f32.mrb[0].mxu0
  %v1743 = vpop.f32.mrb[0].mxu0
  %v1744 = vadd.f32 0.0, %v1743
  %v1745 = vpop.f32.mrb[0].mxu0
  %1746 = vmatprep.mubr.bf16.mxu0 %v1688
  %1747 = vmatmul.mubr.bf16.gmra.mrb[0].mxu0 %v1672
  %v1748 = vpop.f32.mrb[0].mxu0
  %v1749 = vadd.f32 0.0, %v1748
  %v1750 = vpop.f32.mrb[0].mxu0
  %v1751 = vpop.f32.mrb[0].mxu0
  %v1752 = vpop.f32.mrb[0].mxu0
  %1753 = vdwg.mxu0
  %v1754 = vpack.c.bf16 %v1728, %v1725
  %v1755 = vpack.c.bf16 %v1736, %v1733
  %v1756 = vpack.c.bf16 %v1744, %v1741
  %v1757 = vpack.c.bf16 %v1749, %v1749
  %s1758 = scalar_lea.vmem %s4, 16
  %v1759 = vld [vmem:[%s1758] sm:$0xf]
  %v1760 = vld [vmem:[%s1758 + $0x4] sm:$0xf]
  %v1761 = vld [vmem:[%s1758 + $0x8] sm:$0xf]
  %v1762 = vld [vmem:[%s1758 + $0xc] sm:$0xf]
  %v1767 = vunpack.c.l.b16 %v1759
  %v1768 = vunpack.c.l.b16 %v1760
  %v1769 = vunpack.c.l.b16 %v1761
  %v1770 = vunpack.c.l.b16 %v1762
  %v1771 = vpack.c.b16 %v1768, %v1767
  %v1772 = vpack.c.b16 %v1770, %v1769
  %vm1775 = vcmask 261120
  %v1777 = vsel %vm1775, %v1754, 0
  %v1780 = vsel %vm1775, %v1755, 0
  %v1783 = vsel %vm1775, %v1756, 0
  %v1786 = vsel %vm1775, %v1757, 0
  %1788 = vmatprep.subr.bf16.mxu0 0
  %1789 = vmatpush1.bf16.msra.mxu0 %v1771
  %1790 = vmatprep.subr.bf16.mxu0 0
  %1791 = vmatpush1.bf16.msra.mxu0 %v1772
  %1792 = vmatprep.subr.bf16.mxu0 0
  %1793 = vmatpush1.bf16.msra.mxu0 0
  %1794 = vmatprep.subr.bf16.mxu0 0
  %1795 = vmatpush1.bf16.msra.mxu0 0
  %1796 = vmatprep.subr.bf16.mxu0 0
  %1797 = vmatpush1.bf16.msra.mxu0 0
  %1798 = vmatprep.subr.bf16.mxu0 0
  %1799 = vmatpush1.bf16.msra.mxu0 0
  %1800 = vmatprep.subr.bf16.mxu0 0
  %1801 = vmatpush1.bf16.msra.mxu0 0
  %1802 = vmatprep.subr.bf16.mxu0 0
  %1803 = vmatpush1.bf16.msra.mxu0 0
  %1804 = vmatprep.subr.bf16.mxu0 0
  %1805 = vmatpush1.bf16.msra.mxu0 0
  %1806 = vmatprep.subr.bf16.mxu0 0
  %1807 = vmatpush1.bf16.msra.mxu0 0
  %1808 = vmatprep.subr.bf16.mxu0 0
  %1809 = vmatpush1.bf16.msra.mxu0 0
  %1810 = vmatprep.subr.bf16.mxu0 0
  %1811 = vmatpush1.bf16.msra.mxu0 0
  %1812 = vmatprep.subr.bf16.mxu0 0
  %1813 = vmatpush1.bf16.msra.mxu0 0
  %1814 = vmatprep.subr.bf16.mxu0 0
  %1815 = vmatpush1.bf16.msra.mxu0 0
  %1816 = vmatprep.subr.bf16.mxu0 0
  %1817 = vmatpush1.bf16.msra.mxu0 0
  %1818 = vmatprep.subr.bf16.mxu0 0
  %1819 = vmatpush1.bf16.msra.mxu0 0
  %1820 = vmatprep.mubr.bf16.mxu0 0
  %1821 = vmatmul.mubr.bf16.gmra.mrb[0].mxu0 %v1777
  %v1822 = vpop.f32.mrb[0].mxu0
  %v1823 = vadd.f32 0.0, %v1822
  %v1824 = vpop.f32.mrb[0].mxu0
  %v1825 = vpop.f32.mrb[0].mxu0
  %v1826 = vadd.f32 0.0, %v1825
  %v1827 = vpop.f32.mrb[0].mxu0
  %1828 = vmatprep.mubr.bf16.mxu0 0
  %1829 = vmatmul.mubr.bf16.gmra.mrb[0].mxu0 %v1780
  %v1830 = vpop.f32.mrb[0].mxu0
  %v1831 = vadd.f32 0.0, %v1830
  %v1832 = vpop.f32.mrb[0].mxu0
  %v1833 = vpop.f32.mrb[0].mxu0
  %v1834 = vadd.f32 0.0, %v1833
  %v1835 = vpop.f32.mrb[0].mxu0
  %1836 = vmatprep.mubr.bf16.mxu0 0
  %1837 = vmatmul.mubr.bf16.gmra.mrb[0].mxu0 %v1783
  %v1838 = vpop.f32.mrb[0].mxu0
  %v1839 = vadd.f32 0.0, %v1838
  %v1840 = vpop.f32.mrb[0].mxu0
  %v1841 = vpop.f32.mrb[0].mxu0
  %v1842 = vadd.f32 0.0, %v1841
  %v1843 = vpop.f32.mrb[0].mxu0
  %1844 = vmatprep.mubr.bf16.mxu0 0
  %1845 = vmatmul.mubr.bf16.gmra.mrb[0].mxu0 %v1786
  %v1846 = vpop.f32.mrb[0].mxu0
  %v1847 = vadd.f32 0.0, %v1846
  %v1848 = vpop.f32.mrb[0].mxu0
  %v1849 = vpop.f32.mrb[0].mxu0
  %v1850 = vpop.f32.mrb[0].mxu0
  %1851 = vdwg.mxu0
  %v1856 = vunpack.c.l.b16 %v1633
  %v1857 = vunpack.c.l.b16 %v1634
  %v1858 = vunpack.c.l.b16 %v1635
  %v1859 = vunpack.c.l.b16 %v1636
  %v1860 = vpack.c.b16 %v1857, %v1856
  %v1861 = vpack.c.b16 %v1859, %v1858
  %v1865 = vsel %vm1775, %v1629, 0
  %v1868 = vsel %vm1775, %v1630, 0
  %v1871 = vsel %vm1775, %v1631, 0
  %v1874 = vsel %vm1775, %v1632, 0
  %1876 = vmatprep.subr.bf16.mxu0 0
  %1877 = vmatpush1.bf16.msra.mxu0 %v1860
  %1878 = vmatprep.subr.bf16.mxu0 0
  %1879 = vmatpush1.bf16.msra.mxu0 %v1861
  %1880 = vmatprep.subr.bf16.mxu0 0
  %1881 = vmatpush1.bf16.msra.mxu0 0
  %1882 = vmatprep.subr.bf16.mxu0 0
  %1883 = vmatpush1.bf16.msra.mxu0 0
  %1884 = vmatprep.subr.bf16.mxu0 0
  %1885 = vmatpush1.bf16.msra.mxu0 0
  %1886 = vmatprep.subr.bf16.mxu0 0
  %1887 = vmatpush1.bf16.msra.mxu0 0
  %1888 = vmatprep.subr.bf16.mxu0 0
  %1889 = vmatpush1.bf16.msra.mxu0 0
  %1890 = vmatprep.subr.bf16.mxu0 0
  %1891 = vmatpush1.bf16.msra.mxu0 0
  %1892 = vmatprep.subr.bf16.mxu0 0
  %1893 = vmatpush1.bf16.msra.mxu0 0
  %1894 = vmatprep.subr.bf16.mxu0 0
  %1895 = vmatpush1.bf16.msra.mxu0 0
  %1896 = vmatprep.subr.bf16.mxu0 0
  %1897 = vmatpush1.bf16.msra.mxu0 0
  %1898 = vmatprep.subr.bf16.mxu0 0
  %1899 = vmatpush1.bf16.msra.mxu0 0
  %1900 = vmatprep.subr.bf16.mxu0 0
  %1901 = vmatpush1.bf16.msra.mxu0 0
  %1902 = vmatprep.subr.bf16.mxu0 0
  %1903 = vmatpush1.bf16.msra.mxu0 0
  %1904 = vmatprep.subr.bf16.mxu0 0
  %1905 = vmatpush1.bf16.msra.mxu0 0
  %1906 = vmatprep.subr.bf16.mxu0 0
  %1907 = vmatpush1.bf16.msra.mxu0 0
  %1908 = vmatprep.mubr.bf16.mxu0 0
  %1909 = vmatmul.mubr.bf16.gmra.mrb[0].mxu0 %v1865
  %v1910 = vpop.f32.mrb[0].mxu0
  %v1911 = vadd.f32 %v1823, %v1910
  %v1912 = vpop.f32.mrb[0].mxu0
  %v1913 = vpop.f32.mrb[0].mxu0
  %v1914 = vadd.f32 %v1826, %v1913
  %v1915 = vpop.f32.mrb[0].mxu0
  %1916 = vmatprep.mubr.bf16.mxu0 0
  %1917 = vmatmul.mubr.bf16.gmra.mrb[0].mxu0 %v1868
  %v1918 = vpop.f32.mrb[0].mxu0
  %v1919 = vadd.f32 %v1831, %v1918
  %v1920 = vpop.f32.mrb[0].mxu0
  %v1921 = vpop.f32.mrb[0].mxu0
  %v1922 = vadd.f32 %v1834, %v1921
  %v1923 = vpop.f32.mrb[0].mxu0
  %1924 = vmatprep.mubr.bf16.mxu0 0
  %1925 = vmatmul.mubr.bf16.gmra.mrb[0].mxu0 %v1871
  %v1926 = vpop.f32.mrb[0].mxu0
  %v1927 = vadd.f32 %v1839, %v1926
  %v1928 = vpop.f32.mrb[0].mxu0
  %v1929 = vpop.f32.mrb[0].mxu0
  %v1930 = vadd.f32 %v1842, %v1929
  %v1931 = vpop.f32.mrb[0].mxu0
  %1932 = vmatprep.mubr.bf16.mxu0 0
  %1933 = vmatmul.mubr.bf16.gmra.mrb[0].mxu0 %v1874
  %v1934 = vpop.f32.mrb[0].mxu0
  %v1935 = vadd.f32 %v1847, %v1934
  %v1936 = vpop.f32.mrb[0].mxu0
  %v1937 = vpop.f32.mrb[0].mxu0
  %v1938 = vpop.f32.mrb[0].mxu0
  %1939 = vdwg.mxu0
  %s1940 = scalar_lea.vmem %s3, 112
  %v1941 = vld [vmem:[%s1940] sm:$0xff]
  %v1942 = vld [vmem:[%s1940 + $0x8] sm:$0xff]
  %v1943 = vld [vmem:[%s1940 + $0x10] sm:$0xff]
  %v1944 = vld [vmem:[%s1940 + $0x18] sm:$0xff]
  %v1945 = vld [vmem:[%s1940 + $0x20] sm:$0xff]
  %v1946 = vld [vmem:[%s1940 + $0x28] sm:$0xff]
  %v1947 = vld [vmem:[%s1940 + $0x30] sm:$0x11]
  %v1955 = vunpack.c.l.b16 %v1941
  %v1956 = vunpack.c.h.b16 %v1941
  %v1957 = vunpack.c.l.b16 %v1942
  %v1958 = vunpack.c.h.b16 %v1942
  %v1959 = vunpack.c.l.b16 %v1943
  %v1960 = vunpack.c.h.b16 %v1943
  %v1961 = vunpack.c.l.b16 %v1944
  %v1962 = vunpack.c.h.b16 %v1944
  %v1963 = vunpack.c.l.b16 %v1945
  %v1964 = vunpack.c.h.b16 %v1945
  %v1965 = vunpack.c.l.b16 %v1946
  %v1966 = vunpack.c.h.b16 %v1946
  %v1967 = vunpack.c.l.b16 %v1947
  %v1968 = vunpack.c.h.b16 %v1947
  %v1969 = vpack.c.b16 %v1957, %v1955
  %v1970 = vpack.c.b16 %v1958, %v1956
  %v1971 = vpack.c.b16 %v1961, %v1959
  %v1972 = vpack.c.b16 %v1962, %v1960
  %v1973 = vpack.c.b16 %v1965, %v1963
  %v1974 = vpack.c.b16 %v1966, %v1964
  %v1975 = vpack.c.b16 %v1967, %v1967
  %v1976 = vpack.c.b16 %v1968, %v1968
  %v1982 = vsel %vm1548, %v1970, 0
  %v1985 = vsel %vm1548, %v1972, 0
  %v1988 = vsel %vm1548, %v1974, 0
  %v1991 = vsel %vm1548, %v1976, 0
  %1993 = vmatprep.subr.bf16.mxu0 0
  %1994 = vmatpush1.bf16.msra.mxu0 %v1495
  %1995 = vmatprep.subr.bf16.mxu0 0
  %1996 = vmatpush1.bf16.msra.mxu0 %v1496
  %1997 = vmatprep.subr.bf16.mxu0 0
  %1998 = vmatpush1.bf16.msra.mxu0 %v1497
  %1999 = vmatprep.subr.bf16.mxu0 0
  %2000 = vmatpush1.bf16.msra.mxu0 %v1498
  %2001 = vmatprep.subr.bf16.mxu0 0
  %2002 = vmatpush1.bf16.msra.mxu0 %v1499
  %2003 = vmatprep.subr.bf16.mxu0 0
  %2004 = vmatpush1.bf16.msra.mxu0 %v1500
  %2005 = vmatprep.subr.bf16.mxu0 0
  %2006 = vmatpush1.bf16.msra.mxu0 %v1501
  %2007 = vmatprep.subr.bf16.mxu0 0
  %2008 = vmatpush1.bf16.msra.mxu0 %v1502
  %2009 = vmatprep.subr.bf16.mxu0 0
  %2010 = vmatpush1.bf16.msra.mxu0 %v1503
  %2011 = vmatprep.subr.bf16.mxu0 0
  %2012 = vmatpush1.bf16.msra.mxu0 %v1504
  %2013 = vmatprep.subr.bf16.mxu0 0
  %2014 = vmatpush1.bf16.msra.mxu0 %v1505
  %2015 = vmatprep.subr.bf16.mxu0 0
  %2016 = vmatpush1.bf16.msra.mxu0 %v1506
  %2017 = vmatprep.subr.bf16.mxu0 0
  %2018 = vmatpush1.bf16.msra.mxu0 %v1563
  %2019 = vmatprep.subr.bf16.mxu0 0
  %2020 = vmatpush1.bf16.msra.mxu0 0
  %2021 = vmatprep.subr.bf16.mxu0 0
  %2022 = vmatpush1.bf16.msra.mxu0 0
  %2023 = vmatprep.subr.bf16.mxu0 0
  %2024 = vmatpush1.bf16.msra.mxu0 0
  %2025 = vmatprep.mubr.bf16.mxu0 %v1982
  %2026 = vmatmul.mubr.bf16.gmra.mrb[0].mxu0 %v1969
  %v2027 = vpop.f32.mrb[0].mxu0
  %v2028 = vadd.f32 0.0, %v2027
  %v2029 = vpop.f32.mrb[0].mxu0
  %v2030 = vpop.f32.mrb[0].mxu0
  %v2031 = vadd.f32 0.0, %v2030
  %v2032 = vpop.f32.mrb[0].mxu0
  %2033 = vmatprep.mubr.bf16.mxu0 %v1985
  %2034 = vmatmul.mubr.bf16.gmra.mrb[0].mxu0 %v1971
  %v2035 = vpop.f32.mrb[0].mxu0
  %v2036 = vadd.f32 0.0, %v2035
  %v2037 = vpop.f32.mrb[0].mxu0
  %v2038 = vpop.f32.mrb[0].mxu0
  %v2039 = vadd.f32 0.0, %v2038
  %v2040 = vpop.f32.mrb[0].mxu0
  %2041 = vmatprep.mubr.bf16.mxu0 %v1988
  %2042 = vmatmul.mubr.bf16.gmra.mrb[0].mxu0 %v1973
  %v2043 = vpop.f32.mrb[0].mxu0
  %v2044 = vadd.f32 0.0, %v2043
  %v2045 = vpop.f32.mrb[0].mxu0
  %v2046 = vpop.f32.mrb[0].mxu0
  %v2047 = vadd.f32 0.0, %v2046
  %v2048 = vpop.f32.mrb[0].mxu0
  %2049 = vmatprep.mubr.bf16.mxu0 %v1991
  %2050 = vmatmul.mubr.bf16.gmra.mrb[0].mxu0 %v1975
  %v2051 = vpop.f32.mrb[0].mxu0
  %v2052 = vadd.f32 0.0, %v2051
  %v2053 = vpop.f32.mrb[0].mxu0
  %v2054 = vpop.f32.mrb[0].mxu0
  %v2055 = vpop.f32.mrb[0].mxu0
  %2056 = vdwg.mxu0
  %v2057 = vpack.c.bf16 %v2031, %v2028
  %v2058 = vpack.c.bf16 %v2039, %v2036
  %v2059 = vpack.c.bf16 %v2047, %v2044
  %v2060 = vpack.c.bf16 %v2052, %v2052
  %s2061 = scalar_lea.vmem %s4, 32
  %v2062 = vld [vmem:[%s2061] sm:$0xf]
  %v2063 = vld [vmem:[%s2061 + $0x4] sm:$0xf]
  %v2064 = vld [vmem:[%s2061 + $0x8] sm:$0xf]
  %v2065 = vld [vmem:[%s2061 + $0xc] sm:$0xf]
  %v2070 = vunpack.c.l.b16 %v2062
  %v2071 = vunpack.c.l.b16 %v2063
  %v2072 = vunpack.c.l.b16 %v2064
  %v2073 = vunpack.c.l.b16 %v2065
  %v2074 = vpack.c.b16 %v2071, %v2070
  %v2075 = vpack.c.b16 %v2073, %v2072
  %v2079 = vsel %vm1775, %v2057, 0
  %v2082 = vsel %vm1775, %v2058, 0
  %v2085 = vsel %vm1775, %v2059, 0
  %v2088 = vsel %vm1775, %v2060, 0
  %2090 = vmatprep.subr.bf16.mxu0 0
  %2091 = vmatpush1.bf16.msra.mxu0 %v2074
  %2092 = vmatprep.subr.bf16.mxu0 0
  %2093 = vmatpush1.bf16.msra.mxu0 %v2075
  %2094 = vmatprep.subr.bf16.mxu0 0
  %2095 = vmatpush1.bf16.msra.mxu0 0
  %2096 = vmatprep.subr.bf16.mxu0 0
  %2097 = vmatpush1.bf16.msra.mxu0 0
  %2098 = vmatprep.subr.bf16.mxu0 0
  %2099 = vmatpush1.bf16.msra.mxu0 0
  %2100 = vmatprep.subr.bf16.mxu0 0
  %2101 = vmatpush1.bf16.msra.mxu0 0
  %2102 = vmatprep.subr.bf16.mxu0 0
  %2103 = vmatpush1.bf16.msra.mxu0 0
  %2104 = vmatprep.subr.bf16.mxu0 0
  %2105 = vmatpush1.bf16.msra.mxu0 0
  %2106 = vmatprep.subr.bf16.mxu0 0
  %2107 = vmatpush1.bf16.msra.mxu0 0
  %2108 = vmatprep.subr.bf16.mxu0 0
  %2109 = vmatpush1.bf16.msra.mxu0 0
  %2110 = vmatprep.subr.bf16.mxu0 0
  %2111 = vmatpush1.bf16.msra.mxu0 0
  %2112 = vmatprep.subr.bf16.mxu0 0
  %2113 = vmatpush1.bf16.msra.mxu0 0
  %2114 = vmatprep.subr.bf16.mxu0 0
  %2115 = vmatpush1.bf16.msra.mxu0 0
  %2116 = vmatprep.subr.bf16.mxu0 0
  %2117 = vmatpush1.bf16.msra.mxu0 0
  %2118 = vmatprep.subr.bf16.mxu0 0
  %2119 = vmatpush1.bf16.msra.mxu0 0
  %2120 = vmatprep.subr.bf16.mxu0 0
  %2121 = vmatpush1.bf16.msra.mxu0 0
  %2122 = vmatprep.mubr.bf16.mxu0 0
  %2123 = vmatmul.mubr.bf16.gmra.mrb[0].mxu0 %v2079
  %v2124 = vpop.f32.mrb[0].mxu0
  %v2125 = vadd.f32 0.0, %v2124
  %v2126 = vpop.f32.mrb[0].mxu0
  %v2127 = vpop.f32.mrb[0].mxu0
  %v2128 = vadd.f32 0.0, %v2127
  %v2129 = vpop.f32.mrb[0].mxu0
  %2130 = vmatprep.mubr.bf16.mxu0 0
  %2131 = vmatmul.mubr.bf16.gmra.mrb[0].mxu0 %v2082
  %v2132 = vpop.f32.mrb[0].mxu0
  %v2133 = vadd.f32 0.0, %v2132
  %v2134 = vpop.f32.mrb[0].mxu0
  %v2135 = vpop.f32.mrb[0].mxu0
  %v2136 = vadd.f32 0.0, %v2135
  %v2137 = vpop.f32.mrb[0].mxu0
  %2138 = vmatprep.mubr.bf16.mxu0 0
  %2139 = vmatmul.mubr.bf16.gmra.mrb[0].mxu0 %v2085
  %v2140 = vpop.f32.mrb[0].mxu0
  %v2141 = vadd.f32 0.0, %v2140
  %v2142 = vpop.f32.mrb[0].mxu0
  %v2143 = vpop.f32.mrb[0].mxu0
  %v2144 = vadd.f32 0.0, %v2143
  %v2145 = vpop.f32.mrb[0].mxu0
  %2146 = vmatprep.mubr.bf16.mxu0 0
  %2147 = vmatmul.mubr.bf16.gmra.mrb[0].mxu0 %v2088
  %v2148 = vpop.f32.mrb[0].mxu0
  %v2149 = vadd.f32 0.0, %v2148
  %v2150 = vpop.f32.mrb[0].mxu0
  %v2151 = vpop.f32.mrb[0].mxu0
  %v2152 = vpop.f32.mrb[0].mxu0
  %2153 = vdwg.mxu0
  %v2154 = vadd.f32 %v1911, %v2125
  %v2155 = vadd.f32 %v1914, %v2128
  %v2156 = vadd.f32 %v1919, %v2133
  %v2157 = vadd.f32 %v1922, %v2136
  %v2158 = vadd.f32 %v1927, %v2141
  %v2159 = vadd.f32 %v1930, %v2144
  %v2160 = vadd.f32 %v1935, %v2149
  %s2161 = scalar_lea.vmem %s3, 168
  %v2162 = vld [vmem:[%s2161] sm:$0xff]
  %v2163 = vld [vmem:[%s2161 + $0x8] sm:$0xff]
  %v2164 = vld [vmem:[%s2161 + $0x10] sm:$0xff]
  %v2165 = vld [vmem:[%s2161 + $0x18] sm:$0xff]
  %v2166 = vld [vmem:[%s2161 + $0x20] sm:$0xff]
  %v2167 = vld [vmem:[%s2161 + $0x28] sm:$0xff]
  %v2168 = vld [vmem:[%s2161 + $0x30] sm:$0x11]
  %v2176 = vunpack.c.l.b16 %v2162
  %v2177 = vunpack.c.h.b16 %v2162
  %v2178 = vunpack.c.l.b16 %v2163
  %v2179 = vunpack.c.h.b16 %v2163
  %v2180 = vunpack.c.l.b16 %v2164
  %v2181 = vunpack.c.h.b16 %v2164
  %v2182 = vunpack.c.l.b16 %v2165
  %v2183 = vunpack.c.h.b16 %v2165
  %v2184 = vunpack.c.l.b16 %v2166
  %v2185 = vunpack.c.h.b16 %v2166
  %v2186 = vunpack.c.l.b16 %v2167
  %v2187 = vunpack.c.h.b16 %v2167
  %v2188 = vunpack.c.l.b16 %v2168
  %v2189 = vunpack.c.h.b16 %v2168
  %v2190 = vpack.c.b16 %v2178, %v2176
  %v2191 = vpack.c.b16 %v2179, %v2177
  %v2192 = vpack.c.b16 %v2182, %v2180
  %v2193 = vpack.c.b16 %v2183, %v2181
  %v2194 = vpack.c.b16 %v2186, %v2184
  %v2195 = vpack.c.b16 %v2187, %v2185
  %v2196 = vpack.c.b16 %v2188, %v2188
  %v2197 = vpack.c.b16 %v2189, %v2189
  %v2203 = vsel %vm1548, %v2191, 0
  %v2206 = vsel %vm1548, %v2193, 0
  %v2209 = vsel %vm1548, %v2195, 0
  %v2212 = vsel %vm1548, %v2197, 0
  %2214 = vmatprep.subr.bf16.mxu0 0
  %2215 = vmatpush1.bf16.msra.mxu0 %v1495
  %2216 = vmatprep.subr.bf16.mxu0 0
  %2217 = vmatpush1.bf16.msra.mxu0 %v1496
  %2218 = vmatprep.subr.bf16.mxu0 0
  %2219 = vmatpush1.bf16.msra.mxu0 %v1497
  %2220 = vmatprep.subr.bf16.mxu0 0
  %2221 = vmatpush1.bf16.msra.mxu0 %v1498
  %2222 = vmatprep.subr.bf16.mxu0 0
  %2223 = vmatpush1.bf16.msra.mxu0 %v1499
  %2224 = vmatprep.subr.bf16.mxu0 0
  %2225 = vmatpush1.bf16.msra.mxu0 %v1500
  %2226 = vmatprep.subr.bf16.mxu0 0
  %2227 = vmatpush1.bf16.msra.mxu0 %v1501
  %2228 = vmatprep.subr.bf16.mxu0 0
  %2229 = vmatpush1.bf16.msra.mxu0 %v1502
  %2230 = vmatprep.subr.bf16.mxu0 0
  %2231 = vmatpush1.bf16.msra.mxu0 %v1503
  %2232 = vmatprep.subr.bf16.mxu0 0
  %2233 = vmatpush1.bf16.msra.mxu0 %v1504
  %2234 = vmatprep.subr.bf16.mxu0 0
  %2235 = vmatpush1.bf16.msra.mxu0 %v1505
  %2236 = vmatprep.subr.bf16.mxu0 0
  %2237 = vmatpush1.bf16.msra.mxu0 %v1506
  %2238 = vmatprep.subr.bf16.mxu0 0
  %2239 = vmatpush1.bf16.msra.mxu0 %v1563
  %2240 = vmatprep.subr.bf16.mxu0 0
  %2241 = vmatpush1.bf16.msra.mxu0 0
  %2242 = vmatprep.subr.bf16.mxu0 0
  %2243 = vmatpush1.bf16.msra.mxu0 0
  %2244 = vmatprep.subr.bf16.mxu0 0
  %2245 = vmatpush1.bf16.msra.mxu0 0
  %2246 = vmatprep.mubr.bf16.mxu0 %v2203
  %2247 = vmatmul.mubr.bf16.gmra.mrb[0].mxu0 %v2190
  %v2248 = vpop.f32.mrb[0].mxu0
  %v2249 = vadd.f32 0.0, %v2248
  %v2250 = vpop.f32.mrb[0].mxu0
  %v2251 = vpop.f32.mrb[0].mxu0
  %v2252 = vadd.f32 0.0, %v2251
  %v2253 = vpop.f32.mrb[0].mxu0
  %2254 = vmatprep.mubr.bf16.mxu0 %v2206
  %2255 = vmatmul.mubr.bf16.gmra.mrb[0].mxu0 %v2192
  %v2256 = vpop.f32.mrb[0].mxu0
  %v2257 = vadd.f32 0.0, %v2256
  %v2258 = vpop.f32.mrb[0].mxu0
  %v2259 = vpop.f32.mrb[0].mxu0
  %v2260 = vadd.f32 0.0, %v2259
  %v2261 = vpop.f32.mrb[0].mxu0
  %2262 = vmatprep.mubr.bf16.mxu0 %v2209
  %2263 = vmatmul.mubr.bf16.gmra.mrb[0].mxu0 %v2194
  %v2264 = vpop.f32.mrb[0].mxu0
  %v2265 = vadd.f32 0.0, %v2264
  %v2266 = vpop.f32.mrb[0].mxu0
  %v2267 = vpop.f32.mrb[0].mxu0
  %v2268 = vadd.f32 0.0, %v2267
  %v2269 = vpop.f32.mrb[0].mxu0
  %2270 = vmatprep.mubr.bf16.mxu0 %v2212
  %2271 = vmatmul.mubr.bf16.gmra.mrb[0].mxu0 %v2196
  %v2272 = vpop.f32.mrb[0].mxu0
  %v2273 = vadd.f32 0.0, %v2272
  %v2274 = vpop.f32.mrb[0].mxu0
  %v2275 = vpop.f32.mrb[0].mxu0
  %v2276 = vpop.f32.mrb[0].mxu0
  %2277 = vdwg.mxu0
  %v2278 = vpack.c.bf16 %v2252, %v2249
  %v2279 = vpack.c.bf16 %v2260, %v2257
  %v2280 = vpack.c.bf16 %v2268, %v2265
  %v2281 = vpack.c.bf16 %v2273, %v2273
  %s2282 = scalar_lea.vmem %s4, 48
  %v2283 = vld [vmem:[%s2282] sm:$0xf]
  %v2284 = vld [vmem:[%s2282 + $0x4] sm:$0xf]
  %v2285 = vld [vmem:[%s2282 + $0x8] sm:$0xf]
  %v2286 = vld [vmem:[%s2282 + $0xc] sm:$0xf]
  %v2291 = vunpack.c.l.b16 %v2283
  %v2292 = vunpack.c.l.b16 %v2284
  %v2293 = vunpack.c.l.b16 %v2285
  %v2294 = vunpack.c.l.b16 %v2286
  %v2295 = vpack.c.b16 %v2292, %v2291
  %v2296 = vpack.c.b16 %v2294, %v2293
  %v2300 = vsel %vm1775, %v2278, 0
  %v2303 = vsel %vm1775, %v2279, 0
  %v2306 = vsel %vm1775, %v2280, 0
  %v2309 = vsel %vm1775, %v2281, 0
  %2311 = vmatprep.subr.bf16.mxu0 0
  %2312 = vmatpush1.bf16.msra.mxu0 %v2295
  %2313 = vmatprep.subr.bf16.mxu0 0
  %2314 = vmatpush1.bf16.msra.mxu0 %v2296
  %2315 = vmatprep.subr.bf16.mxu0 0
  %2316 = vmatpush1.bf16.msra.mxu0 0
  %2317 = vmatprep.subr.bf16.mxu0 0
  %2318 = vmatpush1.bf16.msra.mxu0 0
  %2319 = vmatprep.subr.bf16.mxu0 0
  %2320 = vmatpush1.bf16.msra.mxu0 0
  %2321 = vmatprep.subr.bf16.mxu0 0
  %2322 = vmatpush1.bf16.msra.mxu0 0
  %2323 = vmatprep.subr.bf16.mxu0 0
  %2324 = vmatpush1.bf16.msra.mxu0 0
  %2325 = vmatprep.subr.bf16.mxu0 0
  %2326 = vmatpush1.bf16.msra.mxu0 0
  %2327 = vmatprep.subr.bf16.mxu0 0
  %2328 = vmatpush1.bf16.msra.mxu0 0
  %2329 = vmatprep.subr.bf16.mxu0 0
  %2330 = vmatpush1.bf16.msra.mxu0 0
  %2331 = vmatprep.subr.bf16.mxu0 0
  %2332 = vmatpush1.bf16.msra.mxu0 0
  %2333 = vmatprep.subr.bf16.mxu0 0
  %2334 = vmatpush1.bf16.msra.mxu0 0
  %2335 = vmatprep.subr.bf16.mxu0 0
  %2336 = vmatpush1.bf16.msra.mxu0 0
  %2337 = vmatprep.subr.bf16.mxu0 0
  %2338 = vmatpush1.bf16.msra.mxu0 0
  %2339 = vmatprep.subr.bf16.mxu0 0
  %2340 = vmatpush1.bf16.msra.mxu0 0
  %2341 = vmatprep.subr.bf16.mxu0 0
  %2342 = vmatpush1.bf16.msra.mxu0 0
  %2343 = vmatprep.mubr.bf16.mxu0 0
  %2344 = vmatmul.mubr.bf16.gmra.mrb[0].mxu0 %v2300
  %v2345 = vpop.f32.mrb[0].mxu0
  %v2346 = vadd.f32 0.0, %v2345
  %v2347 = vpop.f32.mrb[0].mxu0
  %v2348 = vpop.f32.mrb[0].mxu0
  %v2349 = vadd.f32 0.0, %v2348
  %v2350 = vpop.f32.mrb[0].mxu0
  %2351 = vmatprep.mubr.bf16.mxu0 0
  %2352 = vmatmul.mubr.bf16.gmra.mrb[0].mxu0 %v2303
  %v2353 = vpop.f32.mrb[0].mxu0
  %v2354 = vadd.f32 0.0, %v2353
  %v2355 = vpop.f32.mrb[0].mxu0
  %v2356 = vpop.f32.mrb[0].mxu0
  %v2357 = vadd.f32 0.0, %v2356
  %v2358 = vpop.f32.mrb[0].mxu0
  %2359 = vmatprep.mubr.bf16.mxu0 0
  %2360 = vmatmul.mubr.bf16.gmra.mrb[0].mxu0 %v2306
  %v2361 = vpop.f32.mrb[0].mxu0
  %v2362 = vadd.f32 0.0, %v2361
  %v2363 = vpop.f32.mrb[0].mxu0
  %v2364 = vpop.f32.mrb[0].mxu0
  %v2365 = vadd.f32 0.0, %v2364
  %v2366 = vpop.f32.mrb[0].mxu0
  %2367 = vmatprep.mubr.bf16.mxu0 0
  %2368 = vmatmul.mubr.bf16.gmra.mrb[0].mxu0 %v2309
  %v2369 = vpop.f32.mrb[0].mxu0
  %v2370 = vadd.f32 0.0, %v2369
  %v2371 = vpop.f32.mrb[0].mxu0
  %v2372 = vpop.f32.mrb[0].mxu0
  %v2373 = vpop.f32.mrb[0].mxu0
  %2374 = vdwg.mxu0
  %v2375 = vadd.f32 %v2154, %v2346
  %v2376 = vadd.f32 %v2155, %v2349
  %v2377 = vadd.f32 %v2156, %v2354
  %v2378 = vadd.f32 %v2157, %v2357
  %v2379 = vadd.f32 %v2158, %v2362
  %v2380 = vadd.f32 %v2159, %v2365
  %v2381 = vadd.f32 %v2160, %v2370
  %s2382 = scalar_lea.vmem %s3, 224
  %v2383 = vld [vmem:[%s2382] sm:$0xff]
  %v2384 = vld [vmem:[%s2382 + $0x8] sm:$0xff]
  %v2385 = vld [vmem:[%s2382 + $0x10] sm:$0xff]
  %v2386 = vld [vmem:[%s2382 + $0x18] sm:$0xff]
  %v2387 = vld [vmem:[%s2382 + $0x20] sm:$0xff]
  %v2388 = vld [vmem:[%s2382 + $0x28] sm:$0xff]
  %v2389 = vld [vmem:[%s2382 + $0x30] sm:$0x11]
  %v2397 = vunpack.c.l.b16 %v2383
  %v2398 = vunpack.c.h.b16 %v2383
  %v2399 = vunpack.c.l.b16 %v2384
  %v2400 = vunpack.c.h.b16 %v2384
  %v2401 = vunpack.c.l.b16 %v2385
  %v2402 = vunpack.c.h.b16 %v2385
  %v2403 = vunpack.c.l.b16 %v2386
  %v2404 = vunpack.c.h.b16 %v2386
  %v2405 = vunpack.c.l.b16 %v2387
  %v2406 = vunpack.c.h.b16 %v2387
  %v2407 = vunpack.c.l.b16 %v2388
  %v2408 = vunpack.c.h.b16 %v2388
  %v2409 = vunpack.c.l.b16 %v2389
  %v2410 = vunpack.c.h.b16 %v2389
  %v2411 = vpack.c.b16 %v2399, %v2397
  %v2412 = vpack.c.b16 %v2400, %v2398
  %v2413 = vpack.c.b16 %v2403, %v2401
  %v2414 = vpack.c.b16 %v2404, %v2402
  %v2415 = vpack.c.b16 %v2407, %v2405
  %v2416 = vpack.c.b16 %v2408, %v2406
  %v2417 = vpack.c.b16 %v2409, %v2409
  %v2418 = vpack.c.b16 %v2410, %v2410
  %v2424 = vsel %vm1548, %v2412, 0
  %v2427 = vsel %vm1548, %v2414, 0
  %v2430 = vsel %vm1548, %v2416, 0
  %v2433 = vsel %vm1548, %v2418, 0
  %2435 = vmatprep.subr.bf16.mxu0 0
  %2436 = vmatpush1.bf16.msra.mxu0 %v1495
  %2437 = vmatprep.subr.bf16.mxu0 0
  %2438 = vmatpush1.bf16.msra.mxu0 %v1496
  %2439 = vmatprep.subr.bf16.mxu0 0
  %2440 = vmatpush1.bf16.msra.mxu0 %v1497
  %2441 = vmatprep.subr.bf16.mxu0 0
  %2442 = vmatpush1.bf16.msra.mxu0 %v1498
  %2443 = vmatprep.subr.bf16.mxu0 0
  %2444 = vmatpush1.bf16.msra.mxu0 %v1499
  %2445 = vmatprep.subr.bf16.mxu0 0
  %2446 = vmatpush1.bf16.msra.mxu0 %v1500
  %2447 = vmatprep.subr.bf16.mxu0 0
  %2448 = vmatpush1.bf16.msra.mxu0 %v1501
  %2449 = vmatprep.subr.bf16.mxu0 0
  %2450 = vmatpush1.bf16.msra.mxu0 %v1502
  %2451 = vmatprep.subr.bf16.mxu0 0
  %2452 = vmatpush1.bf16.msra.mxu0 %v1503
  %2453 = vmatprep.subr.bf16.mxu0 0
  %2454 = vmatpush1.bf16.msra.mxu0 %v1504
  %2455 = vmatprep.subr.bf16.mxu0 0
  %2456 = vmatpush1.bf16.msra.mxu0 %v1505
  %2457 = vmatprep.subr.bf16.mxu0 0
  %2458 = vmatpush1.bf16.msra.mxu0 %v1506
  %2459 = vmatprep.subr.bf16.mxu0 0
  %2460 = vmatpush1.bf16.msra.mxu0 %v1563
  %2461 = vmatprep.subr.bf16.mxu0 0
  %2462 = vmatpush1.bf16.msra.mxu0 0
  %2463 = vmatprep.subr.bf16.mxu0 0
  %2464 = vmatpush1.bf16.msra.mxu0 0
  %2465 = vmatprep.subr.bf16.mxu0 0
  %2466 = vmatpush1.bf16.msra.mxu0 0
  %2467 = vmatprep.mubr.bf16.mxu0 %v2424
  %2468 = vmatmul.mubr.bf16.gmra.mrb[0].mxu0 %v2411
  %v2469 = vpop.f32.mrb[0].mxu0
  %v2470 = vadd.f32 0.0, %v2469
  %v2471 = vpop.f32.mrb[0].mxu0
  %v2472 = vpop.f32.mrb[0].mxu0
  %v2473 = vadd.f32 0.0, %v2472
  %v2474 = vpop.f32.mrb[0].mxu0
  %2475 = vmatprep.mubr.bf16.mxu0 %v2427
  %2476 = vmatmul.mubr.bf16.gmra.mrb[0].mxu0 %v2413
  %v2477 = vpop.f32.mrb[0].mxu0
  %v2478 = vadd.f32 0.0, %v2477
  %v2479 = vpop.f32.mrb[0].mxu0
  %v2480 = vpop.f32.mrb[0].mxu0
  %v2481 = vadd.f32 0.0, %v2480
  %v2482 = vpop.f32.mrb[0].mxu0
  %2483 = vmatprep.mubr.bf16.mxu0 %v2430
  %2484 = vmatmul.mubr.bf16.gmra.mrb[0].mxu0 %v2415
  %v2485 = vpop.f32.mrb[0].mxu0
  %v2486 = vadd.f32 0.0, %v2485
  %v2487 = vpop.f32.mrb[0].mxu0
  %v2488 = vpop.f32.mrb[0].mxu0
  %v2489 = vadd.f32 0.0, %v2488
  %v2490 = vpop.f32.mrb[0].mxu0
  %2491 = vmatprep.mubr.bf16.mxu0 %v2433
  %2492 = vmatmul.mubr.bf16.gmra.mrb[0].mxu0 %v2417
  %v2493 = vpop.f32.mrb[0].mxu0
  %v2494 = vadd.f32 0.0, %v2493
  %v2495 = vpop.f32.mrb[0].mxu0
  %v2496 = vpop.f32.mrb[0].mxu0
  %v2497 = vpop.f32.mrb[0].mxu0
  %2498 = vdwg.mxu0
  %v2499 = vpack.c.bf16 %v2473, %v2470
  %v2500 = vpack.c.bf16 %v2481, %v2478
  %v2501 = vpack.c.bf16 %v2489, %v2486
  %v2502 = vpack.c.bf16 %v2494, %v2494
  %s2503 = scalar_lea.vmem %s4, 64
  %v2504 = vld [vmem:[%s2503] sm:$0xf]
  %v2505 = vld [vmem:[%s2503 + $0x4] sm:$0xf]
  %v2506 = vld [vmem:[%s2503 + $0x8] sm:$0xf]
  %v2507 = vld [vmem:[%s2503 + $0xc] sm:$0xf]
  %v2512 = vunpack.c.l.b16 %v2504
  %v2513 = vunpack.c.l.b16 %v2505
  %v2514 = vunpack.c.l.b16 %v2506
  %v2515 = vunpack.c.l.b16 %v2507
  %v2516 = vpack.c.b16 %v2513, %v2512
  %v2517 = vpack.c.b16 %v2515, %v2514
  %v2521 = vsel %vm1775, %v2499, 0
  %v2524 = vsel %vm1775, %v2500, 0
  %v2527 = vsel %vm1775, %v2501, 0
  %v2530 = vsel %vm1775, %v2502, 0
  %2532 = vmatprep.subr.bf16.mxu0 0
  %2533 = vmatpush1.bf16.msra.mxu0 %v2516
  %2534 = vmatprep.subr.bf16.mxu0 0
  %2535 = vmatpush1.bf16.msra.mxu0 %v2517
  %2536 = vmatprep.subr.bf16.mxu0 0
  %2537 = vmatpush1.bf16.msra.mxu0 0
  %2538 = vmatprep.subr.bf16.mxu0 0
  %2539 = vmatpush1.bf16.msra.mxu0 0
  %2540 = vmatprep.subr.bf16.mxu0 0
  %2541 = vmatpush1.bf16.msra.mxu0 0
  %2542 = vmatprep.subr.bf16.mxu0 0
  %2543 = vmatpush1.bf16.msra.mxu0 0
  %2544 = vmatprep.subr.bf16.mxu0 0
  %2545 = vmatpush1.bf16.msra.mxu0 0
  %2546 = vmatprep.subr.bf16.mxu0 0
  %2547 = vmatpush1.bf16.msra.mxu0 0
  %2548 = vmatprep.subr.bf16.mxu0 0
  %2549 = vmatpush1.bf16.msra.mxu0 0
  %2550 = vmatprep.subr.bf16.mxu0 0
  %2551 = vmatpush1.bf16.msra.mxu0 0
  %2552 = vmatprep.subr.bf16.mxu0 0
  %2553 = vmatpush1.bf16.msra.mxu0 0
  %2554 = vmatprep.subr.bf16.mxu0 0
  %2555 = vmatpush1.bf16.msra.mxu0 0
  %2556 = vmatprep.subr.bf16.mxu0 0
  %2557 = vmatpush1.bf16.msra.mxu0 0
  %2558 = vmatprep.subr.bf16.mxu0 0
  %2559 = vmatpush1.bf16.msra.mxu0 0
  %2560 = vmatprep.subr.bf16.mxu0 0
  %2561 = vmatpush1.bf16.msra.mxu0 0
  %2562 = vmatprep.subr.bf16.mxu0 0
  %2563 = vmatpush1.bf16.msra.mxu0 0
  %2564 = vmatprep.mubr.bf16.mxu0 0
  %2565 = vmatmul.mubr.bf16.gmra.mrb[0].mxu0 %v2521
  %v2566 = vpop.f32.mrb[0].mxu0
  %v2567 = vadd.f32 0.0, %v2566
  %v2568 = vpop.f32.mrb[0].mxu0
  %v2569 = vpop.f32.mrb[0].mxu0
  %v2570 = vadd.f32 0.0, %v2569
  %v2571 = vpop.f32.mrb[0].mxu0
  %2572 = vmatprep.mubr.bf16.mxu0 0
  %2573 = vmatmul.mubr.bf16.gmra.mrb[0].mxu0 %v2524
  %v2574 = vpop.f32.mrb[0].mxu0
  %v2575 = vadd.f32 0.0, %v2574
  %v2576 = vpop.f32.mrb[0].mxu0
  %v2577 = vpop.f32.mrb[0].mxu0
  %v2578 = vadd.f32 0.0, %v2577
  %v2579 = vpop.f32.mrb[0].mxu0
  %2580 = vmatprep.mubr.bf16.mxu0 0
  %2581 = vmatmul.mubr.bf16.gmra.mrb[0].mxu0 %v2527
  %v2582 = vpop.f32.mrb[0].mxu0
  %v2583 = vadd.f32 0.0, %v2582
  %v2584 = vpop.f32.mrb[0].mxu0
  %v2585 = vpop.f32.mrb[0].mxu0
  %v2586 = vadd.f32 0.0, %v2585
  %v2587 = vpop.f32.mrb[0].mxu0
  %2588 = vmatprep.mubr.bf16.mxu0 0
  %2589 = vmatmul.mubr.bf16.gmra.mrb[0].mxu0 %v2530
  %v2590 = vpop.f32.mrb[0].mxu0
  %v2591 = vadd.f32 0.0, %v2590
  %v2592 = vpop.f32.mrb[0].mxu0
  %v2593 = vpop.f32.mrb[0].mxu0
  %v2594 = vpop.f32.mrb[0].mxu0
  %2595 = vdwg.mxu0
  %v2596 = vadd.f32 %v2375, %v2567
  %v2597 = vadd.f32 %v2376, %v2570
  %v2598 = vadd.f32 %v2377, %v2575
  %v2599 = vadd.f32 %v2378, %v2578
  %v2600 = vadd.f32 %v2379, %v2583
  %v2601 = vadd.f32 %v2380, %v2586
  %v2602 = vadd.f32 %v2381, %v2591
  %s2603 = scalar_lea.vmem %s3, 280
  %v2604 = vld [vmem:[%s2603] sm:$0xff]
  %v2605 = vld [vmem:[%s2603 + $0x8] sm:$0xff]
  %v2606 = vld [vmem:[%s2603 + $0x10] sm:$0xff]
  %v2607 = vld [vmem:[%s2603 + $0x18] sm:$0xff]
  %v2608 = vld [vmem:[%s2603 + $0x20] sm:$0xff]
  %v2609 = vld [vmem:[%s2603 + $0x28] sm:$0xff]
  %v2610 = vld [vmem:[%s2603 + $0x30] sm:$0x11]
  %v2618 = vunpack.c.l.b16 %v2604
  %v2619 = vunpack.c.h.b16 %v2604
  %v2620 = vunpack.c.l.b16 %v2605
  %v2621 = vunpack.c.h.b16 %v2605
  %v2622 = vunpack.c.l.b16 %v2606
  %v2623 = vunpack.c.h.b16 %v2606
  %v2624 = vunpack.c.l.b16 %v2607
  %v2625 = vunpack.c.h.b16 %v2607
  %v2626 = vunpack.c.l.b16 %v2608
  %v2627 = vunpack.c.h.b16 %v2608
  %v2628 = vunpack.c.l.b16 %v2609
  %v2629 = vunpack.c.h.b16 %v2609
  %v2630 = vunpack.c.l.b16 %v2610
  %v2631 = vunpack.c.h.b16 %v2610
  %v2632 = vpack.c.b16 %v2620, %v2618
  %v2633 = vpack.c.b16 %v2621, %v2619
  %v2634 = vpack.c.b16 %v2624, %v2622
  %v2635 = vpack.c.b16 %v2625, %v2623
  %v2636 = vpack.c.b16 %v2628, %v2626
  %v2637 = vpack.c.b16 %v2629, %v2627
  %v2638 = vpack.c.b16 %v2630, %v2630
  %v2639 = vpack.c.b16 %v2631, %v2631
  %v2645 = vsel %vm1548, %v2633, 0
  %v2648 = vsel %vm1548, %v2635, 0
  %v2651 = vsel %vm1548, %v2637, 0
  %v2654 = vsel %vm1548, %v2639, 0
  %2656 = vmatprep.subr.bf16.mxu0 0
  %2657 = vmatpush1.bf16.msra.mxu0 %v1495
  %2658 = vmatprep.subr.bf16.mxu0 0
  %2659 = vmatpush1.bf16.msra.mxu0 %v1496
  %2660 = vmatprep.subr.bf16.mxu0 0
  %2661 = vmatpush1.bf16.msra.mxu0 %v1497
  %2662 = vmatprep.subr.bf16.mxu0 0
  %2663 = vmatpush1.bf16.msra.mxu0 %v1498
  %2664 = vmatprep.subr.bf16.mxu0 0
  %2665 = vmatpush1.bf16.msra.mxu0 %v1499
  %2666 = vmatprep.subr.bf16.mxu0 0
  %2667 = vmatpush1.bf16.msra.mxu0 %v1500
  %2668 = vmatprep.subr.bf16.mxu0 0
  %2669 = vmatpush1.bf16.msra.mxu0 %v1501
  %2670 = vmatprep.subr.bf16.mxu0 0
  %2671 = vmatpush1.bf16.msra.mxu0 %v1502
  %2672 = vmatprep.subr.bf16.mxu0 0
  %2673 = vmatpush1.bf16.msra.mxu0 %v1503
  %2674 = vmatprep.subr.bf16.mxu0 0
  %2675 = vmatpush1.bf16.msra.mxu0 %v1504
  %2676 = vmatprep.subr.bf16.mxu0 0
  %2677 = vmatpush1.bf16.msra.mxu0 %v1505
  %2678 = vmatprep.subr.bf16.mxu0 0
  %2679 = vmatpush1.bf16.msra.mxu0 %v1506
  %2680 = vmatprep.subr.bf16.mxu0 0
  %2681 = vmatpush1.bf16.msra.mxu0 %v1563
  %2682 = vmatprep.subr.bf16.mxu0 0
  %2683 = vmatpush1.bf16.msra.mxu0 0
  %2684 = vmatprep.subr.bf16.mxu0 0
  %2685 = vmatpush1.bf16.msra.mxu0 0
  %2686 = vmatprep.subr.bf16.mxu0 0
  %2687 = vmatpush1.bf16.msra.mxu0 0
  %2688 = vmatprep.mubr.bf16.mxu0 %v2645
  %2689 = vmatmul.mubr.bf16.gmra.mrb[0].mxu0 %v2632
  %v2690 = vpop.f32.mrb[0].mxu0
  %v2691 = vadd.f32 0.0, %v2690
  %v2692 = vpop.f32.mrb[0].mxu0
  %v2693 = vpop.f32.mrb[0].mxu0
  %v2694 = vadd.f32 0.0, %v2693
  %v2695 = vpop.f32.mrb[0].mxu0
  %2696 = vmatprep.mubr.bf16.mxu0 %v2648
  %2697 = vmatmul.mubr.bf16.gmra.mrb[0].mxu0 %v2634
  %v2698 = vpop.f32.mrb[0].mxu0
  %v2699 = vadd.f32 0.0, %v2698
  %v2700 = vpop.f32.mrb[0].mxu0
  %v2701 = vpop.f32.mrb[0].mxu0
  %v2702 = vadd.f32 0.0, %v2701
  %v2703 = vpop.f32.mrb[0].mxu0
  %2704 = vmatprep.mubr.bf16.mxu0 %v2651
  %2705 = vmatmul.mubr.bf16.gmra.mrb[0].mxu0 %v2636
  %v2706 = vpop.f32.mrb[0].mxu0
  %v2707 = vadd.f32 0.0, %v2706
  %v2708 = vpop.f32.mrb[0].mxu0
  %v2709 = vpop.f32.mrb[0].mxu0
  %v2710 = vadd.f32 0.0, %v2709
  %v2711 = vpop.f32.mrb[0].mxu0
  %2712 = vmatprep.mubr.bf16.mxu0 %v2654
  %2713 = vmatmul.mubr.bf16.gmra.mrb[0].mxu0 %v2638
  %v2714 = vpop.f32.mrb[0].mxu0
  %v2715 = vadd.f32 0.0, %v2714
  %v2716 = vpop.f32.mrb[0].mxu0
  %v2717 = vpop.f32.mrb[0].mxu0
  %v2718 = vpop.f32.mrb[0].mxu0
  %2719 = vdwg.mxu0
  %v2720 = vpack.c.bf16 %v2694, %v2691
  %v2721 = vpack.c.bf16 %v2702, %v2699
  %v2722 = vpack.c.bf16 %v2710, %v2707
  %v2723 = vpack.c.bf16 %v2715, %v2715
  %s2724 = scalar_lea.vmem %s4, 80
  %v2725 = vld [vmem:[%s2724] sm:$0xf]
  %v2726 = vld [vmem:[%s2724 + $0x4] sm:$0xf]
  %v2727 = vld [vmem:[%s2724 + $0x8] sm:$0xf]
  %v2728 = vld [vmem:[%s2724 + $0xc] sm:$0xf]
  %v2733 = vunpack.c.l.b16 %v2725
  %v2734 = vunpack.c.l.b16 %v2726
  %v2735 = vunpack.c.l.b16 %v2727
  %v2736 = vunpack.c.l.b16 %v2728
  %v2737 = vpack.c.b16 %v2734, %v2733
  %v2738 = vpack.c.b16 %v2736, %v2735
  %v2742 = vsel %vm1775, %v2720, 0
  %v2745 = vsel %vm1775, %v2721, 0
  %v2748 = vsel %vm1775, %v2722, 0
  %v2751 = vsel %vm1775, %v2723, 0
  %2753 = vmatprep.subr.bf16.mxu0 0
  %2754 = vmatpush1.bf16.msra.mxu0 %v2737
  %2755 = vmatprep.subr.bf16.mxu0 0
  %2756 = vmatpush1.bf16.msra.mxu0 %v2738
  %2757 = vmatprep.subr.bf16.mxu0 0
  %2758 = vmatpush1.bf16.msra.mxu0 0
  %2759 = vmatprep.subr.bf16.mxu0 0
  %2760 = vmatpush1.bf16.msra.mxu0 0
  %2761 = vmatprep.subr.bf16.mxu0 0
  %2762 = vmatpush1.bf16.msra.mxu0 0
  %2763 = vmatprep.subr.bf16.mxu0 0
  %2764 = vmatpush1.bf16.msra.mxu0 0
  %2765 = vmatprep.subr.bf16.mxu0 0
  %2766 = vmatpush1.bf16.msra.mxu0 0
  %2767 = vmatprep.subr.bf16.mxu0 0
  %2768 = vmatpush1.bf16.msra.mxu0 0
  %2769 = vmatprep.subr.bf16.mxu0 0
  %2770 = vmatpush1.bf16.msra.mxu0 0
  %2771 = vmatprep.subr.bf16.mxu0 0
  %2772 = vmatpush1.bf16.msra.mxu0 0
  %2773 = vmatprep.subr.bf16.mxu0 0
  %2774 = vmatpush1.bf16.msra.mxu0 0
  %2775 = vmatprep.subr.bf16.mxu0 0
  %2776 = vmatpush1.bf16.msra.mxu0 0
  %2777 = vmatprep.subr.bf16.mxu0 0
  %2778 = vmatpush1.bf16.msra.mxu0 0
  %2779 = vmatprep.subr.bf16.mxu0 0
  %2780 = vmatpush1.bf16.msra.mxu0 0
  %2781 = vmatprep.subr.bf16.mxu0 0
  %2782 = vmatpush1.bf16.msra.mxu0 0
  %2783 = vmatprep.subr.bf16.mxu0 0
  %2784 = vmatpush1.bf16.msra.mxu0 0
  %2785 = vmatprep.mubr.bf16.mxu0 0
  %2786 = vmatmul.mubr.bf16.gmra.mrb[0].mxu0 %v2742
  %v2787 = vpop.f32.mrb[0].mxu0
  %v2788 = vadd.f32 0.0, %v2787
  %v2789 = vpop.f32.mrb[0].mxu0
  %v2790 = vpop.f32.mrb[0].mxu0
  %v2791 = vadd.f32 0.0, %v2790
  %v2792 = vpop.f32.mrb[0].mxu0
  %2793 = vmatprep.mubr.bf16.mxu0 0
  %2794 = vmatmul.mubr.bf16.gmra.mrb[0].mxu0 %v2745
  %v2795 = vpop.f32.mrb[0].mxu0
  %v2796 = vadd.f32 0.0, %v2795
  %v2797 = vpop.f32.mrb[0].mxu0
  %v2798 = vpop.f32.mrb[0].mxu0
  %v2799 = vadd.f32 0.0, %v2798
  %v2800 = vpop.f32.mrb[0].mxu0
  %2801 = vmatprep.mubr.bf16.mxu0 0
  %2802 = vmatmul.mubr.bf16.gmra.mrb[0].mxu0 %v2748
  %v2803 = vpop.f32.mrb[0].mxu0
  %v2804 = vadd.f32 0.0, %v2803
  %v2805 = vpop.f32.mrb[0].mxu0
  %v2806 = vpop.f32.mrb[0].mxu0
  %v2807 = vadd.f32 0.0, %v2806
  %v2808 = vpop.f32.mrb[0].mxu0
  %2809 = vmatprep.mubr.bf16.mxu0 0
  %2810 = vmatmul.mubr.bf16.gmra.mrb[0].mxu0 %v2751
  %v2811 = vpop.f32.mrb[0].mxu0
  %v2812 = vadd.f32 0.0, %v2811
  %v2813 = vpop.f32.mrb[0].mxu0
  %v2814 = vpop.f32.mrb[0].mxu0
  %v2815 = vpop.f32.mrb[0].mxu0
  %2816 = vdwg.mxu0
  %v2817 = vadd.f32 %v2596, %v2788
  %v2818 = vadd.f32 %v2597, %v2791
  %v2819 = vadd.f32 %v2598, %v2796
  %v2820 = vadd.f32 %v2599, %v2799
  %v2821 = vadd.f32 %v2600, %v2804
  %v2822 = vadd.f32 %v2601, %v2807
  %v2823 = vadd.f32 %v2602, %v2812
  %s2824 = scalar_lea.vmem %s3, 336
  %v2825 = vld [vmem:[%s2824] sm:$0xff]
  %v2826 = vld [vmem:[%s2824 + $0x8] sm:$0xff]
  %v2827 = vld [vmem:[%s2824 + $0x10] sm:$0xff]
  %v2828 = vld [vmem:[%s2824 + $0x18] sm:$0xff]
  %v2829 = vld [vmem:[%s2824 + $0x20] sm:$0xff]
  %v2830 = vld [vmem:[%s2824 + $0x28] sm:$0xff]
  %v2831 = vld [vmem:[%s2824 + $0x30] sm:$0x11]
  %v2839 = vunpack.c.l.b16 %v2825
  %v2840 = vunpack.c.h.b16 %v2825
  %v2841 = vunpack.c.l.b16 %v2826
  %v2842 = vunpack.c.h.b16 %v2826
  %v2843 = vunpack.c.l.b16 %v2827
  %v2844 = vunpack.c.h.b16 %v2827
  %v2845 = vunpack.c.l.b16 %v2828
  %v2846 = vunpack.c.h.b16 %v2828
  %v2847 = vunpack.c.l.b16 %v2829
  %v2848 = vunpack.c.h.b16 %v2829
  %v2849 = vunpack.c.l.b16 %v2830
  %v2850 = vunpack.c.h.b16 %v2830
  %v2851 = vunpack.c.l.b16 %v2831
  %v2852 = vunpack.c.h.b16 %v2831
  %v2853 = vpack.c.b16 %v2841, %v2839
  %v2854 = vpack.c.b16 %v2842, %v2840
  %v2855 = vpack.c.b16 %v2845, %v2843
  %v2856 = vpack.c.b16 %v2846, %v2844
  %v2857 = vpack.c.b16 %v2849, %v2847
  %v2858 = vpack.c.b16 %v2850, %v2848
  %v2859 = vpack.c.b16 %v2851, %v2851
  %v2860 = vpack.c.b16 %v2852, %v2852
  %v2866 = vsel %vm1548, %v2854, 0
  %v2869 = vsel %vm1548, %v2856, 0
  %v2872 = vsel %vm1548, %v2858, 0
  %v2875 = vsel %vm1548, %v2860, 0
  %2877 = vmatprep.subr.bf16.mxu0 0
  %2878 = vmatpush1.bf16.msra.mxu0 %v1495
  %2879 = vmatprep.subr.bf16.mxu0 0
  %2880 = vmatpush1.bf16.msra.mxu0 %v1496
  %2881 = vmatprep.subr.bf16.mxu0 0
  %2882 = vmatpush1.bf16.msra.mxu0 %v1497
  %2883 = vmatprep.subr.bf16.mxu0 0
  %2884 = vmatpush1.bf16.msra.mxu0 %v1498
  %2885 = vmatprep.subr.bf16.mxu0 0
  %2886 = vmatpush1.bf16.msra.mxu0 %v1499
  %2887 = vmatprep.subr.bf16.mxu0 0
  %2888 = vmatpush1.bf16.msra.mxu0 %v1500
  %2889 = vmatprep.subr.bf16.mxu0 0
  %2890 = vmatpush1.bf16.msra.mxu0 %v1501
  %2891 = vmatprep.subr.bf16.mxu0 0
  %2892 = vmatpush1.bf16.msra.mxu0 %v1502
  %2893 = vmatprep.subr.bf16.mxu0 0
  %2894 = vmatpush1.bf16.msra.mxu0 %v1503
  %2895 = vmatprep.subr.bf16.mxu0 0
  %2896 = vmatpush1.bf16.msra.mxu0 %v1504
  %2897 = vmatprep.subr.bf16.mxu0 0
  %2898 = vmatpush1.bf16.msra.mxu0 %v1505
  %2899 = vmatprep.subr.bf16.mxu0 0
  %2900 = vmatpush1.bf16.msra.mxu0 %v1506
  %2901 = vmatprep.subr.bf16.mxu0 0
  %2902 = vmatpush1.bf16.msra.mxu0 %v1563
  %2903 = vmatprep.subr.bf16.mxu0 0
  %2904 = vmatpush1.bf16.msra.mxu0 0
  %2905 = vmatprep.subr.bf16.mxu0 0
  %2906 = vmatpush1.bf16.msra.mxu0 0
  %2907 = vmatprep.subr.bf16.mxu0 0
  %2908 = vmatpush1.bf16.msra.mxu0 0
  %2909 = vmatprep.mubr.bf16.mxu0 %v2866
  %2910 = vmatmul.mubr.bf16.gmra.mrb[0].mxu0 %v2853
  %v2911 = vpop.f32.mrb[0].mxu0
  %v2912 = vadd.f32 0.0, %v2911
  %v2913 = vpop.f32.mrb[0].mxu0
  %v2914 = vpop.f32.mrb[0].mxu0
  %v2915 = vadd.f32 0.0, %v2914
  %v2916 = vpop.f32.mrb[0].mxu0
  %2917 = vmatprep.mubr.bf16.mxu0 %v2869
  %2918 = vmatmul.mubr.bf16.gmra.mrb[0].mxu0 %v2855
  %v2919 = vpop.f32.mrb[0].mxu0
  %v2920 = vadd.f32 0.0, %v2919
  %v2921 = vpop.f32.mrb[0].mxu0
  %v2922 = vpop.f32.mrb[0].mxu0
  %v2923 = vadd.f32 0.0, %v2922
  %v2924 = vpop.f32.mrb[0].mxu0
  %2925 = vmatprep.mubr.bf16.mxu0 %v2872
  %2926 = vmatmul.mubr.bf16.gmra.mrb[0].mxu0 %v2857
  %v2927 = vpop.f32.mrb[0].mxu0
  %v2928 = vadd.f32 0.0, %v2927
  %v2929 = vpop.f32.mrb[0].mxu0
  %v2930 = vpop.f32.mrb[0].mxu0
  %v2931 = vadd.f32 0.0, %v2930
  %v2932 = vpop.f32.mrb[0].mxu0
  %2933 = vmatprep.mubr.bf16.mxu0 %v2875
  %2934 = vmatmul.mubr.bf16.gmra.mrb[0].mxu0 %v2859
  %v2935 = vpop.f32.mrb[0].mxu0
  %v2936 = vadd.f32 0.0, %v2935
  %v2937 = vpop.f32.mrb[0].mxu0
  %v2938 = vpop.f32.mrb[0].mxu0
  %v2939 = vpop.f32.mrb[0].mxu0
  %2940 = vdwg.mxu0
  %v2941 = vpack.c.bf16 %v2915, %v2912
  %v2942 = vpack.c.bf16 %v2923, %v2920
  %v2943 = vpack.c.bf16 %v2931, %v2928
  %v2944 = vpack.c.bf16 %v2936, %v2936
  %s2945 = scalar_lea.vmem %s4, 96
  %v2946 = vld [vmem:[%s2945] sm:$0xf]
  %v2947 = vld [vmem:[%s2945 + $0x4] sm:$0xf]
  %v2948 = vld [vmem:[%s2945 + $0x8] sm:$0xf]
  %v2949 = vld [vmem:[%s2945 + $0xc] sm:$0xf]
  %v2954 = vunpack.c.l.b16 %v2946
  %v2955 = vunpack.c.l.b16 %v2947
  %v2956 = vunpack.c.l.b16 %v2948
  %v2957 = vunpack.c.l.b16 %v2949
  %v2958 = vpack.c.b16 %v2955, %v2954
  %v2959 = vpack.c.b16 %v2957, %v2956
  %v2963 = vsel %vm1775, %v2941, 0
  %v2966 = vsel %vm1775, %v2942, 0
  %v2969 = vsel %vm1775, %v2943, 0
  %v2972 = vsel %vm1775, %v2944, 0
  %2974 = vmatprep.subr.bf16.mxu0 0
  %2975 = vmatpush1.bf16.msra.mxu0 %v2958
  %2976 = vmatprep.subr.bf16.mxu0 0
  %2977 = vmatpush1.bf16.msra.mxu0 %v2959
  %2978 = vmatprep.subr.bf16.mxu0 0
  %2979 = vmatpush1.bf16.msra.mxu0 0
  %2980 = vmatprep.subr.bf16.mxu0 0
  %2981 = vmatpush1.bf16.msra.mxu0 0
  %2982 = vmatprep.subr.bf16.mxu0 0
  %2983 = vmatpush1.bf16.msra.mxu0 0
  %2984 = vmatprep.subr.bf16.mxu0 0
  %2985 = vmatpush1.bf16.msra.mxu0 0
  %2986 = vmatprep.subr.bf16.mxu0 0
  %2987 = vmatpush1.bf16.msra.mxu0 0
  %2988 = vmatprep.subr.bf16.mxu0 0
  %2989 = vmatpush1.bf16.msra.mxu0 0
  %2990 = vmatprep.subr.bf16.mxu0 0
  %2991 = vmatpush1.bf16.msra.mxu0 0
  %2992 = vmatprep.subr.bf16.mxu0 0
  %2993 = vmatpush1.bf16.msra.mxu0 0
  %2994 = vmatprep.subr.bf16.mxu0 0
  %2995 = vmatpush1.bf16.msra.mxu0 0
  %2996 = vmatprep.subr.bf16.mxu0 0
  %2997 = vmatpush1.bf16.msra.mxu0 0
  %2998 = vmatprep.subr.bf16.mxu0 0
  %2999 = vmatpush1.bf16.msra.mxu0 0
  %3000 = vmatprep.subr.bf16.mxu0 0
  %3001 = vmatpush1.bf16.msra.mxu0 0
  %3002 = vmatprep.subr.bf16.mxu0 0
  %3003 = vmatpush1.bf16.msra.mxu0 0
  %3004 = vmatprep.subr.bf16.mxu0 0
  %3005 = vmatpush1.bf16.msra.mxu0 0
  %3006 = vmatprep.mubr.bf16.mxu0 0
  %3007 = vmatmul.mubr.bf16.gmra.mrb[0].mxu0 %v2963
  %v3008 = vpop.f32.mrb[0].mxu0
  %v3009 = vadd.f32 0.0, %v3008
  %v3010 = vpop.f32.mrb[0].mxu0
  %v3011 = vpop.f32.mrb[0].mxu0
  %v3012 = vadd.f32 0.0, %v3011
  %v3013 = vpop.f32.mrb[0].mxu0
  %3014 = vmatprep.mubr.bf16.mxu0 0
  %3015 = vmatmul.mubr.bf16.gmra.mrb[0].mxu0 %v2966
  %v3016 = vpop.f32.mrb[0].mxu0
  %v3017 = vadd.f32 0.0, %v3016
  %v3018 = vpop.f32.mrb[0].mxu0
  %v3019 = vpop.f32.mrb[0].mxu0
  %v3020 = vadd.f32 0.0, %v3019
  %v3021 = vpop.f32.mrb[0].mxu0
  %3022 = vmatprep.mubr.bf16.mxu0 0
  %3023 = vmatmul.mubr.bf16.gmra.mrb[0].mxu0 %v2969
  %v3024 = vpop.f32.mrb[0].mxu0
  %v3025 = vadd.f32 0.0, %v3024
  %v3026 = vpop.f32.mrb[0].mxu0
  %v3027 = vpop.f32.mrb[0].mxu0
  %v3028 = vadd.f32 0.0, %v3027
  %v3029 = vpop.f32.mrb[0].mxu0
  %3030 = vmatprep.mubr.bf16.mxu0 0
  %3031 = vmatmul.mubr.bf16.gmra.mrb[0].mxu0 %v2972
  %v3032 = vpop.f32.mrb[0].mxu0
  %v3033 = vadd.f32 0.0, %v3032
  %v3034 = vpop.f32.mrb[0].mxu0
  %v3035 = vpop.f32.mrb[0].mxu0
  %v3036 = vpop.f32.mrb[0].mxu0
  %3037 = vdwg.mxu0
  %v3038 = vadd.f32 %v2817, %v3009
  %v3039 = vadd.f32 %v2818, %v3012
  %v3040 = vadd.f32 %v2819, %v3017
  %v3041 = vadd.f32 %v2820, %v3020
  %v3042 = vadd.f32 %v2821, %v3025
  %v3043 = vadd.f32 %v2822, %v3028
  %v3044 = vadd.f32 %v2823, %v3033
  %s3045 = scalar_lea.vmem %s3, 392
  %v3046 = vld [vmem:[%s3045] sm:$0xff]
  %v3047 = vld [vmem:[%s3045 + $0x8] sm:$0xff]
  %v3048 = vld [vmem:[%s3045 + $0x10] sm:$0xff]
  %v3049 = vld [vmem:[%s3045 + $0x18] sm:$0xff]
  %v3050 = vld [vmem:[%s3045 + $0x20] sm:$0xff]
  %v3051 = vld [vmem:[%s3045 + $0x28] sm:$0xff]
  %v3052 = vld [vmem:[%s3045 + $0x30] sm:$0x11]
  %v3060 = vunpack.c.l.b16 %v3046
  %v3061 = vunpack.c.h.b16 %v3046
  %v3062 = vunpack.c.l.b16 %v3047
  %v3063 = vunpack.c.h.b16 %v3047
  %v3064 = vunpack.c.l.b16 %v3048
  %v3065 = vunpack.c.h.b16 %v3048
  %v3066 = vunpack.c.l.b16 %v3049
  %v3067 = vunpack.c.h.b16 %v3049
  %v3068 = vunpack.c.l.b16 %v3050
  %v3069 = vunpack.c.h.b16 %v3050
  %v3070 = vunpack.c.l.b16 %v3051
  %v3071 = vunpack.c.h.b16 %v3051
  %v3072 = vunpack.c.l.b16 %v3052
  %v3073 = vunpack.c.h.b16 %v3052
  %v3074 = vpack.c.b16 %v3062, %v3060
  %v3075 = vpack.c.b16 %v3063, %v3061
  %v3076 = vpack.c.b16 %v3066, %v3064
  %v3077 = vpack.c.b16 %v3067, %v3065
  %v3078 = vpack.c.b16 %v3070, %v3068
  %v3079 = vpack.c.b16 %v3071, %v3069
  %v3080 = vpack.c.b16 %v3072, %v3072
  %v3081 = vpack.c.b16 %v3073, %v3073
  %v3087 = vsel %vm1548, %v3075, 0
  %v3090 = vsel %vm1548, %v3077, 0
  %v3093 = vsel %vm1548, %v3079, 0
  %v3096 = vsel %vm1548, %v3081, 0
  %3098 = vmatprep.subr.bf16.mxu0 0
  %3099 = vmatpush1.bf16.msra.mxu0 %v1495
  %3100 = vmatprep.subr.bf16.mxu0 0
  %3101 = vmatpush1.bf16.msra.mxu0 %v1496
  %3102 = vmatprep.subr.bf16.mxu0 0
  %3103 = vmatpush1.bf16.msra.mxu0 %v1497
  %3104 = vmatprep.subr.bf16.mxu0 0
  %3105 = vmatpush1.bf16.msra.mxu0 %v1498
  %3106 = vmatprep.subr.bf16.mxu0 0
  %3107 = vmatpush1.bf16.msra.mxu0 %v1499
  %3108 = vmatprep.subr.bf16.mxu0 0
  %3109 = vmatpush1.bf16.msra.mxu0 %v1500
  %3110 = vmatprep.subr.bf16.mxu0 0
  %3111 = vmatpush1.bf16.msra.mxu0 %v1501
  %3112 = vmatprep.subr.bf16.mxu0 0
  %3113 = vmatpush1.bf16.msra.mxu0 %v1502
  %3114 = vmatprep.subr.bf16.mxu0 0
  %3115 = vmatpush1.bf16.msra.mxu0 %v1503
  %3116 = vmatprep.subr.bf16.mxu0 0
  %3117 = vmatpush1.bf16.msra.mxu0 %v1504
  %3118 = vmatprep.subr.bf16.mxu0 0
  %3119 = vmatpush1.bf16.msra.mxu0 %v1505
  %3120 = vmatprep.subr.bf16.mxu0 0
  %3121 = vmatpush1.bf16.msra.mxu0 %v1506
  %3122 = vmatprep.subr.bf16.mxu0 0
  %3123 = vmatpush1.bf16.msra.mxu0 %v1563
  %3124 = vmatprep.subr.bf16.mxu0 0
  %3125 = vmatpush1.bf16.msra.mxu0 0
  %3126 = vmatprep.subr.bf16.mxu0 0
  %3127 = vmatpush1.bf16.msra.mxu0 0
  %3128 = vmatprep.subr.bf16.mxu0 0
  %3129 = vmatpush1.bf16.msra.mxu0 0
  %3130 = vmatprep.mubr.bf16.mxu0 %v3087
  %3131 = vmatmul.mubr.bf16.gmra.mrb[0].mxu0 %v3074
  %v3132 = vpop.f32.mrb[0].mxu0
  %v3133 = vadd.f32 0.0, %v3132
  %v3134 = vpop.f32.mrb[0].mxu0
  %v3135 = vpop.f32.mrb[0].mxu0
  %v3136 = vadd.f32 0.0, %v3135
  %v3137 = vpop.f32.mrb[0].mxu0
  %3138 = vmatprep.mubr.bf16.mxu0 %v3090
  %3139 = vmatmul.mubr.bf16.gmra.mrb[0].mxu0 %v3076
  %v3140 = vpop.f32.mrb[0].mxu0
  %v3141 = vadd.f32 0.0, %v3140
  %v3142 = vpop.f32.mrb[0].mxu0
  %v3143 = vpop.f32.mrb[0].mxu0
  %v3144 = vadd.f32 0.0, %v3143
  %v3145 = vpop.f32.mrb[0].mxu0
  %3146 = vmatprep.mubr.bf16.mxu0 %v3093
  %3147 = vmatmul.mubr.bf16.gmra.mrb[0].mxu0 %v3078
  %v3148 = vpop.f32.mrb[0].mxu0
  %v3149 = vadd.f32 0.0, %v3148
  %v3150 = vpop.f32.mrb[0].mxu0
  %v3151 = vpop.f32.mrb[0].mxu0
  %v3152 = vadd.f32 0.0, %v3151
  %v3153 = vpop.f32.mrb[0].mxu0
  %3154 = vmatprep.mubr.bf16.mxu0 %v3096
  %3155 = vmatmul.mubr.bf16.gmra.mrb[0].mxu0 %v3080
  %v3156 = vpop.f32.mrb[0].mxu0
  %v3157 = vadd.f32 0.0, %v3156
  %v3158 = vpop.f32.mrb[0].mxu0
  %v3159 = vpop.f32.mrb[0].mxu0
  %v3160 = vpop.f32.mrb[0].mxu0
  %3161 = vdwg.mxu0
  %v3162 = vpack.c.bf16 %v3136, %v3133
  %v3163 = vpack.c.bf16 %v3144, %v3141
  %v3164 = vpack.c.bf16 %v3152, %v3149
  %v3165 = vpack.c.bf16 %v3157, %v3157
  %s3166 = scalar_lea.vmem %s4, 112
  %v3167 = vld [vmem:[%s3166] sm:$0xf]
  %v3168 = vld [vmem:[%s3166 + $0x4] sm:$0xf]
  %v3169 = vld [vmem:[%s3166 + $0x8] sm:$0xf]
  %v3170 = vld [vmem:[%s3166 + $0xc] sm:$0xf]
  %v3175 = vunpack.c.l.b16 %v3167
  %v3176 = vunpack.c.l.b16 %v3168
  %v3177 = vunpack.c.l.b16 %v3169
  %v3178 = vunpack.c.l.b16 %v3170
  %v3179 = vpack.c.b16 %v3176, %v3175
  %v3180 = vpack.c.b16 %v3178, %v3177
  %v3184 = vsel %vm1775, %v3162, 0
  %v3187 = vsel %vm1775, %v3163, 0
  %v3190 = vsel %vm1775, %v3164, 0
  %v3193 = vsel %vm1775, %v3165, 0
  %3195 = vmatprep.subr.bf16.mxu0 0
  %3196 = vmatpush1.bf16.msra.mxu0 %v3179
  %3197 = vmatprep.subr.bf16.mxu0 0
  %3198 = vmatpush1.bf16.msra.mxu0 %v3180
  %3199 = vmatprep.subr.bf16.mxu0 0
  %3200 = vmatpush1.bf16.msra.mxu0 0
  %3201 = vmatprep.subr.bf16.mxu0 0
  %3202 = vmatpush1.bf16.msra.mxu0 0
  %3203 = vmatprep.subr.bf16.mxu0 0
  %3204 = vmatpush1.bf16.msra.mxu0 0
  %3205 = vmatprep.subr.bf16.mxu0 0
  %3206 = vmatpush1.bf16.msra.mxu0 0
  %3207 = vmatprep.subr.bf16.mxu0 0
  %3208 = vmatpush1.bf16.msra.mxu0 0
  %3209 = vmatprep.subr.bf16.mxu0 0
  %3210 = vmatpush1.bf16.msra.mxu0 0
  %3211 = vmatprep.subr.bf16.mxu0 0
  %3212 = vmatpush1.bf16.msra.mxu0 0
  %3213 = vmatprep.subr.bf16.mxu0 0
  %3214 = vmatpush1.bf16.msra.mxu0 0
  %3215 = vmatprep.subr.bf16.mxu0 0
  %3216 = vmatpush1.bf16.msra.mxu0 0
  %3217 = vmatprep.subr.bf16.mxu0 0
  %3218 = vmatpush1.bf16.msra.mxu0 0
  %3219 = vmatprep.subr.bf16.mxu0 0
  %3220 = vmatpush1.bf16.msra.mxu0 0
  %3221 = vmatprep.subr.bf16.mxu0 0
  %3222 = vmatpush1.bf16.msra.mxu0 0
  %3223 = vmatprep.subr.bf16.mxu0 0
  %3224 = vmatpush1.bf16.msra.mxu0 0
  %3225 = vmatprep.subr.bf16.mxu0 0
  %3226 = vmatpush1.bf16.msra.mxu0 0
  %3227 = vmatprep.mubr.bf16.mxu0 0
  %3228 = vmatmul.mubr.bf16.gmra.mrb[0].mxu0 %v3184
  %v3229 = vpop.f32.mrb[0].mxu0
  %v3230 = vadd.f32 0.0, %v3229
  %v3231 = vpop.f32.mrb[0].mxu0
  %v3232 = vpop.f32.mrb[0].mxu0
  %v3233 = vadd.f32 0.0, %v3232
  %v3234 = vpop.f32.mrb[0].mxu0
  %3235 = vmatprep.mubr.bf16.mxu0 0
  %3236 = vmatmul.mubr.bf16.gmra.mrb[0].mxu0 %v3187
  %v3237 = vpop.f32.mrb[0].mxu0
  %v3238 = vadd.f32 0.0, %v3237
  %v3239 = vpop.f32.mrb[0].mxu0
  %v3240 = vpop.f32.mrb[0].mxu0
  %v3241 = vadd.f32 0.0, %v3240
  %v3242 = vpop.f32.mrb[0].mxu0
  %3243 = vmatprep.mubr.bf16.mxu0 0
  %3244 = vmatmul.mubr.bf16.gmra.mrb[0].mxu0 %v3190
  %v3245 = vpop.f32.mrb[0].mxu0
  %v3246 = vadd.f32 0.0, %v3245
  %v3247 = vpop.f32.mrb[0].mxu0
  %v3248 = vpop.f32.mrb[0].mxu0
  %v3249 = vadd.f32 0.0, %v3248
  %v3250 = vpop.f32.mrb[0].mxu0
  %3251 = vmatprep.mubr.bf16.mxu0 0
  %3252 = vmatmul.mubr.bf16.gmra.mrb[0].mxu0 %v3193
  %v3253 = vpop.f32.mrb[0].mxu0
  %v3254 = vadd.f32 0.0, %v3253
  %v3255 = vpop.f32.mrb[0].mxu0
  %v3256 = vpop.f32.mrb[0].mxu0
  %v3257 = vpop.f32.mrb[0].mxu0
  %3258 = vdwg.mxu0
  %v3259 = vadd.f32 %v3038, %v3230
  %v3260 = vadd.f32 %v3039, %v3233
  %v3261 = vadd.f32 %v3040, %v3238
  %v3262 = vadd.f32 %v3041, %v3241
  %v3263 = vadd.f32 %v3042, %v3246
  %v3264 = vadd.f32 %v3043, %v3249
  %v3265 = vadd.f32 %v3044, %v3254
  %s3266 = scalar_lea.vmem %s3, 448
  %v3267 = vld [vmem:[%s3266] sm:$0xff]
  %v3268 = vld [vmem:[%s3266 + $0x8] sm:$0xff]
  %v3269 = vld [vmem:[%s3266 + $0x10] sm:$0xff]
  %v3270 = vld [vmem:[%s3266 + $0x18] sm:$0xff]
  %v3271 = vld [vmem:[%s3266 + $0x20] sm:$0xff]
  %v3272 = vld [vmem:[%s3266 + $0x28] sm:$0xff]
  %v3273 = vld [vmem:[%s3266 + $0x30] sm:$0x11]
  %v3281 = vunpack.c.l.b16 %v3267
  %v3282 = vunpack.c.h.b16 %v3267
  %v3283 = vunpack.c.l.b16 %v3268
  %v3284 = vunpack.c.h.b16 %v3268
  %v3285 = vunpack.c.l.b16 %v3269
  %v3286 = vunpack.c.h.b16 %v3269
  %v3287 = vunpack.c.l.b16 %v3270
  %v3288 = vunpack.c.h.b16 %v3270
  %v3289 = vunpack.c.l.b16 %v3271
  %v3290 = vunpack.c.h.b16 %v3271
  %v3291 = vunpack.c.l.b16 %v3272
  %v3292 = vunpack.c.h.b16 %v3272
  %v3293 = vunpack.c.l.b16 %v3273
  %v3294 = vunpack.c.h.b16 %v3273
  %v3295 = vpack.c.b16 %v3283, %v3281
  %v3296 = vpack.c.b16 %v3284, %v3282
  %v3297 = vpack.c.b16 %v3287, %v3285
  %v3298 = vpack.c.b16 %v3288, %v3286
  %v3299 = vpack.c.b16 %v3291, %v3289
  %v3300 = vpack.c.b16 %v3292, %v3290
  %v3301 = vpack.c.b16 %v3293, %v3293
  %v3302 = vpack.c.b16 %v3294, %v3294
  %v3308 = vsel %vm1548, %v3296, 0
  %v3311 = vsel %vm1548, %v3298, 0
  %v3314 = vsel %vm1548, %v3300, 0
  %v3317 = vsel %vm1548, %v3302, 0
  %3319 = vmatprep.subr.bf16.mxu0 0
  %3320 = vmatpush1.bf16.msra.mxu0 %v1495
  %3321 = vmatprep.subr.bf16.mxu0 0
  %3322 = vmatpush1.bf16.msra.mxu0 %v1496
  %3323 = vmatprep.subr.bf16.mxu0 0
  %3324 = vmatpush1.bf16.msra.mxu0 %v1497
  %3325 = vmatprep.subr.bf16.mxu0 0
  %3326 = vmatpush1.bf16.msra.mxu0 %v1498
  %3327 = vmatprep.subr.bf16.mxu0 0
  %3328 = vmatpush1.bf16.msra.mxu0 %v1499
  %3329 = vmatprep.subr.bf16.mxu0 0
  %3330 = vmatpush1.bf16.msra.mxu0 %v1500
  %3331 = vmatprep.subr.bf16.mxu0 0
  %3332 = vmatpush1.bf16.msra.mxu0 %v1501
  %3333 = vmatprep.subr.bf16.mxu0 0
  %3334 = vmatpush1.bf16.msra.mxu0 %v1502
  %3335 = vmatprep.subr.bf16.mxu0 0
  %3336 = vmatpush1.bf16.msra.mxu0 %v1503
  %3337 = vmatprep.subr.bf16.mxu0 0
  %3338 = vmatpush1.bf16.msra.mxu0 %v1504
  %3339 = vmatprep.subr.bf16.mxu0 0
  %3340 = vmatpush1.bf16.msra.mxu0 %v1505
  %3341 = vmatprep.subr.bf16.mxu0 0
  %3342 = vmatpush1.bf16.msra.mxu0 %v1506
  %3343 = vmatprep.subr.bf16.mxu0 0
  %3344 = vmatpush1.bf16.msra.mxu0 %v1563
  %3345 = vmatprep.subr.bf16.mxu0 0
  %3346 = vmatpush1.bf16.msra.mxu0 0
  %3347 = vmatprep.subr.bf16.mxu0 0
  %3348 = vmatpush1.bf16.msra.mxu0 0
  %3349 = vmatprep.subr.bf16.mxu0 0
  %3350 = vmatpush1.bf16.msra.mxu0 0
  %3351 = vmatprep.mubr.bf16.mxu0 %v3308
  %3352 = vmatmul.mubr.bf16.gmra.mrb[0].mxu0 %v3295
  %v3353 = vpop.f32.mrb[0].mxu0
  %v3354 = vadd.f32 0.0, %v3353
  %v3355 = vpop.f32.mrb[0].mxu0
  %v3356 = vpop.f32.mrb[0].mxu0
  %v3357 = vadd.f32 0.0, %v3356
  %v3358 = vpop.f32.mrb[0].mxu0
  %3359 = vmatprep.mubr.bf16.mxu0 %v3311
  %3360 = vmatmul.mubr.bf16.gmra.mrb[0].mxu0 %v3297
  %v3361 = vpop.f32.mrb[0].mxu0
  %v3362 = vadd.f32 0.0, %v3361
  %v3363 = vpop.f32.mrb[0].mxu0
  %v3364 = vpop.f32.mrb[0].mxu0
  %v3365 = vadd.f32 0.0, %v3364
  %v3366 = vpop.f32.mrb[0].mxu0
  %3367 = vmatprep.mubr.bf16.mxu0 %v3314
  %3368 = vmatmul.mubr.bf16.gmra.mrb[0].mxu0 %v3299
  %v3369 = vpop.f32.mrb[0].mxu0
  %v3370 = vadd.f32 0.0, %v3369
  %v3371 = vpop.f32.mrb[0].mxu0
  %v3372 = vpop.f32.mrb[0].mxu0
  %v3373 = vadd.f32 0.0, %v3372
  %v3374 = vpop.f32.mrb[0].mxu0
  %3375 = vmatprep.mubr.bf16.mxu0 %v3317
  %3376 = vmatmul.mubr.bf16.gmra.mrb[0].mxu0 %v3301
  %v3377 = vpop.f32.mrb[0].mxu0
  %v3378 = vadd.f32 0.0, %v3377
  %v3379 = vpop.f32.mrb[0].mxu0
  %v3380 = vpop.f32.mrb[0].mxu0
  %v3381 = vpop.f32.mrb[0].mxu0
  %3382 = vdwg.mxu0
  %v3383 = vpack.c.bf16 %v3357, %v3354
  %v3384 = vpack.c.bf16 %v3365, %v3362
  %v3385 = vpack.c.bf16 %v3373, %v3370
  %v3386 = vpack.c.bf16 %v3378, %v3378
  %s3387 = scalar_lea.vmem %s4, 128
  %v3388 = vld [vmem:[%s3387] sm:$0xf]
  %v3389 = vld [vmem:[%s3387 + $0x4] sm:$0xf]
  %v3390 = vld [vmem:[%s3387 + $0x8] sm:$0xf]
  %v3391 = vld [vmem:[%s3387 + $0xc] sm:$0xf]
  %v3396 = vunpack.c.l.b16 %v3388
  %v3397 = vunpack.c.l.b16 %v3389
  %v3398 = vunpack.c.l.b16 %v3390
  %v3399 = vunpack.c.l.b16 %v3391
  %v3400 = vpack.c.b16 %v3397, %v3396
  %v3401 = vpack.c.b16 %v3399, %v3398
  %v3405 = vsel %vm1775, %v3383, 0
  %v3408 = vsel %vm1775, %v3384, 0
  %v3411 = vsel %vm1775, %v3385, 0
  %v3414 = vsel %vm1775, %v3386, 0
  %3416 = vmatprep.subr.bf16.mxu0 0
  %3417 = vmatpush1.bf16.msra.mxu0 %v3400
  %3418 = vmatprep.subr.bf16.mxu0 0
  %3419 = vmatpush1.bf16.msra.mxu0 %v3401
  %3420 = vmatprep.subr.bf16.mxu0 0
  %3421 = vmatpush1.bf16.msra.mxu0 0
  %3422 = vmatprep.subr.bf16.mxu0 0
  %3423 = vmatpush1.bf16.msra.mxu0 0
  %3424 = vmatprep.subr.bf16.mxu0 0
  %3425 = vmatpush1.bf16.msra.mxu0 0
  %3426 = vmatprep.subr.bf16.mxu0 0
  %3427 = vmatpush1.bf16.msra.mxu0 0
  %3428 = vmatprep.subr.bf16.mxu0 0
  %3429 = vmatpush1.bf16.msra.mxu0 0
  %3430 = vmatprep.subr.bf16.mxu0 0
  %3431 = vmatpush1.bf16.msra.mxu0 0
  %3432 = vmatprep.subr.bf16.mxu0 0
  %3433 = vmatpush1.bf16.msra.mxu0 0
  %3434 = vmatprep.subr.bf16.mxu0 0
  %3435 = vmatpush1.bf16.msra.mxu0 0
  %3436 = vmatprep.subr.bf16.mxu0 0
  %3437 = vmatpush1.bf16.msra.mxu0 0
  %3438 = vmatprep.subr.bf16.mxu0 0
  %3439 = vmatpush1.bf16.msra.mxu0 0
  %3440 = vmatprep.subr.bf16.mxu0 0
  %3441 = vmatpush1.bf16.msra.mxu0 0
  %3442 = vmatprep.subr.bf16.mxu0 0
  %3443 = vmatpush1.bf16.msra.mxu0 0
  %3444 = vmatprep.subr.bf16.mxu0 0
  %3445 = vmatpush1.bf16.msra.mxu0 0
  %3446 = vmatprep.subr.bf16.mxu0 0
  %3447 = vmatpush1.bf16.msra.mxu0 0
  %3448 = vmatprep.mubr.bf16.mxu0 0
  %3449 = vmatmul.mubr.bf16.gmra.mrb[0].mxu0 %v3405
  %v3450 = vpop.f32.mrb[0].mxu0
  %v3451 = vadd.f32 0.0, %v3450
  %v3452 = vpop.f32.mrb[0].mxu0
  %v3453 = vpop.f32.mrb[0].mxu0
  %v3454 = vadd.f32 0.0, %v3453
  %v3455 = vpop.f32.mrb[0].mxu0
  %3456 = vmatprep.mubr.bf16.mxu0 0
  %3457 = vmatmul.mubr.bf16.gmra.mrb[0].mxu0 %v3408
  %v3458 = vpop.f32.mrb[0].mxu0
  %v3459 = vadd.f32 0.0, %v3458
  %v3460 = vpop.f32.mrb[0].mxu0
  %v3461 = vpop.f32.mrb[0].mxu0
  %v3462 = vadd.f32 0.0, %v3461
  %v3463 = vpop.f32.mrb[0].mxu0
  %3464 = vmatprep.mubr.bf16.mxu0 0
  %3465 = vmatmul.mubr.bf16.gmra.mrb[0].mxu0 %v3411
  %v3466 = vpop.f32.mrb[0].mxu0
  %v3467 = vadd.f32 0.0, %v3466
  %v3468 = vpop.f32.mrb[0].mxu0
  %v3469 = vpop.f32.mrb[0].mxu0
  %v3470 = vadd.f32 0.0, %v3469
  %v3471 = vpop.f32.mrb[0].mxu0
  %3472 = vmatprep.mubr.bf16.mxu0 0
  %3473 = vmatmul.mubr.bf16.gmra.mrb[0].mxu0 %v3414
  %v3474 = vpop.f32.mrb[0].mxu0
  %v3475 = vadd.f32 0.0, %v3474
  %v3476 = vpop.f32.mrb[0].mxu0
  %v3477 = vpop.f32.mrb[0].mxu0
  %v3478 = vpop.f32.mrb[0].mxu0
  %3479 = vdwg.mxu0
  %v3480 = vadd.f32 %v3259, %v3451
  %v3481 = vadd.f32 %v3260, %v3454
  %v3482 = vadd.f32 %v3261, %v3459
  %v3483 = vadd.f32 %v3262, %v3462
  %v3484 = vadd.f32 %v3263, %v3467
  %v3485 = vadd.f32 %v3264, %v3470
  %v3486 = vadd.f32 %v3265, %v3475
  %s3487 = scalar_lea.vmem %s3, 504
  %v3488 = vld [vmem:[%s3487] sm:$0xff]
  %v3489 = vld [vmem:[%s3487 + $0x8] sm:$0xff]
  %v3490 = vld [vmem:[%s3487 + $0x10] sm:$0xff]
  %v3491 = vld [vmem:[%s3487 + $0x18] sm:$0xff]
  %v3492 = vld [vmem:[%s3487 + $0x20] sm:$0xff]
  %v3493 = vld [vmem:[%s3487 + $0x28] sm:$0xff]
  %v3494 = vld [vmem:[%s3487 + $0x30] sm:$0x11]
  %v3502 = vunpack.c.l.b16 %v3488
  %v3503 = vunpack.c.h.b16 %v3488
  %v3504 = vunpack.c.l.b16 %v3489
  %v3505 = vunpack.c.h.b16 %v3489
  %v3506 = vunpack.c.l.b16 %v3490
  %v3507 = vunpack.c.h.b16 %v3490
  %v3508 = vunpack.c.l.b16 %v3491
  %v3509 = vunpack.c.h.b16 %v3491
  %v3510 = vunpack.c.l.b16 %v3492
  %v3511 = vunpack.c.h.b16 %v3492
  %v3512 = vunpack.c.l.b16 %v3493
  %v3513 = vunpack.c.h.b16 %v3493
  %v3514 = vunpack.c.l.b16 %v3494
  %v3515 = vunpack.c.h.b16 %v3494
  %v3516 = vpack.c.b16 %v3504, %v3502
  %v3517 = vpack.c.b16 %v3505, %v3503
  %v3518 = vpack.c.b16 %v3508, %v3506
  %v3519 = vpack.c.b16 %v3509, %v3507
  %v3520 = vpack.c.b16 %v3512, %v3510
  %v3521 = vpack.c.b16 %v3513, %v3511
  %v3522 = vpack.c.b16 %v3514, %v3514
  %v3523 = vpack.c.b16 %v3515, %v3515
  %v3529 = vsel %vm1548, %v3517, 0
  %v3532 = vsel %vm1548, %v3519, 0
  %v3535 = vsel %vm1548, %v3521, 0
  %v3538 = vsel %vm1548, %v3523, 0
  %3540 = vmatprep.subr.bf16.mxu0 0
  %3541 = vmatpush1.bf16.msra.mxu0 %v1495
  %3542 = vmatprep.subr.bf16.mxu0 0
  %3543 = vmatpush1.bf16.msra.mxu0 %v1496
  %3544 = vmatprep.subr.bf16.mxu0 0
  %3545 = vmatpush1.bf16.msra.mxu0 %v1497
  %3546 = vmatprep.subr.bf16.mxu0 0
  %3547 = vmatpush1.bf16.msra.mxu0 %v1498
  %3548 = vmatprep.subr.bf16.mxu0 0
  %3549 = vmatpush1.bf16.msra.mxu0 %v1499
  %3550 = vmatprep.subr.bf16.mxu0 0
  %3551 = vmatpush1.bf16.msra.mxu0 %v1500
  %3552 = vmatprep.subr.bf16.mxu0 0
  %3553 = vmatpush1.bf16.msra.mxu0 %v1501
  %3554 = vmatprep.subr.bf16.mxu0 0
  %3555 = vmatpush1.bf16.msra.mxu0 %v1502
  %3556 = vmatprep.subr.bf16.mxu0 0
  %3557 = vmatpush1.bf16.msra.mxu0 %v1503
  %3558 = vmatprep.subr.bf16.mxu0 0
  %3559 = vmatpush1.bf16.msra.mxu0 %v1504
  %3560 = vmatprep.subr.bf16.mxu0 0
  %3561 = vmatpush1.bf16.msra.mxu0 %v1505
  %3562 = vmatprep.subr.bf16.mxu0 0
  %3563 = vmatpush1.bf16.msra.mxu0 %v1506
  %3564 = vmatprep.subr.bf16.mxu0 0
  %3565 = vmatpush1.bf16.msra.mxu0 %v1563
  %3566 = vmatprep.subr.bf16.mxu0 0
  %3567 = vmatpush1.bf16.msra.mxu0 0
  %3568 = vmatprep.subr.bf16.mxu0 0
  %3569 = vmatpush1.bf16.msra.mxu0 0
  %3570 = vmatprep.subr.bf16.mxu0 0
  %3571 = vmatpush1.bf16.msra.mxu0 0
  %3572 = vmatprep.mubr.bf16.mxu0 %v3529
  %3573 = vmatmul.mubr.bf16.gmra.mrb[0].mxu0 %v3516
  %v3574 = vpop.f32.mrb[0].mxu0
  %v3575 = vadd.f32 0.0, %v3574
  %v3576 = vpop.f32.mrb[0].mxu0
  %v3577 = vpop.f32.mrb[0].mxu0
  %v3578 = vadd.f32 0.0, %v3577
  %v3579 = vpop.f32.mrb[0].mxu0
  %3580 = vmatprep.mubr.bf16.mxu0 %v3532
  %3581 = vmatmul.mubr.bf16.gmra.mrb[0].mxu0 %v3518
  %v3582 = vpop.f32.mrb[0].mxu0
  %v3583 = vadd.f32 0.0, %v3582
  %v3584 = vpop.f32.mrb[0].mxu0
  %v3585 = vpop.f32.mrb[0].mxu0
  %v3586 = vadd.f32 0.0, %v3585
  %v3587 = vpop.f32.mrb[0].mxu0
  %3588 = vmatprep.mubr.bf16.mxu0 %v3535
  %3589 = vmatmul.mubr.bf16.gmra.mrb[0].mxu0 %v3520
  %v3590 = vpop.f32.mrb[0].mxu0
  %v3591 = vadd.f32 0.0, %v3590
  %v3592 = vpop.f32.mrb[0].mxu0
  %v3593 = vpop.f32.mrb[0].mxu0
  %v3594 = vadd.f32 0.0, %v3593
  %v3595 = vpop.f32.mrb[0].mxu0
  %3596 = vmatprep.mubr.bf16.mxu0 %v3538
  %3597 = vmatmul.mubr.bf16.gmra.mrb[0].mxu0 %v3522
  %v3598 = vpop.f32.mrb[0].mxu0
  %v3599 = vadd.f32 0.0, %v3598
  %v3600 = vpop.f32.mrb[0].mxu0
  %v3601 = vpop.f32.mrb[0].mxu0
  %v3602 = vpop.f32.mrb[0].mxu0
  %3603 = vdwg.mxu0
  %v3604 = vpack.c.bf16 %v3578, %v3575
  %v3605 = vpack.c.bf16 %v3586, %v3583
  %v3606 = vpack.c.bf16 %v3594, %v3591
  %v3607 = vpack.c.bf16 %v3599, %v3599
  %s3608 = scalar_lea.vmem %s4, 144
  %v3609 = vld [vmem:[%s3608] sm:$0xf]
  %v3610 = vld [vmem:[%s3608 + $0x4] sm:$0xf]
  %v3611 = vld [vmem:[%s3608 + $0x8] sm:$0xf]
  %v3612 = vld [vmem:[%s3608 + $0xc] sm:$0xf]
  %v3617 = vunpack.c.l.b16 %v3609
  %v3618 = vunpack.c.l.b16 %v3610
  %v3619 = vunpack.c.l.b16 %v3611
  %v3620 = vunpack.c.l.b16 %v3612
  %v3621 = vpack.c.b16 %v3618, %v3617
  %v3622 = vpack.c.b16 %v3620, %v3619
  %v3626 = vsel %vm1775, %v3604, 0
  %v3629 = vsel %vm1775, %v3605, 0
  %v3632 = vsel %vm1775, %v3606, 0
  %v3635 = vsel %vm1775, %v3607, 0
  %3637 = vmatprep.subr.bf16.mxu0 0
  %3638 = vmatpush1.bf16.msra.mxu0 %v3621
  %3639 = vmatprep.subr.bf16.mxu0 0
  %3640 = vmatpush1.bf16.msra.mxu0 %v3622
  %3641 = vmatprep.subr.bf16.mxu0 0
  %3642 = vmatpush1.bf16.msra.mxu0 0
  %3643 = vmatprep.subr.bf16.mxu0 0
  %3644 = vmatpush1.bf16.msra.mxu0 0
  %3645 = vmatprep.subr.bf16.mxu0 0
  %3646 = vmatpush1.bf16.msra.mxu0 0
  %3647 = vmatprep.subr.bf16.mxu0 0
  %3648 = vmatpush1.bf16.msra.mxu0 0
  %3649 = vmatprep.subr.bf16.mxu0 0
  %3650 = vmatpush1.bf16.msra.mxu0 0
  %3651 = vmatprep.subr.bf16.mxu0 0
  %3652 = vmatpush1.bf16.msra.mxu0 0
  %3653 = vmatprep.subr.bf16.mxu0 0
  %3654 = vmatpush1.bf16.msra.mxu0 0
  %3655 = vmatprep.subr.bf16.mxu0 0
  %3656 = vmatpush1.bf16.msra.mxu0 0
  %3657 = vmatprep.subr.bf16.mxu0 0
  %3658 = vmatpush1.bf16.msra.mxu0 0
  %3659 = vmatprep.subr.bf16.mxu0 0
  %3660 = vmatpush1.bf16.msra.mxu0 0
  %3661 = vmatprep.subr.bf16.mxu0 0
  %3662 = vmatpush1.bf16.msra.mxu0 0
  %3663 = vmatprep.subr.bf16.mxu0 0
  %3664 = vmatpush1.bf16.msra.mxu0 0
  %3665 = vmatprep.subr.bf16.mxu0 0
  %3666 = vmatpush1.bf16.msra.mxu0 0
  %3667 = vmatprep.subr.bf16.mxu0 0
  %3668 = vmatpush1.bf16.msra.mxu0 0
  %3669 = vmatprep.mubr.bf16.mxu0 0
  %3670 = vmatmul.mubr.bf16.gmra.mrb[0].mxu0 %v3626
  %v3671 = vpop.f32.mrb[0].mxu0
  %v3672 = vadd.f32 0.0, %v3671
  %v3673 = vpop.f32.mrb[0].mxu0
  %v3674 = vpop.f32.mrb[0].mxu0
  %v3675 = vadd.f32 0.0, %v3674
  %v3676 = vpop.f32.mrb[0].mxu0
  %3677 = vmatprep.mubr.bf16.mxu0 0
  %3678 = vmatmul.mubr.bf16.gmra.mrb[0].mxu0 %v3629
  %v3679 = vpop.f32.mrb[0].mxu0
  %v3680 = vadd.f32 0.0, %v3679
  %v3681 = vpop.f32.mrb[0].mxu0
  %v3682 = vpop.f32.mrb[0].mxu0
  %v3683 = vadd.f32 0.0, %v3682
  %v3684 = vpop.f32.mrb[0].mxu0
  %3685 = vmatprep.mubr.bf16.mxu0 0
  %3686 = vmatmul.mubr.bf16.gmra.mrb[0].mxu0 %v3632
  %v3687 = vpop.f32.mrb[0].mxu0
  %v3688 = vadd.f32 0.0, %v3687
  %v3689 = vpop.f32.mrb[0].mxu0
  %v3690 = vpop.f32.mrb[0].mxu0
  %v3691 = vadd.f32 0.0, %v3690
  %v3692 = vpop.f32.mrb[0].mxu0
  %3693 = vmatprep.mubr.bf16.mxu0 0
  %3694 = vmatmul.mubr.bf16.gmra.mrb[0].mxu0 %v3635
  %v3695 = vpop.f32.mrb[0].mxu0
  %v3696 = vadd.f32 0.0, %v3695
  %v3697 = vpop.f32.mrb[0].mxu0
  %v3698 = vpop.f32.mrb[0].mxu0
  %v3699 = vpop.f32.mrb[0].mxu0
  %3700 = vdwg.mxu0
  %v3701 = vadd.f32 %v3480, %v3672
  %v3702 = vadd.f32 %v3481, %v3675
  %v3703 = vadd.f32 %v3482, %v3680
  %v3704 = vadd.f32 %v3483, %v3683
  %v3705 = vadd.f32 %v3484, %v3688
  %v3706 = vadd.f32 %v3485, %v3691
  %v3707 = vadd.f32 %v3486, %v3696
  %s3708 = scalar_lea.vmem %s3, 560
  %v3709 = vld [vmem:[%s3708] sm:$0xff]
  %v3710 = vld [vmem:[%s3708 + $0x8] sm:$0xff]
  %v3711 = vld [vmem:[%s3708 + $0x10] sm:$0xff]
  %v3712 = vld [vmem:[%s3708 + $0x18] sm:$0xff]
  %v3713 = vld [vmem:[%s3708 + $0x20] sm:$0xff]
  %v3714 = vld [vmem:[%s3708 + $0x28] sm:$0xff]
  %v3715 = vld [vmem:[%s3708 + $0x30] sm:$0x11]
  %v3723 = vunpack.c.l.b16 %v3709
  %v3724 = vunpack.c.h.b16 %v3709
  %v3725 = vunpack.c.l.b16 %v3710
  %v3726 = vunpack.c.h.b16 %v3710
  %v3727 = vunpack.c.l.b16 %v3711
  %v3728 = vunpack.c.h.b16 %v3711
  %v3729 = vunpack.c.l.b16 %v3712
  %v3730 = vunpack.c.h.b16 %v3712
  %v3731 = vunpack.c.l.b16 %v3713
  %v3732 = vunpack.c.h.b16 %v3713
  %v3733 = vunpack.c.l.b16 %v3714
  %v3734 = vunpack.c.h.b16 %v3714
  %v3735 = vunpack.c.l.b16 %v3715
  %v3736 = vunpack.c.h.b16 %v3715
  %v3737 = vpack.c.b16 %v3725, %v3723
  %v3738 = vpack.c.b16 %v3726, %v3724
  %v3739 = vpack.c.b16 %v3729, %v3727
  %v3740 = vpack.c.b16 %v3730, %v3728
  %v3741 = vpack.c.b16 %v3733, %v3731
  %v3742 = vpack.c.b16 %v3734, %v3732
  %v3743 = vpack.c.b16 %v3735, %v3735
  %v3744 = vpack.c.b16 %v3736, %v3736
  %v3750 = vsel %vm1548, %v3738, 0
  %v3753 = vsel %vm1548, %v3740, 0
  %v3756 = vsel %vm1548, %v3742, 0
  %v3759 = vsel %vm1548, %v3744, 0
  %3761 = vmatprep.subr.bf16.mxu0 0
  %3762 = vmatpush1.bf16.msra.mxu0 %v1495
  %3763 = vmatprep.subr.bf16.mxu0 0
  %3764 = vmatpush1.bf16.msra.mxu0 %v1496
  %3765 = vmatprep.subr.bf16.mxu0 0
  %3766 = vmatpush1.bf16.msra.mxu0 %v1497
  %3767 = vmatprep.subr.bf16.mxu0 0
  %3768 = vmatpush1.bf16.msra.mxu0 %v1498
  %3769 = vmatprep.subr.bf16.mxu0 0
  %3770 = vmatpush1.bf16.msra.mxu0 %v1499
  %3771 = vmatprep.subr.bf16.mxu0 0
  %3772 = vmatpush1.bf16.msra.mxu0 %v1500
  %3773 = vmatprep.subr.bf16.mxu0 0
  %3774 = vmatpush1.bf16.msra.mxu0 %v1501
  %3775 = vmatprep.subr.bf16.mxu0 0
  %3776 = vmatpush1.bf16.msra.mxu0 %v1502
  %3777 = vmatprep.subr.bf16.mxu0 0
  %3778 = vmatpush1.bf16.msra.mxu0 %v1503
  %3779 = vmatprep.subr.bf16.mxu0 0
  %3780 = vmatpush1.bf16.msra.mxu0 %v1504
  %3781 = vmatprep.subr.bf16.mxu0 0
  %3782 = vmatpush1.bf16.msra.mxu0 %v1505
  %3783 = vmatprep.subr.bf16.mxu0 0
  %3784 = vmatpush1.bf16.msra.mxu0 %v1506
  %3785 = vmatprep.subr.bf16.mxu0 0
  %3786 = vmatpush1.bf16.msra.mxu0 %v1563
  %3787 = vmatprep.subr.bf16.mxu0 0
  %3788 = vmatpush1.bf16.msra.mxu0 0
  %3789 = vmatprep.subr.bf16.mxu0 0
  %3790 = vmatpush1.bf16.msra.mxu0 0
  %3791 = vmatprep.subr.bf16.mxu0 0
  %3792 = vmatpush1.bf16.msra.mxu0 0
  %3793 = vmatprep.mubr.bf16.mxu0 %v3750
  %3794 = vmatmul.mubr.bf16.gmra.mrb[0].mxu0 %v3737
  %v3795 = vpop.f32.mrb[0].mxu0
  %v3796 = vadd.f32 0.0, %v3795
  %v3797 = vpop.f32.mrb[0].mxu0
  %v3798 = vpop.f32.mrb[0].mxu0
  %v3799 = vadd.f32 0.0, %v3798
  %v3800 = vpop.f32.mrb[0].mxu0
  %3801 = vmatprep.mubr.bf16.mxu0 %v3753
  %3802 = vmatmul.mubr.bf16.gmra.mrb[0].mxu0 %v3739
  %v3803 = vpop.f32.mrb[0].mxu0
  %v3804 = vadd.f32 0.0, %v3803
  %v3805 = vpop.f32.mrb[0].mxu0
  %v3806 = vpop.f32.mrb[0].mxu0
  %v3807 = vadd.f32 0.0, %v3806
  %v3808 = vpop.f32.mrb[0].mxu0
  %3809 = vmatprep.mubr.bf16.mxu0 %v3756
  %3810 = vmatmul.mubr.bf16.gmra.mrb[0].mxu0 %v3741
  %v3811 = vpop.f32.mrb[0].mxu0
  %v3812 = vadd.f32 0.0, %v3811
  %v3813 = vpop.f32.mrb[0].mxu0
  %v3814 = vpop.f32.mrb[0].mxu0
  %v3815 = vadd.f32 0.0, %v3814
  %v3816 = vpop.f32.mrb[0].mxu0
  %3817 = vmatprep.mubr.bf16.mxu0 %v3759
  %3818 = vmatmul.mubr.bf16.gmra.mrb[0].mxu0 %v3743
  %v3819 = vpop.f32.mrb[0].mxu0
  %v3820 = vadd.f32 0.0, %v3819
  %v3821 = vpop.f32.mrb[0].mxu0
  %v3822 = vpop.f32.mrb[0].mxu0
  %v3823 = vpop.f32.mrb[0].mxu0
  %3824 = vdwg.mxu0
  %v3825 = vpack.c.bf16 %v3799, %v3796
  %v3826 = vpack.c.bf16 %v3807, %v3804
  %v3827 = vpack.c.bf16 %v3815, %v3812
  %v3828 = vpack.c.bf16 %v3820, %v3820
  %s3829 = scalar_lea.vmem %s4, 160
  %v3830 = vld [vmem:[%s3829] sm:$0xf]
  %v3831 = vld [vmem:[%s3829 + $0x4] sm:$0xf]
  %v3832 = vld [vmem:[%s3829 + $0x8] sm:$0xf]
  %v3833 = vld [vmem:[%s3829 + $0xc] sm:$0xf]
  %v3838 = vunpack.c.l.b16 %v3830
  %v3839 = vunpack.c.l.b16 %v3831
  %v3840 = vunpack.c.l.b16 %v3832
  %v3841 = vunpack.c.l.b16 %v3833
  %v3842 = vpack.c.b16 %v3839, %v3838
  %v3843 = vpack.c.b16 %v3841, %v3840
  %v3847 = vsel %vm1775, %v3825, 0
  %v3850 = vsel %vm1775, %v3826, 0
  %v3853 = vsel %vm1775, %v3827, 0
  %v3856 = vsel %vm1775, %v3828, 0
  %3858 = vmatprep.subr.bf16.mxu0 0
  %3859 = vmatpush1.bf16.msra.mxu0 %v3842
  %3860 = vmatprep.subr.bf16.mxu0 0
  %3861 = vmatpush1.bf16.msra.mxu0 %v3843
  %3862 = vmatprep.subr.bf16.mxu0 0
  %3863 = vmatpush1.bf16.msra.mxu0 0
  %3864 = vmatprep.subr.bf16.mxu0 0
  %3865 = vmatpush1.bf16.msra.mxu0 0
  %3866 = vmatprep.subr.bf16.mxu0 0
  %3867 = vmatpush1.bf16.msra.mxu0 0
  %3868 = vmatprep.subr.bf16.mxu0 0
  %3869 = vmatpush1.bf16.msra.mxu0 0
  %3870 = vmatprep.subr.bf16.mxu0 0
  %3871 = vmatpush1.bf16.msra.mxu0 0
  %3872 = vmatprep.subr.bf16.mxu0 0
  %3873 = vmatpush1.bf16.msra.mxu0 0
  %3874 = vmatprep.subr.bf16.mxu0 0
  %3875 = vmatpush1.bf16.msra.mxu0 0
  %3876 = vmatprep.subr.bf16.mxu0 0
  %3877 = vmatpush1.bf16.msra.mxu0 0
  %3878 = vmatprep.subr.bf16.mxu0 0
  %3879 = vmatpush1.bf16.msra.mxu0 0
  %3880 = vmatprep.subr.bf16.mxu0 0
  %3881 = vmatpush1.bf16.msra.mxu0 0
  %3882 = vmatprep.subr.bf16.mxu0 0
  %3883 = vmatpush1.bf16.msra.mxu0 0
  %3884 = vmatprep.subr.bf16.mxu0 0
  %3885 = vmatpush1.bf16.msra.mxu0 0
  %3886 = vmatprep.subr.bf16.mxu0 0
  %3887 = vmatpush1.bf16.msra.mxu0 0
  %3888 = vmatprep.subr.bf16.mxu0 0
  %3889 = vmatpush1.bf16.msra.mxu0 0
  %3890 = vmatprep.mubr.bf16.mxu0 0
  %3891 = vmatmul.mubr.bf16.gmra.mrb[0].mxu0 %v3847
  %v3892 = vpop.f32.mrb[0].mxu0
  %v3893 = vadd.f32 0.0, %v3892
  %v3894 = vpop.f32.mrb[0].mxu0
  %v3895 = vpop.f32.mrb[0].mxu0
  %v3896 = vadd.f32 0.0, %v3895
  %v3897 = vpop.f32.mrb[0].mxu0
  %3898 = vmatprep.mubr.bf16.mxu0 0
  %3899 = vmatmul.mubr.bf16.gmra.mrb[0].mxu0 %v3850
  %v3900 = vpop.f32.mrb[0].mxu0
  %v3901 = vadd.f32 0.0, %v3900
  %v3902 = vpop.f32.mrb[0].mxu0
  %v3903 = vpop.f32.mrb[0].mxu0
  %v3904 = vadd.f32 0.0, %v3903
  %v3905 = vpop.f32.mrb[0].mxu0
  %3906 = vmatprep.mubr.bf16.mxu0 0
  %3907 = vmatmul.mubr.bf16.gmra.mrb[0].mxu0 %v3853
  %v3908 = vpop.f32.mrb[0].mxu0
  %v3909 = vadd.f32 0.0, %v3908
  %v3910 = vpop.f32.mrb[0].mxu0
  %v3911 = vpop.f32.mrb[0].mxu0
  %v3912 = vadd.f32 0.0, %v3911
  %v3913 = vpop.f32.mrb[0].mxu0
  %3914 = vmatprep.mubr.bf16.mxu0 0
  %3915 = vmatmul.mubr.bf16.gmra.mrb[0].mxu0 %v3856
  %v3916 = vpop.f32.mrb[0].mxu0
  %v3917 = vadd.f32 0.0, %v3916
  %v3918 = vpop.f32.mrb[0].mxu0
  %v3919 = vpop.f32.mrb[0].mxu0
  %v3920 = vpop.f32.mrb[0].mxu0
  %3921 = vdwg.mxu0
  %v3922 = vadd.f32 %v3701, %v3893
  %v3923 = vadd.f32 %v3702, %v3896
  %v3924 = vadd.f32 %v3703, %v3901
  %v3925 = vadd.f32 %v3704, %v3904
  %v3926 = vadd.f32 %v3705, %v3909
  %v3927 = vadd.f32 %v3706, %v3912
  %v3928 = vadd.f32 %v3707, %v3917
  %s3929 = scalar_lea.vmem %s3, 616
  %v3930 = vld [vmem:[%s3929] sm:$0xff]
  %v3931 = vld [vmem:[%s3929 + $0x8] sm:$0xff]
  %v3932 = vld [vmem:[%s3929 + $0x10] sm:$0xff]
  %v3933 = vld [vmem:[%s3929 + $0x18] sm:$0xff]
  %v3934 = vld [vmem:[%s3929 + $0x20] sm:$0xff]
  %v3935 = vld [vmem:[%s3929 + $0x28] sm:$0xff]
  %v3936 = vld [vmem:[%s3929 + $0x30] sm:$0x11]
  %v3944 = vunpack.c.l.b16 %v3930
  %v3945 = vunpack.c.h.b16 %v3930
  %v3946 = vunpack.c.l.b16 %v3931
  %v3947 = vunpack.c.h.b16 %v3931
  %v3948 = vunpack.c.l.b16 %v3932
  %v3949 = vunpack.c.h.b16 %v3932
  %v3950 = vunpack.c.l.b16 %v3933
  %v3951 = vunpack.c.h.b16 %v3933
  %v3952 = vunpack.c.l.b16 %v3934
  %v3953 = vunpack.c.h.b16 %v3934
  %v3954 = vunpack.c.l.b16 %v3935
  %v3955 = vunpack.c.h.b16 %v3935
  %v3956 = vunpack.c.l.b16 %v3936
  %v3957 = vunpack.c.h.b16 %v3936
  %v3958 = vpack.c.b16 %v3946, %v3944
  %v3959 = vpack.c.b16 %v3947, %v3945
  %v3960 = vpack.c.b16 %v3950, %v3948
  %v3961 = vpack.c.b16 %v3951, %v3949
  %v3962 = vpack.c.b16 %v3954, %v3952
  %v3963 = vpack.c.b16 %v3955, %v3953
  %v3964 = vpack.c.b16 %v3956, %v3956
  %v3965 = vpack.c.b16 %v3957, %v3957
  %v3971 = vsel %vm1548, %v3959, 0
  %v3974 = vsel %vm1548, %v3961, 0
  %v3977 = vsel %vm1548, %v3963, 0
  %v3980 = vsel %vm1548, %v3965, 0
  %3982 = vmatprep.subr.bf16.mxu0 0
  %3983 = vmatpush1.bf16.msra.mxu0 %v1495
  %3984 = vmatprep.subr.bf16.mxu0 0
  %3985 = vmatpush1.bf16.msra.mxu0 %v1496
  %3986 = vmatprep.subr.bf16.mxu0 0
  %3987 = vmatpush1.bf16.msra.mxu0 %v1497
  %3988 = vmatprep.subr.bf16.mxu0 0
  %3989 = vmatpush1.bf16.msra.mxu0 %v1498
  %3990 = vmatprep.subr.bf16.mxu0 0
  %3991 = vmatpush1.bf16.msra.mxu0 %v1499
  %3992 = vmatprep.subr.bf16.mxu0 0
  %3993 = vmatpush1.bf16.msra.mxu0 %v1500
  %3994 = vmatprep.subr.bf16.mxu0 0
  %3995 = vmatpush1.bf16.msra.mxu0 %v1501
  %3996 = vmatprep.subr.bf16.mxu0 0
  %3997 = vmatpush1.bf16.msra.mxu0 %v1502
  %3998 = vmatprep.subr.bf16.mxu0 0
  %3999 = vmatpush1.bf16.msra.mxu0 %v1503
  %4000 = vmatprep.subr.bf16.mxu0 0
  %4001 = vmatpush1.bf16.msra.mxu0 %v1504
  %4002 = vmatprep.subr.bf16.mxu0 0
  %4003 = vmatpush1.bf16.msra.mxu0 %v1505
  %4004 = vmatprep.subr.bf16.mxu0 0
  %4005 = vmatpush1.bf16.msra.mxu0 %v1506
  %4006 = vmatprep.subr.bf16.mxu0 0
  %4007 = vmatpush1.bf16.msra.mxu0 %v1563
  %4008 = vmatprep.subr.bf16.mxu0 0
  %4009 = vmatpush1.bf16.msra.mxu0 0
  %4010 = vmatprep.subr.bf16.mxu0 0
  %4011 = vmatpush1.bf16.msra.mxu0 0
  %4012 = vmatprep.subr.bf16.mxu0 0
  %4013 = vmatpush1.bf16.msra.mxu0 0
  %4014 = vmatprep.mubr.bf16.mxu0 %v3971
  %4015 = vmatmul.mubr.bf16.gmra.mrb[0].mxu0 %v3958
  %v4016 = vpop.f32.mrb[0].mxu0
  %v4017 = vadd.f32 0.0, %v4016
  %v4018 = vpop.f32.mrb[0].mxu0
  %v4019 = vpop.f32.mrb[0].mxu0
  %v4020 = vadd.f32 0.0, %v4019
  %v4021 = vpop.f32.mrb[0].mxu0
  %4022 = vmatprep.mubr.bf16.mxu0 %v3974
  %4023 = vmatmul.mubr.bf16.gmra.mrb[0].mxu0 %v3960
  %v4024 = vpop.f32.mrb[0].mxu0
  %v4025 = vadd.f32 0.0, %v4024
  %v4026 = vpop.f32.mrb[0].mxu0
  %v4027 = vpop.f32.mrb[0].mxu0
  %v4028 = vadd.f32 0.0, %v4027
  %v4029 = vpop.f32.mrb[0].mxu0
  %4030 = vmatprep.mubr.bf16.mxu0 %v3977
  %4031 = vmatmul.mubr.bf16.gmra.mrb[0].mxu0 %v3962
  %v4032 = vpop.f32.mrb[0].mxu0
  %v4033 = vadd.f32 0.0, %v4032
  %v4034 = vpop.f32.mrb[0].mxu0
  %v4035 = vpop.f32.mrb[0].mxu0
  %v4036 = vadd.f32 0.0, %v4035
  %v4037 = vpop.f32.mrb[0].mxu0
  %4038 = vmatprep.mubr.bf16.mxu0 %v3980
  %4039 = vmatmul.mubr.bf16.gmra.mrb[0].mxu0 %v3964
  %v4040 = vpop.f32.mrb[0].mxu0
  %v4041 = vadd.f32 0.0, %v4040
  %v4042 = vpop.f32.mrb[0].mxu0
  %v4043 = vpop.f32.mrb[0].mxu0
  %v4044 = vpop.f32.mrb[0].mxu0
  %4045 = vdwg.mxu0
  %v4046 = vpack.c.bf16 %v4020, %v4017
  %v4047 = vpack.c.bf16 %v4028, %v4025
  %v4048 = vpack.c.bf16 %v4036, %v4033
  %v4049 = vpack.c.bf16 %v4041, %v4041
  %s4050 = scalar_lea.vmem %s4, 176
  %v4051 = vld [vmem:[%s4050] sm:$0xf]
  %v4052 = vld [vmem:[%s4050 + $0x4] sm:$0xf]
  %v4053 = vld [vmem:[%s4050 + $0x8] sm:$0xf]
  %v4054 = vld [vmem:[%s4050 + $0xc] sm:$0xf]
  %v4059 = vunpack.c.l.b16 %v4051
  %v4060 = vunpack.c.l.b16 %v4052
  %v4061 = vunpack.c.l.b16 %v4053
  %v4062 = vunpack.c.l.b16 %v4054
  %v4063 = vpack.c.b16 %v4060, %v4059
  %v4064 = vpack.c.b16 %v4062, %v4061
  %v4068 = vsel %vm1775, %v4046, 0
  %v4071 = vsel %vm1775, %v4047, 0
  %v4074 = vsel %vm1775, %v4048, 0
  %v4077 = vsel %vm1775, %v4049, 0
  %4079 = vmatprep.subr.bf16.mxu0 0
  %4080 = vmatpush1.bf16.msra.mxu0 %v4063
  %4081 = vmatprep.subr.bf16.mxu0 0
  %4082 = vmatpush1.bf16.msra.mxu0 %v4064
  %4083 = vmatprep.subr.bf16.mxu0 0
  %4084 = vmatpush1.bf16.msra.mxu0 0
  %4085 = vmatprep.subr.bf16.mxu0 0
  %4086 = vmatpush1.bf16.msra.mxu0 0
  %4087 = vmatprep.subr.bf16.mxu0 0
  %4088 = vmatpush1.bf16.msra.mxu0 0
  %4089 = vmatprep.subr.bf16.mxu0 0
  %4090 = vmatpush1.bf16.msra.mxu0 0
  %4091 = vmatprep.subr.bf16.mxu0 0
  %4092 = vmatpush1.bf16.msra.mxu0 0
  %4093 = vmatprep.subr.bf16.mxu0 0
  %4094 = vmatpush1.bf16.msra.mxu0 0
  %4095 = vmatprep.subr.bf16.mxu0 0
  %4096 = vmatpush1.bf16.msra.mxu0 0
  %4097 = vmatprep.subr.bf16.mxu0 0
  %4098 = vmatpush1.bf16.msra.mxu0 0
  %4099 = vmatprep.subr.bf16.mxu0 0
  %4100 = vmatpush1.bf16.msra.mxu0 0
  %4101 = vmatprep.subr.bf16.mxu0 0
  %4102 = vmatpush1.bf16.msra.mxu0 0
  %4103 = vmatprep.subr.bf16.mxu0 0
  %4104 = vmatpush1.bf16.msra.mxu0 0
  %4105 = vmatprep.subr.bf16.mxu0 0
  %4106 = vmatpush1.bf16.msra.mxu0 0
  %4107 = vmatprep.subr.bf16.mxu0 0
  %4108 = vmatpush1.bf16.msra.mxu0 0
  %4109 = vmatprep.subr.bf16.mxu0 0
  %4110 = vmatpush1.bf16.msra.mxu0 0
  %4111 = vmatprep.mubr.bf16.mxu0 0
  %4112 = vmatmul.mubr.bf16.gmra.mrb[0].mxu0 %v4068
  %v4113 = vpop.f32.mrb[0].mxu0
  %v4114 = vadd.f32 0.0, %v4113
  %v4115 = vpop.f32.mrb[0].mxu0
  %v4116 = vpop.f32.mrb[0].mxu0
  %v4117 = vadd.f32 0.0, %v4116
  %v4118 = vpop.f32.mrb[0].mxu0
  %4119 = vmatprep.mubr.bf16.mxu0 0
  %4120 = vmatmul.mubr.bf16.gmra.mrb[0].mxu0 %v4071
  %v4121 = vpop.f32.mrb[0].mxu0
  %v4122 = vadd.f32 0.0, %v4121
  %v4123 = vpop.f32.mrb[0].mxu0
  %v4124 = vpop.f32.mrb[0].mxu0
  %v4125 = vadd.f32 0.0, %v4124
  %v4126 = vpop.f32.mrb[0].mxu0
  %4127 = vmatprep.mubr.bf16.mxu0 0
  %4128 = vmatmul.mubr.bf16.gmra.mrb[0].mxu0 %v4074
  %v4129 = vpop.f32.mrb[0].mxu0
  %v4130 = vadd.f32 0.0, %v4129
  %v4131 = vpop.f32.mrb[0].mxu0
  %v4132 = vpop.f32.mrb[0].mxu0
  %v4133 = vadd.f32 0.0, %v4132
  %v4134 = vpop.f32.mrb[0].mxu0
  %4135 = vmatprep.mubr.bf16.mxu0 0
  %4136 = vmatmul.mubr.bf16.gmra.mrb[0].mxu0 %v4077
  %v4137 = vpop.f32.mrb[0].mxu0
  %v4138 = vadd.f32 0.0, %v4137
  %v4139 = vpop.f32.mrb[0].mxu0
  %v4140 = vpop.f32.mrb[0].mxu0
  %v4141 = vpop.f32.mrb[0].mxu0
  %4142 = vdwg.mxu0
  %v4143 = vadd.f32 %v3922, %v4114
  %v4144 = vadd.f32 %v3923, %v4117
  %v4145 = vadd.f32 %v3924, %v4122
  %v4146 = vadd.f32 %v3925, %v4125
  %v4147 = vadd.f32 %v3926, %v4130
  %v4148 = vadd.f32 %v3927, %v4133
  %v4149 = vadd.f32 %v3928, %v4138
  %s4150 = scalar_lea.vmem %s3, 672
  %v4151 = vld [vmem:[%s4150] sm:$0xff]
  %v4152 = vld [vmem:[%s4150 + $0x8] sm:$0xff]
  %v4153 = vld [vmem:[%s4150 + $0x10] sm:$0xff]
  %v4154 = vld [vmem:[%s4150 + $0x18] sm:$0xff]
  %v4155 = vld [vmem:[%s4150 + $0x20] sm:$0xff]
  %v4156 = vld [vmem:[%s4150 + $0x28] sm:$0xff]
  %v4157 = vld [vmem:[%s4150 + $0x30] sm:$0x11]
  %v4165 = vunpack.c.l.b16 %v4151
  %v4166 = vunpack.c.h.b16 %v4151
  %v4167 = vunpack.c.l.b16 %v4152
  %v4168 = vunpack.c.h.b16 %v4152
  %v4169 = vunpack.c.l.b16 %v4153
  %v4170 = vunpack.c.h.b16 %v4153
  %v4171 = vunpack.c.l.b16 %v4154
  %v4172 = vunpack.c.h.b16 %v4154
  %v4173 = vunpack.c.l.b16 %v4155
  %v4174 = vunpack.c.h.b16 %v4155
  %v4175 = vunpack.c.l.b16 %v4156
  %v4176 = vunpack.c.h.b16 %v4156
  %v4177 = vunpack.c.l.b16 %v4157
  %v4178 = vunpack.c.h.b16 %v4157
  %v4179 = vpack.c.b16 %v4167, %v4165
  %v4180 = vpack.c.b16 %v4168, %v4166
  %v4181 = vpack.c.b16 %v4171, %v4169
  %v4182 = vpack.c.b16 %v4172, %v4170
  %v4183 = vpack.c.b16 %v4175, %v4173
  %v4184 = vpack.c.b16 %v4176, %v4174
  %v4185 = vpack.c.b16 %v4177, %v4177
  %v4186 = vpack.c.b16 %v4178, %v4178
  %v4192 = vsel %vm1548, %v4180, 0
  %v4195 = vsel %vm1548, %v4182, 0
  %v4198 = vsel %vm1548, %v4184, 0
  %v4201 = vsel %vm1548, %v4186, 0
  %4203 = vmatprep.subr.bf16.mxu0 0
  %4204 = vmatpush1.bf16.msra.mxu0 %v1495
  %4205 = vmatprep.subr.bf16.mxu0 0
  %4206 = vmatpush1.bf16.msra.mxu0 %v1496
  %4207 = vmatprep.subr.bf16.mxu0 0
  %4208 = vmatpush1.bf16.msra.mxu0 %v1497
  %4209 = vmatprep.subr.bf16.mxu0 0
  %4210 = vmatpush1.bf16.msra.mxu0 %v1498
  %4211 = vmatprep.subr.bf16.mxu0 0
  %4212 = vmatpush1.bf16.msra.mxu0 %v1499
  %4213 = vmatprep.subr.bf16.mxu0 0
  %4214 = vmatpush1.bf16.msra.mxu0 %v1500
  %4215 = vmatprep.subr.bf16.mxu0 0
  %4216 = vmatpush1.bf16.msra.mxu0 %v1501
  %4217 = vmatprep.subr.bf16.mxu0 0
  %4218 = vmatpush1.bf16.msra.mxu0 %v1502
  %4219 = vmatprep.subr.bf16.mxu0 0
  %4220 = vmatpush1.bf16.msra.mxu0 %v1503
  %4221 = vmatprep.subr.bf16.mxu0 0
  %4222 = vmatpush1.bf16.msra.mxu0 %v1504
  %4223 = vmatprep.subr.bf16.mxu0 0
  %4224 = vmatpush1.bf16.msra.mxu0 %v1505
  %4225 = vmatprep.subr.bf16.mxu0 0
  %4226 = vmatpush1.bf16.msra.mxu0 %v1506
  %4227 = vmatprep.subr.bf16.mxu0 0
  %4228 = vmatpush1.bf16.msra.mxu0 %v1563
  %4229 = vmatprep.subr.bf16.mxu0 0
  %4230 = vmatpush1.bf16.msra.mxu0 0
  %4231 = vmatprep.subr.bf16.mxu0 0
  %4232 = vmatpush1.bf16.msra.mxu0 0
  %4233 = vmatprep.subr.bf16.mxu0 0
  %4234 = vmatpush1.bf16.msra.mxu0 0
  %4235 = vmatprep.mubr.bf16.mxu0 %v4192
  %4236 = vmatmul.mubr.bf16.gmra.mrb[0].mxu0 %v4179
  %v4237 = vpop.f32.mrb[0].mxu0
  %v4238 = vadd.f32 0.0, %v4237
  %v4239 = vpop.f32.mrb[0].mxu0
  %v4240 = vpop.f32.mrb[0].mxu0
  %v4241 = vadd.f32 0.0, %v4240
  %v4242 = vpop.f32.mrb[0].mxu0
  %4243 = vmatprep.mubr.bf16.mxu0 %v4195
  %4244 = vmatmul.mubr.bf16.gmra.mrb[0].mxu0 %v4181
  %v4245 = vpop.f32.mrb[0].mxu0
  %v4246 = vadd.f32 0.0, %v4245
  %v4247 = vpop.f32.mrb[0].mxu0
  %v4248 = vpop.f32.mrb[0].mxu0
  %v4249 = vadd.f32 0.0, %v4248
  %v4250 = vpop.f32.mrb[0].mxu0
  %4251 = vmatprep.mubr.bf16.mxu0 %v4198
  %4252 = vmatmul.mubr.bf16.gmra.mrb[0].mxu0 %v4183
  %v4253 = vpop.f32.mrb[0].mxu0
  %v4254 = vadd.f32 0.0, %v4253
  %v4255 = vpop.f32.mrb[0].mxu0
  %v4256 = vpop.f32.mrb[0].mxu0
  %v4257 = vadd.f32 0.0, %v4256
  %v4258 = vpop.f32.mrb[0].mxu0
  %4259 = vmatprep.mubr.bf16.mxu0 %v4201
  %4260 = vmatmul.mubr.bf16.gmra.mrb[0].mxu0 %v4185
  %v4261 = vpop.f32.mrb[0].mxu0
  %v4262 = vadd.f32 0.0, %v4261
  %v4263 = vpop.f32.mrb[0].mxu0
  %v4264 = vpop.f32.mrb[0].mxu0
  %v4265 = vpop.f32.mrb[0].mxu0
  %4266 = vdwg.mxu0
  %v4267 = vpack.c.bf16 %v4241, %v4238
  %v4268 = vpack.c.bf16 %v4249, %v4246
  %v4269 = vpack.c.bf16 %v4257, %v4254
  %v4270 = vpack.c.bf16 %v4262, %v4262
  %s4271 = scalar_lea.vmem %s4, 192
  %v4272 = vld [vmem:[%s4271] sm:$0xf]
  %v4273 = vld [vmem:[%s4271 + $0x4] sm:$0xf]
  %v4274 = vld [vmem:[%s4271 + $0x8] sm:$0xf]
  %v4275 = vld [vmem:[%s4271 + $0xc] sm:$0xf]
  %v4280 = vunpack.c.l.b16 %v4272
  %v4281 = vunpack.c.l.b16 %v4273
  %v4282 = vunpack.c.l.b16 %v4274
  %v4283 = vunpack.c.l.b16 %v4275
  %v4284 = vpack.c.b16 %v4281, %v4280
  %v4285 = vpack.c.b16 %v4283, %v4282
  %v4289 = vsel %vm1775, %v4267, 0
  %v4292 = vsel %vm1775, %v4268, 0
  %v4295 = vsel %vm1775, %v4269, 0
  %v4298 = vsel %vm1775, %v4270, 0
  %4300 = vmatprep.subr.bf16.mxu0 0
  %4301 = vmatpush1.bf16.msra.mxu0 %v4284
  %4302 = vmatprep.subr.bf16.mxu0 0
  %4303 = vmatpush1.bf16.msra.mxu0 %v4285
  %4304 = vmatprep.subr.bf16.mxu0 0
  %4305 = vmatpush1.bf16.msra.mxu0 0
  %4306 = vmatprep.subr.bf16.mxu0 0
  %4307 = vmatpush1.bf16.msra.mxu0 0
  %4308 = vmatprep.subr.bf16.mxu0 0
  %4309 = vmatpush1.bf16.msra.mxu0 0
  %4310 = vmatprep.subr.bf16.mxu0 0
  %4311 = vmatpush1.bf16.msra.mxu0 0
  %4312 = vmatprep.subr.bf16.mxu0 0
  %4313 = vmatpush1.bf16.msra.mxu0 0
  %4314 = vmatprep.subr.bf16.mxu0 0
  %4315 = vmatpush1.bf16.msra.mxu0 0
  %4316 = vmatprep.subr.bf16.mxu0 0
  %4317 = vmatpush1.bf16.msra.mxu0 0
  %4318 = vmatprep.subr.bf16.mxu0 0
  %4319 = vmatpush1.bf16.msra.mxu0 0
  %4320 = vmatprep.subr.bf16.mxu0 0
  %4321 = vmatpush1.bf16.msra.mxu0 0
  %4322 = vmatprep.subr.bf16.mxu0 0
  %4323 = vmatpush1.bf16.msra.mxu0 0
  %4324 = vmatprep.subr.bf16.mxu0 0
  %4325 = vmatpush1.bf16.msra.mxu0 0
  %4326 = vmatprep.subr.bf16.mxu0 0
  %4327 = vmatpush1.bf16.msra.mxu0 0
  %4328 = vmatprep.subr.bf16.mxu0 0
  %4329 = vmatpush1.bf16.msra.mxu0 0
  %4330 = vmatprep.subr.bf16.mxu0 0
  %4331 = vmatpush1.bf16.msra.mxu0 0
  %4332 = vmatprep.mubr.bf16.mxu0 0
  %4333 = vmatmul.mubr.bf16.gmra.mrb[0].mxu0 %v4289
  %v4334 = vpop.f32.mrb[0].mxu0
  %v4335 = vadd.f32 0.0, %v4334
  %v4336 = vpop.f32.mrb[0].mxu0
  %v4337 = vpop.f32.mrb[0].mxu0
  %v4338 = vadd.f32 0.0, %v4337
  %v4339 = vpop.f32.mrb[0].mxu0
  %4340 = vmatprep.mubr.bf16.mxu0 0
  %4341 = vmatmul.mubr.bf16.gmra.mrb[0].mxu0 %v4292
  %v4342 = vpop.f32.mrb[0].mxu0
  %v4343 = vadd.f32 0.0, %v4342
  %v4344 = vpop.f32.mrb[0].mxu0
  %v4345 = vpop.f32.mrb[0].mxu0
  %v4346 = vadd.f32 0.0, %v4345
  %v4347 = vpop.f32.mrb[0].mxu0
  %4348 = vmatprep.mubr.bf16.mxu0 0
  %4349 = vmatmul.mubr.bf16.gmra.mrb[0].mxu0 %v4295
  %v4350 = vpop.f32.mrb[0].mxu0
  %v4351 = vadd.f32 0.0, %v4350
  %v4352 = vpop.f32.mrb[0].mxu0
  %v4353 = vpop.f32.mrb[0].mxu0
  %v4354 = vadd.f32 0.0, %v4353
  %v4355 = vpop.f32.mrb[0].mxu0
  %4356 = vmatprep.mubr.bf16.mxu0 0
  %4357 = vmatmul.mubr.bf16.gmra.mrb[0].mxu0 %v4298
  %v4358 = vpop.f32.mrb[0].mxu0
  %v4359 = vadd.f32 0.0, %v4358
  %v4360 = vpop.f32.mrb[0].mxu0
  %v4361 = vpop.f32.mrb[0].mxu0
  %v4362 = vpop.f32.mrb[0].mxu0
  %4363 = vdwg.mxu0
  %v4364 = vadd.f32 %v4143, %v4335
  %v4365 = vadd.f32 %v4144, %v4338
  %v4366 = vadd.f32 %v4145, %v4343
  %v4367 = vadd.f32 %v4146, %v4346
  %v4368 = vadd.f32 %v4147, %v4351
  %v4369 = vadd.f32 %v4148, %v4354
  %v4370 = vadd.f32 %v4149, %v4359
  %s4371 = scalar_lea.vmem %s3, 728
  %v4372 = vld [vmem:[%s4371] sm:$0xff]
  %v4373 = vld [vmem:[%s4371 + $0x8] sm:$0xff]
  %v4374 = vld [vmem:[%s4371 + $0x10] sm:$0xff]
  %v4375 = vld [vmem:[%s4371 + $0x18] sm:$0xff]
  %v4376 = vld [vmem:[%s4371 + $0x20] sm:$0xff]
  %v4377 = vld [vmem:[%s4371 + $0x28] sm:$0xff]
  %v4378 = vld [vmem:[%s4371 + $0x30] sm:$0x11]
  %v4386 = vunpack.c.l.b16 %v4372
  %v4387 = vunpack.c.h.b16 %v4372
  %v4388 = vunpack.c.l.b16 %v4373
  %v4389 = vunpack.c.h.b16 %v4373
  %v4390 = vunpack.c.l.b16 %v4374
  %v4391 = vunpack.c.h.b16 %v4374
  %v4392 = vunpack.c.l.b16 %v4375
  %v4393 = vunpack.c.h.b16 %v4375
  %v4394 = vunpack.c.l.b16 %v4376
  %v4395 = vunpack.c.h.b16 %v4376
  %v4396 = vunpack.c.l.b16 %v4377
  %v4397 = vunpack.c.h.b16 %v4377
  %v4398 = vunpack.c.l.b16 %v4378
  %v4399 = vunpack.c.h.b16 %v4378
  %v4400 = vpack.c.b16 %v4388, %v4386
  %v4401 = vpack.c.b16 %v4389, %v4387
  %v4402 = vpack.c.b16 %v4392, %v4390
  %v4403 = vpack.c.b16 %v4393, %v4391
  %v4404 = vpack.c.b16 %v4396, %v4394
  %v4405 = vpack.c.b16 %v4397, %v4395
  %v4406 = vpack.c.b16 %v4398, %v4398
  %v4407 = vpack.c.b16 %v4399, %v4399
  %v4413 = vsel %vm1548, %v4401, 0
  %v4416 = vsel %vm1548, %v4403, 0
  %v4419 = vsel %vm1548, %v4405, 0
  %v4422 = vsel %vm1548, %v4407, 0
  %4424 = vmatprep.subr.bf16.mxu0 0
  %4425 = vmatpush1.bf16.msra.mxu0 %v1495
  %4426 = vmatprep.subr.bf16.mxu0 0
  %4427 = vmatpush1.bf16.msra.mxu0 %v1496
  %4428 = vmatprep.subr.bf16.mxu0 0
  %4429 = vmatpush1.bf16.msra.mxu0 %v1497
  %4430 = vmatprep.subr.bf16.mxu0 0
  %4431 = vmatpush1.bf16.msra.mxu0 %v1498
  %4432 = vmatprep.subr.bf16.mxu0 0
  %4433 = vmatpush1.bf16.msra.mxu0 %v1499
  %4434 = vmatprep.subr.bf16.mxu0 0
  %4435 = vmatpush1.bf16.msra.mxu0 %v1500
  %4436 = vmatprep.subr.bf16.mxu0 0
  %4437 = vmatpush1.bf16.msra.mxu0 %v1501
  %4438 = vmatprep.subr.bf16.mxu0 0
  %4439 = vmatpush1.bf16.msra.mxu0 %v1502
  %4440 = vmatprep.subr.bf16.mxu0 0
  %4441 = vmatpush1.bf16.msra.mxu0 %v1503
  %4442 = vmatprep.subr.bf16.mxu0 0
  %4443 = vmatpush1.bf16.msra.mxu0 %v1504
  %4444 = vmatprep.subr.bf16.mxu0 0
  %4445 = vmatpush1.bf16.msra.mxu0 %v1505
  %4446 = vmatprep.subr.bf16.mxu0 0
  %4447 = vmatpush1.bf16.msra.mxu0 %v1506
  %4448 = vmatprep.subr.bf16.mxu0 0
  %4449 = vmatpush1.bf16.msra.mxu0 %v1563
  %4450 = vmatprep.subr.bf16.mxu0 0
  %4451 = vmatpush1.bf16.msra.mxu0 0
  %4452 = vmatprep.subr.bf16.mxu0 0
  %4453 = vmatpush1.bf16.msra.mxu0 0
  %4454 = vmatprep.subr.bf16.mxu0 0
  %4455 = vmatpush1.bf16.msra.mxu0 0
  %4456 = vmatprep.mubr.bf16.mxu0 %v4413
  %4457 = vmatmul.mubr.bf16.gmra.mrb[0].mxu0 %v4400
  %v4458 = vpop.f32.mrb[0].mxu0
  %v4459 = vadd.f32 0.0, %v4458
  %v4460 = vpop.f32.mrb[0].mxu0
  %v4461 = vpop.f32.mrb[0].mxu0
  %v4462 = vadd.f32 0.0, %v4461
  %v4463 = vpop.f32.mrb[0].mxu0
  %4464 = vmatprep.mubr.bf16.mxu0 %v4416
  %4465 = vmatmul.mubr.bf16.gmra.mrb[0].mxu0 %v4402
  %v4466 = vpop.f32.mrb[0].mxu0
  %v4467 = vadd.f32 0.0, %v4466
  %v4468 = vpop.f32.mrb[0].mxu0
  %v4469 = vpop.f32.mrb[0].mxu0
  %v4470 = vadd.f32 0.0, %v4469
  %v4471 = vpop.f32.mrb[0].mxu0
  %4472 = vmatprep.mubr.bf16.mxu0 %v4419
  %4473 = vmatmul.mubr.bf16.gmra.mrb[0].mxu0 %v4404
  %v4474 = vpop.f32.mrb[0].mxu0
  %v4475 = vadd.f32 0.0, %v4474
  %v4476 = vpop.f32.mrb[0].mxu0
  %v4477 = vpop.f32.mrb[0].mxu0
  %v4478 = vadd.f32 0.0, %v4477
  %v4479 = vpop.f32.mrb[0].mxu0
  %4480 = vmatprep.mubr.bf16.mxu0 %v4422
  %4481 = vmatmul.mubr.bf16.gmra.mrb[0].mxu0 %v4406
  %v4482 = vpop.f32.mrb[0].mxu0
  %v4483 = vadd.f32 0.0, %v4482
  %v4484 = vpop.f32.mrb[0].mxu0
  %v4485 = vpop.f32.mrb[0].mxu0
  %v4486 = vpop.f32.mrb[0].mxu0
  %4487 = vdwg.mxu0
  %v4488 = vpack.c.bf16 %v4462, %v4459
  %v4489 = vpack.c.bf16 %v4470, %v4467
  %v4490 = vpack.c.bf16 %v4478, %v4475
  %v4491 = vpack.c.bf16 %v4483, %v4483
  %s4492 = scalar_lea.vmem %s4, 208
  %v4493 = vld [vmem:[%s4492] sm:$0xf]
  %v4494 = vld [vmem:[%s4492 + $0x4] sm:$0xf]
  %v4495 = vld [vmem:[%s4492 + $0x8] sm:$0xf]
  %v4496 = vld [vmem:[%s4492 + $0xc] sm:$0xf]
  %v4501 = vunpack.c.l.b16 %v4493
  %v4502 = vunpack.c.l.b16 %v4494
  %v4503 = vunpack.c.l.b16 %v4495
  %v4504 = vunpack.c.l.b16 %v4496
  %v4505 = vpack.c.b16 %v4502, %v4501
  %v4506 = vpack.c.b16 %v4504, %v4503
  %v4510 = vsel %vm1775, %v4488, 0
  %v4513 = vsel %vm1775, %v4489, 0
  %v4516 = vsel %vm1775, %v4490, 0
  %v4519 = vsel %vm1775, %v4491, 0
  %4521 = vmatprep.subr.bf16.mxu0 0
  %4522 = vmatpush1.bf16.msra.mxu0 %v4505
  %4523 = vmatprep.subr.bf16.mxu0 0
  %4524 = vmatpush1.bf16.msra.mxu0 %v4506
  %4525 = vmatprep.subr.bf16.mxu0 0
  %4526 = vmatpush1.bf16.msra.mxu0 0
  %4527 = vmatprep.subr.bf16.mxu0 0
  %4528 = vmatpush1.bf16.msra.mxu0 0
  %4529 = vmatprep.subr.bf16.mxu0 0
  %4530 = vmatpush1.bf16.msra.mxu0 0
  %4531 = vmatprep.subr.bf16.mxu0 0
  %4532 = vmatpush1.bf16.msra.mxu0 0
  %4533 = vmatprep.subr.bf16.mxu0 0
  %4534 = vmatpush1.bf16.msra.mxu0 0
  %4535 = vmatprep.subr.bf16.mxu0 0
  %4536 = vmatpush1.bf16.msra.mxu0 0
  %4537 = vmatprep.subr.bf16.mxu0 0
  %4538 = vmatpush1.bf16.msra.mxu0 0
  %4539 = vmatprep.subr.bf16.mxu0 0
  %4540 = vmatpush1.bf16.msra.mxu0 0
  %4541 = vmatprep.subr.bf16.mxu0 0
  %4542 = vmatpush1.bf16.msra.mxu0 0
  %4543 = vmatprep.subr.bf16.mxu0 0
  %4544 = vmatpush1.bf16.msra.mxu0 0
  %4545 = vmatprep.subr.bf16.mxu0 0
  %4546 = vmatpush1.bf16.msra.mxu0 0
  %4547 = vmatprep.subr.bf16.mxu0 0
  %4548 = vmatpush1.bf16.msra.mxu0 0
  %4549 = vmatprep.subr.bf16.mxu0 0
  %4550 = vmatpush1.bf16.msra.mxu0 0
  %4551 = vmatprep.subr.bf16.mxu0 0
  %4552 = vmatpush1.bf16.msra.mxu0 0
  %4553 = vmatprep.mubr.bf16.mxu0 0
  %4554 = vmatmul.mubr.bf16.gmra.mrb[0].mxu0 %v4510
  %v4555 = vpop.f32.mrb[0].mxu0
  %v4556 = vadd.f32 0.0, %v4555
  %v4557 = vpop.f32.mrb[0].mxu0
  %v4558 = vpop.f32.mrb[0].mxu0
  %v4559 = vadd.f32 0.0, %v4558
  %v4560 = vpop.f32.mrb[0].mxu0
  %4561 = vmatprep.mubr.bf16.mxu0 0
  %4562 = vmatmul.mubr.bf16.gmra.mrb[0].mxu0 %v4513
  %v4563 = vpop.f32.mrb[0].mxu0
  %v4564 = vadd.f32 0.0, %v4563
  %v4565 = vpop.f32.mrb[0].mxu0
  %v4566 = vpop.f32.mrb[0].mxu0
  %v4567 = vadd.f32 0.0, %v4566
  %v4568 = vpop.f32.mrb[0].mxu0
  %4569 = vmatprep.mubr.bf16.mxu0 0
  %4570 = vmatmul.mubr.bf16.gmra.mrb[0].mxu0 %v4516
  %v4571 = vpop.f32.mrb[0].mxu0
  %v4572 = vadd.f32 0.0, %v4571
  %v4573 = vpop.f32.mrb[0].mxu0
  %v4574 = vpop.f32.mrb[0].mxu0
  %v4575 = vadd.f32 0.0, %v4574
  %v4576 = vpop.f32.mrb[0].mxu0
  %4577 = vmatprep.mubr.bf16.mxu0 0
  %4578 = vmatmul.mubr.bf16.gmra.mrb[0].mxu0 %v4519
  %v4579 = vpop.f32.mrb[0].mxu0
  %v4580 = vadd.f32 0.0, %v4579
  %v4581 = vpop.f32.mrb[0].mxu0
  %v4582 = vpop.f32.mrb[0].mxu0
  %v4583 = vpop.f32.mrb[0].mxu0
  %4584 = vdwg.mxu0
  %v4585 = vadd.f32 %v4364, %v4556
  %v4586 = vadd.f32 %v4365, %v4559
  %v4587 = vadd.f32 %v4366, %v4564
  %v4588 = vadd.f32 %v4367, %v4567
  %v4589 = vadd.f32 %v4368, %v4572
  %v4590 = vadd.f32 %v4369, %v4575
  %v4591 = vadd.f32 %v4370, %v4580
  %s4592 = scalar_lea.vmem %s3, 784
  %v4593 = vld [vmem:[%s4592] sm:$0xff]
  %v4594 = vld [vmem:[%s4592 + $0x8] sm:$0xff]
  %v4595 = vld [vmem:[%s4592 + $0x10] sm:$0xff]
  %v4596 = vld [vmem:[%s4592 + $0x18] sm:$0xff]
  %v4597 = vld [vmem:[%s4592 + $0x20] sm:$0xff]
  %v4598 = vld [vmem:[%s4592 + $0x28] sm:$0xff]
  %v4599 = vld [vmem:[%s4592 + $0x30] sm:$0x11]
  %v4607 = vunpack.c.l.b16 %v4593
  %v4608 = vunpack.c.h.b16 %v4593
  %v4609 = vunpack.c.l.b16 %v4594
  %v4610 = vunpack.c.h.b16 %v4594
  %v4611 = vunpack.c.l.b16 %v4595
  %v4612 = vunpack.c.h.b16 %v4595
  %v4613 = vunpack.c.l.b16 %v4596
  %v4614 = vunpack.c.h.b16 %v4596
  %v4615 = vunpack.c.l.b16 %v4597
  %v4616 = vunpack.c.h.b16 %v4597
  %v4617 = vunpack.c.l.b16 %v4598
  %v4618 = vunpack.c.h.b16 %v4598
  %v4619 = vunpack.c.l.b16 %v4599
  %v4620 = vunpack.c.h.b16 %v4599
  %v4621 = vpack.c.b16 %v4609, %v4607
  %v4622 = vpack.c.b16 %v4610, %v4608
  %v4623 = vpack.c.b16 %v4613, %v4611
  %v4624 = vpack.c.b16 %v4614, %v4612
  %v4625 = vpack.c.b16 %v4617, %v4615
  %v4626 = vpack.c.b16 %v4618, %v4616
  %v4627 = vpack.c.b16 %v4619, %v4619
  %v4628 = vpack.c.b16 %v4620, %v4620
  %v4634 = vsel %vm1548, %v4622, 0
  %v4637 = vsel %vm1548, %v4624, 0
  %v4640 = vsel %vm1548, %v4626, 0
  %v4643 = vsel %vm1548, %v4628, 0
  %4645 = vmatprep.subr.bf16.mxu0 0
  %4646 = vmatpush1.bf16.msra.mxu0 %v1495
  %4647 = vmatprep.subr.bf16.mxu0 0
  %4648 = vmatpush1.bf16.msra.mxu0 %v1496
  %4649 = vmatprep.subr.bf16.mxu0 0
  %4650 = vmatpush1.bf16.msra.mxu0 %v1497
  %4651 = vmatprep.subr.bf16.mxu0 0
  %4652 = vmatpush1.bf16.msra.mxu0 %v1498
  %4653 = vmatprep.subr.bf16.mxu0 0
  %4654 = vmatpush1.bf16.msra.mxu0 %v1499
  %4655 = vmatprep.subr.bf16.mxu0 0
  %4656 = vmatpush1.bf16.msra.mxu0 %v1500
  %4657 = vmatprep.subr.bf16.mxu0 0
  %4658 = vmatpush1.bf16.msra.mxu0 %v1501
  %4659 = vmatprep.subr.bf16.mxu0 0
  %4660 = vmatpush1.bf16.msra.mxu0 %v1502
  %4661 = vmatprep.subr.bf16.mxu0 0
  %4662 = vmatpush1.bf16.msra.mxu0 %v1503
  %4663 = vmatprep.subr.bf16.mxu0 0
  %4664 = vmatpush1.bf16.msra.mxu0 %v1504
  %4665 = vmatprep.subr.bf16.mxu0 0
  %4666 = vmatpush1.bf16.msra.mxu0 %v1505
  %4667 = vmatprep.subr.bf16.mxu0 0
  %4668 = vmatpush1.bf16.msra.mxu0 %v1506
  %4669 = vmatprep.subr.bf16.mxu0 0
  %4670 = vmatpush1.bf16.msra.mxu0 %v1563
  %4671 = vmatprep.subr.bf16.mxu0 0
  %4672 = vmatpush1.bf16.msra.mxu0 0
  %4673 = vmatprep.subr.bf16.mxu0 0
  %4674 = vmatpush1.bf16.msra.mxu0 0
  %4675 = vmatprep.subr.bf16.mxu0 0
  %4676 = vmatpush1.bf16.msra.mxu0 0
  %4677 = vmatprep.mubr.bf16.mxu0 %v4634
  %4678 = vmatmul.mubr.bf16.gmra.mrb[0].mxu0 %v4621
  %v4679 = vpop.f32.mrb[0].mxu0
  %v4680 = vadd.f32 0.0, %v4679
  %v4681 = vpop.f32.mrb[0].mxu0
  %v4682 = vpop.f32.mrb[0].mxu0
  %v4683 = vadd.f32 0.0, %v4682
  %v4684 = vpop.f32.mrb[0].mxu0
  %4685 = vmatprep.mubr.bf16.mxu0 %v4637
  %4686 = vmatmul.mubr.bf16.gmra.mrb[0].mxu0 %v4623
  %v4687 = vpop.f32.mrb[0].mxu0
  %v4688 = vadd.f32 0.0, %v4687
  %v4689 = vpop.f32.mrb[0].mxu0
  %v4690 = vpop.f32.mrb[0].mxu0
  %v4691 = vadd.f32 0.0, %v4690
  %v4692 = vpop.f32.mrb[0].mxu0
  %4693 = vmatprep.mubr.bf16.mxu0 %v4640
  %4694 = vmatmul.mubr.bf16.gmra.mrb[0].mxu0 %v4625
  %v4695 = vpop.f32.mrb[0].mxu0
  %v4696 = vadd.f32 0.0, %v4695
  %v4697 = vpop.f32.mrb[0].mxu0
  %v4698 = vpop.f32.mrb[0].mxu0
  %v4699 = vadd.f32 0.0, %v4698
  %v4700 = vpop.f32.mrb[0].mxu0
  %4701 = vmatprep.mubr.bf16.mxu0 %v4643
  %4702 = vmatmul.mubr.bf16.gmra.mrb[0].mxu0 %v4627
  %v4703 = vpop.f32.mrb[0].mxu0
  %v4704 = vadd.f32 0.0, %v4703
  %v4705 = vpop.f32.mrb[0].mxu0
  %v4706 = vpop.f32.mrb[0].mxu0
  %v4707 = vpop.f32.mrb[0].mxu0
  %4708 = vdwg.mxu0
  %v4709 = vpack.c.bf16 %v4683, %v4680
  %v4710 = vpack.c.bf16 %v4691, %v4688
  %v4711 = vpack.c.bf16 %v4699, %v4696
  %v4712 = vpack.c.bf16 %v4704, %v4704
  %s4713 = scalar_lea.vmem %s4, 224
  %v4714 = vld [vmem:[%s4713] sm:$0xf]
  %v4715 = vld [vmem:[%s4713 + $0x4] sm:$0xf]
  %v4716 = vld [vmem:[%s4713 + $0x8] sm:$0xf]
  %v4717 = vld [vmem:[%s4713 + $0xc] sm:$0xf]
  %v4722 = vunpack.c.l.b16 %v4714
  %v4723 = vunpack.c.l.b16 %v4715
  %v4724 = vunpack.c.l.b16 %v4716
  %v4725 = vunpack.c.l.b16 %v4717
  %v4726 = vpack.c.b16 %v4723, %v4722
  %v4727 = vpack.c.b16 %v4725, %v4724
  %v4731 = vsel %vm1775, %v4709, 0
  %v4734 = vsel %vm1775, %v4710, 0
  %v4737 = vsel %vm1775, %v4711, 0
  %v4740 = vsel %vm1775, %v4712, 0
  %4742 = vmatprep.subr.bf16.mxu0 0
  %4743 = vmatpush1.bf16.msra.mxu0 %v4726
  %4744 = vmatprep.subr.bf16.mxu0 0
  %4745 = vmatpush1.bf16.msra.mxu0 %v4727
  %4746 = vmatprep.subr.bf16.mxu0 0
  %4747 = vmatpush1.bf16.msra.mxu0 0
  %4748 = vmatprep.subr.bf16.mxu0 0
  %4749 = vmatpush1.bf16.msra.mxu0 0
  %4750 = vmatprep.subr.bf16.mxu0 0
  %4751 = vmatpush1.bf16.msra.mxu0 0
  %4752 = vmatprep.subr.bf16.mxu0 0
  %4753 = vmatpush1.bf16.msra.mxu0 0
  %4754 = vmatprep.subr.bf16.mxu0 0
  %4755 = vmatpush1.bf16.msra.mxu0 0
  %4756 = vmatprep.subr.bf16.mxu0 0
  %4757 = vmatpush1.bf16.msra.mxu0 0
  %4758 = vmatprep.subr.bf16.mxu0 0
  %4759 = vmatpush1.bf16.msra.mxu0 0
  %4760 = vmatprep.subr.bf16.mxu0 0
  %4761 = vmatpush1.bf16.msra.mxu0 0
  %4762 = vmatprep.subr.bf16.mxu0 0
  %4763 = vmatpush1.bf16.msra.mxu0 0
  %4764 = vmatprep.subr.bf16.mxu0 0
  %4765 = vmatpush1.bf16.msra.mxu0 0
  %4766 = vmatprep.subr.bf16.mxu0 0
  %4767 = vmatpush1.bf16.msra.mxu0 0
  %4768 = vmatprep.subr.bf16.mxu0 0
  %4769 = vmatpush1.bf16.msra.mxu0 0
  %4770 = vmatprep.subr.bf16.mxu0 0
  %4771 = vmatpush1.bf16.msra.mxu0 0
  %4772 = vmatprep.subr.bf16.mxu0 0
  %4773 = vmatpush1.bf16.msra.mxu0 0
  %4774 = vmatprep.mubr.bf16.mxu0 0
  %4775 = vmatmul.mubr.bf16.gmra.mrb[0].mxu0 %v4731
  %v4776 = vpop.f32.mrb[0].mxu0
  %v4777 = vadd.f32 0.0, %v4776
  %v4778 = vpop.f32.mrb[0].mxu0
  %v4779 = vpop.f32.mrb[0].mxu0
  %v4780 = vadd.f32 0.0, %v4779
  %v4781 = vpop.f32.mrb[0].mxu0
  %4782 = vmatprep.mubr.bf16.mxu0 0
  %4783 = vmatmul.mubr.bf16.gmra.mrb[0].mxu0 %v4734
  %v4784 = vpop.f32.mrb[0].mxu0
  %v4785 = vadd.f32 0.0, %v4784
  %v4786 = vpop.f32.mrb[0].mxu0
  %v4787 = vpop.f32.mrb[0].mxu0
  %v4788 = vadd.f32 0.0, %v4787
  %v4789 = vpop.f32.mrb[0].mxu0
  %4790 = vmatprep.mubr.bf16.mxu0 0
  %4791 = vmatmul.mubr.bf16.gmra.mrb[0].mxu0 %v4737
  %v4792 = vpop.f32.mrb[0].mxu0
  %v4793 = vadd.f32 0.0, %v4792
  %v4794 = vpop.f32.mrb[0].mxu0
  %v4795 = vpop.f32.mrb[0].mxu0
  %v4796 = vadd.f32 0.0, %v4795
  %v4797 = vpop.f32.mrb[0].mxu0
  %4798 = vmatprep.mubr.bf16.mxu0 0
  %4799 = vmatmul.mubr.bf16.gmra.mrb[0].mxu0 %v4740
  %v4800 = vpop.f32.mrb[0].mxu0
  %v4801 = vadd.f32 0.0, %v4800
  %v4802 = vpop.f32.mrb[0].mxu0
  %v4803 = vpop.f32.mrb[0].mxu0
  %v4804 = vpop.f32.mrb[0].mxu0
  %4805 = vdwg.mxu0
  %v4806 = vadd.f32 %v4585, %v4777
  %v4807 = vadd.f32 %v4586, %v4780
  %v4808 = vadd.f32 %v4587, %v4785
  %v4809 = vadd.f32 %v4588, %v4788
  %v4810 = vadd.f32 %v4589, %v4793
  %v4811 = vadd.f32 %v4590, %v4796
  %v4812 = vadd.f32 %v4591, %v4801
  %s4813 = scalar_lea.vmem %s3, 840
  %v4814 = vld [vmem:[%s4813] sm:$0xff]
  %v4815 = vld [vmem:[%s4813 + $0x8] sm:$0xff]
  %v4816 = vld [vmem:[%s4813 + $0x10] sm:$0xff]
  %v4817 = vld [vmem:[%s4813 + $0x18] sm:$0xff]
  %v4818 = vld [vmem:[%s4813 + $0x20] sm:$0xff]
  %v4819 = vld [vmem:[%s4813 + $0x28] sm:$0xff]
  %v4820 = vld [vmem:[%s4813 + $0x30] sm:$0x11]
  %v4828 = vunpack.c.l.b16 %v4814
  %v4829 = vunpack.c.h.b16 %v4814
  %v4830 = vunpack.c.l.b16 %v4815
  %v4831 = vunpack.c.h.b16 %v4815
  %v4832 = vunpack.c.l.b16 %v4816
  %v4833 = vunpack.c.h.b16 %v4816
  %v4834 = vunpack.c.l.b16 %v4817
  %v4835 = vunpack.c.h.b16 %v4817
  %v4836 = vunpack.c.l.b16 %v4818
  %v4837 = vunpack.c.h.b16 %v4818
  %v4838 = vunpack.c.l.b16 %v4819
  %v4839 = vunpack.c.h.b16 %v4819
  %v4840 = vunpack.c.l.b16 %v4820
  %v4841 = vunpack.c.h.b16 %v4820
  %v4842 = vpack.c.b16 %v4830, %v4828
  %v4843 = vpack.c.b16 %v4831, %v4829
  %v4844 = vpack.c.b16 %v4834, %v4832
  %v4845 = vpack.c.b16 %v4835, %v4833
  %v4846 = vpack.c.b16 %v4838, %v4836
  %v4847 = vpack.c.b16 %v4839, %v4837
  %v4848 = vpack.c.b16 %v4840, %v4840
  %v4849 = vpack.c.b16 %v4841, %v4841
  %v4855 = vsel %vm1548, %v4843, 0
  %v4858 = vsel %vm1548, %v4845, 0
  %v4861 = vsel %vm1548, %v4847, 0
  %v4864 = vsel %vm1548, %v4849, 0
  %4866 = vmatprep.subr.bf16.mxu0 0
  %4867 = vmatpush1.bf16.msra.mxu0 %v1495
  %4868 = vmatprep.subr.bf16.mxu0 0
  %4869 = vmatpush1.bf16.msra.mxu0 %v1496
  %4870 = vmatprep.subr.bf16.mxu0 0
  %4871 = vmatpush1.bf16.msra.mxu0 %v1497
  %4872 = vmatprep.subr.bf16.mxu0 0
  %4873 = vmatpush1.bf16.msra.mxu0 %v1498
  %4874 = vmatprep.subr.bf16.mxu0 0
  %4875 = vmatpush1.bf16.msra.mxu0 %v1499
  %4876 = vmatprep.subr.bf16.mxu0 0
  %4877 = vmatpush1.bf16.msra.mxu0 %v1500
  %4878 = vmatprep.subr.bf16.mxu0 0
  %4879 = vmatpush1.bf16.msra.mxu0 %v1501
  %4880 = vmatprep.subr.bf16.mxu0 0
  %4881 = vmatpush1.bf16.msra.mxu0 %v1502
  %4882 = vmatprep.subr.bf16.mxu0 0
  %4883 = vmatpush1.bf16.msra.mxu0 %v1503
  %4884 = vmatprep.subr.bf16.mxu0 0
  %4885 = vmatpush1.bf16.msra.mxu0 %v1504
  %4886 = vmatprep.subr.bf16.mxu0 0
  %4887 = vmatpush1.bf16.msra.mxu0 %v1505
  %4888 = vmatprep.subr.bf16.mxu0 0
  %4889 = vmatpush1.bf16.msra.mxu0 %v1506
  %4890 = vmatprep.subr.bf16.mxu0 0
  %4891 = vmatpush1.bf16.msra.mxu0 %v1563
  %4892 = vmatprep.subr.bf16.mxu0 0
  %4893 = vmatpush1.bf16.msra.mxu0 0
  %4894 = vmatprep.subr.bf16.mxu0 0
  %4895 = vmatpush1.bf16.msra.mxu0 0
  %4896 = vmatprep.subr.bf16.mxu0 0
  %4897 = vmatpush1.bf16.msra.mxu0 0
  %4898 = vmatprep.mubr.bf16.mxu0 %v4855
  %4899 = vmatmul.mubr.bf16.gmra.mrb[0].mxu0 %v4842
  %v4900 = vpop.f32.mrb[0].mxu0
  %v4901 = vadd.f32 0.0, %v4900
  %v4902 = vpop.f32.mrb[0].mxu0
  %v4903 = vpop.f32.mrb[0].mxu0
  %v4904 = vadd.f32 0.0, %v4903
  %v4905 = vpop.f32.mrb[0].mxu0
  %4906 = vmatprep.mubr.bf16.mxu0 %v4858
  %4907 = vmatmul.mubr.bf16.gmra.mrb[0].mxu0 %v4844
  %v4908 = vpop.f32.mrb[0].mxu0
  %v4909 = vadd.f32 0.0, %v4908
  %v4910 = vpop.f32.mrb[0].mxu0
  %v4911 = vpop.f32.mrb[0].mxu0
  %v4912 = vadd.f32 0.0, %v4911
  %v4913 = vpop.f32.mrb[0].mxu0
  %4914 = vmatprep.mubr.bf16.mxu0 %v4861
  %4915 = vmatmul.mubr.bf16.gmra.mrb[0].mxu0 %v4846
  %v4916 = vpop.f32.mrb[0].mxu0
  %v4917 = vadd.f32 0.0, %v4916
  %v4918 = vpop.f32.mrb[0].mxu0
  %v4919 = vpop.f32.mrb[0].mxu0
  %v4920 = vadd.f32 0.0, %v4919
  %v4921 = vpop.f32.mrb[0].mxu0
  %4922 = vmatprep.mubr.bf16.mxu0 %v4864
  %4923 = vmatmul.mubr.bf16.gmra.mrb[0].mxu0 %v4848
  %v4924 = vpop.f32.mrb[0].mxu0
  %v4925 = vadd.f32 0.0, %v4924
  %v4926 = vpop.f32.mrb[0].mxu0
  %v4927 = vpop.f32.mrb[0].mxu0
  %v4928 = vpop.f32.mrb[0].mxu0
  %4929 = vdwg.mxu0
  %v4930 = vpack.c.bf16 %v4904, %v4901
  %v4931 = vpack.c.bf16 %v4912, %v4909
  %v4932 = vpack.c.bf16 %v4920, %v4917
  %v4933 = vpack.c.bf16 %v4925, %v4925
  %s4934 = scalar_lea.vmem %s4, 240
  %v4935 = vld [vmem:[%s4934] sm:$0xf]
  %v4936 = vld [vmem:[%s4934 + $0x4] sm:$0xf]
  %v4937 = vld [vmem:[%s4934 + $0x8] sm:$0xf]
  %v4938 = vld [vmem:[%s4934 + $0xc] sm:$0xf]
  %v4943 = vunpack.c.l.b16 %v4935
  %v4944 = vunpack.c.l.b16 %v4936
  %v4945 = vunpack.c.l.b16 %v4937
  %v4946 = vunpack.c.l.b16 %v4938
  %v4947 = vpack.c.b16 %v4944, %v4943
  %v4948 = vpack.c.b16 %v4946, %v4945
  %v4952 = vsel %vm1775, %v4930, 0
  %v4955 = vsel %vm1775, %v4931, 0
  %v4958 = vsel %vm1775, %v4932, 0
  %v4961 = vsel %vm1775, %v4933, 0
  %4963 = vmatprep.subr.bf16.mxu0 0
  %4964 = vmatpush1.bf16.msra.mxu0 %v4947
  %4965 = vmatprep.subr.bf16.mxu0 0
  %4966 = vmatpush1.bf16.msra.mxu0 %v4948
  %4967 = vmatprep.subr.bf16.mxu0 0
  %4968 = vmatpush1.bf16.msra.mxu0 0
  %4969 = vmatprep.subr.bf16.mxu0 0
  %4970 = vmatpush1.bf16.msra.mxu0 0
  %4971 = vmatprep.subr.bf16.mxu0 0
  %4972 = vmatpush1.bf16.msra.mxu0 0
  %4973 = vmatprep.subr.bf16.mxu0 0
  %4974 = vmatpush1.bf16.msra.mxu0 0
  %4975 = vmatprep.subr.bf16.mxu0 0
  %4976 = vmatpush1.bf16.msra.mxu0 0
  %4977 = vmatprep.subr.bf16.mxu0 0
  %4978 = vmatpush1.bf16.msra.mxu0 0
  %4979 = vmatprep.subr.bf16.mxu0 0
  %4980 = vmatpush1.bf16.msra.mxu0 0
  %4981 = vmatprep.subr.bf16.mxu0 0
  %4982 = vmatpush1.bf16.msra.mxu0 0
  %4983 = vmatprep.subr.bf16.mxu0 0
  %4984 = vmatpush1.bf16.msra.mxu0 0
  %4985 = vmatprep.subr.bf16.mxu0 0
  %4986 = vmatpush1.bf16.msra.mxu0 0
  %4987 = vmatprep.subr.bf16.mxu0 0
  %4988 = vmatpush1.bf16.msra.mxu0 0
  %4989 = vmatprep.subr.bf16.mxu0 0
  %4990 = vmatpush1.bf16.msra.mxu0 0
  %4991 = vmatprep.subr.bf16.mxu0 0
  %4992 = vmatpush1.bf16.msra.mxu0 0
  %4993 = vmatprep.subr.bf16.mxu0 0
  %4994 = vmatpush1.bf16.msra.mxu0 0
  %4995 = vmatprep.mubr.bf16.mxu0 0
  %4996 = vmatmul.mubr.bf16.gmra.mrb[0].mxu0 %v4952
  %v4997 = vpop.f32.mrb[0].mxu0
  %v4998 = vadd.f32 0.0, %v4997
  %v4999 = vpop.f32.mrb[0].mxu0
  %v5000 = vpop.f32.mrb[0].mxu0
  %v5001 = vadd.f32 0.0, %v5000
  %v5002 = vpop.f32.mrb[0].mxu0
  %5003 = vmatprep.mubr.bf16.mxu0 0
  %5004 = vmatmul.mubr.bf16.gmra.mrb[0].mxu0 %v4955
  %v5005 = vpop.f32.mrb[0].mxu0
  %v5006 = vadd.f32 0.0, %v5005
  %v5007 = vpop.f32.mrb[0].mxu0
  %v5008 = vpop.f32.mrb[0].mxu0
  %v5009 = vadd.f32 0.0, %v5008
  %v5010 = vpop.f32.mrb[0].mxu0
  %5011 = vmatprep.mubr.bf16.mxu0 0
  %5012 = vmatmul.mubr.bf16.gmra.mrb[0].mxu0 %v4958
  %v5013 = vpop.f32.mrb[0].mxu0
  %v5014 = vadd.f32 0.0, %v5013
  %v5015 = vpop.f32.mrb[0].mxu0
  %v5016 = vpop.f32.mrb[0].mxu0
  %v5017 = vadd.f32 0.0, %v5016
  %v5018 = vpop.f32.mrb[0].mxu0
  %5019 = vmatprep.mubr.bf16.mxu0 0
  %5020 = vmatmul.mubr.bf16.gmra.mrb[0].mxu0 %v4961
  %v5021 = vpop.f32.mrb[0].mxu0
  %v5022 = vadd.f32 0.0, %v5021
  %v5023 = vpop.f32.mrb[0].mxu0
  %v5024 = vpop.f32.mrb[0].mxu0
  %v5025 = vpop.f32.mrb[0].mxu0
  %5026 = vdwg.mxu0
  %v5027 = vadd.f32 %v4806, %v4998
  %v5028 = vadd.f32 %v4807, %v5001
  %v5029 = vadd.f32 %v4808, %v5006
  %v5030 = vadd.f32 %v4809, %v5009
  %v5031 = vadd.f32 %v4810, %v5014
  %v5032 = vadd.f32 %v4811, %v5017
  %v5033 = vadd.f32 %v4812, %v5022
  %v5034 = vld [vmem:[%s5] sm:$0x1]
  %v5036 = vlaneseq
  %v5037 = vshrl.u32 %v5036, 7
  %v5038 = vsub.s32 0, %v5037
  %v5039 = vrot.slane %v5034, %v5038
  %v5041 = vadd.f32 %v5027, %v5039
  %v5042 = vadd.f32 %v5028, %v5039
  %v5043 = vadd.f32 %v5029, %v5039
  %v5044 = vadd.f32 %v5030, %v5039
  %v5045 = vadd.f32 %v5031, %v5039
  %v5046 = vadd.f32 %v5032, %v5039
  %v5047 = vadd.f32 %v5033, %v5039
  %v5048 = vmax.f32 %v5041, 0.0
  %v5049 = vmax.f32 %v5042, 0.0
  %v5050 = vmax.f32 %v5043, 0.0
  %v5051 = vmax.f32 %v5044, 0.0
  %v5052 = vmax.f32 %v5045, 0.0
  %v5053 = vmax.f32 %v5046, 0.0
  %v5054 = vmax.f32 %v5047, 0.0
  %v5055 = vpack.c.bf16 %v5049, %v5048
  %v5056 = vpack.c.bf16 %v5051, %v5050
  %v5057 = vpack.c.bf16 %v5053, %v5052
  %v5058 = vpack.c.bf16 %v5054, %v5054
  %v5059 = vld [vmem:[%s6] sm:$0xf]
  %v5060 = vld [vmem:[%s6 + $0x4] sm:$0xf]
  %v5061 = vld [vmem:[%s6 + $0x8] sm:$0xf]
  %v5062 = vld [vmem:[%s6 + $0xc] sm:$0xf]
  %v5063 = vld [vmem:[%s6 + $0x10] sm:$0xf]
  %v5064 = vld [vmem:[%s6 + $0x14] sm:$0xf]
  %v5065 = vld [vmem:[%s6 + $0x18] sm:$0x1]
  %v5073 = vunpack.c.l.b16 %v5059
  %v5074 = vunpack.c.l.b16 %v5060
  %v5075 = vunpack.c.l.b16 %v5061
  %v5076 = vunpack.c.l.b16 %v5062
  %v5077 = vunpack.c.l.b16 %v5063
  %v5078 = vunpack.c.l.b16 %v5064
  %v5079 = vunpack.c.l.b16 %v5065
  %v5080 = vpack.c.b16 %v5074, %v5073
  %v5081 = vpack.c.b16 %v5076, %v5075
  %v5082 = vpack.c.b16 %v5078, %v5077
  %v5083 = vpack.c.b16 %v5079, %v5079
  %vm5084 = vcmask 408576
  %v5086 = vsel %vm5084, %v5080, 0
  %v5089 = vsel %vm5084, %v5081, 0
  %v5092 = vsel %vm5084, %v5082, 0
  %v5095 = vsel %vm5084, %v5083, 0
  %vm5097 = vcmask 1040384
  %v5099 = vsel %vm5097, %v5058, 0
  %5101 = vmatprep.subr.bf16.mxu0 0
  %5102 = vmatpush1.bf16.msra.mxu0 %v5055
  %5103 = vmatprep.subr.bf16.mxu0 0
  %5104 = vmatpush1.bf16.msra.mxu0 %v5056
  %5105 = vmatprep.subr.bf16.mxu0 0
  %5106 = vmatpush1.bf16.msra.mxu0 %v5057
  %5107 = vmatprep.subr.bf16.mxu0 0
  %5108 = vmatpush1.bf16.msra.mxu0 %v5099
  %5109 = vmatprep.subr.bf16.mxu0 0
  %5110 = vmatpush1.bf16.msra.mxu0 0
  %5111 = vmatprep.subr.bf16.mxu0 0
  %5112 = vmatpush1.bf16.msra.mxu0 0
  %5113 = vmatprep.subr.bf16.mxu0 0
  %5114 = vmatpush1.bf16.msra.mxu0 0
  %5115 = vmatprep.subr.bf16.mxu0 0
  %5116 = vmatpush1.bf16.msra.mxu0 0
  %5117 = vmatprep.subr.bf16.mxu0 0
  %5118 = vmatpush1.bf16.msra.mxu0 0
  %5119 = vmatprep.subr.bf16.mxu0 0
  %5120 = vmatpush1.bf16.msra.mxu0 0
  %5121 = vmatprep.subr.bf16.mxu0 0
  %5122 = vmatpush1.bf16.msra.mxu0 0
  %5123 = vmatprep.subr.bf16.mxu0 0
  %5124 = vmatpush1.bf16.msra.mxu0 0
  %5125 = vmatprep.subr.bf16.mxu0 0
  %5126 = vmatpush1.bf16.msra.mxu0 0
  %5127 = vmatprep.subr.bf16.mxu0 0
  %5128 = vmatpush1.bf16.msra.mxu0 0
  %5129 = vmatprep.subr.bf16.mxu0 0
  %5130 = vmatpush1.bf16.msra.mxu0 0
  %5131 = vmatprep.subr.bf16.mxu0 0
  %5132 = vmatpush1.bf16.msra.mxu0 0
  %5133 = vmatprep.mubr.bf16.mxu0 0
  %5134 = vmatmul.mubr.bf16.gmra.mrb[0].mxu0 %v5086
  %v5135 = vpop.f32.mrb[0].mxu0
  %v5136 = vadd.f32 0.0, %v5135
  %v5137 = vpop.f32.mrb[0].mxu0
  %v5138 = vpop.f32.mrb[0].mxu0
  %v5139 = vadd.f32 0.0, %v5138
  %v5140 = vpop.f32.mrb[0].mxu0
  %5141 = vmatprep.mubr.bf16.mxu0 0
  %5142 = vmatmul.mubr.bf16.gmra.mrb[0].mxu0 %v5089
  %v5143 = vpop.f32.mrb[0].mxu0
  %v5144 = vadd.f32 0.0, %v5143
  %v5145 = vpop.f32.mrb[0].mxu0
  %v5146 = vpop.f32.mrb[0].mxu0
  %v5147 = vadd.f32 0.0, %v5146
  %v5148 = vpop.f32.mrb[0].mxu0
  %5149 = vmatprep.mubr.bf16.mxu0 0
  %5150 = vmatmul.mubr.bf16.gmra.mrb[0].mxu0 %v5092
  %v5151 = vpop.f32.mrb[0].mxu0
  %v5152 = vadd.f32 0.0, %v5151
  %v5153 = vpop.f32.mrb[0].mxu0
  %v5154 = vpop.f32.mrb[0].mxu0
  %v5155 = vadd.f32 0.0, %v5154
  %v5156 = vpop.f32.mrb[0].mxu0
  %5157 = vmatprep.mubr.bf16.mxu0 0
  %5158 = vmatmul.mubr.bf16.gmra.mrb[0].mxu0 %v5095
  %v5159 = vpop.f32.mrb[0].mxu0
  %v5160 = vadd.f32 0.0, %v5159
  %v5161 = vpop.f32.mrb[0].mxu0
  %v5162 = vpop.f32.mrb[0].mxu0
  %v5163 = vpop.f32.mrb[0].mxu0
  %5164 = vdwg.mxu0
  %v5165 = vpack.c.bf16 %v5139, %v5136
  %v5166 = vpack.c.bf16 %v5147, %v5144
  %v5167 = vpack.c.bf16 %v5155, %v5152
  %v5168 = vpack.c.bf16 %v5160, %v5160
  %v5169 = vld [vmem:[%s7] sm:$0xf]
  %v5170 = vld [vmem:[%s7 + $0x4] sm:$0xf]
  %v5171 = vld [vmem:[%s7 + $0x8] sm:$0xf]
  %v5172 = vld [vmem:[%s7 + $0xc] sm:$0xf]
  %v5173 = vld [vmem:[%s7 + $0x10] sm:$0xf]
  %v5174 = vld [vmem:[%s7 + $0x14] sm:$0xf]
  %v5175 = vld [vmem:[%s7 + $0x18] sm:$0xf]
  %v5176 = vld [vmem:[%s7 + $0x1c] sm:$0xf]
  %s5177 = scalar_lea.vmem %s6, 28
  %v5178 = vld [vmem:[%s5177] sm:$0xf]
  %v5179 = vld [vmem:[%s5177 + $0x4] sm:$0xf]
  %v5180 = vld [vmem:[%s5177 + $0x8] sm:$0xf]
  %v5181 = vld [vmem:[%s5177 + $0xc] sm:$0xf]
  %v5182 = vld [vmem:[%s5177 + $0x10] sm:$0xf]
  %v5183 = vld [vmem:[%s5177 + $0x14] sm:$0xf]
  %v5184 = vld [vmem:[%s5177 + $0x18] sm:$0x1]
  %v5192 = vunpack.c.l.b16 %v5178
  %v5193 = vunpack.c.l.b16 %v5179
  %v5194 = vunpack.c.l.b16 %v5180
  %v5195 = vunpack.c.l.b16 %v5181
  %v5196 = vunpack.c.l.b16 %v5182
  %v5197 = vunpack.c.l.b16 %v5183
  %v5198 = vunpack.c.l.b16 %v5184
  %v5199 = vpack.c.b16 %v5193, %v5192
  %v5200 = vpack.c.b16 %v5195, %v5194
  %v5201 = vpack.c.b16 %v5197, %v5196
  %v5202 = vpack.c.b16 %v5198, %v5198
  %v5204 = vsel %vm5084, %v5199, 0
  %v5207 = vsel %vm5084, %v5200, 0
  %v5210 = vsel %vm5084, %v5201, 0
  %v5213 = vsel %vm5084, %v5202, 0
  %5215 = vmatprep.subr.bf16.mxu0 0
  %5216 = vmatpush1.bf16.msra.mxu0 %v5055
  %5217 = vmatprep.subr.bf16.mxu0 0
  %5218 = vmatpush1.bf16.msra.mxu0 %v5056
  %5219 = vmatprep.subr.bf16.mxu0 0
  %5220 = vmatpush1.bf16.msra.mxu0 %v5057
  %5221 = vmatprep.subr.bf16.mxu0 0
  %5222 = vmatpush1.bf16.msra.mxu0 %v5099
  %5223 = vmatprep.subr.bf16.mxu0 0
  %5224 = vmatpush1.bf16.msra.mxu0 0
  %5225 = vmatprep.subr.bf16.mxu0 0
  %5226 = vmatpush1.bf16.msra.mxu0 0
  %5227 = vmatprep.subr.bf16.mxu0 0
  %5228 = vmatpush1.bf16.msra.mxu0 0
  %5229 = vmatprep.subr.bf16.mxu0 0
  %5230 = vmatpush1.bf16.msra.mxu0 0
  %5231 = vmatprep.subr.bf16.mxu0 0
  %5232 = vmatpush1.bf16.msra.mxu0 0
  %5233 = vmatprep.subr.bf16.mxu0 0
  %5234 = vmatpush1.bf16.msra.mxu0 0
  %5235 = vmatprep.subr.bf16.mxu0 0
  %5236 = vmatpush1.bf16.msra.mxu0 0
  %5237 = vmatprep.subr.bf16.mxu0 0
  %5238 = vmatpush1.bf16.msra.mxu0 0
  %5239 = vmatprep.subr.bf16.mxu0 0
  %5240 = vmatpush1.bf16.msra.mxu0 0
  %5241 = vmatprep.subr.bf16.mxu0 0
  %5242 = vmatpush1.bf16.msra.mxu0 0
  %5243 = vmatprep.subr.bf16.mxu0 0
  %5244 = vmatpush1.bf16.msra.mxu0 0
  %5245 = vmatprep.subr.bf16.mxu0 0
  %5246 = vmatpush1.bf16.msra.mxu0 0
  %5247 = vmatprep.mubr.bf16.mxu0 0
  %5248 = vmatmul.mubr.bf16.gmra.mrb[0].mxu0 %v5204
  %v5249 = vpop.f32.mrb[0].mxu0
  %v5250 = vadd.f32 0.0, %v5249
  %v5251 = vpop.f32.mrb[0].mxu0
  %v5252 = vpop.f32.mrb[0].mxu0
  %v5253 = vadd.f32 0.0, %v5252
  %v5254 = vpop.f32.mrb[0].mxu0
  %5255 = vmatprep.mubr.bf16.mxu0 0
  %5256 = vmatmul.mubr.bf16.gmra.mrb[0].mxu0 %v5207
  %v5257 = vpop.f32.mrb[0].mxu0
  %v5258 = vadd.f32 0.0, %v5257
  %v5259 = vpop.f32.mrb[0].mxu0
  %v5260 = vpop.f32.mrb[0].mxu0
  %v5261 = vadd.f32 0.0, %v5260
  %v5262 = vpop.f32.mrb[0].mxu0
  %5263 = vmatprep.mubr.bf16.mxu0 0
  %5264 = vmatmul.mubr.bf16.gmra.mrb[0].mxu0 %v5210
  %v5265 = vpop.f32.mrb[0].mxu0
  %v5266 = vadd.f32 0.0, %v5265
  %v5267 = vpop.f32.mrb[0].mxu0
  %v5268 = vpop.f32.mrb[0].mxu0
  %v5269 = vadd.f32 0.0, %v5268
  %v5270 = vpop.f32.mrb[0].mxu0
  %5271 = vmatprep.mubr.bf16.mxu0 0
  %5272 = vmatmul.mubr.bf16.gmra.mrb[0].mxu0 %v5213
  %v5273 = vpop.f32.mrb[0].mxu0
  %v5274 = vadd.f32 0.0, %v5273
  %v5275 = vpop.f32.mrb[0].mxu0
  %v5276 = vpop.f32.mrb[0].mxu0
  %v5277 = vpop.f32.mrb[0].mxu0
  %5278 = vdwg.mxu0
  %v5279 = vpack.c.bf16 %v5253, %v5250
  %v5280 = vpack.c.bf16 %v5261, %v5258
  %v5281 = vpack.c.bf16 %v5269, %v5266
  %v5282 = vpack.c.bf16 %v5274, %v5274
  %s5283 = scalar_lea.vmem %s7, 32
  %v5284 = vld [vmem:[%s5283] sm:$0xf]
  %v5285 = vld [vmem:[%s5283 + $0x4] sm:$0xf]
  %v5286 = vld [vmem:[%s5283 + $0x8] sm:$0xf]
  %v5287 = vld [vmem:[%s5283 + $0xc] sm:$0xf]
  %v5288 = vld [vmem:[%s5283 + $0x10] sm:$0xf]
  %v5289 = vld [vmem:[%s5283 + $0x14] sm:$0xf]
  %v5290 = vld [vmem:[%s5283 + $0x18] sm:$0xf]
  %v5291 = vld [vmem:[%s5283 + $0x1c] sm:$0xf]
  %v5300 = vunpack.c.l.b16 %v5284
  %v5301 = vunpack.c.l.b16 %v5285
  %v5302 = vunpack.c.l.b16 %v5286
  %v5303 = vunpack.c.l.b16 %v5287
  %v5304 = vunpack.c.l.b16 %v5288
  %v5305 = vunpack.c.l.b16 %v5289
  %v5306 = vunpack.c.l.b16 %v5290
  %v5307 = vunpack.c.l.b16 %v5291
  %v5308 = vpack.c.b16 %v5301, %v5300
  %v5309 = vpack.c.b16 %v5303, %v5302
  %v5310 = vpack.c.b16 %v5305, %v5304
  %v5311 = vpack.c.b16 %v5307, %v5306
  %vm5316 = vcmask 523264
  %v5318 = vsel %vm5316, %v5279, 0
  %v5321 = vsel %vm5316, %v5280, 0
  %v5324 = vsel %vm5316, %v5281, 0
  %v5327 = vsel %vm5316, %v5282, 0
  %5329 = vmatprep.subr.bf16.mxu0 0
  %5330 = vmatpush1.bf16.msra.mxu0 %v5308
  %5331 = vmatprep.subr.bf16.mxu0 0
  %5332 = vmatpush1.bf16.msra.mxu0 %v5309
  %5333 = vmatprep.subr.bf16.mxu0 0
  %5334 = vmatpush1.bf16.msra.mxu0 %v5310
  %5335 = vmatprep.subr.bf16.mxu0 0
  %5336 = vmatpush1.bf16.msra.mxu0 %v5311
  %5337 = vmatprep.subr.bf16.mxu0 0
  %5338 = vmatpush1.bf16.msra.mxu0 0
  %5339 = vmatprep.subr.bf16.mxu0 0
  %5340 = vmatpush1.bf16.msra.mxu0 0
  %5341 = vmatprep.subr.bf16.mxu0 0
  %5342 = vmatpush1.bf16.msra.mxu0 0
  %5343 = vmatprep.subr.bf16.mxu0 0
  %5344 = vmatpush1.bf16.msra.mxu0 0
  %5345 = vmatprep.subr.bf16.mxu0 0
  %5346 = vmatpush1.bf16.msra.mxu0 0
  %5347 = vmatprep.subr.bf16.mxu0 0
  %5348 = vmatpush1.bf16.msra.mxu0 0
  %5349 = vmatprep.subr.bf16.mxu0 0
  %5350 = vmatpush1.bf16.msra.mxu0 0
  %5351 = vmatprep.subr.bf16.mxu0 0
  %5352 = vmatpush1.bf16.msra.mxu0 0
  %5353 = vmatprep.subr.bf16.mxu0 0
  %5354 = vmatpush1.bf16.msra.mxu0 0
  %5355 = vmatprep.subr.bf16.mxu0 0
  %5356 = vmatpush1.bf16.msra.mxu0 0
  %5357 = vmatprep.subr.bf16.mxu0 0
  %5358 = vmatpush1.bf16.msra.mxu0 0
  %5359 = vmatprep.subr.bf16.mxu0 0
  %5360 = vmatpush1.bf16.msra.mxu0 0
  %5361 = vmatprep.mubr.bf16.mxu0 0
  %5362 = vmatmul.mubr.bf16.gmra.mrb[0].mxu0 %v5318
  %v5363 = vpop.f32.mrb[0].mxu0
  %v5364 = vadd.f32 0.0, %v5363
  %v5365 = vpop.f32.mrb[0].mxu0
  %v5366 = vpop.f32.mrb[0].mxu0
  %v5367 = vadd.f32 0.0, %v5366
  %v5368 = vpop.f32.mrb[0].mxu0
  %5369 = vmatprep.mubr.bf16.mxu0 0
  %5370 = vmatmul.mubr.bf16.gmra.mrb[0].mxu0 %v5321
  %v5371 = vpop.f32.mrb[0].mxu0
  %v5372 = vadd.f32 0.0, %v5371
  %v5373 = vpop.f32.mrb[0].mxu0
  %v5374 = vpop.f32.mrb[0].mxu0
  %v5375 = vadd.f32 0.0, %v5374
  %v5376 = vpop.f32.mrb[0].mxu0
  %5377 = vmatprep.mubr.bf16.mxu0 0
  %5378 = vmatmul.mubr.bf16.gmra.mrb[0].mxu0 %v5324
  %v5379 = vpop.f32.mrb[0].mxu0
  %v5380 = vadd.f32 0.0, %v5379
  %v5381 = vpop.f32.mrb[0].mxu0
  %v5382 = vpop.f32.mrb[0].mxu0
  %v5383 = vadd.f32 0.0, %v5382
  %v5384 = vpop.f32.mrb[0].mxu0
  %5385 = vmatprep.mubr.bf16.mxu0 0
  %5386 = vmatmul.mubr.bf16.gmra.mrb[0].mxu0 %v5327
  %v5387 = vpop.f32.mrb[0].mxu0
  %v5388 = vadd.f32 0.0, %v5387
  %v5389 = vpop.f32.mrb[0].mxu0
  %v5390 = vpop.f32.mrb[0].mxu0
  %v5391 = vpop.f32.mrb[0].mxu0
  %5392 = vdwg.mxu0
  %v5401 = vunpack.c.l.b16 %v5169
  %v5402 = vunpack.c.l.b16 %v5170
  %v5403 = vunpack.c.l.b16 %v5171
  %v5404 = vunpack.c.l.b16 %v5172
  %v5405 = vunpack.c.l.b16 %v5173
  %v5406 = vunpack.c.l.b16 %v5174
  %v5407 = vunpack.c.l.b16 %v5175
  %v5408 = vunpack.c.l.b16 %v5176
  %v5409 = vpack.c.b16 %v5402, %v5401
  %v5410 = vpack.c.b16 %v5404, %v5403
  %v5411 = vpack.c.b16 %v5406, %v5405
  %v5412 = vpack.c.b16 %v5408, %v5407
  %v5418 = vsel %vm5316, %v5165, 0
  %v5421 = vsel %vm5316, %v5166, 0
  %v5424 = vsel %vm5316, %v5167, 0
  %v5427 = vsel %vm5316, %v5168, 0
  %5429 = vmatprep.subr.bf16.mxu0 0
  %5430 = vmatpush1.bf16.msra.mxu0 %v5409
  %5431 = vmatprep.subr.bf16.mxu0 0
  %5432 = vmatpush1.bf16.msra.mxu0 %v5410
  %5433 = vmatprep.subr.bf16.mxu0 0
  %5434 = vmatpush1.bf16.msra.mxu0 %v5411
  %5435 = vmatprep.subr.bf16.mxu0 0
  %5436 = vmatpush1.bf16.msra.mxu0 %v5412
  %5437 = vmatprep.subr.bf16.mxu0 0
  %5438 = vmatpush1.bf16.msra.mxu0 0
  %5439 = vmatprep.subr.bf16.mxu0 0
  %5440 = vmatpush1.bf16.msra.mxu0 0
  %5441 = vmatprep.subr.bf16.mxu0 0
  %5442 = vmatpush1.bf16.msra.mxu0 0
  %5443 = vmatprep.subr.bf16.mxu0 0
  %5444 = vmatpush1.bf16.msra.mxu0 0
  %5445 = vmatprep.subr.bf16.mxu0 0
  %5446 = vmatpush1.bf16.msra.mxu0 0
  %5447 = vmatprep.subr.bf16.mxu0 0
  %5448 = vmatpush1.bf16.msra.mxu0 0
  %5449 = vmatprep.subr.bf16.mxu0 0
  %5450 = vmatpush1.bf16.msra.mxu0 0
  %5451 = vmatprep.subr.bf16.mxu0 0
  %5452 = vmatpush1.bf16.msra.mxu0 0
  %5453 = vmatprep.subr.bf16.mxu0 0
  %5454 = vmatpush1.bf16.msra.mxu0 0
  %5455 = vmatprep.subr.bf16.mxu0 0
  %5456 = vmatpush1.bf16.msra.mxu0 0
  %5457 = vmatprep.subr.bf16.mxu0 0
  %5458 = vmatpush1.bf16.msra.mxu0 0
  %5459 = vmatprep.subr.bf16.mxu0 0
  %5460 = vmatpush1.bf16.msra.mxu0 0
  %5461 = vmatprep.mubr.bf16.mxu0 0
  %5462 = vmatmul.mubr.bf16.gmra.mrb[0].mxu0 %v5418
  %v5463 = vpop.f32.mrb[0].mxu0
  %v5464 = vadd.f32 %v5364, %v5463
  %v5465 = vpop.f32.mrb[0].mxu0
  %v5466 = vpop.f32.mrb[0].mxu0
  %v5467 = vadd.f32 %v5367, %v5466
  %v5468 = vpop.f32.mrb[0].mxu0
  %5469 = vmatprep.mubr.bf16.mxu0 0
  %5470 = vmatmul.mubr.bf16.gmra.mrb[0].mxu0 %v5421
  %v5471 = vpop.f32.mrb[0].mxu0
  %v5472 = vadd.f32 %v5372, %v5471
  %v5473 = vpop.f32.mrb[0].mxu0
  %v5474 = vpop.f32.mrb[0].mxu0
  %v5475 = vadd.f32 %v5375, %v5474
  %v5476 = vpop.f32.mrb[0].mxu0
  %5477 = vmatprep.mubr.bf16.mxu0 0
  %5478 = vmatmul.mubr.bf16.gmra.mrb[0].mxu0 %v5424
  %v5479 = vpop.f32.mrb[0].mxu0
  %v5480 = vadd.f32 %v5380, %v5479
  %v5481 = vpop.f32.mrb[0].mxu0
  %v5482 = vpop.f32.mrb[0].mxu0
  %v5483 = vadd.f32 %v5383, %v5482
  %v5484 = vpop.f32.mrb[0].mxu0
  %5485 = vmatprep.mubr.bf16.mxu0 0
  %5486 = vmatmul.mubr.bf16.gmra.mrb[0].mxu0 %v5427
  %v5487 = vpop.f32.mrb[0].mxu0
  %v5488 = vadd.f32 %v5388, %v5487
  %v5489 = vpop.f32.mrb[0].mxu0
  %v5490 = vpop.f32.mrb[0].mxu0
  %v5491 = vpop.f32.mrb[0].mxu0
  %5492 = vdwg.mxu0
  %s5493 = scalar_lea.vmem %s6, 56
  %v5494 = vld [vmem:[%s5493] sm:$0xf]
  %v5495 = vld [vmem:[%s5493 + $0x4] sm:$0xf]
  %v5496 = vld [vmem:[%s5493 + $0x8] sm:$0xf]
  %v5497 = vld [vmem:[%s5493 + $0xc] sm:$0xf]
  %v5498 = vld [vmem:[%s5493 + $0x10] sm:$0xf]
  %v5499 = vld [vmem:[%s5493 + $0x14] sm:$0xf]
  %v5500 = vld [vmem:[%s5493 + $0x18] sm:$0x1]
  %v5508 = vunpack.c.l.b16 %v5494
  %v5509 = vunpack.c.l.b16 %v5495
  %v5510 = vunpack.c.l.b16 %v5496
  %v5511 = vunpack.c.l.b16 %v5497
  %v5512 = vunpack.c.l.b16 %v5498
  %v5513 = vunpack.c.l.b16 %v5499
  %v5514 = vunpack.c.l.b16 %v5500
  %v5515 = vpack.c.b16 %v5509, %v5508
  %v5516 = vpack.c.b16 %v5511, %v5510
  %v5517 = vpack.c.b16 %v5513, %v5512
  %v5518 = vpack.c.b16 %v5514, %v5514
  %v5520 = vsel %vm5084, %v5515, 0
  %v5523 = vsel %vm5084, %v5516, 0
  %v5526 = vsel %vm5084, %v5517, 0
  %v5529 = vsel %vm5084, %v5518, 0
  %5531 = vmatprep.subr.bf16.mxu0 0
  %5532 = vmatpush1.bf16.msra.mxu0 %v5055
  %5533 = vmatprep.subr.bf16.mxu0 0
  %5534 = vmatpush1.bf16.msra.mxu0 %v5056
  %5535 = vmatprep.subr.bf16.mxu0 0
  %5536 = vmatpush1.bf16.msra.mxu0 %v5057
  %5537 = vmatprep.subr.bf16.mxu0 0
  %5538 = vmatpush1.bf16.msra.mxu0 %v5099
  %5539 = vmatprep.subr.bf16.mxu0 0
  %5540 = vmatpush1.bf16.msra.mxu0 0
  %5541 = vmatprep.subr.bf16.mxu0 0
  %5542 = vmatpush1.bf16.msra.mxu0 0
  %5543 = vmatprep.subr.bf16.mxu0 0
  %5544 = vmatpush1.bf16.msra.mxu0 0
  %5545 = vmatprep.subr.bf16.mxu0 0
  %5546 = vmatpush1.bf16.msra.mxu0 0
  %5547 = vmatprep.subr.bf16.mxu0 0
  %5548 = vmatpush1.bf16.msra.mxu0 0
  %5549 = vmatprep.subr.bf16.mxu0 0
  %5550 = vmatpush1.bf16.msra.mxu0 0
  %5551 = vmatprep.subr.bf16.mxu0 0
  %5552 = vmatpush1.bf16.msra.mxu0 0
  %5553 = vmatprep.subr.bf16.mxu0 0
  %5554 = vmatpush1.bf16.msra.mxu0 0
  %5555 = vmatprep.subr.bf16.mxu0 0
  %5556 = vmatpush1.bf16.msra.mxu0 0
  %5557 = vmatprep.subr.bf16.mxu0 0
  %5558 = vmatpush1.bf16.msra.mxu0 0
  %5559 = vmatprep.subr.bf16.mxu0 0
  %5560 = vmatpush1.bf16.msra.mxu0 0
  %5561 = vmatprep.subr.bf16.mxu0 0
  %5562 = vmatpush1.bf16.msra.mxu0 0
  %5563 = vmatprep.mubr.bf16.mxu0 0
  %5564 = vmatmul.mubr.bf16.gmra.mrb[0].mxu0 %v5520
  %v5565 = vpop.f32.mrb[0].mxu0
  %v5566 = vadd.f32 0.0, %v5565
  %v5567 = vpop.f32.mrb[0].mxu0
  %v5568 = vpop.f32.mrb[0].mxu0
  %v5569 = vadd.f32 0.0, %v5568
  %v5570 = vpop.f32.mrb[0].mxu0
  %5571 = vmatprep.mubr.bf16.mxu0 0
  %5572 = vmatmul.mubr.bf16.gmra.mrb[0].mxu0 %v5523
  %v5573 = vpop.f32.mrb[0].mxu0
  %v5574 = vadd.f32 0.0, %v5573
  %v5575 = vpop.f32.mrb[0].mxu0
  %v5576 = vpop.f32.mrb[0].mxu0
  %v5577 = vadd.f32 0.0, %v5576
  %v5578 = vpop.f32.mrb[0].mxu0
  %5579 = vmatprep.mubr.bf16.mxu0 0
  %5580 = vmatmul.mubr.bf16.gmra.mrb[0].mxu0 %v5526
  %v5581 = vpop.f32.mrb[0].mxu0
  %v5582 = vadd.f32 0.0, %v5581
  %v5583 = vpop.f32.mrb[0].mxu0
  %v5584 = vpop.f32.mrb[0].mxu0
  %v5585 = vadd.f32 0.0, %v5584
  %v5586 = vpop.f32.mrb[0].mxu0
  %5587 = vmatprep.mubr.bf16.mxu0 0
  %5588 = vmatmul.mubr.bf16.gmra.mrb[0].mxu0 %v5529
  %v5589 = vpop.f32.mrb[0].mxu0
  %v5590 = vadd.f32 0.0, %v5589
  %v5591 = vpop.f32.mrb[0].mxu0
  %v5592 = vpop.f32.mrb[0].mxu0
  %v5593 = vpop.f32.mrb[0].mxu0
  %5594 = vdwg.mxu0
  %v5595 = vpack.c.bf16 %v5569, %v5566
  %v5596 = vpack.c.bf16 %v5577, %v5574
  %v5597 = vpack.c.bf16 %v5585, %v5582
  %v5598 = vpack.c.bf16 %v5590, %v5590
  %s5599 = scalar_lea.vmem %s7, 64
  %v5600 = vld [vmem:[%s5599] sm:$0xf]
  %v5601 = vld [vmem:[%s5599 + $0x4] sm:$0xf]
  %v5602 = vld [vmem:[%s5599 + $0x8] sm:$0xf]
  %v5603 = vld [vmem:[%s5599 + $0xc] sm:$0xf]
  %v5604 = vld [vmem:[%s5599 + $0x10] sm:$0xf]
  %v5605 = vld [vmem:[%s5599 + $0x14] sm:$0xf]
  %v5606 = vld [vmem:[%s5599 + $0x18] sm:$0xf]
  %v5607 = vld [vmem:[%s5599 + $0x1c] sm:$0xf]
  %v5616 = vunpack.c.l.b16 %v5600
  %v5617 = vunpack.c.l.b16 %v5601
  %v5618 = vunpack.c.l.b16 %v5602
  %v5619 = vunpack.c.l.b16 %v5603
  %v5620 = vunpack.c.l.b16 %v5604
  %v5621 = vunpack.c.l.b16 %v5605
  %v5622 = vunpack.c.l.b16 %v5606
  %v5623 = vunpack.c.l.b16 %v5607
  %v5624 = vpack.c.b16 %v5617, %v5616
  %v5625 = vpack.c.b16 %v5619, %v5618
  %v5626 = vpack.c.b16 %v5621, %v5620
  %v5627 = vpack.c.b16 %v5623, %v5622
  %v5633 = vsel %vm5316, %v5595, 0
  %v5636 = vsel %vm5316, %v5596, 0
  %v5639 = vsel %vm5316, %v5597, 0
  %v5642 = vsel %vm5316, %v5598, 0
  %5644 = vmatprep.subr.bf16.mxu0 0
  %5645 = vmatpush1.bf16.msra.mxu0 %v5624
  %5646 = vmatprep.subr.bf16.mxu0 0
  %5647 = vmatpush1.bf16.msra.mxu0 %v5625
  %5648 = vmatprep.subr.bf16.mxu0 0
  %5649 = vmatpush1.bf16.msra.mxu0 %v5626
  %5650 = vmatprep.subr.bf16.mxu0 0
  %5651 = vmatpush1.bf16.msra.mxu0 %v5627
  %5652 = vmatprep.subr.bf16.mxu0 0
  %5653 = vmatpush1.bf16.msra.mxu0 0
  %5654 = vmatprep.subr.bf16.mxu0 0
  %5655 = vmatpush1.bf16.msra.mxu0 0
  %5656 = vmatprep.subr.bf16.mxu0 0
  %5657 = vmatpush1.bf16.msra.mxu0 0
  %5658 = vmatprep.subr.bf16.mxu0 0
  %5659 = vmatpush1.bf16.msra.mxu0 0
  %5660 = vmatprep.subr.bf16.mxu0 0
  %5661 = vmatpush1.bf16.msra.mxu0 0
  %5662 = vmatprep.subr.bf16.mxu0 0
  %5663 = vmatpush1.bf16.msra.mxu0 0
  %5664 = vmatprep.subr.bf16.mxu0 0
  %5665 = vmatpush1.bf16.msra.mxu0 0
  %5666 = vmatprep.subr.bf16.mxu0 0
  %5667 = vmatpush1.bf16.msra.mxu0 0
  %5668 = vmatprep.subr.bf16.mxu0 0
  %5669 = vmatpush1.bf16.msra.mxu0 0
  %5670 = vmatprep.subr.bf16.mxu0 0
  %5671 = vmatpush1.bf16.msra.mxu0 0
  %5672 = vmatprep.subr.bf16.mxu0 0
  %5673 = vmatpush1.bf16.msra.mxu0 0
  %5674 = vmatprep.subr.bf16.mxu0 0
  %5675 = vmatpush1.bf16.msra.mxu0 0
  %5676 = vmatprep.mubr.bf16.mxu0 0
  %5677 = vmatmul.mubr.bf16.gmra.mrb[0].mxu0 %v5633
  %v5678 = vpop.f32.mrb[0].mxu0
  %v5679 = vadd.f32 0.0, %v5678
  %v5680 = vpop.f32.mrb[0].mxu0
  %v5681 = vpop.f32.mrb[0].mxu0
  %v5682 = vadd.f32 0.0, %v5681
  %v5683 = vpop.f32.mrb[0].mxu0
  %5684 = vmatprep.mubr.bf16.mxu0 0
  %5685 = vmatmul.mubr.bf16.gmra.mrb[0].mxu0 %v5636
  %v5686 = vpop.f32.mrb[0].mxu0
  %v5687 = vadd.f32 0.0, %v5686
  %v5688 = vpop.f32.mrb[0].mxu0
  %v5689 = vpop.f32.mrb[0].mxu0
  %v5690 = vadd.f32 0.0, %v5689
  %v5691 = vpop.f32.mrb[0].mxu0
  %5692 = vmatprep.mubr.bf16.mxu0 0
  %5693 = vmatmul.mubr.bf16.gmra.mrb[0].mxu0 %v5639
  %v5694 = vpop.f32.mrb[0].mxu0
  %v5695 = vadd.f32 0.0, %v5694
  %v5696 = vpop.f32.mrb[0].mxu0
  %v5697 = vpop.f32.mrb[0].mxu0
  %v5698 = vadd.f32 0.0, %v5697
  %v5699 = vpop.f32.mrb[0].mxu0
  %5700 = vmatprep.mubr.bf16.mxu0 0
  %5701 = vmatmul.mubr.bf16.gmra.mrb[0].mxu0 %v5642
  %v5702 = vpop.f32.mrb[0].mxu0
  %v5703 = vadd.f32 0.0, %v5702
  %v5704 = vpop.f32.mrb[0].mxu0
  %v5705 = vpop.f32.mrb[0].mxu0
  %v5706 = vpop.f32.mrb[0].mxu0
  %5707 = vdwg.mxu0
  %v5708 = vadd.f32 %v5464, %v5679
  %v5709 = vadd.f32 %v5467, %v5682
  %v5710 = vadd.f32 %v5472, %v5687
  %v5711 = vadd.f32 %v5475, %v5690
  %v5712 = vadd.f32 %v5480, %v5695
  %v5713 = vadd.f32 %v5483, %v5698
  %v5714 = vadd.f32 %v5488, %v5703
  %s5715 = scalar_lea.vmem %s6, 84
  %v5716 = vld [vmem:[%s5715] sm:$0xf]
  %v5717 = vld [vmem:[%s5715 + $0x4] sm:$0xf]
  %v5718 = vld [vmem:[%s5715 + $0x8] sm:$0xf]
  %v5719 = vld [vmem:[%s5715 + $0xc] sm:$0xf]
  %v5720 = vld [vmem:[%s5715 + $0x10] sm:$0xf]
  %v5721 = vld [vmem:[%s5715 + $0x14] sm:$0xf]
  %v5722 = vld [vmem:[%s5715 + $0x18] sm:$0x1]
  %v5730 = vunpack.c.l.b16 %v5716
  %v5731 = vunpack.c.l.b16 %v5717
  %v5732 = vunpack.c.l.b16 %v5718
  %v5733 = vunpack.c.l.b16 %v5719
  %v5734 = vunpack.c.l.b16 %v5720
  %v5735 = vunpack.c.l.b16 %v5721
  %v5736 = vunpack.c.l.b16 %v5722
  %v5737 = vpack.c.b16 %v5731, %v5730
  %v5738 = vpack.c.b16 %v5733, %v5732
  %v5739 = vpack.c.b16 %v5735, %v5734
  %v5740 = vpack.c.b16 %v5736, %v5736
  %v5742 = vsel %vm5084, %v5737, 0
  %v5745 = vsel %vm5084, %v5738, 0
  %v5748 = vsel %vm5084, %v5739, 0
  %v5751 = vsel %vm5084, %v5740, 0
  %5753 = vmatprep.subr.bf16.mxu0 0
  %5754 = vmatpush1.bf16.msra.mxu0 %v5055
  %5755 = vmatprep.subr.bf16.mxu0 0
  %5756 = vmatpush1.bf16.msra.mxu0 %v5056
  %5757 = vmatprep.subr.bf16.mxu0 0
  %5758 = vmatpush1.bf16.msra.mxu0 %v5057
  %5759 = vmatprep.subr.bf16.mxu0 0
  %5760 = vmatpush1.bf16.msra.mxu0 %v5099
  %5761 = vmatprep.subr.bf16.mxu0 0
  %5762 = vmatpush1.bf16.msra.mxu0 0
  %5763 = vmatprep.subr.bf16.mxu0 0
  %5764 = vmatpush1.bf16.msra.mxu0 0
  %5765 = vmatprep.subr.bf16.mxu0 0
  %5766 = vmatpush1.bf16.msra.mxu0 0
  %5767 = vmatprep.subr.bf16.mxu0 0
  %5768 = vmatpush1.bf16.msra.mxu0 0
  %5769 = vmatprep.subr.bf16.mxu0 0
  %5770 = vmatpush1.bf16.msra.mxu0 0
  %5771 = vmatprep.subr.bf16.mxu0 0
  %5772 = vmatpush1.bf16.msra.mxu0 0
  %5773 = vmatprep.subr.bf16.mxu0 0
  %5774 = vmatpush1.bf16.msra.mxu0 0
  %5775 = vmatprep.subr.bf16.mxu0 0
  %5776 = vmatpush1.bf16.msra.mxu0 0
  %5777 = vmatprep.subr.bf16.mxu0 0
  %5778 = vmatpush1.bf16.msra.mxu0 0
  %5779 = vmatprep.subr.bf16.mxu0 0
  %5780 = vmatpush1.bf16.msra.mxu0 0
  %5781 = vmatprep.subr.bf16.mxu0 0
  %5782 = vmatpush1.bf16.msra.mxu0 0
  %5783 = vmatprep.subr.bf16.mxu0 0
  %5784 = vmatpush1.bf16.msra.mxu0 0
  %5785 = vmatprep.mubr.bf16.mxu0 0
  %5786 = vmatmul.mubr.bf16.gmra.mrb[0].mxu0 %v5742
  %v5787 = vpop.f32.mrb[0].mxu0
  %v5788 = vadd.f32 0.0, %v5787
  %v5789 = vpop.f32.mrb[0].mxu0
  %v5790 = vpop.f32.mrb[0].mxu0
  %v5791 = vadd.f32 0.0, %v5790
  %v5792 = vpop.f32.mrb[0].mxu0
  %5793 = vmatprep.mubr.bf16.mxu0 0
  %5794 = vmatmul.mubr.bf16.gmra.mrb[0].mxu0 %v5745
  %v5795 = vpop.f32.mrb[0].mxu0
  %v5796 = vadd.f32 0.0, %v5795
  %v5797 = vpop.f32.mrb[0].mxu0
  %v5798 = vpop.f32.mrb[0].mxu0
  %v5799 = vadd.f32 0.0, %v5798
  %v5800 = vpop.f32.mrb[0].mxu0
  %5801 = vmatprep.mubr.bf16.mxu0 0
  %5802 = vmatmul.mubr.bf16.gmra.mrb[0].mxu0 %v5748
  %v5803 = vpop.f32.mrb[0].mxu0
  %v5804 = vadd.f32 0.0, %v5803
  %v5805 = vpop.f32.mrb[0].mxu0
  %v5806 = vpop.f32.mrb[0].mxu0
  %v5807 = vadd.f32 0.0, %v5806
  %v5808 = vpop.f32.mrb[0].mxu0
  %5809 = vmatprep.mubr.bf16.mxu0 0
  %5810 = vmatmul.mubr.bf16.gmra.mrb[0].mxu0 %v5751
  %v5811 = vpop.f32.mrb[0].mxu0
  %v5812 = vadd.f32 0.0, %v5811
  %v5813 = vpop.f32.mrb[0].mxu0
  %v5814 = vpop.f32.mrb[0].mxu0
  %v5815 = vpop.f32.mrb[0].mxu0
  %5816 = vdwg.mxu0
  %v5817 = vpack.c.bf16 %v5791, %v5788
  %v5818 = vpack.c.bf16 %v5799, %v5796
  %v5819 = vpack.c.bf16 %v5807, %v5804
  %v5820 = vpack.c.bf16 %v5812, %v5812
  %s5821 = scalar_lea.vmem %s7, 96
  %v5822 = vld [vmem:[%s5821] sm:$0xf]
  %v5823 = vld [vmem:[%s5821 + $0x4] sm:$0xf]
  %v5824 = vld [vmem:[%s5821 + $0x8] sm:$0xf]
  %v5825 = vld [vmem:[%s5821 + $0xc] sm:$0xf]
  %v5826 = vld [vmem:[%s5821 + $0x10] sm:$0xf]
  %v5827 = vld [vmem:[%s5821 + $0x14] sm:$0xf]
  %v5828 = vld [vmem:[%s5821 + $0x18] sm:$0xf]
  %v5829 = vld [vmem:[%s5821 + $0x1c] sm:$0xf]
  %v5838 = vunpack.c.l.b16 %v5822
  %v5839 = vunpack.c.l.b16 %v5823
  %v5840 = vunpack.c.l.b16 %v5824
  %v5841 = vunpack.c.l.b16 %v5825
  %v5842 = vunpack.c.l.b16 %v5826
  %v5843 = vunpack.c.l.b16 %v5827
  %v5844 = vunpack.c.l.b16 %v5828
  %v5845 = vunpack.c.l.b16 %v5829
  %v5846 = vpack.c.b16 %v5839, %v5838
  %v5847 = vpack.c.b16 %v5841, %v5840
  %v5848 = vpack.c.b16 %v5843, %v5842
  %v5849 = vpack.c.b16 %v5845, %v5844
  %v5855 = vsel %vm5316, %v5817, 0
  %v5858 = vsel %vm5316, %v5818, 0
  %v5861 = vsel %vm5316, %v5819, 0
  %v5864 = vsel %vm5316, %v5820, 0
  %5866 = vmatprep.subr.bf16.mxu0 0
  %5867 = vmatpush1.bf16.msra.mxu0 %v5846
  %5868 = vmatprep.subr.bf16.mxu0 0
  %5869 = vmatpush1.bf16.msra.mxu0 %v5847
  %5870 = vmatprep.subr.bf16.mxu0 0
  %5871 = vmatpush1.bf16.msra.mxu0 %v5848
  %5872 = vmatprep.subr.bf16.mxu0 0
  %5873 = vmatpush1.bf16.msra.mxu0 %v5849
  %5874 = vmatprep.subr.bf16.mxu0 0
  %5875 = vmatpush1.bf16.msra.mxu0 0
  %5876 = vmatprep.subr.bf16.mxu0 0
  %5877 = vmatpush1.bf16.msra.mxu0 0
  %5878 = vmatprep.subr.bf16.mxu0 0
  %5879 = vmatpush1.bf16.msra.mxu0 0
  %5880 = vmatprep.subr.bf16.mxu0 0
  %5881 = vmatpush1.bf16.msra.mxu0 0
  %5882 = vmatprep.subr.bf16.mxu0 0
  %5883 = vmatpush1.bf16.msra.mxu0 0
  %5884 = vmatprep.subr.bf16.mxu0 0
  %5885 = vmatpush1.bf16.msra.mxu0 0
  %5886 = vmatprep.subr.bf16.mxu0 0
  %5887 = vmatpush1.bf16.msra.mxu0 0
  %5888 = vmatprep.subr.bf16.mxu0 0
  %5889 = vmatpush1.bf16.msra.mxu0 0
  %5890 = vmatprep.subr.bf16.mxu0 0
  %5891 = vmatpush1.bf16.msra.mxu0 0
  %5892 = vmatprep.subr.bf16.mxu0 0
  %5893 = vmatpush1.bf16.msra.mxu0 0
  %5894 = vmatprep.subr.bf16.mxu0 0
  %5895 = vmatpush1.bf16.msra.mxu0 0
  %5896 = vmatprep.subr.bf16.mxu0 0
  %5897 = vmatpush1.bf16.msra.mxu0 0
  %5898 = vmatprep.mubr.bf16.mxu0 0
  %5899 = vmatmul.mubr.bf16.gmra.mrb[0].mxu0 %v5855
  %v5900 = vpop.f32.mrb[0].mxu0
  %v5901 = vadd.f32 0.0, %v5900
  %v5902 = vpop.f32.mrb[0].mxu0
  %v5903 = vpop.f32.mrb[0].mxu0
  %v5904 = vadd.f32 0.0, %v5903
  %v5905 = vpop.f32.mrb[0].mxu0
  %5906 = vmatprep.mubr.bf16.mxu0 0
  %5907 = vmatmul.mubr.bf16.gmra.mrb[0].mxu0 %v5858
  %v5908 = vpop.f32.mrb[0].mxu0
  %v5909 = vadd.f32 0.0, %v5908
  %v5910 = vpop.f32.mrb[0].mxu0
  %v5911 = vpop.f32.mrb[0].mxu0
  %v5912 = vadd.f32 0.0, %v5911
  %v5913 = vpop.f32.mrb[0].mxu0
  %5914 = vmatprep.mubr.bf16.mxu0 0
  %5915 = vmatmul.mubr.bf16.gmra.mrb[0].mxu0 %v5861
  %v5916 = vpop.f32.mrb[0].mxu0
  %v5917 = vadd.f32 0.0, %v5916
  %v5918 = vpop.f32.mrb[0].mxu0
  %v5919 = vpop.f32.mrb[0].mxu0
  %v5920 = vadd.f32 0.0, %v5919
  %v5921 = vpop.f32.mrb[0].mxu0
  %5922 = vmatprep.mubr.bf16.mxu0 0
  %5923 = vmatmul.mubr.bf16.gmra.mrb[0].mxu0 %v5864
  %v5924 = vpop.f32.mrb[0].mxu0
  %v5925 = vadd.f32 0.0, %v5924
  %v5926 = vpop.f32.mrb[0].mxu0
  %v5927 = vpop.f32.mrb[0].mxu0
  %v5928 = vpop.f32.mrb[0].mxu0
  %5929 = vdwg.mxu0
  %v5930 = vadd.f32 %v5708, %v5901
  %v5931 = vadd.f32 %v5709, %v5904
  %v5932 = vadd.f32 %v5710, %v5909
  %v5933 = vadd.f32 %v5711, %v5912
  %v5934 = vadd.f32 %v5712, %v5917
  %v5935 = vadd.f32 %v5713, %v5920
  %v5936 = vadd.f32 %v5714, %v5925
  %s5937 = scalar_lea.vmem %s6, 112
  %v5938 = vld [vmem:[%s5937] sm:$0xf]
  %v5939 = vld [vmem:[%s5937 + $0x4] sm:$0xf]
  %v5940 = vld [vmem:[%s5937 + $0x8] sm:$0xf]
  %v5941 = vld [vmem:[%s5937 + $0xc] sm:$0xf]
  %v5942 = vld [vmem:[%s5937 + $0x10] sm:$0xf]
  %v5943 = vld [vmem:[%s5937 + $0x14] sm:$0xf]
  %v5944 = vld [vmem:[%s5937 + $0x18] sm:$0x1]
  %v5952 = vunpack.c.l.b16 %v5938
  %v5953 = vunpack.c.l.b16 %v5939
  %v5954 = vunpack.c.l.b16 %v5940
  %v5955 = vunpack.c.l.b16 %v5941
  %v5956 = vunpack.c.l.b16 %v5942
  %v5957 = vunpack.c.l.b16 %v5943
  %v5958 = vunpack.c.l.b16 %v5944
  %v5959 = vpack.c.b16 %v5953, %v5952
  %v5960 = vpack.c.b16 %v5955, %v5954
  %v5961 = vpack.c.b16 %v5957, %v5956
  %v5962 = vpack.c.b16 %v5958, %v5958
  %v5964 = vsel %vm5084, %v5959, 0
  %v5967 = vsel %vm5084, %v5960, 0
  %v5970 = vsel %vm5084, %v5961, 0
  %v5973 = vsel %vm5084, %v5962, 0
  %5975 = vmatprep.subr.bf16.mxu0 0
  %5976 = vmatpush1.bf16.msra.mxu0 %v5055
  %5977 = vmatprep.subr.bf16.mxu0 0
  %5978 = vmatpush1.bf16.msra.mxu0 %v5056
  %5979 = vmatprep.subr.bf16.mxu0 0
  %5980 = vmatpush1.bf16.msra.mxu0 %v5057
  %5981 = vmatprep.subr.bf16.mxu0 0
  %5982 = vmatpush1.bf16.msra.mxu0 %v5099
  %5983 = vmatprep.subr.bf16.mxu0 0
  %5984 = vmatpush1.bf16.msra.mxu0 0
  %5985 = vmatprep.subr.bf16.mxu0 0
  %5986 = vmatpush1.bf16.msra.mxu0 0
  %5987 = vmatprep.subr.bf16.mxu0 0
  %5988 = vmatpush1.bf16.msra.mxu0 0
  %5989 = vmatprep.subr.bf16.mxu0 0
  %5990 = vmatpush1.bf16.msra.mxu0 0
  %5991 = vmatprep.subr.bf16.mxu0 0
  %5992 = vmatpush1.bf16.msra.mxu0 0
  %5993 = vmatprep.subr.bf16.mxu0 0
  %5994 = vmatpush1.bf16.msra.mxu0 0
  %5995 = vmatprep.subr.bf16.mxu0 0
  %5996 = vmatpush1.bf16.msra.mxu0 0
  %5997 = vmatprep.subr.bf16.mxu0 0
  %5998 = vmatpush1.bf16.msra.mxu0 0
  %5999 = vmatprep.subr.bf16.mxu0 0
  %6000 = vmatpush1.bf16.msra.mxu0 0
  %6001 = vmatprep.subr.bf16.mxu0 0
  %6002 = vmatpush1.bf16.msra.mxu0 0
  %6003 = vmatprep.subr.bf16.mxu0 0
  %6004 = vmatpush1.bf16.msra.mxu0 0
  %6005 = vmatprep.subr.bf16.mxu0 0
  %6006 = vmatpush1.bf16.msra.mxu0 0
  %6007 = vmatprep.mubr.bf16.mxu0 0
  %6008 = vmatmul.mubr.bf16.gmra.mrb[0].mxu0 %v5964
  %v6009 = vpop.f32.mrb[0].mxu0
  %v6010 = vadd.f32 0.0, %v6009
  %v6011 = vpop.f32.mrb[0].mxu0
  %v6012 = vpop.f32.mrb[0].mxu0
  %v6013 = vadd.f32 0.0, %v6012
  %v6014 = vpop.f32.mrb[0].mxu0
  %6015 = vmatprep.mubr.bf16.mxu0 0
  %6016 = vmatmul.mubr.bf16.gmra.mrb[0].mxu0 %v5967
  %v6017 = vpop.f32.mrb[0].mxu0
  %v6018 = vadd.f32 0.0, %v6017
  %v6019 = vpop.f32.mrb[0].mxu0
  %v6020 = vpop.f32.mrb[0].mxu0
  %v6021 = vadd.f32 0.0, %v6020
  %v6022 = vpop.f32.mrb[0].mxu0
  %6023 = vmatprep.mubr.bf16.mxu0 0
  %6024 = vmatmul.mubr.bf16.gmra.mrb[0].mxu0 %v5970
  %v6025 = vpop.f32.mrb[0].mxu0
  %v6026 = vadd.f32 0.0, %v6025
  %v6027 = vpop.f32.mrb[0].mxu0
  %v6028 = vpop.f32.mrb[0].mxu0
  %v6029 = vadd.f32 0.0, %v6028
  %v6030 = vpop.f32.mrb[0].mxu0
  %6031 = vmatprep.mubr.bf16.mxu0 0
  %6032 = vmatmul.mubr.bf16.gmra.mrb[0].mxu0 %v5973
  %v6033 = vpop.f32.mrb[0].mxu0
  %v6034 = vadd.f32 0.0, %v6033
  %v6035 = vpop.f32.mrb[0].mxu0
  %v6036 = vpop.f32.mrb[0].mxu0
  %v6037 = vpop.f32.mrb[0].mxu0
  %6038 = vdwg.mxu0
  %v6039 = vpack.c.bf16 %v6013, %v6010
  %v6040 = vpack.c.bf16 %v6021, %v6018
  %v6041 = vpack.c.bf16 %v6029, %v6026
  %v6042 = vpack.c.bf16 %v6034, %v6034
  %s6043 = scalar_lea.vmem %s7, 128
  %v6044 = vld [vmem:[%s6043] sm:$0xf]
  %v6045 = vld [vmem:[%s6043 + $0x4] sm:$0xf]
  %v6046 = vld [vmem:[%s6043 + $0x8] sm:$0xf]
  %v6047 = vld [vmem:[%s6043 + $0xc] sm:$0xf]
  %v6048 = vld [vmem:[%s6043 + $0x10] sm:$0xf]
  %v6049 = vld [vmem:[%s6043 + $0x14] sm:$0xf]
  %v6050 = vld [vmem:[%s6043 + $0x18] sm:$0xf]
  %v6051 = vld [vmem:[%s6043 + $0x1c] sm:$0xf]
  %v6060 = vunpack.c.l.b16 %v6044
  %v6061 = vunpack.c.l.b16 %v6045
  %v6062 = vunpack.c.l.b16 %v6046
  %v6063 = vunpack.c.l.b16 %v6047
  %v6064 = vunpack.c.l.b16 %v6048
  %v6065 = vunpack.c.l.b16 %v6049
  %v6066 = vunpack.c.l.b16 %v6050
  %v6067 = vunpack.c.l.b16 %v6051
  %v6068 = vpack.c.b16 %v6061, %v6060
  %v6069 = vpack.c.b16 %v6063, %v6062
  %v6070 = vpack.c.b16 %v6065, %v6064
  %v6071 = vpack.c.b16 %v6067, %v6066
  %v6077 = vsel %vm5316, %v6039, 0
  %v6080 = vsel %vm5316, %v6040, 0
  %v6083 = vsel %vm5316, %v6041, 0
  %v6086 = vsel %vm5316, %v6042, 0
  %6088 = vmatprep.subr.bf16.mxu0 0
  %6089 = vmatpush1.bf16.msra.mxu0 %v6068
  %6090 = vmatprep.subr.bf16.mxu0 0
  %6091 = vmatpush1.bf16.msra.mxu0 %v6069
  %6092 = vmatprep.subr.bf16.mxu0 0
  %6093 = vmatpush1.bf16.msra.mxu0 %v6070
  %6094 = vmatprep.subr.bf16.mxu0 0
  %6095 = vmatpush1.bf16.msra.mxu0 %v6071
  %6096 = vmatprep.subr.bf16.mxu0 0
  %6097 = vmatpush1.bf16.msra.mxu0 0
  %6098 = vmatprep.subr.bf16.mxu0 0
  %6099 = vmatpush1.bf16.msra.mxu0 0
  %6100 = vmatprep.subr.bf16.mxu0 0
  %6101 = vmatpush1.bf16.msra.mxu0 0
  %6102 = vmatprep.subr.bf16.mxu0 0
  %6103 = vmatpush1.bf16.msra.mxu0 0
  %6104 = vmatprep.subr.bf16.mxu0 0
  %6105 = vmatpush1.bf16.msra.mxu0 0
  %6106 = vmatprep.subr.bf16.mxu0 0
  %6107 = vmatpush1.bf16.msra.mxu0 0
  %6108 = vmatprep.subr.bf16.mxu0 0
  %6109 = vmatpush1.bf16.msra.mxu0 0
  %6110 = vmatprep.subr.bf16.mxu0 0
  %6111 = vmatpush1.bf16.msra.mxu0 0
  %6112 = vmatprep.subr.bf16.mxu0 0
  %6113 = vmatpush1.bf16.msra.mxu0 0
  %6114 = vmatprep.subr.bf16.mxu0 0
  %6115 = vmatpush1.bf16.msra.mxu0 0
  %6116 = vmatprep.subr.bf16.mxu0 0
  %6117 = vmatpush1.bf16.msra.mxu0 0
  %6118 = vmatprep.subr.bf16.mxu0 0
  %6119 = vmatpush1.bf16.msra.mxu0 0
  %6120 = vmatprep.mubr.bf16.mxu0 0
  %6121 = vmatmul.mubr.bf16.gmra.mrb[0].mxu0 %v6077
  %v6122 = vpop.f32.mrb[0].mxu0
  %v6123 = vadd.f32 0.0, %v6122
  %v6124 = vpop.f32.mrb[0].mxu0
  %v6125 = vpop.f32.mrb[0].mxu0
  %v6126 = vadd.f32 0.0, %v6125
  %v6127 = vpop.f32.mrb[0].mxu0
  %6128 = vmatprep.mubr.bf16.mxu0 0
  %6129 = vmatmul.mubr.bf16.gmra.mrb[0].mxu0 %v6080
  %v6130 = vpop.f32.mrb[0].mxu0
  %v6131 = vadd.f32 0.0, %v6130
  %v6132 = vpop.f32.mrb[0].mxu0
  %v6133 = vpop.f32.mrb[0].mxu0
  %v6134 = vadd.f32 0.0, %v6133
  %v6135 = vpop.f32.mrb[0].mxu0
  %6136 = vmatprep.mubr.bf16.mxu0 0
  %6137 = vmatmul.mubr.bf16.gmra.mrb[0].mxu0 %v6083
  %v6138 = vpop.f32.mrb[0].mxu0
  %v6139 = vadd.f32 0.0, %v6138
  %v6140 = vpop.f32.mrb[0].mxu0
  %v6141 = vpop.f32.mrb[0].mxu0
  %v6142 = vadd.f32 0.0, %v6141
  %v6143 = vpop.f32.mrb[0].mxu0
  %6144 = vmatprep.mubr.bf16.mxu0 0
  %6145 = vmatmul.mubr.bf16.gmra.mrb[0].mxu0 %v6086
  %v6146 = vpop.f32.mrb[0].mxu0
  %v6147 = vadd.f32 0.0, %v6146
  %v6148 = vpop.f32.mrb[0].mxu0
  %v6149 = vpop.f32.mrb[0].mxu0
  %v6150 = vpop.f32.mrb[0].mxu0
  %6151 = vdwg.mxu0
  %v6152 = vadd.f32 %v5930, %v6123
  %v6153 = vadd.f32 %v5931, %v6126
  %v6154 = vadd.f32 %v5932, %v6131
  %v6155 = vadd.f32 %v5933, %v6134
  %v6156 = vadd.f32 %v5934, %v6139
  %v6157 = vadd.f32 %v5935, %v6142
  %v6158 = vadd.f32 %v5936, %v6147
  %s6159 = scalar_lea.vmem %s6, 140
  %v6160 = vld [vmem:[%s6159] sm:$0xf]
  %v6161 = vld [vmem:[%s6159 + $0x4] sm:$0xf]
  %v6162 = vld [vmem:[%s6159 + $0x8] sm:$0xf]
  %v6163 = vld [vmem:[%s6159 + $0xc] sm:$0xf]
  %v6164 = vld [vmem:[%s6159 + $0x10] sm:$0xf]
  %v6165 = vld [vmem:[%s6159 + $0x14] sm:$0xf]
  %v6166 = vld [vmem:[%s6159 + $0x18] sm:$0x1]
  %v6174 = vunpack.c.l.b16 %v6160
  %v6175 = vunpack.c.l.b16 %v6161
  %v6176 = vunpack.c.l.b16 %v6162
  %v6177 = vunpack.c.l.b16 %v6163
  %v6178 = vunpack.c.l.b16 %v6164
  %v6179 = vunpack.c.l.b16 %v6165
  %v6180 = vunpack.c.l.b16 %v6166
  %v6181 = vpack.c.b16 %v6175, %v6174
  %v6182 = vpack.c.b16 %v6177, %v6176
  %v6183 = vpack.c.b16 %v6179, %v6178
  %v6184 = vpack.c.b16 %v6180, %v6180
  %v6186 = vsel %vm5084, %v6181, 0
  %v6189 = vsel %vm5084, %v6182, 0
  %v6192 = vsel %vm5084, %v6183, 0
  %v6195 = vsel %vm5084, %v6184, 0
  %6197 = vmatprep.subr.bf16.mxu0 0
  %6198 = vmatpush1.bf16.msra.mxu0 %v5055
  %6199 = vmatprep.subr.bf16.mxu0 0
  %6200 = vmatpush1.bf16.msra.mxu0 %v5056
  %6201 = vmatprep.subr.bf16.mxu0 0
  %6202 = vmatpush1.bf16.msra.mxu0 %v5057
  %6203 = vmatprep.subr.bf16.mxu0 0
  %6204 = vmatpush1.bf16.msra.mxu0 %v5099
  %6205 = vmatprep.subr.bf16.mxu0 0
  %6206 = vmatpush1.bf16.msra.mxu0 0
  %6207 = vmatprep.subr.bf16.mxu0 0
  %6208 = vmatpush1.bf16.msra.mxu0 0
  %6209 = vmatprep.subr.bf16.mxu0 0
  %6210 = vmatpush1.bf16.msra.mxu0 0
  %6211 = vmatprep.subr.bf16.mxu0 0
  %6212 = vmatpush1.bf16.msra.mxu0 0
  %6213 = vmatprep.subr.bf16.mxu0 0
  %6214 = vmatpush1.bf16.msra.mxu0 0
  %6215 = vmatprep.subr.bf16.mxu0 0
  %6216 = vmatpush1.bf16.msra.mxu0 0
  %6217 = vmatprep.subr.bf16.mxu0 0
  %6218 = vmatpush1.bf16.msra.mxu0 0
  %6219 = vmatprep.subr.bf16.mxu0 0
  %6220 = vmatpush1.bf16.msra.mxu0 0
  %6221 = vmatprep.subr.bf16.mxu0 0
  %6222 = vmatpush1.bf16.msra.mxu0 0
  %6223 = vmatprep.subr.bf16.mxu0 0
  %6224 = vmatpush1.bf16.msra.mxu0 0
  %6225 = vmatprep.subr.bf16.mxu0 0
  %6226 = vmatpush1.bf16.msra.mxu0 0
  %6227 = vmatprep.subr.bf16.mxu0 0
  %6228 = vmatpush1.bf16.msra.mxu0 0
  %6229 = vmatprep.mubr.bf16.mxu0 0
  %6230 = vmatmul.mubr.bf16.gmra.mrb[0].mxu0 %v6186
  %v6231 = vpop.f32.mrb[0].mxu0
  %v6232 = vadd.f32 0.0, %v6231
  %v6233 = vpop.f32.mrb[0].mxu0
  %v6234 = vpop.f32.mrb[0].mxu0
  %v6235 = vadd.f32 0.0, %v6234
  %v6236 = vpop.f32.mrb[0].mxu0
  %6237 = vmatprep.mubr.bf16.mxu0 0
  %6238 = vmatmul.mubr.bf16.gmra.mrb[0].mxu0 %v6189
  %v6239 = vpop.f32.mrb[0].mxu0
  %v6240 = vadd.f32 0.0, %v6239
  %v6241 = vpop.f32.mrb[0].mxu0
  %v6242 = vpop.f32.mrb[0].mxu0
  %v6243 = vadd.f32 0.0, %v6242
  %v6244 = vpop.f32.mrb[0].mxu0
  %6245 = vmatprep.mubr.bf16.mxu0 0
  %6246 = vmatmul.mubr.bf16.gmra.mrb[0].mxu0 %v6192
  %v6247 = vpop.f32.mrb[0].mxu0
  %v6248 = vadd.f32 0.0, %v6247
  %v6249 = vpop.f32.mrb[0].mxu0
  %v6250 = vpop.f32.mrb[0].mxu0
  %v6251 = vadd.f32 0.0, %v6250
  %v6252 = vpop.f32.mrb[0].mxu0
  %6253 = vmatprep.mubr.bf16.mxu0 0
  %6254 = vmatmul.mubr.bf16.gmra.mrb[0].mxu0 %v6195
  %v6255 = vpop.f32.mrb[0].mxu0
  %v6256 = vadd.f32 0.0, %v6255
  %v6257 = vpop.f32.mrb[0].mxu0
  %v6258 = vpop.f32.mrb[0].mxu0
  %v6259 = vpop.f32.mrb[0].mxu0
  %6260 = vdwg.mxu0
  %v6261 = vpack.c.bf16 %v6235, %v6232
  %v6262 = vpack.c.bf16 %v6243, %v6240
  %v6263 = vpack.c.bf16 %v6251, %v6248
  %v6264 = vpack.c.bf16 %v6256, %v6256
  %s6265 = scalar_lea.vmem %s7, 160
  %v6266 = vld [vmem:[%s6265] sm:$0xf]
  %v6267 = vld [vmem:[%s6265 + $0x4] sm:$0xf]
  %v6268 = vld [vmem:[%s6265 + $0x8] sm:$0xf]
  %v6269 = vld [vmem:[%s6265 + $0xc] sm:$0xf]
  %v6270 = vld [vmem:[%s6265 + $0x10] sm:$0xf]
  %v6271 = vld [vmem:[%s6265 + $0x14] sm:$0xf]
  %v6272 = vld [vmem:[%s6265 + $0x18] sm:$0xf]
  %v6273 = vld [vmem:[%s6265 + $0x1c] sm:$0xf]
  %v6282 = vunpack.c.l.b16 %v6266
  %v6283 = vunpack.c.l.b16 %v6267
  %v6284 = vunpack.c.l.b16 %v6268
  %v6285 = vunpack.c.l.b16 %v6269
  %v6286 = vunpack.c.l.b16 %v6270
  %v6287 = vunpack.c.l.b16 %v6271
  %v6288 = vunpack.c.l.b16 %v6272
  %v6289 = vunpack.c.l.b16 %v6273
  %v6290 = vpack.c.b16 %v6283, %v6282
  %v6291 = vpack.c.b16 %v6285, %v6284
  %v6292 = vpack.c.b16 %v6287, %v6286
  %v6293 = vpack.c.b16 %v6289, %v6288
  %v6299 = vsel %vm5316, %v6261, 0
  %v6302 = vsel %vm5316, %v6262, 0
  %v6305 = vsel %vm5316, %v6263, 0
  %v6308 = vsel %vm5316, %v6264, 0
  %6310 = vmatprep.subr.bf16.mxu0 0
  %6311 = vmatpush1.bf16.msra.mxu0 %v6290
  %6312 = vmatprep.subr.bf16.mxu0 0
  %6313 = vmatpush1.bf16.msra.mxu0 %v6291
  %6314 = vmatprep.subr.bf16.mxu0 0
  %6315 = vmatpush1.bf16.msra.mxu0 %v6292
  %6316 = vmatprep.subr.bf16.mxu0 0
  %6317 = vmatpush1.bf16.msra.mxu0 %v6293
  %6318 = vmatprep.subr.bf16.mxu0 0
  %6319 = vmatpush1.bf16.msra.mxu0 0
  %6320 = vmatprep.subr.bf16.mxu0 0
  %6321 = vmatpush1.bf16.msra.mxu0 0
  %6322 = vmatprep.subr.bf16.mxu0 0
  %6323 = vmatpush1.bf16.msra.mxu0 0
  %6324 = vmatprep.subr.bf16.mxu0 0
  %6325 = vmatpush1.bf16.msra.mxu0 0
  %6326 = vmatprep.subr.bf16.mxu0 0
  %6327 = vmatpush1.bf16.msra.mxu0 0
  %6328 = vmatprep.subr.bf16.mxu0 0
  %6329 = vmatpush1.bf16.msra.mxu0 0
  %6330 = vmatprep.subr.bf16.mxu0 0
  %6331 = vmatpush1.bf16.msra.mxu0 0
  %6332 = vmatprep.subr.bf16.mxu0 0
  %6333 = vmatpush1.bf16.msra.mxu0 0
  %6334 = vmatprep.subr.bf16.mxu0 0
  %6335 = vmatpush1.bf16.msra.mxu0 0
  %6336 = vmatprep.subr.bf16.mxu0 0
  %6337 = vmatpush1.bf16.msra.mxu0 0
  %6338 = vmatprep.subr.bf16.mxu0 0
  %6339 = vmatpush1.bf16.msra.mxu0 0
  %6340 = vmatprep.subr.bf16.mxu0 0
  %6341 = vmatpush1.bf16.msra.mxu0 0
  %6342 = vmatprep.mubr.bf16.mxu0 0
  %6343 = vmatmul.mubr.bf16.gmra.mrb[0].mxu0 %v6299
  %v6344 = vpop.f32.mrb[0].mxu0
  %v6345 = vadd.f32 0.0, %v6344
  %v6346 = vpop.f32.mrb[0].mxu0
  %v6347 = vpop.f32.mrb[0].mxu0
  %v6348 = vadd.f32 0.0, %v6347
  %v6349 = vpop.f32.mrb[0].mxu0
  %6350 = vmatprep.mubr.bf16.mxu0 0
  %6351 = vmatmul.mubr.bf16.gmra.mrb[0].mxu0 %v6302
  %v6352 = vpop.f32.mrb[0].mxu0
  %v6353 = vadd.f32 0.0, %v6352
  %v6354 = vpop.f32.mrb[0].mxu0
  %v6355 = vpop.f32.mrb[0].mxu0
  %v6356 = vadd.f32 0.0, %v6355
  %v6357 = vpop.f32.mrb[0].mxu0
  %6358 = vmatprep.mubr.bf16.mxu0 0
  %6359 = vmatmul.mubr.bf16.gmra.mrb[0].mxu0 %v6305
  %v6360 = vpop.f32.mrb[0].mxu0
  %v6361 = vadd.f32 0.0, %v6360
  %v6362 = vpop.f32.mrb[0].mxu0
  %v6363 = vpop.f32.mrb[0].mxu0
  %v6364 = vadd.f32 0.0, %v6363
  %v6365 = vpop.f32.mrb[0].mxu0
  %6366 = vmatprep.mubr.bf16.mxu0 0
  %6367 = vmatmul.mubr.bf16.gmra.mrb[0].mxu0 %v6308
  %v6368 = vpop.f32.mrb[0].mxu0
  %v6369 = vadd.f32 0.0, %v6368
  %v6370 = vpop.f32.mrb[0].mxu0
  %v6371 = vpop.f32.mrb[0].mxu0
  %v6372 = vpop.f32.mrb[0].mxu0
  %6373 = vdwg.mxu0
  %v6374 = vadd.f32 %v6152, %v6345
  %v6375 = vadd.f32 %v6153, %v6348
  %v6376 = vadd.f32 %v6154, %v6353
  %v6377 = vadd.f32 %v6155, %v6356
  %v6378 = vadd.f32 %v6156, %v6361
  %v6379 = vadd.f32 %v6157, %v6364
  %v6380 = vadd.f32 %v6158, %v6369
  %s6381 = scalar_lea.vmem %s6, 168
  %v6382 = vld [vmem:[%s6381] sm:$0xf]
  %v6383 = vld [vmem:[%s6381 + $0x4] sm:$0xf]
  %v6384 = vld [vmem:[%s6381 + $0x8] sm:$0xf]
  %v6385 = vld [vmem:[%s6381 + $0xc] sm:$0xf]
  %v6386 = vld [vmem:[%s6381 + $0x10] sm:$0xf]
  %v6387 = vld [vmem:[%s6381 + $0x14] sm:$0xf]
  %v6388 = vld [vmem:[%s6381 + $0x18] sm:$0x1]
  %v6396 = vunpack.c.l.b16 %v6382
  %v6397 = vunpack.c.l.b16 %v6383
  %v6398 = vunpack.c.l.b16 %v6384
  %v6399 = vunpack.c.l.b16 %v6385
  %v6400 = vunpack.c.l.b16 %v6386
  %v6401 = vunpack.c.l.b16 %v6387
  %v6402 = vunpack.c.l.b16 %v6388
  %v6403 = vpack.c.b16 %v6397, %v6396
  %v6404 = vpack.c.b16 %v6399, %v6398
  %v6405 = vpack.c.b16 %v6401, %v6400
  %v6406 = vpack.c.b16 %v6402, %v6402
  %v6408 = vsel %vm5084, %v6403, 0
  %v6411 = vsel %vm5084, %v6404, 0
  %v6414 = vsel %vm5084, %v6405, 0
  %v6417 = vsel %vm5084, %v6406, 0
  %6419 = vmatprep.subr.bf16.mxu0 0
  %6420 = vmatpush1.bf16.msra.mxu0 %v5055
  %6421 = vmatprep.subr.bf16.mxu0 0
  %6422 = vmatpush1.bf16.msra.mxu0 %v5056
  %6423 = vmatprep.subr.bf16.mxu0 0
  %6424 = vmatpush1.bf16.msra.mxu0 %v5057
  %6425 = vmatprep.subr.bf16.mxu0 0
  %6426 = vmatpush1.bf16.msra.mxu0 %v5099
  %6427 = vmatprep.subr.bf16.mxu0 0
  %6428 = vmatpush1.bf16.msra.mxu0 0
  %6429 = vmatprep.subr.bf16.mxu0 0
  %6430 = vmatpush1.bf16.msra.mxu0 0
  %6431 = vmatprep.subr.bf16.mxu0 0
  %6432 = vmatpush1.bf16.msra.mxu0 0
  %6433 = vmatprep.subr.bf16.mxu0 0
  %6434 = vmatpush1.bf16.msra.mxu0 0
  %6435 = vmatprep.subr.bf16.mxu0 0
  %6436 = vmatpush1.bf16.msra.mxu0 0
  %6437 = vmatprep.subr.bf16.mxu0 0
  %6438 = vmatpush1.bf16.msra.mxu0 0
  %6439 = vmatprep.subr.bf16.mxu0 0
  %6440 = vmatpush1.bf16.msra.mxu0 0
  %6441 = vmatprep.subr.bf16.mxu0 0
  %6442 = vmatpush1.bf16.msra.mxu0 0
  %6443 = vmatprep.subr.bf16.mxu0 0
  %6444 = vmatpush1.bf16.msra.mxu0 0
  %6445 = vmatprep.subr.bf16.mxu0 0
  %6446 = vmatpush1.bf16.msra.mxu0 0
  %6447 = vmatprep.subr.bf16.mxu0 0
  %6448 = vmatpush1.bf16.msra.mxu0 0
  %6449 = vmatprep.subr.bf16.mxu0 0
  %6450 = vmatpush1.bf16.msra.mxu0 0
  %6451 = vmatprep.mubr.bf16.mxu0 0
  %6452 = vmatmul.mubr.bf16.gmra.mrb[0].mxu0 %v6408
  %v6453 = vpop.f32.mrb[0].mxu0
  %v6454 = vadd.f32 0.0, %v6453
  %v6455 = vpop.f32.mrb[0].mxu0
  %v6456 = vpop.f32.mrb[0].mxu0
  %v6457 = vadd.f32 0.0, %v6456
  %v6458 = vpop.f32.mrb[0].mxu0
  %6459 = vmatprep.mubr.bf16.mxu0 0
  %6460 = vmatmul.mubr.bf16.gmra.mrb[0].mxu0 %v6411
  %v6461 = vpop.f32.mrb[0].mxu0
  %v6462 = vadd.f32 0.0, %v6461
  %v6463 = vpop.f32.mrb[0].mxu0
  %v6464 = vpop.f32.mrb[0].mxu0
  %v6465 = vadd.f32 0.0, %v6464
  %v6466 = vpop.f32.mrb[0].mxu0
  %6467 = vmatprep.mubr.bf16.mxu0 0
  %6468 = vmatmul.mubr.bf16.gmra.mrb[0].mxu0 %v6414
  %v6469 = vpop.f32.mrb[0].mxu0
  %v6470 = vadd.f32 0.0, %v6469
  %v6471 = vpop.f32.mrb[0].mxu0
  %v6472 = vpop.f32.mrb[0].mxu0
  %v6473 = vadd.f32 0.0, %v6472
  %v6474 = vpop.f32.mrb[0].mxu0
  %6475 = vmatprep.mubr.bf16.mxu0 0
  %6476 = vmatmul.mubr.bf16.gmra.mrb[0].mxu0 %v6417
  %v6477 = vpop.f32.mrb[0].mxu0
  %v6478 = vadd.f32 0.0, %v6477
  %v6479 = vpop.f32.mrb[0].mxu0
  %v6480 = vpop.f32.mrb[0].mxu0
  %v6481 = vpop.f32.mrb[0].mxu0
  %6482 = vdwg.mxu0
  %v6483 = vpack.c.bf16 %v6457, %v6454
  %v6484 = vpack.c.bf16 %v6465, %v6462
  %v6485 = vpack.c.bf16 %v6473, %v6470
  %v6486 = vpack.c.bf16 %v6478, %v6478
  %s6487 = scalar_lea.vmem %s7, 192
  %v6488 = vld [vmem:[%s6487] sm:$0xf]
  %v6489 = vld [vmem:[%s6487 + $0x4] sm:$0xf]
  %v6490 = vld [vmem:[%s6487 + $0x8] sm:$0xf]
  %v6491 = vld [vmem:[%s6487 + $0xc] sm:$0xf]
  %v6492 = vld [vmem:[%s6487 + $0x10] sm:$0xf]
  %v6493 = vld [vmem:[%s6487 + $0x14] sm:$0xf]
  %v6494 = vld [vmem:[%s6487 + $0x18] sm:$0xf]
  %v6495 = vld [vmem:[%s6487 + $0x1c] sm:$0xf]
  %v6504 = vunpack.c.l.b16 %v6488
  %v6505 = vunpack.c.l.b16 %v6489
  %v6506 = vunpack.c.l.b16 %v6490
  %v6507 = vunpack.c.l.b16 %v6491
  %v6508 = vunpack.c.l.b16 %v6492
  %v6509 = vunpack.c.l.b16 %v6493
  %v6510 = vunpack.c.l.b16 %v6494
  %v6511 = vunpack.c.l.b16 %v6495
  %v6512 = vpack.c.b16 %v6505, %v6504
  %v6513 = vpack.c.b16 %v6507, %v6506
  %v6514 = vpack.c.b16 %v6509, %v6508
  %v6515 = vpack.c.b16 %v6511, %v6510
  %v6521 = vsel %vm5316, %v6483, 0
  %v6524 = vsel %vm5316, %v6484, 0
  %v6527 = vsel %vm5316, %v6485, 0
  %v6530 = vsel %vm5316, %v6486, 0
  %6532 = vmatprep.subr.bf16.mxu0 0
  %6533 = vmatpush1.bf16.msra.mxu0 %v6512
  %6534 = vmatprep.subr.bf16.mxu0 0
  %6535 = vmatpush1.bf16.msra.mxu0 %v6513
  %6536 = vmatprep.subr.bf16.mxu0 0
  %6537 = vmatpush1.bf16.msra.mxu0 %v6514
  %6538 = vmatprep.subr.bf16.mxu0 0
  %6539 = vmatpush1.bf16.msra.mxu0 %v6515
  %6540 = vmatprep.subr.bf16.mxu0 0
  %6541 = vmatpush1.bf16.msra.mxu0 0
  %6542 = vmatprep.subr.bf16.mxu0 0
  %6543 = vmatpush1.bf16.msra.mxu0 0
  %6544 = vmatprep.subr.bf16.mxu0 0
  %6545 = vmatpush1.bf16.msra.mxu0 0
  %6546 = vmatprep.subr.bf16.mxu0 0
  %6547 = vmatpush1.bf16.msra.mxu0 0
  %6548 = vmatprep.subr.bf16.mxu0 0
  %6549 = vmatpush1.bf16.msra.mxu0 0
  %6550 = vmatprep.subr.bf16.mxu0 0
  %6551 = vmatpush1.bf16.msra.mxu0 0
  %6552 = vmatprep.subr.bf16.mxu0 0
  %6553 = vmatpush1.bf16.msra.mxu0 0
  %6554 = vmatprep.subr.bf16.mxu0 0
  %6555 = vmatpush1.bf16.msra.mxu0 0
  %6556 = vmatprep.subr.bf16.mxu0 0
  %6557 = vmatpush1.bf16.msra.mxu0 0
  %6558 = vmatprep.subr.bf16.mxu0 0
  %6559 = vmatpush1.bf16.msra.mxu0 0
  %6560 = vmatprep.subr.bf16.mxu0 0
  %6561 = vmatpush1.bf16.msra.mxu0 0
  %6562 = vmatprep.subr.bf16.mxu0 0
  %6563 = vmatpush1.bf16.msra.mxu0 0
  %6564 = vmatprep.mubr.bf16.mxu0 0
  %6565 = vmatmul.mubr.bf16.gmra.mrb[0].mxu0 %v6521
  %v6566 = vpop.f32.mrb[0].mxu0
  %v6567 = vadd.f32 0.0, %v6566
  %v6568 = vpop.f32.mrb[0].mxu0
  %v6569 = vpop.f32.mrb[0].mxu0
  %v6570 = vadd.f32 0.0, %v6569
  %v6571 = vpop.f32.mrb[0].mxu0
  %6572 = vmatprep.mubr.bf16.mxu0 0
  %6573 = vmatmul.mubr.bf16.gmra.mrb[0].mxu0 %v6524
  %v6574 = vpop.f32.mrb[0].mxu0
  %v6575 = vadd.f32 0.0, %v6574
  %v6576 = vpop.f32.mrb[0].mxu0
  %v6577 = vpop.f32.mrb[0].mxu0
  %v6578 = vadd.f32 0.0, %v6577
  %v6579 = vpop.f32.mrb[0].mxu0
  %6580 = vmatprep.mubr.bf16.mxu0 0
  %6581 = vmatmul.mubr.bf16.gmra.mrb[0].mxu0 %v6527
  %v6582 = vpop.f32.mrb[0].mxu0
  %v6583 = vadd.f32 0.0, %v6582
  %v6584 = vpop.f32.mrb[0].mxu0
  %v6585 = vpop.f32.mrb[0].mxu0
  %v6586 = vadd.f32 0.0, %v6585
  %v6587 = vpop.f32.mrb[0].mxu0
  %6588 = vmatprep.mubr.bf16.mxu0 0
  %6589 = vmatmul.mubr.bf16.gmra.mrb[0].mxu0 %v6530
  %v6590 = vpop.f32.mrb[0].mxu0
  %v6591 = vadd.f32 0.0, %v6590
  %v6592 = vpop.f32.mrb[0].mxu0
  %v6593 = vpop.f32.mrb[0].mxu0
  %v6594 = vpop.f32.mrb[0].mxu0
  %6595 = vdwg.mxu0
  %v6596 = vadd.f32 %v6374, %v6567
  %v6597 = vadd.f32 %v6375, %v6570
  %v6598 = vadd.f32 %v6376, %v6575
  %v6599 = vadd.f32 %v6377, %v6578
  %v6600 = vadd.f32 %v6378, %v6583
  %v6601 = vadd.f32 %v6379, %v6586
  %v6602 = vadd.f32 %v6380, %v6591
  %s6603 = scalar_lea.vmem %s6, 196
  %v6604 = vld [vmem:[%s6603] sm:$0xf]
  %v6605 = vld [vmem:[%s6603 + $0x4] sm:$0xf]
  %v6606 = vld [vmem:[%s6603 + $0x8] sm:$0xf]
  %v6607 = vld [vmem:[%s6603 + $0xc] sm:$0xf]
  %v6608 = vld [vmem:[%s6603 + $0x10] sm:$0xf]
  %v6609 = vld [vmem:[%s6603 + $0x14] sm:$0xf]
  %v6610 = vld [vmem:[%s6603 + $0x18] sm:$0x1]
  %v6618 = vunpack.c.l.b16 %v6604
  %v6619 = vunpack.c.l.b16 %v6605
  %v6620 = vunpack.c.l.b16 %v6606
  %v6621 = vunpack.c.l.b16 %v6607
  %v6622 = vunpack.c.l.b16 %v6608
  %v6623 = vunpack.c.l.b16 %v6609
  %v6624 = vunpack.c.l.b16 %v6610
  %v6625 = vpack.c.b16 %v6619, %v6618
  %v6626 = vpack.c.b16 %v6621, %v6620
  %v6627 = vpack.c.b16 %v6623, %v6622
  %v6628 = vpack.c.b16 %v6624, %v6624
  %v6630 = vsel %vm5084, %v6625, 0
  %v6633 = vsel %vm5084, %v6626, 0
  %v6636 = vsel %vm5084, %v6627, 0
  %v6639 = vsel %vm5084, %v6628, 0
  %6641 = vmatprep.subr.bf16.mxu0 0
  %6642 = vmatpush1.bf16.msra.mxu0 %v5055
  %6643 = vmatprep.subr.bf16.mxu0 0
  %6644 = vmatpush1.bf16.msra.mxu0 %v5056
  %6645 = vmatprep.subr.bf16.mxu0 0
  %6646 = vmatpush1.bf16.msra.mxu0 %v5057
  %6647 = vmatprep.subr.bf16.mxu0 0
  %6648 = vmatpush1.bf16.msra.mxu0 %v5099
  %6649 = vmatprep.subr.bf16.mxu0 0
  %6650 = vmatpush1.bf16.msra.mxu0 0
  %6651 = vmatprep.subr.bf16.mxu0 0
  %6652 = vmatpush1.bf16.msra.mxu0 0
  %6653 = vmatprep.subr.bf16.mxu0 0
  %6654 = vmatpush1.bf16.msra.mxu0 0
  %6655 = vmatprep.subr.bf16.mxu0 0
  %6656 = vmatpush1.bf16.msra.mxu0 0
  %6657 = vmatprep.subr.bf16.mxu0 0
  %6658 = vmatpush1.bf16.msra.mxu0 0
  %6659 = vmatprep.subr.bf16.mxu0 0
  %6660 = vmatpush1.bf16.msra.mxu0 0
  %6661 = vmatprep.subr.bf16.mxu0 0
  %6662 = vmatpush1.bf16.msra.mxu0 0
  %6663 = vmatprep.subr.bf16.mxu0 0
  %6664 = vmatpush1.bf16.msra.mxu0 0
  %6665 = vmatprep.subr.bf16.mxu0 0
  %6666 = vmatpush1.bf16.msra.mxu0 0
  %6667 = vmatprep.subr.bf16.mxu0 0
  %6668 = vmatpush1.bf16.msra.mxu0 0
  %6669 = vmatprep.subr.bf16.mxu0 0
  %6670 = vmatpush1.bf16.msra.mxu0 0
  %6671 = vmatprep.subr.bf16.mxu0 0
  %6672 = vmatpush1.bf16.msra.mxu0 0
  %6673 = vmatprep.mubr.bf16.mxu0 0
  %6674 = vmatmul.mubr.bf16.gmra.mrb[0].mxu0 %v6630
  %v6675 = vpop.f32.mrb[0].mxu0
  %v6676 = vadd.f32 0.0, %v6675
  %v6677 = vpop.f32.mrb[0].mxu0
  %v6678 = vpop.f32.mrb[0].mxu0
  %v6679 = vadd.f32 0.0, %v6678
  %v6680 = vpop.f32.mrb[0].mxu0
  %6681 = vmatprep.mubr.bf16.mxu0 0
  %6682 = vmatmul.mubr.bf16.gmra.mrb[0].mxu0 %v6633
  %v6683 = vpop.f32.mrb[0].mxu0
  %v6684 = vadd.f32 0.0, %v6683
  %v6685 = vpop.f32.mrb[0].mxu0
  %v6686 = vpop.f32.mrb[0].mxu0
  %v6687 = vadd.f32 0.0, %v6686
  %v6688 = vpop.f32.mrb[0].mxu0
  %6689 = vmatprep.mubr.bf16.mxu0 0
  %6690 = vmatmul.mubr.bf16.gmra.mrb[0].mxu0 %v6636
  %v6691 = vpop.f32.mrb[0].mxu0
  %v6692 = vadd.f32 0.0, %v6691
  %v6693 = vpop.f32.mrb[0].mxu0
  %v6694 = vpop.f32.mrb[0].mxu0
  %v6695 = vadd.f32 0.0, %v6694
  %v6696 = vpop.f32.mrb[0].mxu0
  %6697 = vmatprep.mubr.bf16.mxu0 0
  %6698 = vmatmul.mubr.bf16.gmra.mrb[0].mxu0 %v6639
  %v6699 = vpop.f32.mrb[0].mxu0
  %v6700 = vadd.f32 0.0, %v6699
  %v6701 = vpop.f32.mrb[0].mxu0
  %v6702 = vpop.f32.mrb[0].mxu0
  %v6703 = vpop.f32.mrb[0].mxu0
  %6704 = vdwg.mxu0
  %v6705 = vpack.c.bf16 %v6679, %v6676
  %v6706 = vpack.c.bf16 %v6687, %v6684
  %v6707 = vpack.c.bf16 %v6695, %v6692
  %v6708 = vpack.c.bf16 %v6700, %v6700
  %s6709 = scalar_lea.vmem %s7, 224
  %v6710 = vld [vmem:[%s6709] sm:$0xf]
  %v6711 = vld [vmem:[%s6709 + $0x4] sm:$0xf]
  %v6712 = vld [vmem:[%s6709 + $0x8] sm:$0xf]
  %v6713 = vld [vmem:[%s6709 + $0xc] sm:$0xf]
  %v6714 = vld [vmem:[%s6709 + $0x10] sm:$0xf]
  %v6715 = vld [vmem:[%s6709 + $0x14] sm:$0xf]
  %v6716 = vld [vmem:[%s6709 + $0x18] sm:$0xf]
  %v6717 = vld [vmem:[%s6709 + $0x1c] sm:$0xf]
  %v6726 = vunpack.c.l.b16 %v6710
  %v6727 = vunpack.c.l.b16 %v6711
  %v6728 = vunpack.c.l.b16 %v6712
  %v6729 = vunpack.c.l.b16 %v6713
  %v6730 = vunpack.c.l.b16 %v6714
  %v6731 = vunpack.c.l.b16 %v6715
  %v6732 = vunpack.c.l.b16 %v6716
  %v6733 = vunpack.c.l.b16 %v6717
  %v6734 = vpack.c.b16 %v6727, %v6726
  %v6735 = vpack.c.b16 %v6729, %v6728
  %v6736 = vpack.c.b16 %v6731, %v6730
  %v6737 = vpack.c.b16 %v6733, %v6732
  %v6743 = vsel %vm5316, %v6705, 0
  %v6746 = vsel %vm5316, %v6706, 0
  %v6749 = vsel %vm5316, %v6707, 0
  %v6752 = vsel %vm5316, %v6708, 0
  %6754 = vmatprep.subr.bf16.mxu0 0
  %6755 = vmatpush1.bf16.msra.mxu0 %v6734
  %6756 = vmatprep.subr.bf16.mxu0 0
  %6757 = vmatpush1.bf16.msra.mxu0 %v6735
  %6758 = vmatprep.subr.bf16.mxu0 0
  %6759 = vmatpush1.bf16.msra.mxu0 %v6736
  %6760 = vmatprep.subr.bf16.mxu0 0
  %6761 = vmatpush1.bf16.msra.mxu0 %v6737
  %6762 = vmatprep.subr.bf16.mxu0 0
  %6763 = vmatpush1.bf16.msra.mxu0 0
  %6764 = vmatprep.subr.bf16.mxu0 0
  %6765 = vmatpush1.bf16.msra.mxu0 0
  %6766 = vmatprep.subr.bf16.mxu0 0
  %6767 = vmatpush1.bf16.msra.mxu0 0
  %6768 = vmatprep.subr.bf16.mxu0 0
  %6769 = vmatpush1.bf16.msra.mxu0 0
  %6770 = vmatprep.subr.bf16.mxu0 0
  %6771 = vmatpush1.bf16.msra.mxu0 0
  %6772 = vmatprep.subr.bf16.mxu0 0
  %6773 = vmatpush1.bf16.msra.mxu0 0
  %6774 = vmatprep.subr.bf16.mxu0 0
  %6775 = vmatpush1.bf16.msra.mxu0 0
  %6776 = vmatprep.subr.bf16.mxu0 0
  %6777 = vmatpush1.bf16.msra.mxu0 0
  %6778 = vmatprep.subr.bf16.mxu0 0
  %6779 = vmatpush1.bf16.msra.mxu0 0
  %6780 = vmatprep.subr.bf16.mxu0 0
  %6781 = vmatpush1.bf16.msra.mxu0 0
  %6782 = vmatprep.subr.bf16.mxu0 0
  %6783 = vmatpush1.bf16.msra.mxu0 0
  %6784 = vmatprep.subr.bf16.mxu0 0
  %6785 = vmatpush1.bf16.msra.mxu0 0
  %6786 = vmatprep.mubr.bf16.mxu0 0
  %6787 = vmatmul.mubr.bf16.gmra.mrb[0].mxu0 %v6743
  %v6788 = vpop.f32.mrb[0].mxu0
  %v6789 = vadd.f32 0.0, %v6788
  %v6790 = vpop.f32.mrb[0].mxu0
  %v6791 = vpop.f32.mrb[0].mxu0
  %v6792 = vadd.f32 0.0, %v6791
  %v6793 = vpop.f32.mrb[0].mxu0
  %6794 = vmatprep.mubr.bf16.mxu0 0
  %6795 = vmatmul.mubr.bf16.gmra.mrb[0].mxu0 %v6746
  %v6796 = vpop.f32.mrb[0].mxu0
  %v6797 = vadd.f32 0.0, %v6796
  %v6798 = vpop.f32.mrb[0].mxu0
  %v6799 = vpop.f32.mrb[0].mxu0
  %v6800 = vadd.f32 0.0, %v6799
  %v6801 = vpop.f32.mrb[0].mxu0
  %6802 = vmatprep.mubr.bf16.mxu0 0
  %6803 = vmatmul.mubr.bf16.gmra.mrb[0].mxu0 %v6749
  %v6804 = vpop.f32.mrb[0].mxu0
  %v6805 = vadd.f32 0.0, %v6804
  %v6806 = vpop.f32.mrb[0].mxu0
  %v6807 = vpop.f32.mrb[0].mxu0
  %v6808 = vadd.f32 0.0, %v6807
  %v6809 = vpop.f32.mrb[0].mxu0
  %6810 = vmatprep.mubr.bf16.mxu0 0
  %6811 = vmatmul.mubr.bf16.gmra.mrb[0].mxu0 %v6752
  %v6812 = vpop.f32.mrb[0].mxu0
  %v6813 = vadd.f32 0.0, %v6812
  %v6814 = vpop.f32.mrb[0].mxu0
  %v6815 = vpop.f32.mrb[0].mxu0
  %v6816 = vpop.f32.mrb[0].mxu0
  %6817 = vdwg.mxu0
  %v6818 = vadd.f32 %v6596, %v6789
  %v6819 = vadd.f32 %v6597, %v6792
  %v6820 = vadd.f32 %v6598, %v6797
  %v6821 = vadd.f32 %v6599, %v6800
  %v6822 = vadd.f32 %v6600, %v6805
  %v6823 = vadd.f32 %v6601, %v6808
  %v6824 = vadd.f32 %v6602, %v6813
  %s6825 = scalar_lea.vmem %s6, 224
  %v6826 = vld [vmem:[%s6825] sm:$0xf]
  %v6827 = vld [vmem:[%s6825 + $0x4] sm:$0xf]
  %v6828 = vld [vmem:[%s6825 + $0x8] sm:$0xf]
  %v6829 = vld [vmem:[%s6825 + $0xc] sm:$0xf]
  %v6830 = vld [vmem:[%s6825 + $0x10] sm:$0xf]
  %v6831 = vld [vmem:[%s6825 + $0x14] sm:$0xf]
  %v6832 = vld [vmem:[%s6825 + $0x18] sm:$0x1]
  %v6840 = vunpack.c.l.b16 %v6826
  %v6841 = vunpack.c.l.b16 %v6827
  %v6842 = vunpack.c.l.b16 %v6828
  %v6843 = vunpack.c.l.b16 %v6829
  %v6844 = vunpack.c.l.b16 %v6830
  %v6845 = vunpack.c.l.b16 %v6831
  %v6846 = vunpack.c.l.b16 %v6832
  %v6847 = vpack.c.b16 %v6841, %v6840
  %v6848 = vpack.c.b16 %v6843, %v6842
  %v6849 = vpack.c.b16 %v6845, %v6844
  %v6850 = vpack.c.b16 %v6846, %v6846
  %v6852 = vsel %vm5084, %v6847, 0
  %v6855 = vsel %vm5084, %v6848, 0
  %v6858 = vsel %vm5084, %v6849, 0
  %v6861 = vsel %vm5084, %v6850, 0
  %6863 = vmatprep.subr.bf16.mxu0 0
  %6864 = vmatpush1.bf16.msra.mxu0 %v5055
  %6865 = vmatprep.subr.bf16.mxu0 0
  %6866 = vmatpush1.bf16.msra.mxu0 %v5056
  %6867 = vmatprep.subr.bf16.mxu0 0
  %6868 = vmatpush1.bf16.msra.mxu0 %v5057
  %6869 = vmatprep.subr.bf16.mxu0 0
  %6870 = vmatpush1.bf16.msra.mxu0 %v5099
  %6871 = vmatprep.subr.bf16.mxu0 0
  %6872 = vmatpush1.bf16.msra.mxu0 0
  %6873 = vmatprep.subr.bf16.mxu0 0
  %6874 = vmatpush1.bf16.msra.mxu0 0
  %6875 = vmatprep.subr.bf16.mxu0 0
  %6876 = vmatpush1.bf16.msra.mxu0 0
  %6877 = vmatprep.subr.bf16.mxu0 0
  %6878 = vmatpush1.bf16.msra.mxu0 0
  %6879 = vmatprep.subr.bf16.mxu0 0
  %6880 = vmatpush1.bf16.msra.mxu0 0
  %6881 = vmatprep.subr.bf16.mxu0 0
  %6882 = vmatpush1.bf16.msra.mxu0 0
  %6883 = vmatprep.subr.bf16.mxu0 0
  %6884 = vmatpush1.bf16.msra.mxu0 0
  %6885 = vmatprep.subr.bf16.mxu0 0
  %6886 = vmatpush1.bf16.msra.mxu0 0
  %6887 = vmatprep.subr.bf16.mxu0 0
  %6888 = vmatpush1.bf16.msra.mxu0 0
  %6889 = vmatprep.subr.bf16.mxu0 0
  %6890 = vmatpush1.bf16.msra.mxu0 0
  %6891 = vmatprep.subr.bf16.mxu0 0
  %6892 = vmatpush1.bf16.msra.mxu0 0
  %6893 = vmatprep.subr.bf16.mxu0 0
  %6894 = vmatpush1.bf16.msra.mxu0 0
  %6895 = vmatprep.mubr.bf16.mxu0 0
  %6896 = vmatmul.mubr.bf16.gmra.mrb[0].mxu0 %v6852
  %v6897 = vpop.f32.mrb[0].mxu0
  %v6898 = vadd.f32 0.0, %v6897
  %v6899 = vpop.f32.mrb[0].mxu0
  %v6900 = vpop.f32.mrb[0].mxu0
  %v6901 = vadd.f32 0.0, %v6900
  %v6902 = vpop.f32.mrb[0].mxu0
  %6903 = vmatprep.mubr.bf16.mxu0 0
  %6904 = vmatmul.mubr.bf16.gmra.mrb[0].mxu0 %v6855
  %v6905 = vpop.f32.mrb[0].mxu0
  %v6906 = vadd.f32 0.0, %v6905
  %v6907 = vpop.f32.mrb[0].mxu0
  %v6908 = vpop.f32.mrb[0].mxu0
  %v6909 = vadd.f32 0.0, %v6908
  %v6910 = vpop.f32.mrb[0].mxu0
  %6911 = vmatprep.mubr.bf16.mxu0 0
  %6912 = vmatmul.mubr.bf16.gmra.mrb[0].mxu0 %v6858
  %v6913 = vpop.f32.mrb[0].mxu0
  %v6914 = vadd.f32 0.0, %v6913
  %v6915 = vpop.f32.mrb[0].mxu0
  %v6916 = vpop.f32.mrb[0].mxu0
  %v6917 = vadd.f32 0.0, %v6916
  %v6918 = vpop.f32.mrb[0].mxu0
  %6919 = vmatprep.mubr.bf16.mxu0 0
  %6920 = vmatmul.mubr.bf16.gmra.mrb[0].mxu0 %v6861
  %v6921 = vpop.f32.mrb[0].mxu0
  %v6922 = vadd.f32 0.0, %v6921
  %v6923 = vpop.f32.mrb[0].mxu0
  %v6924 = vpop.f32.mrb[0].mxu0
  %v6925 = vpop.f32.mrb[0].mxu0
  %6926 = vdwg.mxu0
  %v6927 = vpack.c.bf16 %v6901, %v6898
  %v6928 = vpack.c.bf16 %v6909, %v6906
  %v6929 = vpack.c.bf16 %v6917, %v6914
  %v6930 = vpack.c.bf16 %v6922, %v6922
  %s6931 = scalar_lea.vmem %s7, 256
  %v6932 = vld [vmem:[%s6931] sm:$0xf]
  %v6933 = vld [vmem:[%s6931 + $0x4] sm:$0xf]
  %v6934 = vld [vmem:[%s6931 + $0x8] sm:$0xf]
  %v6935 = vld [vmem:[%s6931 + $0xc] sm:$0xf]
  %v6936 = vld [vmem:[%s6931 + $0x10] sm:$0xf]
  %v6937 = vld [vmem:[%s6931 + $0x14] sm:$0xf]
  %v6938 = vld [vmem:[%s6931 + $0x18] sm:$0xf]
  %v6939 = vld [vmem:[%s6931 + $0x1c] sm:$0xf]
  %v6948 = vunpack.c.l.b16 %v6932
  %v6949 = vunpack.c.l.b16 %v6933
  %v6950 = vunpack.c.l.b16 %v6934
  %v6951 = vunpack.c.l.b16 %v6935
  %v6952 = vunpack.c.l.b16 %v6936
  %v6953 = vunpack.c.l.b16 %v6937
  %v6954 = vunpack.c.l.b16 %v6938
  %v6955 = vunpack.c.l.b16 %v6939
  %v6956 = vpack.c.b16 %v6949, %v6948
  %v6957 = vpack.c.b16 %v6951, %v6950
  %v6958 = vpack.c.b16 %v6953, %v6952
  %v6959 = vpack.c.b16 %v6955, %v6954
  %v6965 = vsel %vm5316, %v6927, 0
  %v6968 = vsel %vm5316, %v6928, 0
  %v6971 = vsel %vm5316, %v6929, 0
  %v6974 = vsel %vm5316, %v6930, 0
  %6976 = vmatprep.subr.bf16.mxu0 0
  %6977 = vmatpush1.bf16.msra.mxu0 %v6956
  %6978 = vmatprep.subr.bf16.mxu0 0
  %6979 = vmatpush1.bf16.msra.mxu0 %v6957
  %6980 = vmatprep.subr.bf16.mxu0 0
  %6981 = vmatpush1.bf16.msra.mxu0 %v6958
  %6982 = vmatprep.subr.bf16.mxu0 0
  %6983 = vmatpush1.bf16.msra.mxu0 %v6959
  %6984 = vmatprep.subr.bf16.mxu0 0
  %6985 = vmatpush1.bf16.msra.mxu0 0
  %6986 = vmatprep.subr.bf16.mxu0 0
  %6987 = vmatpush1.bf16.msra.mxu0 0
  %6988 = vmatprep.subr.bf16.mxu0 0
  %6989 = vmatpush1.bf16.msra.mxu0 0
  %6990 = vmatprep.subr.bf16.mxu0 0
  %6991 = vmatpush1.bf16.msra.mxu0 0
  %6992 = vmatprep.subr.bf16.mxu0 0
  %6993 = vmatpush1.bf16.msra.mxu0 0
  %6994 = vmatprep.subr.bf16.mxu0 0
  %6995 = vmatpush1.bf16.msra.mxu0 0
  %6996 = vmatprep.subr.bf16.mxu0 0
  %6997 = vmatpush1.bf16.msra.mxu0 0
  %6998 = vmatprep.subr.bf16.mxu0 0
  %6999 = vmatpush1.bf16.msra.mxu0 0
  %7000 = vmatprep.subr.bf16.mxu0 0
  %7001 = vmatpush1.bf16.msra.mxu0 0
  %7002 = vmatprep.subr.bf16.mxu0 0
  %7003 = vmatpush1.bf16.msra.mxu0 0
  %7004 = vmatprep.subr.bf16.mxu0 0
  %7005 = vmatpush1.bf16.msra.mxu0 0
  %7006 = vmatprep.subr.bf16.mxu0 0
  %7007 = vmatpush1.bf16.msra.mxu0 0
  %7008 = vmatprep.mubr.bf16.mxu0 0
  %7009 = vmatmul.mubr.bf16.gmra.mrb[0].mxu0 %v6965
  %v7010 = vpop.f32.mrb[0].mxu0
  %v7011 = vadd.f32 0.0, %v7010
  %v7012 = vpop.f32.mrb[0].mxu0
  %v7013 = vpop.f32.mrb[0].mxu0
  %v7014 = vadd.f32 0.0, %v7013
  %v7015 = vpop.f32.mrb[0].mxu0
  %7016 = vmatprep.mubr.bf16.mxu0 0
  %7017 = vmatmul.mubr.bf16.gmra.mrb[0].mxu0 %v6968
  %v7018 = vpop.f32.mrb[0].mxu0
  %v7019 = vadd.f32 0.0, %v7018
  %v7020 = vpop.f32.mrb[0].mxu0
  %v7021 = vpop.f32.mrb[0].mxu0
  %v7022 = vadd.f32 0.0, %v7021
  %v7023 = vpop.f32.mrb[0].mxu0
  %7024 = vmatprep.mubr.bf16.mxu0 0
  %7025 = vmatmul.mubr.bf16.gmra.mrb[0].mxu0 %v6971
  %v7026 = vpop.f32.mrb[0].mxu0
  %v7027 = vadd.f32 0.0, %v7026
  %v7028 = vpop.f32.mrb[0].mxu0
  %v7029 = vpop.f32.mrb[0].mxu0
  %v7030 = vadd.f32 0.0, %v7029
  %v7031 = vpop.f32.mrb[0].mxu0
  %7032 = vmatprep.mubr.bf16.mxu0 0
  %7033 = vmatmul.mubr.bf16.gmra.mrb[0].mxu0 %v6974
  %v7034 = vpop.f32.mrb[0].mxu0
  %v7035 = vadd.f32 0.0, %v7034
  %v7036 = vpop.f32.mrb[0].mxu0
  %v7037 = vpop.f32.mrb[0].mxu0
  %v7038 = vpop.f32.mrb[0].mxu0
  %7039 = vdwg.mxu0
  %v7040 = vadd.f32 %v6818, %v7011
  %v7041 = vadd.f32 %v6819, %v7014
  %v7042 = vadd.f32 %v6820, %v7019
  %v7043 = vadd.f32 %v6821, %v7022
  %v7044 = vadd.f32 %v6822, %v7027
  %v7045 = vadd.f32 %v6823, %v7030
  %v7046 = vadd.f32 %v6824, %v7035
  %v7047 = vld [vmem:[%s8] sm:$0x1]
  %v7049 = vlaneseq
  %v7050 = vshrl.u32 %v7049, 7
  %v7051 = vsub.s32 0, %v7050
  %v7052 = vrot.slane %v7047, %v7051
  %v7054 = vadd.f32 %v7040, %v7052
  %v7055 = vadd.f32 %v7041, %v7052
  %v7056 = vadd.f32 %v7042, %v7052
  %v7057 = vadd.f32 %v7043, %v7052
  %v7058 = vadd.f32 %v7044, %v7052
  %v7059 = vadd.f32 %v7045, %v7052
  %v7060 = vadd.f32 %v7046, %v7052
  %v7061 = vmax.f32 %v7054, 0.0
  %v7062 = vmax.f32 %v7055, 0.0
  %v7063 = vmax.f32 %v7056, 0.0
  %v7064 = vmax.f32 %v7057, 0.0
  %v7065 = vmax.f32 %v7058, 0.0
  %v7066 = vmax.f32 %v7059, 0.0
  %v7067 = vmax.f32 %v7060, 0.0
  %v7068 = vpack.c.bf16 %v7062, %v7061
  %v7069 = vpack.c.bf16 %v7064, %v7063
  %v7070 = vpack.c.bf16 %v7066, %v7065
  %v7071 = vpack.c.bf16 %v7067, %v7067
  %v7076 = vunpack.c.l.b16 %v7068
  %v7077 = vunpack.c.h.b16 %v7068
  %v7078 = vunpack.c.l.b16 %v7069
  %v7079 = vunpack.c.h.b16 %v7069
  %v7080 = vunpack.c.l.b16 %v7070
  %v7081 = vunpack.c.h.b16 %v7070
  %v7082 = vunpack.c.l.b16 %v7071
  %v7083 = vpack.c.b16 %v7076, %v7076
  %v7084 = vpack.c.b16 %v7077, %v7077
  %v7085 = vpack.c.b16 %v7078, %v7078
  %v7086 = vpack.c.b16 %v7079, %v7079
  %v7087 = vpack.c.b16 %v7080, %v7080
  %v7088 = vpack.c.b16 %v7081, %v7081
  %v7089 = vpack.c.b16 %v7082, %v7082
  %vm7097 = vcmask 519168
  %7098 = vst.msk [vmem:[%s9] sm:$0xf] %vm7097, %v7083
  %7099 = vst.msk [vmem:[%s9 + $0x4] sm:$0xf] %vm7097, %v7084
  %7100 = vst.msk [vmem:[%s9 + $0x8] sm:$0xf] %vm7097, %v7085
  %7101 = vst.msk [vmem:[%s9 + $0xc] sm:$0xf] %vm7097, %v7086
  %7102 = vst.msk [vmem:[%s9 + $0x10] sm:$0xf] %vm7097, %v7087
  %7103 = vst.msk [vmem:[%s9 + $0x14] sm:$0xf] %vm7097, %v7088
  %vm7104 = vcmask 516096
  %7105 = vst.msk [vmem:[%s9 + $0x18] sm:$0x1] %vm7104, %v7089
  // Predicated region
  $region38: #{net_policy_gradient_forward.2} parent=0 // pred_check
    _
  $region39: #{net_policy_gradient_forward.2} parent=0 // pred_check_branch
    %7107 = sbr.rel (0) target = $region41
  $region40: #{net_policy_gradient_forward.2} parent=0 // pred_region
    _
  $region41: #{net_policy_gradient_forward.2} parent=0 // pred_fallthru
    _
  // Predicated region
  $region42: #{net_policy_gradient_forward.2} parent=0 // pred_check
    _
  $region43: #{net_policy_gradient_forward.2} parent=0 // pred_check_branch
    %7109 = sbr.rel (0) target = $region45
  $region44: #{net_policy_gradient_forward.2} parent=0 // pred_region
    _
  $region45: #{net_policy_gradient_forward.2} parent=0 // pred_fallthru
    _

// kernel: net_policy_gradient_forward.3
$region0: #{net_policy_gradient_forward.3}
  #allocation0 [shape = 'u32[]', space=smem, size = 0x4, offset = 0x4, fixed_abs, tag = 'smem constant byte address 0x4 - core index']
  #allocation1 [shape = 'u32[144,128]{1,0:T(1,128)}', space=vmem, size = 0x12000, scoped, tag = 'internal scratch']
  %s0 = inlined_call_operand.vmem [shape: bf16[2,1600], index: 0, kind: input, shape index: {}]
  %s1 = inlined_call_operand.vmem [shape: bf16[1600,256], index: 1, kind: input, shape index: {}]
  %s2 = inlined_call_operand.vmem [shape: f32[1,256], index: 2, kind: input, shape index: {}]
  %s3 = inlined_call_operand.vmem [shape: bf16[256,2], index: 3, kind: input, shape index: {}]
  %s4 = inlined_call_operand.vmem [shape: f32[1,2], index: 4, kind: input, shape index: {}]
  %s5 = inlined_call_operand.hbm [shape: f32[2,2], index: 5, kind: output, shape index: {}]
  %s6 = sld [smem:[#allocation0]]
  $region30: #{net_policy_gradient_forward.3} parent=0
    _
  %s8 = ssub.s32 1, %s6
  %s9 = scalar_select 0, %s8, %s6
  $region1: #{net_policy_gradient_forward.3} parent=0
    #allocation2 [shape = 'u8[1024]{0}', space=vmem, size = 0x400, scoped, tag = 'output window, operand 0, single buffered']
    #allocation3 [shape = 's32[1]{0}', space=sflag, size = 0x4, scoped, tag = 'scoped memory for net_policy_gradient_forward.3']
    %10 = vsyncpa [#allocation3], 0
    // Predicated region
    $region2: #{net_policy_gradient_forward.3} parent=1 // pred_check
      _
    $region3: #{net_policy_gradient_forward.3} parent=1 // pred_check_branch
      %12 = sbr.rel (0) target = $region5
    $region4: #{net_policy_gradient_forward.3} parent=1 // pred_region
      _
    $region5: #{net_policy_gradient_forward.3} parent=1 // pred_fallthru
      _
    // Predicated region
    $region6: #{net_policy_gradient_forward.3} parent=1 // pred_check
      _
    $region7: #{net_policy_gradient_forward.3} parent=1 // pred_check_branch
      %14 = sbr.rel (0) target = $region9
    $region8: #{net_policy_gradient_forward.3} parent=1 // pred_region
      _
    $region9: #{net_policy_gradient_forward.3} parent=1 // pred_fallthru
      _
    // Predicated region
    $region10: #{net_policy_gradient_forward.3} parent=1 // pred_check
      _
    $region11: #{net_policy_gradient_forward.3} parent=1 // pred_check_branch
      %16 = sbr.rel (0) target = $region13
    $region12: #{net_policy_gradient_forward.3} parent=1 // pred_region
      _
    $region13: #{net_policy_gradient_forward.3} parent=1 // pred_fallthru
      _
    // Predicated region
    $region14: #{net_policy_gradient_forward.3} parent=1 // pred_check
      _
    $region15: #{net_policy_gradient_forward.3} parent=1 // pred_check_branch
      %18 = sbr.rel (0) target = $region17
    $region16: #{net_policy_gradient_forward.3} parent=1 // pred_region
      _
    $region17: #{net_policy_gradient_forward.3} parent=1 // pred_fallthru
      _
    // Predicated region
    $region18: #{net_policy_gradient_forward.3} parent=1 // pred_check
      _
    $region19: #{net_policy_gradient_forward.3} parent=1 // pred_check_branch
      %20 = sbr.rel (0) target = $region21
    $region20: #{net_policy_gradient_forward.3} parent=1 // pred_region
      _
    $region21: #{net_policy_gradient_forward.3} parent=1 // pred_fallthru
      _
    %v22 = vld [vmem:[%s0] sm:$0xff]
    %v23 = vld [vmem:[%s0 + $0x8] sm:$0x1f]
    %v24 = vld [vmem:[%s1] sm:$0xff]
    %v25 = vld [vmem:[%s1 + $0x8] sm:$0xff]
    %v26 = vld [vmem:[%s1 + $0x10] sm:$0xff]
    %v27 = vld [vmem:[%s1 + $0x18] sm:$0xff]
    %v28 = vld [vmem:[%s1 + $0x20] sm:$0xff]
    %v29 = vld [vmem:[%s1 + $0x28] sm:$0xff]
    %v30 = vld [vmem:[%s1 + $0x30] sm:$0xff]
    %v31 = vld [vmem:[%s1 + $0x38] sm:$0xff]
    %v32 = vld [vmem:[%s1 + $0x40] sm:$0xff]
    %v33 = vld [vmem:[%s1 + $0x48] sm:$0xff]
    %v34 = vld [vmem:[%s1 + $0x50] sm:$0xff]
    %v35 = vld [vmem:[%s1 + $0x58] sm:$0xff]
    %v36 = vld [vmem:[%s1 + $0x60] sm:$0xff]
    %v37 = vld [vmem:[%s1 + $0x68] sm:$0xff]
    %v38 = vld [vmem:[%s1 + $0x70] sm:$0xff]
    %v39 = vld [vmem:[%s1 + $0x78] sm:$0xff]
    %v40 = vld [vmem:[%s1 + $0x80] sm:$0xff]
    %v41 = vld [vmem:[%s1 + $0x88] sm:$0xff]
    %v42 = vld [vmem:[%s1 + $0x90] sm:$0xff]
    %v43 = vld [vmem:[%s1 + $0x98] sm:$0xff]
    %v44 = vld [vmem:[%s1 + $0xa0] sm:$0xff]
    %v45 = vld [vmem:[%s1 + $0xa8] sm:$0xff]
    %v46 = vld [vmem:[%s1 + $0xb0] sm:$0xff]
    %v47 = vld [vmem:[%s1 + $0xb8] sm:$0xff]
    %v48 = vld [vmem:[%s1 + $0xc0] sm:$0xff]
    %v49 = vld [vmem:[%s1 + $0xc8] sm:$0xff]
    %v50 = vld [vmem:[%s1 + $0xd0] sm:$0xff]
    %v51 = vld [vmem:[%s1 + $0xd8] sm:$0xff]
    %v52 = vld [vmem:[%s1 + $0xe0] sm:$0xff]
    %v53 = vld [vmem:[%s1 + $0xe8] sm:$0xff]
    %v54 = vld [vmem:[%s1 + $0xf0] sm:$0xff]
    %v55 = vld [vmem:[%s1 + $0xf8] sm:$0xff]
    %v56 = vld [vmem:[%s1 + $0x100] sm:$0xff]
    %v57 = vld [vmem:[%s1 + $0x108] sm:$0xff]
    %v58 = vld [vmem:[%s1 + $0x110] sm:$0xff]
    %v59 = vld [vmem:[%s1 + $0x118] sm:$0xff]
    %v60 = vld [vmem:[%s1 + $0x120] sm:$0xff]
    %v61 = vld [vmem:[%s1 + $0x128] sm:$0xff]
    %v62 = vld [vmem:[%s1 + $0x130] sm:$0xff]
    %v63 = vld [vmem:[%s1 + $0x138] sm:$0xff]
    %v64 = vld [vmem:[%s1 + $0x140] sm:$0xff]
    %v65 = vld [vmem:[%s1 + $0x148] sm:$0xff]
    %v66 = vld [vmem:[%s1 + $0x150] sm:$0xff]
    %v67 = vld [vmem:[%s1 + $0x158] sm:$0xff]
    %v68 = vld [vmem:[%s1 + $0x160] sm:$0xff]
    %v69 = vld [vmem:[%s1 + $0x168] sm:$0xff]
    %v70 = vld [vmem:[%s1 + $0x170] sm:$0xff]
    %v71 = vld [vmem:[%s1 + $0x178] sm:$0xff]
    %v72 = vld [vmem:[%s1 + $0x180] sm:$0xff]
    %v73 = vld [vmem:[%s1 + $0x188] sm:$0xff]
    %v74 = vld [vmem:[%s1 + $0x190] sm:$0xff]
    %v75 = vld [vmem:[%s1 + $0x198] sm:$0xff]
    %v76 = vld [vmem:[%s1 + $0x1a0] sm:$0xff]
    %v77 = vld [vmem:[%s1 + $0x1a8] sm:$0xff]
    %v78 = vld [vmem:[%s1 + $0x1b0] sm:$0xff]
    %v79 = vld [vmem:[%s1 + $0x1b8] sm:$0xff]
    %v80 = vld [vmem:[%s1 + $0x1c0] sm:$0xff]
    %v81 = vld [vmem:[%s1 + $0x1c8] sm:$0xff]
    %v82 = vld [vmem:[%s1 + $0x1d0] sm:$0xff]
    %v83 = vld [vmem:[%s1 + $0x1d8] sm:$0xff]
    %v84 = vld [vmem:[%s1 + $0x1e0] sm:$0xff]
    %v85 = vld [vmem:[%s1 + $0x1e8] sm:$0xff]
    %v86 = vld [vmem:[%s1 + $0x1f0] sm:$0xff]
    %v87 = vld [vmem:[%s1 + $0x1f8] sm:$0xff]
    %v88 = vld [vmem:[%s1 + $0x200] sm:$0xff]
    %v89 = vld [vmem:[%s1 + $0x208] sm:$0xff]
    %v90 = vld [vmem:[%s1 + $0x210] sm:$0xff]
    %v91 = vld [vmem:[%s1 + $0x218] sm:$0xff]
    %v92 = vld [vmem:[%s1 + $0x220] sm:$0xff]
    %v93 = vld [vmem:[%s1 + $0x228] sm:$0xff]
    %v94 = vld [vmem:[%s1 + $0x230] sm:$0xff]
    %v95 = vld [vmem:[%s1 + $0x238] sm:$0xff]
    %v96 = vld [vmem:[%s1 + $0x240] sm:$0xff]
    %v97 = vld [vmem:[%s1 + $0x248] sm:$0xff]
    %v98 = vld [vmem:[%s1 + $0x250] sm:$0xff]
    %v99 = vld [vmem:[%s1 + $0x258] sm:$0xff]
    %v100 = vld [vmem:[%s1 + $0x260] sm:$0xff]
    %v101 = vld [vmem:[%s1 + $0x268] sm:$0xff]
    %v102 = vld [vmem:[%s1 + $0x270] sm:$0xff]
    %v103 = vld [vmem:[%s1 + $0x278] sm:$0xff]
    %v104 = vld [vmem:[%s1 + $0x280] sm:$0xff]
    %v105 = vld [vmem:[%s1 + $0x288] sm:$0xff]
    %v106 = vld [vmem:[%s1 + $0x290] sm:$0xff]
    %v107 = vld [vmem:[%s1 + $0x298] sm:$0xff]
    %v108 = vld [vmem:[%s1 + $0x2a0] sm:$0xff]
    %v109 = vld [vmem:[%s1 + $0x2a8] sm:$0xff]
    %v110 = vld [vmem:[%s1 + $0x2b0] sm:$0xff]
    %v111 = vld [vmem:[%s1 + $0x2b8] sm:$0xff]
    %v112 = vld [vmem:[%s1 + $0x2c0] sm:$0xff]
    %v113 = vld [vmem:[%s1 + $0x2c8] sm:$0xff]
    %v114 = vld [vmem:[%s1 + $0x2d0] sm:$0xff]
    %v115 = vld [vmem:[%s1 + $0x2d8] sm:$0xff]
    %v116 = vld [vmem:[%s1 + $0x2e0] sm:$0xff]
    %v117 = vld [vmem:[%s1 + $0x2e8] sm:$0xff]
    %v118 = vld [vmem:[%s1 + $0x2f0] sm:$0xff]
    %v119 = vld [vmem:[%s1 + $0x2f8] sm:$0xff]
    %v120 = vld [vmem:[%s1 + $0x300] sm:$0xff]
    %v121 = vld [vmem:[%s1 + $0x308] sm:$0xff]
    %v122 = vld [vmem:[%s1 + $0x310] sm:$0xff]
    %v123 = vld [vmem:[%s1 + $0x318] sm:$0xff]
    %v124 = vld [vmem:[%s1 + $0x320] sm:$0xff]
    %v125 = vld [vmem:[%s1 + $0x328] sm:$0xff]
    %v126 = vld [vmem:[%s1 + $0x330] sm:$0xff]
    %v127 = vld [vmem:[%s1 + $0x338] sm:$0xff]
    %v128 = vld [vmem:[%s1 + $0x340] sm:$0xff]
    %v129 = vld [vmem:[%s1 + $0x348] sm:$0xff]
    %v130 = vld [vmem:[%s1 + $0x350] sm:$0xff]
    %v131 = vld [vmem:[%s1 + $0x358] sm:$0xff]
    %v132 = vld [vmem:[%s1 + $0x360] sm:$0xff]
    %v133 = vld [vmem:[%s1 + $0x368] sm:$0xff]
    %v134 = vld [vmem:[%s1 + $0x370] sm:$0xff]
    %v135 = vld [vmem:[%s1 + $0x378] sm:$0xff]
    %v136 = vld [vmem:[%s1 + $0x380] sm:$0xff]
    %v137 = vld [vmem:[%s1 + $0x388] sm:$0xff]
    %v138 = vld [vmem:[%s1 + $0x390] sm:$0xff]
    %v139 = vld [vmem:[%s1 + $0x398] sm:$0xff]
    %v140 = vld [vmem:[%s1 + $0x3a0] sm:$0xff]
    %v141 = vld [vmem:[%s1 + $0x3a8] sm:$0xff]
    %v142 = vld [vmem:[%s1 + $0x3b0] sm:$0xff]
    %v143 = vld [vmem:[%s1 + $0x3b8] sm:$0xff]
    %v144 = vld [vmem:[%s1 + $0x3c0] sm:$0xff]
    %v145 = vld [vmem:[%s1 + $0x3c8] sm:$0xff]
    %v146 = vld [vmem:[%s1 + $0x3d0] sm:$0xff]
    %v147 = vld [vmem:[%s1 + $0x3d8] sm:$0xff]
    %v148 = vld [vmem:[%s1 + $0x3e0] sm:$0xff]
    %v149 = vld [vmem:[%s1 + $0x3e8] sm:$0xff]
    %v150 = vld [vmem:[%s1 + $0x3f0] sm:$0xff]
    %v151 = vld [vmem:[%s1 + $0x3f8] sm:$0xff]
    %v152 = vld [vmem:[%s1 + $0x400] sm:$0xff]
    %v153 = vld [vmem:[%s1 + $0x408] sm:$0xff]
    %v154 = vld [vmem:[%s1 + $0x410] sm:$0xff]
    %v155 = vld [vmem:[%s1 + $0x418] sm:$0xff]
    %v156 = vld [vmem:[%s1 + $0x420] sm:$0xff]
    %v157 = vld [vmem:[%s1 + $0x428] sm:$0xff]
    %v158 = vld [vmem:[%s1 + $0x430] sm:$0xff]
    %v159 = vld [vmem:[%s1 + $0x438] sm:$0xff]
    %v160 = vld [vmem:[%s1 + $0x440] sm:$0xff]
    %v161 = vld [vmem:[%s1 + $0x448] sm:$0xff]
    %v162 = vld [vmem:[%s1 + $0x450] sm:$0xff]
    %v163 = vld [vmem:[%s1 + $0x458] sm:$0xff]
    %v164 = vld [vmem:[%s1 + $0x460] sm:$0xff]
    %v165 = vld [vmem:[%s1 + $0x468] sm:$0xff]
    %v166 = vld [vmem:[%s1 + $0x470] sm:$0xff]
    %v167 = vld [vmem:[%s1 + $0x478] sm:$0xff]
    %v168 = vld [vmem:[%s1 + $0x480] sm:$0xff]
    %v169 = vld [vmem:[%s1 + $0x488] sm:$0xff]
    %v170 = vld [vmem:[%s1 + $0x490] sm:$0xff]
    %v171 = vld [vmem:[%s1 + $0x498] sm:$0xff]
    %v172 = vld [vmem:[%s1 + $0x4a0] sm:$0xff]
    %v173 = vld [vmem:[%s1 + $0x4a8] sm:$0xff]
    %v174 = vld [vmem:[%s1 + $0x4b0] sm:$0xff]
    %v175 = vld [vmem:[%s1 + $0x4b8] sm:$0xff]
    %v176 = vld [vmem:[%s1 + $0x4c0] sm:$0xff]
    %v177 = vld [vmem:[%s1 + $0x4c8] sm:$0xff]
    %v178 = vld [vmem:[%s1 + $0x4d0] sm:$0xff]
    %v179 = vld [vmem:[%s1 + $0x4d8] sm:$0xff]
    %v180 = vld [vmem:[%s1 + $0x4e0] sm:$0xff]
    %v181 = vld [vmem:[%s1 + $0x4e8] sm:$0xff]
    %v182 = vld [vmem:[%s1 + $0x4f0] sm:$0xff]
    %v183 = vld [vmem:[%s1 + $0x4f8] sm:$0xff]
    %v184 = vld [vmem:[%s1 + $0x500] sm:$0xff]
    %v185 = vld [vmem:[%s1 + $0x508] sm:$0xff]
    %v186 = vld [vmem:[%s1 + $0x510] sm:$0xff]
    %v187 = vld [vmem:[%s1 + $0x518] sm:$0xff]
    %v188 = vld [vmem:[%s1 + $0x520] sm:$0xff]
    %v189 = vld [vmem:[%s1 + $0x528] sm:$0xff]
    %v190 = vld [vmem:[%s1 + $0x530] sm:$0xff]
    %v191 = vld [vmem:[%s1 + $0x538] sm:$0xff]
    %v192 = vld [vmem:[%s1 + $0x540] sm:$0xff]
    %v193 = vld [vmem:[%s1 + $0x548] sm:$0xff]
    %v194 = vld [vmem:[%s1 + $0x550] sm:$0xff]
    %v195 = vld [vmem:[%s1 + $0x558] sm:$0xff]
    %v196 = vld [vmem:[%s1 + $0x560] sm:$0xff]
    %v197 = vld [vmem:[%s1 + $0x568] sm:$0xff]
    %v198 = vld [vmem:[%s1 + $0x570] sm:$0xff]
    %v199 = vld [vmem:[%s1 + $0x578] sm:$0xff]
    %v200 = vld [vmem:[%s1 + $0x580] sm:$0xff]
    %v201 = vld [vmem:[%s1 + $0x588] sm:$0xff]
    %v202 = vld [vmem:[%s1 + $0x590] sm:$0xff]
    %v203 = vld [vmem:[%s1 + $0x598] sm:$0xff]
    %v204 = vld [vmem:[%s1 + $0x5a0] sm:$0xff]
    %v205 = vld [vmem:[%s1 + $0x5a8] sm:$0xff]
    %v206 = vld [vmem:[%s1 + $0x5b0] sm:$0xff]
    %v207 = vld [vmem:[%s1 + $0x5b8] sm:$0xff]
    %v208 = vld [vmem:[%s1 + $0x5c0] sm:$0xff]
    %v209 = vld [vmem:[%s1 + $0x5c8] sm:$0xff]
    %v210 = vld [vmem:[%s1 + $0x5d0] sm:$0xff]
    %v211 = vld [vmem:[%s1 + $0x5d8] sm:$0xff]
    %v212 = vld [vmem:[%s1 + $0x5e0] sm:$0xff]
    %v213 = vld [vmem:[%s1 + $0x5e8] sm:$0xff]
    %v214 = vld [vmem:[%s1 + $0x5f0] sm:$0xff]
    %v215 = vld [vmem:[%s1 + $0x5f8] sm:$0xff]
    %v216 = vld [vmem:[%s1 + $0x600] sm:$0xff]
    %v217 = vld [vmem:[%s1 + $0x608] sm:$0xff]
    %v218 = vld [vmem:[%s1 + $0x610] sm:$0xff]
    %v219 = vld [vmem:[%s1 + $0x618] sm:$0xff]
    %v220 = vld [vmem:[%s1 + $0x620] sm:$0xff]
    %v221 = vld [vmem:[%s1 + $0x628] sm:$0xff]
    %v222 = vld [vmem:[%s1 + $0x630] sm:$0xff]
    %v223 = vld [vmem:[%s1 + $0x638] sm:$0xff]
    %v224 = vld [vmem:[%s2] sm:$0x3]
    %v226 = vlaneseq
    %v227 = vshrl.u32 %v226, 7
    %v228 = vsub.s32 0, %v227
    %v229 = vrot.slane %v224, %v228
    %v230 = vlaneseq
    %v231 = vshrl.u32 %v230, 7
    %v232 = vsub.s32 1, %v231
    %v233 = vrot.slane %v224, %v232
    %v238 = vcombine.high %v22, %v22
    %v240 = vunpack.c.l.s4 1966171168
    %v241 = vunpack.c.0.s8 %v240
    %v242 = vlaneseq
    %v243 = vshrl.u32 %v242, 7
    %v244 = vsub.s32 %v241, %v243
    %v245 = vrot.slane %v22, %v244
    %v247 = vunpack.c.l.s4 1966171168
    %v248 = vunpack.c.0.s8 %v247
    %v249 = vlaneseq
    %v250 = vshrl.u32 %v249, 7
    %v251 = vsub.s32 %v248, %v250
    %v252 = vrot.slane %v238, %v251
    %v253 = vcombine.high %v245, %v245
    %v254 = vcombine.high %v252, %v252
    %v256 = vunpack.c.l.s4 1966171168
    %v257 = vunpack.c.0.s8 %v256
    %v258 = vlaneseq
    %v259 = vshrl.u32 %v258, 7
    %v260 = vsub.s32 %v257, %v259
    %v261 = vrot.slane %v245, %v260
    %v263 = vunpack.c.l.s4 1966171168
    %v264 = vunpack.c.0.s8 %v263
    %v265 = vlaneseq
    %v266 = vshrl.u32 %v265, 7
    %v267 = vsub.s32 %v264, %v266
    %v268 = vrot.slane %v252, %v267
    %v270 = vunpack.c.l.s4 1966171168
    %v271 = vunpack.c.0.s8 %v270
    %v272 = vlaneseq
    %v273 = vshrl.u32 %v272, 7
    %v274 = vsub.s32 %v271, %v273
    %v275 = vrot.slane %v253, %v274
    %v277 = vunpack.c.l.s4 1966171168
    %v278 = vunpack.c.0.s8 %v277
    %v279 = vlaneseq
    %v280 = vshrl.u32 %v279, 7
    %v281 = vsub.s32 %v278, %v280
    %v282 = vrot.slane %v254, %v281
    %v283 = vcombine.high %v261, %v261
    %v284 = vcombine.high %v268, %v268
    %v285 = vcombine.high %v275, %v275
    %v286 = vcombine.high %v282, %v282
    %v287 = vcombine.high %v23, %v23
    %v289 = vunpack.c.l.s4 1966171168
    %v290 = vunpack.c.0.s8 %v289
    %v291 = vlaneseq
    %v292 = vshrl.u32 %v291, 7
    %v293 = vsub.s32 %v290, %v292
    %v294 = vrot.slane %v23, %v293
    %v296 = vunpack.c.l.s4 1966171168
    %v297 = vunpack.c.0.s8 %v296
    %v298 = vlaneseq
    %v299 = vshrl.u32 %v298, 7
    %v300 = vsub.s32 %v297, %v299
    %v301 = vrot.slane %v287, %v300
    %v302 = vcombine.high %v294, %v294
    %v304 = vunpack.c.l.s4 1966171168
    %v305 = vunpack.c.0.s8 %v304
    %v306 = vlaneseq
    %v307 = vshrl.u32 %v306, 7
    %v308 = vsub.s32 %v305, %v307
    %v309 = vrot.slane %v294, %v308
    %v311 = vunpack.c.l.s4 1966171168
    %v312 = vunpack.c.0.s8 %v311
    %v313 = vlaneseq
    %v314 = vshrl.u32 %v313, 7
    %v315 = vsub.s32 %v312, %v314
    %v316 = vrot.slane %v301, %v315
    %v318 = vunpack.c.l.s4 1966171168
    %v319 = vunpack.c.0.s8 %v318
    %v320 = vlaneseq
    %v321 = vshrl.u32 %v320, 7
    %v322 = vsub.s32 %v319, %v321
    %v323 = vrot.slane %v302, %v322
    %v324 = vcombine.high %v309, %v309
    %v325 = vcombine.high %v323, %v323
    %v538 = vunpack.c.l.b16 %v24
    %v539 = vunpack.c.h.b16 %v24
    %v540 = vunpack.c.l.b16 %v25
    %v541 = vunpack.c.h.b16 %v25
    %v542 = vunpack.c.l.b16 %v26
    %v543 = vunpack.c.h.b16 %v26
    %v544 = vunpack.c.l.b16 %v27
    %v545 = vunpack.c.h.b16 %v27
    %v546 = vunpack.c.l.b16 %v28
    %v547 = vunpack.c.h.b16 %v28
    %v548 = vunpack.c.l.b16 %v29
    %v549 = vunpack.c.h.b16 %v29
    %v550 = vunpack.c.l.b16 %v30
    %v551 = vunpack.c.h.b16 %v30
    %v552 = vunpack.c.l.b16 %v31
    %v553 = vunpack.c.h.b16 %v31
    %v554 = vunpack.c.l.b16 %v32
    %v555 = vunpack.c.h.b16 %v32
    %v556 = vunpack.c.l.b16 %v33
    %v557 = vunpack.c.h.b16 %v33
    %v558 = vunpack.c.l.b16 %v34
    %v559 = vunpack.c.h.b16 %v34
    %v560 = vunpack.c.l.b16 %v35
    %v561 = vunpack.c.h.b16 %v35
    %v562 = vunpack.c.l.b16 %v36
    %v563 = vunpack.c.h.b16 %v36
    %v564 = vunpack.c.l.b16 %v37
    %v565 = vunpack.c.h.b16 %v37
    %v566 = vunpack.c.l.b16 %v38
    %v567 = vunpack.c.h.b16 %v38
    %v568 = vunpack.c.l.b16 %v39
    %v569 = vunpack.c.h.b16 %v39
    %v570 = vunpack.c.l.b16 %v40
    %v571 = vunpack.c.h.b16 %v40
    %v572 = vunpack.c.l.b16 %v41
    %v573 = vunpack.c.h.b16 %v41
    %v574 = vunpack.c.l.b16 %v42
    %v575 = vunpack.c.h.b16 %v42
    %v576 = vunpack.c.l.b16 %v43
    %v577 = vunpack.c.h.b16 %v43
    %v578 = vunpack.c.l.b16 %v44
    %v579 = vunpack.c.h.b16 %v44
    %v580 = vunpack.c.l.b16 %v45
    %v581 = vunpack.c.h.b16 %v45
    %v582 = vunpack.c.l.b16 %v46
    %v583 = vunpack.c.h.b16 %v46
    %v584 = vunpack.c.l.b16 %v47
    %v585 = vunpack.c.h.b16 %v47
    %v586 = vunpack.c.l.b16 %v48
    %v587 = vunpack.c.h.b16 %v48
    %v588 = vunpack.c.l.b16 %v49
    %v589 = vunpack.c.h.b16 %v49
    %v590 = vunpack.c.l.b16 %v50
    %v591 = vunpack.c.h.b16 %v50
    %v592 = vunpack.c.l.b16 %v51
    %v593 = vunpack.c.h.b16 %v51
    %v594 = vunpack.c.l.b16 %v52
    %v595 = vunpack.c.h.b16 %v52
    %v596 = vunpack.c.l.b16 %v53
    %v597 = vunpack.c.h.b16 %v53
    %v598 = vunpack.c.l.b16 %v54
    %v599 = vunpack.c.h.b16 %v54
    %v600 = vunpack.c.l.b16 %v55
    %v601 = vunpack.c.h.b16 %v55
    %v602 = vunpack.c.l.b16 %v56
    %v603 = vunpack.c.h.b16 %v56
    %v604 = vunpack.c.l.b16 %v57
    %v605 = vunpack.c.h.b16 %v57
    %v606 = vunpack.c.l.b16 %v58
    %v607 = vunpack.c.h.b16 %v58
    %v608 = vunpack.c.l.b16 %v59
    %v609 = vunpack.c.h.b16 %v59
    %v610 = vunpack.c.l.b16 %v60
    %v611 = vunpack.c.h.b16 %v60
    %v612 = vunpack.c.l.b16 %v61
    %v613 = vunpack.c.h.b16 %v61
    %v614 = vunpack.c.l.b16 %v62
    %v615 = vunpack.c.h.b16 %v62
    %v616 = vunpack.c.l.b16 %v63
    %v617 = vunpack.c.h.b16 %v63
    %v618 = vunpack.c.l.b16 %v64
    %v619 = vunpack.c.h.b16 %v64
    %v620 = vunpack.c.l.b16 %v65
    %v621 = vunpack.c.h.b16 %v65
    %v622 = vunpack.c.l.b16 %v66
    %v623 = vunpack.c.h.b16 %v66
    %v624 = vunpack.c.l.b16 %v67
    %v625 = vunpack.c.h.b16 %v67
    %v626 = vunpack.c.l.b16 %v68
    %v627 = vunpack.c.h.b16 %v68
    %v628 = vunpack.c.l.b16 %v69
    %v629 = vunpack.c.h.b16 %v69
    %v630 = vunpack.c.l.b16 %v70
    %v631 = vunpack.c.h.b16 %v70
    %v632 = vunpack.c.l.b16 %v71
    %v633 = vunpack.c.h.b16 %v71
    %v634 = vunpack.c.l.b16 %v72
    %v635 = vunpack.c.h.b16 %v72
    %v636 = vunpack.c.l.b16 %v73
    %v637 = vunpack.c.h.b16 %v73
    %v638 = vunpack.c.l.b16 %v74
    %v639 = vunpack.c.h.b16 %v74
    %v640 = vunpack.c.l.b16 %v75
    %v641 = vunpack.c.h.b16 %v75
    %v642 = vunpack.c.l.b16 %v76
    %v643 = vunpack.c.h.b16 %v76
    %v644 = vunpack.c.l.b16 %v77
    %v645 = vunpack.c.h.b16 %v77
    %v646 = vunpack.c.l.b16 %v78
    %v647 = vunpack.c.h.b16 %v78
    %v648 = vunpack.c.l.b16 %v79
    %v649 = vunpack.c.h.b16 %v79
    %v650 = vunpack.c.l.b16 %v80
    %v651 = vunpack.c.h.b16 %v80
    %v652 = vunpack.c.l.b16 %v81
    %v653 = vunpack.c.h.b16 %v81
    %v654 = vunpack.c.l.b16 %v82
    %v655 = vunpack.c.h.b16 %v82
    %v656 = vunpack.c.l.b16 %v83
    %v657 = vunpack.c.h.b16 %v83
    %v658 = vunpack.c.l.b16 %v84
    %v659 = vunpack.c.h.b16 %v84
    %v660 = vunpack.c.l.b16 %v85
    %v661 = vunpack.c.h.b16 %v85
    %v662 = vunpack.c.l.b16 %v86
    %v663 = vunpack.c.h.b16 %v86
    %v664 = vunpack.c.l.b16 %v87
    %v665 = vunpack.c.h.b16 %v87
    %v666 = vunpack.c.l.b16 %v88
    %v667 = vunpack.c.h.b16 %v88
    %v668 = vunpack.c.l.b16 %v89
    %v669 = vunpack.c.h.b16 %v89
    %v670 = vunpack.c.l.b16 %v90
    %v671 = vunpack.c.h.b16 %v90
    %v672 = vunpack.c.l.b16 %v91
    %v673 = vunpack.c.h.b16 %v91
    %v674 = vunpack.c.l.b16 %v92
    %v675 = vunpack.c.h.b16 %v92
    %v676 = vunpack.c.l.b16 %v93
    %v677 = vunpack.c.h.b16 %v93
    %v678 = vunpack.c.l.b16 %v94
    %v679 = vunpack.c.h.b16 %v94
    %v680 = vunpack.c.l.b16 %v95
    %v681 = vunpack.c.h.b16 %v95
    %v682 = vunpack.c.l.b16 %v96
    %v683 = vunpack.c.h.b16 %v96
    %v684 = vunpack.c.l.b16 %v97
    %v685 = vunpack.c.h.b16 %v97
    %v686 = vunpack.c.l.b16 %v98
    %v687 = vunpack.c.h.b16 %v98
    %v688 = vunpack.c.l.b16 %v99
    %v689 = vunpack.c.h.b16 %v99
    %v690 = vunpack.c.l.b16 %v100
    %v691 = vunpack.c.h.b16 %v100
    %v692 = vunpack.c.l.b16 %v101
    %v693 = vunpack.c.h.b16 %v101
    %v694 = vunpack.c.l.b16 %v102
    %v695 = vunpack.c.h.b16 %v102
    %v696 = vunpack.c.l.b16 %v103
    %v697 = vunpack.c.h.b16 %v103
    %v698 = vunpack.c.l.b16 %v104
    %v699 = vunpack.c.h.b16 %v104
    %v700 = vunpack.c.l.b16 %v105
    %v701 = vunpack.c.h.b16 %v105
    %v702 = vunpack.c.l.b16 %v106
    %v703 = vunpack.c.h.b16 %v106
    %v704 = vunpack.c.l.b16 %v107
    %v705 = vunpack.c.h.b16 %v107
    %v706 = vunpack.c.l.b16 %v108
    %v707 = vunpack.c.h.b16 %v108
    %v708 = vunpack.c.l.b16 %v109
    %v709 = vunpack.c.h.b16 %v109
    %v710 = vunpack.c.l.b16 %v110
    %v711 = vunpack.c.h.b16 %v110
    %v712 = vunpack.c.l.b16 %v111
    %v713 = vunpack.c.h.b16 %v111
    %v714 = vunpack.c.l.b16 %v112
    %v715 = vunpack.c.h.b16 %v112
    %v716 = vunpack.c.l.b16 %v113
    %v717 = vunpack.c.h.b16 %v113
    %v718 = vunpack.c.l.b16 %v114
    %v719 = vunpack.c.h.b16 %v114
    %v720 = vunpack.c.l.b16 %v115
    %v721 = vunpack.c.h.b16 %v115
    %v722 = vunpack.c.l.b16 %v116
    %v723 = vunpack.c.h.b16 %v116
    %v724 = vunpack.c.l.b16 %v117
    %v725 = vunpack.c.h.b16 %v117
    %v726 = vunpack.c.l.b16 %v118
    %v727 = vunpack.c.h.b16 %v118
    %v728 = vunpack.c.l.b16 %v119
    %v729 = vunpack.c.h.b16 %v119
    %v730 = vunpack.c.l.b16 %v120
    %v731 = vunpack.c.h.b16 %v120
    %v732 = vunpack.c.l.b16 %v121
    %v733 = vunpack.c.h.b16 %v121
    %v734 = vunpack.c.l.b16 %v122
    %v735 = vunpack.c.h.b16 %v122
    %v736 = vunpack.c.l.b16 %v123
    %v737 = vunpack.c.h.b16 %v123
    %v738 = vunpack.c.l.b16 %v124
    %v739 = vunpack.c.h.b16 %v124
    %v740 = vunpack.c.l.b16 %v125
    %v741 = vunpack.c.h.b16 %v125
    %v742 = vunpack.c.l.b16 %v126
    %v743 = vunpack.c.h.b16 %v126
    %v744 = vunpack.c.l.b16 %v127
    %v745 = vunpack.c.h.b16 %v127
    %v746 = vunpack.c.l.b16 %v128
    %v747 = vunpack.c.h.b16 %v128
    %v748 = vunpack.c.l.b16 %v129
    %v749 = vunpack.c.h.b16 %v129
    %v750 = vunpack.c.l.b16 %v130
    %v751 = vunpack.c.h.b16 %v130
    %v752 = vunpack.c.l.b16 %v131
    %v753 = vunpack.c.h.b16 %v131
    %v754 = vunpack.c.l.b16 %v132
    %v755 = vunpack.c.h.b16 %v132
    %v756 = vunpack.c.l.b16 %v133
    %v757 = vunpack.c.h.b16 %v133
    %v758 = vunpack.c.l.b16 %v134
    %v759 = vunpack.c.h.b16 %v134
    %v760 = vunpack.c.l.b16 %v135
    %v761 = vunpack.c.h.b16 %v135
    %v762 = vunpack.c.l.b16 %v136
    %v763 = vunpack.c.h.b16 %v136
    %v764 = vunpack.c.l.b16 %v137
    %v765 = vunpack.c.h.b16 %v137
    %v766 = vunpack.c.l.b16 %v138
    %v767 = vunpack.c.h.b16 %v138
    %v768 = vunpack.c.l.b16 %v139
    %v769 = vunpack.c.h.b16 %v139
    %v770 = vunpack.c.l.b16 %v140
    %v771 = vunpack.c.h.b16 %v140
    %v772 = vunpack.c.l.b16 %v141
    %v773 = vunpack.c.h.b16 %v141
    %v774 = vunpack.c.l.b16 %v142
    %v775 = vunpack.c.h.b16 %v142
    %v776 = vunpack.c.l.b16 %v143
    %v777 = vunpack.c.h.b16 %v143
    %v778 = vunpack.c.l.b16 %v144
    %v779 = vunpack.c.h.b16 %v144
    %v780 = vunpack.c.l.b16 %v145
    %v781 = vunpack.c.h.b16 %v145
    %v782 = vunpack.c.l.b16 %v146
    %v783 = vunpack.c.h.b16 %v146
    %v784 = vunpack.c.l.b16 %v147
    %v785 = vunpack.c.h.b16 %v147
    %v786 = vunpack.c.l.b16 %v148
    %v787 = vunpack.c.h.b16 %v148
    %v788 = vunpack.c.l.b16 %v149
    %v789 = vunpack.c.h.b16 %v149
    %v790 = vunpack.c.l.b16 %v150
    %v791 = vunpack.c.h.b16 %v150
    %v792 = vunpack.c.l.b16 %v151
    %v793 = vunpack.c.h.b16 %v151
    %v794 = vunpack.c.l.b16 %v152
    %v795 = vunpack.c.h.b16 %v152
    %v796 = vunpack.c.l.b16 %v153
    %v797 = vunpack.c.h.b16 %v153
    %v798 = vunpack.c.l.b16 %v154
    %v799 = vunpack.c.h.b16 %v154
    %v800 = vunpack.c.l.b16 %v155
    %v801 = vunpack.c.h.b16 %v155
    %v802 = vunpack.c.l.b16 %v156
    %v803 = vunpack.c.h.b16 %v156
    %v804 = vunpack.c.l.b16 %v157
    %v805 = vunpack.c.h.b16 %v157
    %v806 = vunpack.c.l.b16 %v158
    %v807 = vunpack.c.h.b16 %v158
    %v808 = vunpack.c.l.b16 %v159
    %v809 = vunpack.c.h.b16 %v159
    %v810 = vunpack.c.l.b16 %v160
    %v811 = vunpack.c.h.b16 %v160
    %v812 = vunpack.c.l.b16 %v161
    %v813 = vunpack.c.h.b16 %v161
    %v814 = vunpack.c.l.b16 %v162
    %v815 = vunpack.c.h.b16 %v162
    %v816 = vunpack.c.l.b16 %v163
    %v817 = vunpack.c.h.b16 %v163
    %v818 = vunpack.c.l.b16 %v164
    %v819 = vunpack.c.h.b16 %v164
    %v820 = vunpack.c.l.b16 %v165
    %v821 = vunpack.c.h.b16 %v165
    %v822 = vunpack.c.l.b16 %v166
    %v823 = vunpack.c.h.b16 %v166
    %v824 = vunpack.c.l.b16 %v167
    %v825 = vunpack.c.h.b16 %v167
    %v826 = vunpack.c.l.b16 %v168
    %v827 = vunpack.c.h.b16 %v168
    %v828 = vunpack.c.l.b16 %v169
    %v829 = vunpack.c.h.b16 %v169
    %v830 = vunpack.c.l.b16 %v170
    %v831 = vunpack.c.h.b16 %v170
    %v832 = vunpack.c.l.b16 %v171
    %v833 = vunpack.c.h.b16 %v171
    %v834 = vunpack.c.l.b16 %v172
    %v835 = vunpack.c.h.b16 %v172
    %v836 = vunpack.c.l.b16 %v173
    %v837 = vunpack.c.h.b16 %v173
    %v838 = vunpack.c.l.b16 %v174
    %v839 = vunpack.c.h.b16 %v174
    %v840 = vunpack.c.l.b16 %v175
    %v841 = vunpack.c.h.b16 %v175
    %v842 = vunpack.c.l.b16 %v176
    %v843 = vunpack.c.h.b16 %v176
    %v844 = vunpack.c.l.b16 %v177
    %v845 = vunpack.c.h.b16 %v177
    %v846 = vunpack.c.l.b16 %v178
    %v847 = vunpack.c.h.b16 %v178
    %v848 = vunpack.c.l.b16 %v179
    %v849 = vunpack.c.h.b16 %v179
    %v850 = vunpack.c.l.b16 %v180
    %v851 = vunpack.c.h.b16 %v180
    %v852 = vunpack.c.l.b16 %v181
    %v853 = vunpack.c.h.b16 %v181
    %v854 = vunpack.c.l.b16 %v182
    %v855 = vunpack.c.h.b16 %v182
    %v856 = vunpack.c.l.b16 %v183
    %v857 = vunpack.c.h.b16 %v183
    %v858 = vunpack.c.l.b16 %v184
    %v859 = vunpack.c.h.b16 %v184
    %v860 = vunpack.c.l.b16 %v185
    %v861 = vunpack.c.h.b16 %v185
    %v862 = vunpack.c.l.b16 %v186
    %v863 = vunpack.c.h.b16 %v186
    %v864 = vunpack.c.l.b16 %v187
    %v865 = vunpack.c.h.b16 %v187
    %v866 = vunpack.c.l.b16 %v188
    %v867 = vunpack.c.h.b16 %v188
    %v868 = vunpack.c.l.b16 %v189
    %v869 = vunpack.c.h.b16 %v189
    %v870 = vunpack.c.l.b16 %v190
    %v871 = vunpack.c.h.b16 %v190
    %v872 = vunpack.c.l.b16 %v191
    %v873 = vunpack.c.h.b16 %v191
    %v874 = vunpack.c.l.b16 %v192
    %v875 = vunpack.c.h.b16 %v192
    %v876 = vunpack.c.l.b16 %v193
    %v877 = vunpack.c.h.b16 %v193
    %v878 = vunpack.c.l.b16 %v194
    %v879 = vunpack.c.h.b16 %v194
    %v880 = vunpack.c.l.b16 %v195
    %v881 = vunpack.c.h.b16 %v195
    %v882 = vunpack.c.l.b16 %v196
    %v883 = vunpack.c.h.b16 %v196
    %v884 = vunpack.c.l.b16 %v197
    %v885 = vunpack.c.h.b16 %v197
    %v886 = vunpack.c.l.b16 %v198
    %v887 = vunpack.c.h.b16 %v198
    %v888 = vunpack.c.l.b16 %v199
    %v889 = vunpack.c.h.b16 %v199
    %v890 = vunpack.c.l.b16 %v200
    %v891 = vunpack.c.h.b16 %v200
    %v892 = vunpack.c.l.b16 %v201
    %v893 = vunpack.c.h.b16 %v201
    %v894 = vunpack.c.l.b16 %v202
    %v895 = vunpack.c.h.b16 %v202
    %v896 = vunpack.c.l.b16 %v203
    %v897 = vunpack.c.h.b16 %v203
    %v898 = vunpack.c.l.b16 %v204
    %v899 = vunpack.c.h.b16 %v204
    %v900 = vunpack.c.l.b16 %v205
    %v901 = vunpack.c.h.b16 %v205
    %v902 = vunpack.c.l.b16 %v206
    %v903 = vunpack.c.h.b16 %v206
    %v904 = vunpack.c.l.b16 %v207
    %v905 = vunpack.c.h.b16 %v207
    %v906 = vunpack.c.l.b16 %v208
    %v907 = vunpack.c.h.b16 %v208
    %v908 = vunpack.c.l.b16 %v209
    %v909 = vunpack.c.h.b16 %v209
    %v910 = vunpack.c.l.b16 %v210
    %v911 = vunpack.c.h.b16 %v210
    %v912 = vunpack.c.l.b16 %v211
    %v913 = vunpack.c.h.b16 %v211
    %v914 = vunpack.c.l.b16 %v212
    %v915 = vunpack.c.h.b16 %v212
    %v916 = vunpack.c.l.b16 %v213
    %v917 = vunpack.c.h.b16 %v213
    %v918 = vunpack.c.l.b16 %v214
    %v919 = vunpack.c.h.b16 %v214
    %v920 = vunpack.c.l.b16 %v215
    %v921 = vunpack.c.h.b16 %v215
    %v922 = vunpack.c.l.b16 %v216
    %v923 = vunpack.c.h.b16 %v216
    %v924 = vunpack.c.l.b16 %v217
    %v925 = vunpack.c.h.b16 %v217
    %v926 = vunpack.c.l.b16 %v218
    %v927 = vunpack.c.h.b16 %v218
    %v928 = vunpack.c.l.b16 %v219
    %v929 = vunpack.c.h.b16 %v219
    %v930 = vunpack.c.l.b16 %v220
    %v931 = vunpack.c.h.b16 %v220
    %v932 = vunpack.c.l.b16 %v221
    %v933 = vunpack.c.h.b16 %v221
    %v934 = vunpack.c.l.b16 %v222
    %v935 = vunpack.c.h.b16 %v222
    %v936 = vunpack.c.l.b16 %v223
    %v937 = vunpack.c.h.b16 %v223
    %v938 = vpack.c.b16 %v540, %v538
    %v939 = vpack.c.b16 %v541, %v539
    %v940 = vpack.c.b16 %v544, %v542
    %v941 = vpack.c.b16 %v545, %v543
    %v942 = vpack.c.b16 %v548, %v546
    %v943 = vpack.c.b16 %v549, %v547
    %v944 = vpack.c.b16 %v552, %v550
    %v945 = vpack.c.b16 %v553, %v551
    %v946 = vpack.c.b16 %v556, %v554
    %v947 = vpack.c.b16 %v557, %v555
    %v948 = vpack.c.b16 %v560, %v558
    %v949 = vpack.c.b16 %v561, %v559
    %v950 = vpack.c.b16 %v564, %v562
    %v951 = vpack.c.b16 %v565, %v563
    %v952 = vpack.c.b16 %v568, %v566
    %v953 = vpack.c.b16 %v569, %v567
    %v954 = vpack.c.b16 %v572, %v570
    %v955 = vpack.c.b16 %v573, %v571
    %v956 = vpack.c.b16 %v576, %v574
    %v957 = vpack.c.b16 %v577, %v575
    %v958 = vpack.c.b16 %v580, %v578
    %v959 = vpack.c.b16 %v581, %v579
    %v960 = vpack.c.b16 %v584, %v582
    %v961 = vpack.c.b16 %v585, %v583
    %v962 = vpack.c.b16 %v588, %v586
    %v963 = vpack.c.b16 %v589, %v587
    %v964 = vpack.c.b16 %v592, %v590
    %v965 = vpack.c.b16 %v593, %v591
    %v966 = vpack.c.b16 %v596, %v594
    %v967 = vpack.c.b16 %v597, %v595
    %v968 = vpack.c.b16 %v600, %v598
    %v969 = vpack.c.b16 %v601, %v599
    %v970 = vpack.c.b16 %v604, %v602
    %v971 = vpack.c.b16 %v605, %v603
    %v972 = vpack.c.b16 %v608, %v606
    %v973 = vpack.c.b16 %v609, %v607
    %v974 = vpack.c.b16 %v612, %v610
    %v975 = vpack.c.b16 %v613, %v611
    %v976 = vpack.c.b16 %v616, %v614
    %v977 = vpack.c.b16 %v617, %v615
    %v978 = vpack.c.b16 %v620, %v618
    %v979 = vpack.c.b16 %v621, %v619
    %v980 = vpack.c.b16 %v624, %v622
    %v981 = vpack.c.b16 %v625, %v623
    %v982 = vpack.c.b16 %v628, %v626
    %v983 = vpack.c.b16 %v629, %v627
    %v984 = vpack.c.b16 %v632, %v630
    %v985 = vpack.c.b16 %v633, %v631
    %v986 = vpack.c.b16 %v636, %v634
    %v987 = vpack.c.b16 %v637, %v635
    %v988 = vpack.c.b16 %v640, %v638
    %v989 = vpack.c.b16 %v641, %v639
    %v990 = vpack.c.b16 %v644, %v642
    %v991 = vpack.c.b16 %v645, %v643
    %v992 = vpack.c.b16 %v648, %v646
    %v993 = vpack.c.b16 %v649, %v647
    %v994 = vpack.c.b16 %v652, %v650
    %v995 = vpack.c.b16 %v653, %v651
    %v996 = vpack.c.b16 %v656, %v654
    %v997 = vpack.c.b16 %v657, %v655
    %v998 = vpack.c.b16 %v660, %v658
    %v999 = vpack.c.b16 %v661, %v659
    %v1000 = vpack.c.b16 %v664, %v662
    %v1001 = vpack.c.b16 %v665, %v663
    %v1002 = vpack.c.b16 %v668, %v666
    %v1003 = vpack.c.b16 %v669, %v667
    %v1004 = vpack.c.b16 %v672, %v670
    %v1005 = vpack.c.b16 %v673, %v671
    %v1006 = vpack.c.b16 %v676, %v674
    %v1007 = vpack.c.b16 %v677, %v675
    %v1008 = vpack.c.b16 %v680, %v678
    %v1009 = vpack.c.b16 %v681, %v679
    %v1010 = vpack.c.b16 %v684, %v682
    %v1011 = vpack.c.b16 %v685, %v683
    %v1012 = vpack.c.b16 %v688, %v686
    %v1013 = vpack.c.b16 %v689, %v687
    %v1014 = vpack.c.b16 %v692, %v690
    %v1015 = vpack.c.b16 %v693, %v691
    %v1016 = vpack.c.b16 %v696, %v694
    %v1017 = vpack.c.b16 %v697, %v695
    %v1018 = vpack.c.b16 %v700, %v698
    %v1019 = vpack.c.b16 %v701, %v699
    %v1020 = vpack.c.b16 %v704, %v702
    %v1021 = vpack.c.b16 %v705, %v703
    %v1022 = vpack.c.b16 %v708, %v706
    %v1023 = vpack.c.b16 %v709, %v707
    %v1024 = vpack.c.b16 %v712, %v710
    %v1025 = vpack.c.b16 %v713, %v711
    %v1026 = vpack.c.b16 %v716, %v714
    %v1027 = vpack.c.b16 %v717, %v715
    %v1028 = vpack.c.b16 %v720, %v718
    %v1029 = vpack.c.b16 %v721, %v719
    %v1030 = vpack.c.b16 %v724, %v722
    %v1031 = vpack.c.b16 %v725, %v723
    %v1032 = vpack.c.b16 %v728, %v726
    %v1033 = vpack.c.b16 %v729, %v727
    %v1034 = vpack.c.b16 %v732, %v730
    %v1035 = vpack.c.b16 %v733, %v731
    %v1036 = vpack.c.b16 %v736, %v734
    %v1037 = vpack.c.b16 %v737, %v735
    %v1038 = vpack.c.b16 %v740, %v738
    %v1039 = vpack.c.b16 %v741, %v739
    %v1040 = vpack.c.b16 %v744, %v742
    %v1041 = vpack.c.b16 %v745, %v743
    %v1042 = vpack.c.b16 %v748, %v746
    %v1043 = vpack.c.b16 %v749, %v747
    %v1044 = vpack.c.b16 %v752, %v750
    %v1045 = vpack.c.b16 %v753, %v751
    %v1046 = vpack.c.b16 %v756, %v754
    %v1047 = vpack.c.b16 %v757, %v755
    %v1048 = vpack.c.b16 %v760, %v758
    %v1049 = vpack.c.b16 %v761, %v759
    %v1050 = vpack.c.b16 %v764, %v762
    %v1051 = vpack.c.b16 %v765, %v763
    %v1052 = vpack.c.b16 %v768, %v766
    %v1053 = vpack.c.b16 %v769, %v767
    %v1054 = vpack.c.b16 %v772, %v770
    %v1055 = vpack.c.b16 %v773, %v771
    %v1056 = vpack.c.b16 %v776, %v774
    %v1057 = vpack.c.b16 %v777, %v775
    %v1058 = vpack.c.b16 %v780, %v778
    %v1059 = vpack.c.b16 %v781, %v779
    %v1060 = vpack.c.b16 %v784, %v782
    %v1061 = vpack.c.b16 %v785, %v783
    %v1062 = vpack.c.b16 %v788, %v786
    %v1063 = vpack.c.b16 %v789, %v787
    %v1064 = vpack.c.b16 %v792, %v790
    %v1065 = vpack.c.b16 %v793, %v791
    %v1066 = vpack.c.b16 %v796, %v794
    %v1067 = vpack.c.b16 %v797, %v795
    %v1068 = vpack.c.b16 %v800, %v798
    %v1069 = vpack.c.b16 %v801, %v799
    %v1070 = vpack.c.b16 %v804, %v802
    %v1071 = vpack.c.b16 %v805, %v803
    %v1072 = vpack.c.b16 %v808, %v806
    %v1073 = vpack.c.b16 %v809, %v807
    %v1074 = vpack.c.b16 %v812, %v810
    %v1075 = vpack.c.b16 %v813, %v811
    %v1076 = vpack.c.b16 %v816, %v814
    %v1077 = vpack.c.b16 %v817, %v815
    %v1078 = vpack.c.b16 %v820, %v818
    %v1079 = vpack.c.b16 %v821, %v819
    %v1080 = vpack.c.b16 %v824, %v822
    %v1081 = vpack.c.b16 %v825, %v823
    %v1082 = vpack.c.b16 %v828, %v826
    %v1083 = vpack.c.b16 %v829, %v827
    %v1084 = vpack.c.b16 %v832, %v830
    %v1085 = vpack.c.b16 %v833, %v831
    %v1086 = vpack.c.b16 %v836, %v834
    %v1087 = vpack.c.b16 %v837, %v835
    %v1088 = vpack.c.b16 %v840, %v838
    %v1089 = vpack.c.b16 %v841, %v839
    %v1090 = vpack.c.b16 %v844, %v842
    %v1091 = vpack.c.b16 %v845, %v843
    %v1092 = vpack.c.b16 %v848, %v846
    %v1093 = vpack.c.b16 %v849, %v847
    %v1094 = vpack.c.b16 %v852, %v850
    %v1095 = vpack.c.b16 %v853, %v851
    %v1096 = vpack.c.b16 %v856, %v854
    %v1097 = vpack.c.b16 %v857, %v855
    %v1098 = vpack.c.b16 %v860, %v858
    %v1099 = vpack.c.b16 %v861, %v859
    %v1100 = vpack.c.b16 %v864, %v862
    %v1101 = vpack.c.b16 %v865, %v863
    %v1102 = vpack.c.b16 %v868, %v866
    %v1103 = vpack.c.b16 %v869, %v867
    %v1104 = vpack.c.b16 %v872, %v870
    %v1105 = vpack.c.b16 %v873, %v871
    %v1106 = vpack.c.b16 %v876, %v874
    %v1107 = vpack.c.b16 %v877, %v875
    %v1108 = vpack.c.b16 %v880, %v878
    %v1109 = vpack.c.b16 %v881, %v879
    %v1110 = vpack.c.b16 %v884, %v882
    %v1111 = vpack.c.b16 %v885, %v883
    %v1112 = vpack.c.b16 %v888, %v886
    %v1113 = vpack.c.b16 %v889, %v887
    %v1114 = vpack.c.b16 %v892, %v890
    %v1115 = vpack.c.b16 %v893, %v891
    %v1116 = vpack.c.b16 %v896, %v894
    %v1117 = vpack.c.b16 %v897, %v895
    %v1118 = vpack.c.b16 %v900, %v898
    %v1119 = vpack.c.b16 %v901, %v899
    %v1120 = vpack.c.b16 %v904, %v902
    %v1121 = vpack.c.b16 %v905, %v903
    %v1122 = vpack.c.b16 %v908, %v906
    %v1123 = vpack.c.b16 %v909, %v907
    %v1124 = vpack.c.b16 %v912, %v910
    %v1125 = vpack.c.b16 %v913, %v911
    %v1126 = vpack.c.b16 %v916, %v914
    %v1127 = vpack.c.b16 %v917, %v915
    %v1128 = vpack.c.b16 %v920, %v918
    %v1129 = vpack.c.b16 %v921, %v919
    %v1130 = vpack.c.b16 %v924, %v922
    %v1131 = vpack.c.b16 %v925, %v923
    %v1132 = vpack.c.b16 %v928, %v926
    %v1133 = vpack.c.b16 %v929, %v927
    %v1134 = vpack.c.b16 %v932, %v930
    %v1135 = vpack.c.b16 %v933, %v931
    %v1136 = vpack.c.b16 %v936, %v934
    %v1137 = vpack.c.b16 %v937, %v935
    %vm1338 = vcmask 523264
    %v1340 = vsel %vm1338, %v316, 0
    %1342 = vmatprep.subr.bf16.mxu0 %v939
    %1343 = vmatpush1.bf16.msra.mxu0 %v938
    %1344 = vmatprep.subr.bf16.mxu0 %v941
    %1345 = vmatpush1.bf16.msra.mxu0 %v940
    %1346 = vmatprep.subr.bf16.mxu0 %v943
    %1347 = vmatpush1.bf16.msra.mxu0 %v942
    %1348 = vmatprep.subr.bf16.mxu0 %v945
    %1349 = vmatpush1.bf16.msra.mxu0 %v944
    %1350 = vmatprep.subr.bf16.mxu0 %v947
    %1351 = vmatpush1.bf16.msra.mxu0 %v946
    %1352 = vmatprep.subr.bf16.mxu0 %v949
    %1353 = vmatpush1.bf16.msra.mxu0 %v948
    %1354 = vmatprep.subr.bf16.mxu0 %v951
    %1355 = vmatpush1.bf16.msra.mxu0 %v950
    %1356 = vmatprep.subr.bf16.mxu0 %v953
    %1357 = vmatpush1.bf16.msra.mxu0 %v952
    %1358 = vmatprep.subr.bf16.mxu0 %v955
    %1359 = vmatpush1.bf16.msra.mxu0 %v954
    %1360 = vmatprep.subr.bf16.mxu0 %v957
    %1361 = vmatpush1.bf16.msra.mxu0 %v956
    %1362 = vmatprep.subr.bf16.mxu0 %v959
    %1363 = vmatpush1.bf16.msra.mxu0 %v958
    %1364 = vmatprep.subr.bf16.mxu0 %v961
    %1365 = vmatpush1.bf16.msra.mxu0 %v960
    %1366 = vmatprep.subr.bf16.mxu0 %v963
    %1367 = vmatpush1.bf16.msra.mxu0 %v962
    %1368 = vmatprep.subr.bf16.mxu0 %v965
    %1369 = vmatpush1.bf16.msra.mxu0 %v964
    %1370 = vmatprep.subr.bf16.mxu0 %v967
    %1371 = vmatpush1.bf16.msra.mxu0 %v966
    %1372 = vmatprep.subr.bf16.mxu0 %v969
    %1373 = vmatpush1.bf16.msra.mxu0 %v968
    %1374 = vmatprep.mubr.bf16.mxu0 %v275
    %1375 = vmatmul.mubr.bf16.gmra.mrb[0].mxu0 %v261
    %v1376 = vpop.f32.mrb[0].mxu0
    %v1377 = vadd.f32 %v229, %v1376
    %v1378 = vpop.f32.mrb[0].mxu0
    %v1379 = vadd.f32 %v233, %v1378
    %v1380 = vpop.f32.mrb[0].mxu0
    %v1381 = vpop.f32.mrb[0].mxu0
    %1382 = vdwg.mxu0
    %1383 = vmatprep.subr.bf16.mxu0 %v971
    %1384 = vmatpush1.bf16.msra.mxu0 %v970
    %1385 = vmatprep.subr.bf16.mxu0 %v973
    %1386 = vmatpush1.bf16.msra.mxu0 %v972
    %1387 = vmatprep.subr.bf16.mxu0 %v975
    %1388 = vmatpush1.bf16.msra.mxu0 %v974
    %1389 = vmatprep.subr.bf16.mxu0 %v977
    %1390 = vmatpush1.bf16.msra.mxu0 %v976
    %1391 = vmatprep.subr.bf16.mxu0 %v979
    %1392 = vmatpush1.bf16.msra.mxu0 %v978
    %1393 = vmatprep.subr.bf16.mxu0 %v981
    %1394 = vmatpush1.bf16.msra.mxu0 %v980
    %1395 = vmatprep.subr.bf16.mxu0 %v983
    %1396 = vmatpush1.bf16.msra.mxu0 %v982
    %1397 = vmatprep.subr.bf16.mxu0 %v985
    %1398 = vmatpush1.bf16.msra.mxu0 %v984
    %1399 = vmatprep.subr.bf16.mxu0 %v987
    %1400 = vmatpush1.bf16.msra.mxu0 %v986
    %1401 = vmatprep.subr.bf16.mxu0 %v989
    %1402 = vmatpush1.bf16.msra.mxu0 %v988
    %1403 = vmatprep.subr.bf16.mxu0 %v991
    %1404 = vmatpush1.bf16.msra.mxu0 %v990
    %1405 = vmatprep.subr.bf16.mxu0 %v993
    %1406 = vmatpush1.bf16.msra.mxu0 %v992
    %1407 = vmatprep.subr.bf16.mxu0 %v995
    %1408 = vmatpush1.bf16.msra.mxu0 %v994
    %1409 = vmatprep.subr.bf16.mxu0 %v997
    %1410 = vmatpush1.bf16.msra.mxu0 %v996
    %1411 = vmatprep.subr.bf16.mxu0 %v999
    %1412 = vmatpush1.bf16.msra.mxu0 %v998
    %1413 = vmatprep.subr.bf16.mxu0 %v1001
    %1414 = vmatpush1.bf16.msra.mxu0 %v1000
    %1415 = vmatprep.mubr.bf16.mxu0 %v285
    %1416 = vmatmul.mubr.bf16.gmra.mrb[0].mxu0 %v283
    %v1417 = vpop.f32.mrb[0].mxu0
    %v1418 = vadd.f32 %v1377, %v1417
    %v1419 = vpop.f32.mrb[0].mxu0
    %v1420 = vadd.f32 %v1379, %v1419
    %v1421 = vpop.f32.mrb[0].mxu0
    %v1422 = vpop.f32.mrb[0].mxu0
    %1423 = vdwg.mxu0
    %1424 = vmatprep.subr.bf16.mxu0 %v1003
    %1425 = vmatpush1.bf16.msra.mxu0 %v1002
    %1426 = vmatprep.subr.bf16.mxu0 %v1005
    %1427 = vmatpush1.bf16.msra.mxu0 %v1004
    %1428 = vmatprep.subr.bf16.mxu0 %v1007
    %1429 = vmatpush1.bf16.msra.mxu0 %v1006
    %1430 = vmatprep.subr.bf16.mxu0 %v1009
    %1431 = vmatpush1.bf16.msra.mxu0 %v1008
    %1432 = vmatprep.subr.bf16.mxu0 %v1011
    %1433 = vmatpush1.bf16.msra.mxu0 %v1010
    %1434 = vmatprep.subr.bf16.mxu0 %v1013
    %1435 = vmatpush1.bf16.msra.mxu0 %v1012
    %1436 = vmatprep.subr.bf16.mxu0 %v1015
    %1437 = vmatpush1.bf16.msra.mxu0 %v1014
    %1438 = vmatprep.subr.bf16.mxu0 %v1017
    %1439 = vmatpush1.bf16.msra.mxu0 %v1016
    %1440 = vmatprep.subr.bf16.mxu0 %v1019
    %1441 = vmatpush1.bf16.msra.mxu0 %v1018
    %1442 = vmatprep.subr.bf16.mxu0 %v1021
    %1443 = vmatpush1.bf16.msra.mxu0 %v1020
    %1444 = vmatprep.subr.bf16.mxu0 %v1023
    %1445 = vmatpush1.bf16.msra.mxu0 %v1022
    %1446 = vmatprep.subr.bf16.mxu0 %v1025
    %1447 = vmatpush1.bf16.msra.mxu0 %v1024
    %1448 = vmatprep.subr.bf16.mxu0 %v1027
    %1449 = vmatpush1.bf16.msra.mxu0 %v1026
    %1450 = vmatprep.subr.bf16.mxu0 %v1029
    %1451 = vmatpush1.bf16.msra.mxu0 %v1028
    %1452 = vmatprep.subr.bf16.mxu0 %v1031
    %1453 = vmatpush1.bf16.msra.mxu0 %v1030
    %1454 = vmatprep.subr.bf16.mxu0 %v1033
    %1455 = vmatpush1.bf16.msra.mxu0 %v1032
    %1456 = vmatprep.mubr.bf16.mxu0 %v282
    %1457 = vmatmul.mubr.bf16.gmra.mrb[0].mxu0 %v268
    %v1458 = vpop.f32.mrb[0].mxu0
    %v1459 = vadd.f32 %v1418, %v1458
    %v1460 = vpop.f32.mrb[0].mxu0
    %v1461 = vadd.f32 %v1420, %v1460
    %v1462 = vpop.f32.mrb[0].mxu0
    %v1463 = vpop.f32.mrb[0].mxu0
    %1464 = vdwg.mxu0
    %1465 = vmatprep.subr.bf16.mxu0 %v1035
    %1466 = vmatpush1.bf16.msra.mxu0 %v1034
    %1467 = vmatprep.subr.bf16.mxu0 %v1037
    %1468 = vmatpush1.bf16.msra.mxu0 %v1036
    %1469 = vmatprep.subr.bf16.mxu0 %v1039
    %1470 = vmatpush1.bf16.msra.mxu0 %v1038
    %1471 = vmatprep.subr.bf16.mxu0 %v1041
    %1472 = vmatpush1.bf16.msra.mxu0 %v1040
    %1473 = vmatprep.subr.bf16.mxu0 %v1043
    %1474 = vmatpush1.bf16.msra.mxu0 %v1042
    %1475 = vmatprep.subr.bf16.mxu0 %v1045
    %1476 = vmatpush1.bf16.msra.mxu0 %v1044
    %1477 = vmatprep.subr.bf16.mxu0 %v1047
    %1478 = vmatpush1.bf16.msra.mxu0 %v1046
    %1479 = vmatprep.subr.bf16.mxu0 %v1049
    %1480 = vmatpush1.bf16.msra.mxu0 %v1048
    %1481 = vmatprep.subr.bf16.mxu0 %v1051
    %1482 = vmatpush1.bf16.msra.mxu0 %v1050
    %1483 = vmatprep.subr.bf16.mxu0 %v1053
    %1484 = vmatpush1.bf16.msra.mxu0 %v1052
    %1485 = vmatprep.subr.bf16.mxu0 %v1055
    %1486 = vmatpush1.bf16.msra.mxu0 %v1054
    %1487 = vmatprep.subr.bf16.mxu0 %v1057
    %1488 = vmatpush1.bf16.msra.mxu0 %v1056
    %1489 = vmatprep.subr.bf16.mxu0 %v1059
    %1490 = vmatpush1.bf16.msra.mxu0 %v1058
    %1491 = vmatprep.subr.bf16.mxu0 %v1061
    %1492 = vmatpush1.bf16.msra.mxu0 %v1060
    %1493 = vmatprep.subr.bf16.mxu0 %v1063
    %1494 = vmatpush1.bf16.msra.mxu0 %v1062
    %1495 = vmatprep.subr.bf16.mxu0 %v1065
    %1496 = vmatpush1.bf16.msra.mxu0 %v1064
    %1497 = vmatprep.mubr.bf16.mxu0 %v286
    %1498 = vmatmul.mubr.bf16.gmra.mrb[0].mxu0 %v284
    %v1499 = vpop.f32.mrb[0].mxu0
    %v1500 = vadd.f32 %v1459, %v1499
    %v1501 = vpop.f32.mrb[0].mxu0
    %v1502 = vadd.f32 %v1461, %v1501
    %v1503 = vpop.f32.mrb[0].mxu0
    %v1504 = vpop.f32.mrb[0].mxu0
    %1505 = vdwg.mxu0
    %1506 = vmatprep.subr.bf16.mxu0 %v1067
    %1507 = vmatpush1.bf16.msra.mxu0 %v1066
    %1508 = vmatprep.subr.bf16.mxu0 %v1069
    %1509 = vmatpush1.bf16.msra.mxu0 %v1068
    %1510 = vmatprep.subr.bf16.mxu0 %v1071
    %1511 = vmatpush1.bf16.msra.mxu0 %v1070
    %1512 = vmatprep.subr.bf16.mxu0 %v1073
    %1513 = vmatpush1.bf16.msra.mxu0 %v1072
    %1514 = vmatprep.subr.bf16.mxu0 %v1075
    %1515 = vmatpush1.bf16.msra.mxu0 %v1074
    %1516 = vmatprep.subr.bf16.mxu0 %v1077
    %1517 = vmatpush1.bf16.msra.mxu0 %v1076
    %1518 = vmatprep.subr.bf16.mxu0 %v1079
    %1519 = vmatpush1.bf16.msra.mxu0 %v1078
    %1520 = vmatprep.subr.bf16.mxu0 %v1081
    %1521 = vmatpush1.bf16.msra.mxu0 %v1080
    %1522 = vmatprep.subr.bf16.mxu0 %v1083
    %1523 = vmatpush1.bf16.msra.mxu0 %v1082
    %1524 = vmatprep.subr.bf16.mxu0 %v1085
    %1525 = vmatpush1.bf16.msra.mxu0 %v1084
    %1526 = vmatprep.subr.bf16.mxu0 %v1087
    %1527 = vmatpush1.bf16.msra.mxu0 %v1086
    %1528 = vmatprep.subr.bf16.mxu0 %v1089
    %1529 = vmatpush1.bf16.msra.mxu0 %v1088
    %1530 = vmatprep.subr.bf16.mxu0 %v1091
    %1531 = vmatpush1.bf16.msra.mxu0 %v1090
    %1532 = vmatprep.subr.bf16.mxu0 %v1093
    %1533 = vmatpush1.bf16.msra.mxu0 %v1092
    %1534 = vmatprep.subr.bf16.mxu0 %v1095
    %1535 = vmatpush1.bf16.msra.mxu0 %v1094
    %1536 = vmatprep.subr.bf16.mxu0 %v1097
    %1537 = vmatpush1.bf16.msra.mxu0 %v1096
    %1538 = vmatprep.mubr.bf16.mxu0 %v323
    %1539 = vmatmul.mubr.bf16.gmra.mrb[0].mxu0 %v309
    %v1540 = vpop.f32.mrb[0].mxu0
    %v1541 = vadd.f32 %v1500, %v1540
    %v1542 = vpop.f32.mrb[0].mxu0
    %v1543 = vadd.f32 %v1502, %v1542
    %v1544 = vpop.f32.mrb[0].mxu0
    %v1545 = vpop.f32.mrb[0].mxu0
    %1546 = vdwg.mxu0
    %1547 = vmatprep.subr.bf16.mxu0 %v1099
    %1548 = vmatpush1.bf16.msra.mxu0 %v1098
    %1549 = vmatprep.subr.bf16.mxu0 %v1101
    %1550 = vmatpush1.bf16.msra.mxu0 %v1100
    %1551 = vmatprep.subr.bf16.mxu0 %v1103
    %1552 = vmatpush1.bf16.msra.mxu0 %v1102
    %1553 = vmatprep.subr.bf16.mxu0 %v1105
    %1554 = vmatpush1.bf16.msra.mxu0 %v1104
    %1555 = vmatprep.subr.bf16.mxu0 %v1107
    %1556 = vmatpush1.bf16.msra.mxu0 %v1106
    %1557 = vmatprep.subr.bf16.mxu0 %v1109
    %1558 = vmatpush1.bf16.msra.mxu0 %v1108
    %1559 = vmatprep.subr.bf16.mxu0 %v1111
    %1560 = vmatpush1.bf16.msra.mxu0 %v1110
    %1561 = vmatprep.subr.bf16.mxu0 %v1113
    %1562 = vmatpush1.bf16.msra.mxu0 %v1112
    %1563 = vmatprep.subr.bf16.mxu0 %v1115
    %1564 = vmatpush1.bf16.msra.mxu0 %v1114
    %1565 = vmatprep.subr.bf16.mxu0 %v1117
    %1566 = vmatpush1.bf16.msra.mxu0 %v1116
    %1567 = vmatprep.subr.bf16.mxu0 %v1119
    %1568 = vmatpush1.bf16.msra.mxu0 %v1118
    %1569 = vmatprep.subr.bf16.mxu0 %v1121
    %1570 = vmatpush1.bf16.msra.mxu0 %v1120
    %1571 = vmatprep.subr.bf16.mxu0 %v1123
    %1572 = vmatpush1.bf16.msra.mxu0 %v1122
    %1573 = vmatprep.subr.bf16.mxu0 %v1125
    %1574 = vmatpush1.bf16.msra.mxu0 %v1124
    %1575 = vmatprep.subr.bf16.mxu0 %v1127
    %1576 = vmatpush1.bf16.msra.mxu0 %v1126
    %1577 = vmatprep.subr.bf16.mxu0 %v1129
    %1578 = vmatpush1.bf16.msra.mxu0 %v1128
    %1579 = vmatprep.mubr.bf16.mxu0 %v325
    %1580 = vmatmul.mubr.bf16.gmra.mrb[0].mxu0 %v324
    %v1581 = vpop.f32.mrb[0].mxu0
    %v1582 = vadd.f32 %v1541, %v1581
    %v1583 = vpop.f32.mrb[0].mxu0
    %v1584 = vadd.f32 %v1543, %v1583
    %v1585 = vpop.f32.mrb[0].mxu0
    %v1586 = vpop.f32.mrb[0].mxu0
    %1587 = vdwg.mxu0
    %1588 = vmatprep.subr.bf16.mxu0 %v1131
    %1589 = vmatpush1.bf16.msra.mxu0 %v1130
    %1590 = vmatprep.subr.bf16.mxu0 %v1133
    %1591 = vmatpush1.bf16.msra.mxu0 %v1132
    %1592 = vmatprep.subr.bf16.mxu0 %v1135
    %1593 = vmatpush1.bf16.msra.mxu0 %v1134
    %1594 = vmatprep.subr.bf16.mxu0 %v1137
    %1595 = vmatpush1.bf16.msra.mxu0 %v1136
    %1596 = vmatprep.subr.bf16.mxu0 0
    %1597 = vmatpush1.bf16.msra.mxu0 0
    %1598 = vmatprep.subr.bf16.mxu0 0
    %1599 = vmatpush1.bf16.msra.mxu0 0
    %1600 = vmatprep.subr.bf16.mxu0 0
    %1601 = vmatpush1.bf16.msra.mxu0 0
    %1602 = vmatprep.subr.bf16.mxu0 0
    %1603 = vmatpush1.bf16.msra.mxu0 0
    %1604 = vmatprep.subr.bf16.mxu0 0
    %1605 = vmatpush1.bf16.msra.mxu0 0
    %1606 = vmatprep.subr.bf16.mxu0 0
    %1607 = vmatpush1.bf16.msra.mxu0 0
    %1608 = vmatprep.subr.bf16.mxu0 0
    %1609 = vmatpush1.bf16.msra.mxu0 0
    %1610 = vmatprep.subr.bf16.mxu0 0
    %1611 = vmatpush1.bf16.msra.mxu0 0
    %1612 = vmatprep.subr.bf16.mxu0 0
    %1613 = vmatpush1.bf16.msra.mxu0 0
    %1614 = vmatprep.subr.bf16.mxu0 0
    %1615 = vmatpush1.bf16.msra.mxu0 0
    %1616 = vmatprep.subr.bf16.mxu0 0
    %1617 = vmatpush1.bf16.msra.mxu0 0
    %1618 = vmatprep.subr.bf16.mxu0 0
    %1619 = vmatpush1.bf16.msra.mxu0 0
    %1620 = vmatprep.mubr.bf16.mxu0 0
    %1621 = vmatmul.mubr.bf16.gmra.mrb[0].mxu0 %v1340
    %v1622 = vpop.f32.mrb[0].mxu0
    %v1623 = vadd.f32 %v1582, %v1622
    %v1624 = vpop.f32.mrb[0].mxu0
    %v1625 = vadd.f32 %v1584, %v1624
    %v1626 = vpop.f32.mrb[0].mxu0
    %v1627 = vpop.f32.mrb[0].mxu0
    %1628 = vdwg.mxu0
    %v1629 = vmax.f32 %v1623, 0.0
    %v1630 = vmax.f32 %v1625, 0.0
    %v1631 = vpack.c.bf16 %v1629, %v1629
    %v1632 = vpack.c.bf16 %v1630, %v1630
    %v1633 = vld [vmem:[%s3] sm:$0xf]
    %v1634 = vld [vmem:[%s3 + $0x4] sm:$0xf]
    %v1635 = vld [vmem:[%s3 + $0x8] sm:$0xf]
    %v1636 = vld [vmem:[%s3 + $0xc] sm:$0xf]
    %v1637 = vld [vmem:[%s3 + $0x10] sm:$0xf]
    %v1638 = vld [vmem:[%s3 + $0x14] sm:$0xf]
    %v1639 = vld [vmem:[%s3 + $0x18] sm:$0xf]
    %v1640 = vld [vmem:[%s3 + $0x1c] sm:$0xf]
    %v1641 = vld [vmem:[%s3 + $0x20] sm:$0xf]
    %v1642 = vld [vmem:[%s3 + $0x24] sm:$0xf]
    %v1643 = vld [vmem:[%s3 + $0x28] sm:$0xf]
    %v1644 = vld [vmem:[%s3 + $0x2c] sm:$0xf]
    %v1645 = vld [vmem:[%s3 + $0x30] sm:$0xf]
    %v1646 = vld [vmem:[%s3 + $0x34] sm:$0xf]
    %v1647 = vld [vmem:[%s3 + $0x38] sm:$0xf]
    %v1648 = vld [vmem:[%s3 + $0x3c] sm:$0xf]
    %v1649 = vld [vmem:[%s3 + $0x40] sm:$0xf]
    %v1650 = vld [vmem:[%s3 + $0x44] sm:$0xf]
    %v1651 = vld [vmem:[%s3 + $0x48] sm:$0xf]
    %v1652 = vld [vmem:[%s3 + $0x4c] sm:$0xf]
    %v1653 = vld [vmem:[%s3 + $0x50] sm:$0xf]
    %v1654 = vld [vmem:[%s3 + $0x54] sm:$0xf]
    %v1655 = vld [vmem:[%s3 + $0x58] sm:$0xf]
    %v1656 = vld [vmem:[%s3 + $0x5c] sm:$0xf]
    %v1657 = vld [vmem:[%s3 + $0x60] sm:$0xf]
    %v1658 = vld [vmem:[%s3 + $0x64] sm:$0xf]
    %v1659 = vld [vmem:[%s3 + $0x68] sm:$0xf]
    %v1660 = vld [vmem:[%s3 + $0x6c] sm:$0xf]
    %v1661 = vld [vmem:[%s3 + $0x70] sm:$0xf]
    %v1662 = vld [vmem:[%s3 + $0x74] sm:$0xf]
    %v1663 = vld [vmem:[%s3 + $0x78] sm:$0xf]
    %v1664 = vld [vmem:[%s3 + $0x7c] sm:$0xf]
    %v1665 = vld [vmem:[%s4] sm:$0x1]
    %v1667 = vlaneseq
    %v1668 = vshrl.u32 %v1667, 7
    %v1669 = vsub.s32 0, %v1668
    %v1670 = vrot.slane %v1665, %v1669
    %v1704 = vunpack.c.l.b16 %v1633
    %v1705 = vunpack.c.l.b16 %v1634
    %v1706 = vunpack.c.l.b16 %v1635
    %v1707 = vunpack.c.l.b16 %v1636
    %v1708 = vunpack.c.l.b16 %v1637
    %v1709 = vunpack.c.l.b16 %v1638
    %v1710 = vunpack.c.l.b16 %v1639
    %v1711 = vunpack.c.l.b16 %v1640
    %v1712 = vunpack.c.l.b16 %v1641
    %v1713 = vunpack.c.l.b16 %v1642
    %v1714 = vunpack.c.l.b16 %v1643
    %v1715 = vunpack.c.l.b16 %v1644
    %v1716 = vunpack.c.l.b16 %v1645
    %v1717 = vunpack.c.l.b16 %v1646
    %v1718 = vunpack.c.l.b16 %v1647
    %v1719 = vunpack.c.l.b16 %v1648
    %v1720 = vunpack.c.l.b16 %v1649
    %v1721 = vunpack.c.l.b16 %v1650
    %v1722 = vunpack.c.l.b16 %v1651
    %v1723 = vunpack.c.l.b16 %v1652
    %v1724 = vunpack.c.l.b16 %v1653
    %v1725 = vunpack.c.l.b16 %v1654
    %v1726 = vunpack.c.l.b16 %v1655
    %v1727 = vunpack.c.l.b16 %v1656
    %v1728 = vunpack.c.l.b16 %v1657
    %v1729 = vunpack.c.l.b16 %v1658
    %v1730 = vunpack.c.l.b16 %v1659
    %v1731 = vunpack.c.l.b16 %v1660
    %v1732 = vunpack.c.l.b16 %v1661
    %v1733 = vunpack.c.l.b16 %v1662
    %v1734 = vunpack.c.l.b16 %v1663
    %v1735 = vunpack.c.l.b16 %v1664
    %v1736 = vpack.c.b16 %v1705, %v1704
    %v1737 = vpack.c.b16 %v1707, %v1706
    %v1738 = vpack.c.b16 %v1709, %v1708
    %v1739 = vpack.c.b16 %v1711, %v1710
    %v1740 = vpack.c.b16 %v1713, %v1712
    %v1741 = vpack.c.b16 %v1715, %v1714
    %v1742 = vpack.c.b16 %v1717, %v1716
    %v1743 = vpack.c.b16 %v1719, %v1718
    %v1744 = vpack.c.b16 %v1721, %v1720
    %v1745 = vpack.c.b16 %v1723, %v1722
    %v1746 = vpack.c.b16 %v1725, %v1724
    %v1747 = vpack.c.b16 %v1727, %v1726
    %v1748 = vpack.c.b16 %v1729, %v1728
    %v1749 = vpack.c.b16 %v1731, %v1730
    %v1750 = vpack.c.b16 %v1733, %v1732
    %v1751 = vpack.c.b16 %v1735, %v1734
    %1768 = vmatprep.subr.bf16.mxu0 0
    %1769 = vmatpush1.bf16.msra.mxu0 %v1736
    %1770 = vmatprep.subr.bf16.mxu0 0
    %1771 = vmatpush1.bf16.msra.mxu0 %v1737
    %1772 = vmatprep.subr.bf16.mxu0 0
    %1773 = vmatpush1.bf16.msra.mxu0 %v1738
    %1774 = vmatprep.subr.bf16.mxu0 0
    %1775 = vmatpush1.bf16.msra.mxu0 %v1739
    %1776 = vmatprep.subr.bf16.mxu0 0
    %1777 = vmatpush1.bf16.msra.mxu0 %v1740
    %1778 = vmatprep.subr.bf16.mxu0 0
    %1779 = vmatpush1.bf16.msra.mxu0 %v1741
    %1780 = vmatprep.subr.bf16.mxu0 0
    %1781 = vmatpush1.bf16.msra.mxu0 %v1742
    %1782 = vmatprep.subr.bf16.mxu0 0
    %1783 = vmatpush1.bf16.msra.mxu0 %v1743
    %1784 = vmatprep.subr.bf16.mxu0 0
    %1785 = vmatpush1.bf16.msra.mxu0 %v1744
    %1786 = vmatprep.subr.bf16.mxu0 0
    %1787 = vmatpush1.bf16.msra.mxu0 %v1745
    %1788 = vmatprep.subr.bf16.mxu0 0
    %1789 = vmatpush1.bf16.msra.mxu0 %v1746
    %1790 = vmatprep.subr.bf16.mxu0 0
    %1791 = vmatpush1.bf16.msra.mxu0 %v1747
    %1792 = vmatprep.subr.bf16.mxu0 0
    %1793 = vmatpush1.bf16.msra.mxu0 %v1748
    %1794 = vmatprep.subr.bf16.mxu0 0
    %1795 = vmatpush1.bf16.msra.mxu0 %v1749
    %1796 = vmatprep.subr.bf16.mxu0 0
    %1797 = vmatpush1.bf16.msra.mxu0 %v1750
    %1798 = vmatprep.subr.bf16.mxu0 0
    %1799 = vmatpush1.bf16.msra.mxu0 %v1751
    %1800 = vmatprep.mubr.bf16.mxu0 %v1632
    %1801 = vmatmul.mubr.bf16.gmra.mrb[0].mxu0 %v1631
    %v1802 = vpop.f32.mrb[0].mxu0
    %v1803 = vadd.f32 %v1670, %v1802
    %v1804 = vpop.f32.mrb[0].mxu0
    %v1805 = vpop.f32.mrb[0].mxu0
    %v1806 = vpop.f32.mrb[0].mxu0
    %1807 = vdwg.mxu0
    %vm1808 = vcmask 9216
    %v1809 = vsel %vm1808, %v1803, -inf
    %1810 = vmax.xlane.f32.xlu0 %v1809
    %v1811 = vpop.xlane.xlu0 %1810
    %v1812 = vsub.f32 %v1803, %v1811
    %v1813 = vmul.f32 %v1812, 1.442695
    %v1814 = vpow.pop %v1813
    %v1815 = vsel %vm1808, %v1814, 0.0
    %1816 = vadd.xlane.f32.xlu0 %v1815
    %v1817 = vpop.xlane.xlu0 %1816
    %v1818 = vrcp.pop %v1817
    %v1819 = vmul.f32 %v1814, %v1818
    %1820 = vst.msk [vmem:[#allocation2] sm:$0x3] %vm1808, %v1819
    // Predicated region
    $region22: #{net_policy_gradient_forward.3} parent=1 // pred_check
      _
    $region23: #{net_policy_gradient_forward.3} parent=1 // pred_check_branch
      %1822 = sbr.rel (0) target = $region25
    $region24: #{net_policy_gradient_forward.3} parent=1 // pred_region
      %s1824 = ssub.s32 32, 32
      %1825 = vsyncadd [#allocation3], %s1824
      %s1827 = sshll.u32 [#allocation2], 4
      %s1828 = int_to_ptr.vmem [resolvable:$true] %s1827
      %1830 = dma.vmem_to_hbm [thread:$0]  %s1828, 32, %s5, [#allocation3]
    $region25: #{net_policy_gradient_forward.3} parent=1 // pred_fallthru
      _
    // Predicated region
    $region26: #{net_policy_gradient_forward.3} parent=1 // pred_check
      _
    $region27: #{net_policy_gradient_forward.3} parent=1 // pred_check_branch
      %1832 = sbr.rel (0) target = $region29
    $region28: #{net_policy_gradient_forward.3} parent=1 // pred_region
      %1833 = dma.done [#allocation3], 32
    $region29: #{net_policy_gradient_forward.3} parent=1 // pred_fallthru
      _
    %1834 = vsyncpa [#allocation3], 1

</llo_original>
